<compile_context>
chip_gen: v7x
topology: tpu7x:2x2x1
jax: 0.10.0
libtpu: 0.0.40
codegen_flags: <defaults>
</compile_context>

<pallas_src>
import functools

import numpy as np
import jax
import jax.numpy as jnp
from jax.experimental import pallas as pl
from jax.experimental.pallas import tpu as pltpu

_SQRT_HALF = 0.7071067811865476


def _erf(z):
    # Abramowitz & Stegun 7.1.26 rational approximation (|err| < 1.5e-7).
    # Divide replaced with EUP approx reciprocal (separate VLIW slot).
    a1, a2, a3, a4, a5 = (0.254829592, -0.284496736, 1.421413741,
                          -1.453152027, 1.061405429)
    p = 0.3275911
    s = jnp.where(z >= 0.0, 1.0, -1.0)
    za = jnp.abs(z)
    t = pl.reciprocal(1.0 + p * za, approx=True)
    poly = ((((a5 * t + a4) * t + a3) * t + a2) * t + a1) * t
    return s * (1.0 - poly * jnp.exp(-za * za))


def _gelu(x):
    # Matches torch.nn.functional.gelu (erf-based, default) semantics.
    return 0.5 * x * (1.0 + _erf(x * _SQRT_HALF))


# ---------------------- fused DFT matrices (2D, truncated) -----------------
def make_dft2_mats(H, W, m1, m2, dtype=jnp.bfloat16):
    # p = n1*W + n2 (row-major spatial flatten), q = k1*m2 + k2 (mode flatten)
    n1 = np.arange(H)[:, None, None, None]
    n2 = np.arange(W)[None, :, None, None]
    k1 = np.arange(m1)[None, None, :, None]
    k2 = np.arange(m2)[None, None, None, :]
    theta = 2.0 * np.pi * (n1 * k1 / H + n2 * k2 / W)      # (H, W, m1, m2)
    theta = theta.reshape(H * W, m1 * m2)
    c, s = np.cos(theta), np.sin(theta)
    # forward:  x @ f2 = [Xr | Xi]   (X = sum_p x[p] e^{-i theta})
    f2 = np.concatenate([c, -s], axis=1)                    # (HW, 2M)
    # inverse:  [Xr | Xi] @ g2 = Re( sum_q X[q] e^{+i theta} )   (1/HW folded
    # into the spectral weights on the host)
    g2 = np.concatenate([c.T, -s.T], axis=0)                # (2M, HW)
    return jnp.asarray(f2, dtype), jnp.asarray(g2, dtype)


# ------------------------------ fused kernel -------------------------------
def _fno2d_kernel(x_ref, w0_ref, b0_ref, wf_ref, f2_ref, g2_ref,
                  w1_ref, b1_ref, w2_ref, b2_ref, o_ref, h_ref,
                  *, L, Bt, width):
    mm = lambda a, b: jnp.dot(a, b, preferred_element_type=jnp.float32)

    # fc0 (channels-first), per batch element of the tile, writing into the
    # sublane-stacked (Bt*width, HW) f32 scratch.
    for b in range(Bt):
        h_ref[pl.ds(b * width, width), :] = mm(w0_ref[...], x_ref[b]) + b0_ref[...]

    # L x (truncated 2D DFT -> per-channel spectral scale (1/HW folded in)
    #      -> inverse DFT -> GELU), all on the stacked activation in VMEM.
    for l in range(L):
        u = mm(h_ref[...].astype(jnp.bfloat16), f2_ref[...]) * wf_ref[l]
        z = mm(u.astype(jnp.bfloat16), g2_ref[...])          # (Bt*width, HW)
        h_ref[...] = _gelu(z)

    # fc1 + GELU -> fc2, per batch element (keeps vreg pressure bounded).
    for b in range(Bt):
        hb = h_ref[pl.ds(b * width, width), :].astype(jnp.bfloat16)
        t = _gelu(mm(w1_ref[...], hb) + b1_ref[...])          # (128, HW)
        o_ref[b] = (mm(w2_ref[...], t.astype(jnp.bfloat16)) + b2_ref[...]
                    ).astype(o_ref.dtype)


def fno2d_forward(x, params, modes1, modes2, *, batch_tile=4):
    # x: (B, Cin, H, W)  NCHW, same as the PyTorch module.
    B, Cin, H, W = x.shape
    HW = H * W
    width = params['w0'].shape[1]
    Cout = params['w2'].shape[1]
    L = len(params['fourier'])
    M = modes1 * modes2

    # Batch tile: stack Bt elements per grid step onto the MXU M dimension.
    Bt = max(1, min(batch_tile, B))
    Bp = ((B + Bt - 1) // Bt) * Bt

    # Flatten spatial dims (free reshape), cast to bf16 at the host, and pad
    # the tiny Cin contraction to 8 sublanes / the batch to a multiple of Bt.
    Cin_p = ((Cin + 7) // 8) * 8
    x3 = x.reshape(B, Cin, HW).astype(jnp.bfloat16)
    pad_b, pad_c = Bp - B, Cin_p - Cin
    if pad_b or pad_c:
        x3 = jnp.pad(x3, ((0, pad_b), (0, pad_c), (0, 0)))

    # Channels-first (transposed) weights, bf16 for the MXU; biases as columns.
    w0t = params['w0'].T
    if pad_c:
        w0t = jnp.pad(w0t, ((0, 0), (0, pad_c)))
    w0t = w0t.astype(jnp.bfloat16)                            # (width, Cin_p)
    b0 = params['b0'].reshape(width, 1).astype(jnp.float32)
    w1t = params['w1'].T.astype(jnp.bfloat16)                 # (128, width)
    b1 = params['b1'].reshape(-1, 1).astype(jnp.float32)      # (128, 1)
    w2t = params['w2'].T.astype(jnp.bfloat16)                 # (Cout, 128)
    b2 = params['b2'].reshape(-1, 1).astype(jnp.float32)      # (Cout, 1)

    # Spectral weights: (L, width, M) -> duplicate for [Re|Im], fold 1/HW,
    # tile along the batch-stacked sublane axis -> (L, Bt*width, 2M), f32.
    wf = jnp.stack([w.reshape(width, M) for w in params['fourier']])
    wf2 = jnp.concatenate([wf, wf], axis=-1) * (1.0 / float(HW))
    wf2 = jnp.tile(wf2, (1, Bt, 1)).astype(jnp.float32)       # (L, Bt*width, 2M)

    f2, g2 = make_dft2_mats(H, W, modes1, modes2)             # (HW,2M), (2M,HW) bf16

    kernel = functools.partial(_fno2d_kernel, L=L, Bt=Bt, width=width)
    full = lambda shape: pl.BlockSpec(shape, lambda b: (0,) * len(shape))

    out = pl.pallas_call(
        kernel,
        out_shape=jax.ShapeDtypeStruct((Bp, Cout, HW), x.dtype),
        grid_spec=pltpu.PrefetchScalarGridSpec(
            num_scalar_prefetch=0,
            grid=(Bp // Bt,),
            in_specs=[
                pl.BlockSpec((Bt, Cin_p, HW), lambda b: (b, 0, 0)),  # x (bf16)
                full((width, Cin_p)),                                # w0^T
                full((width, 1)),                                    # b0
                full((L, Bt * width, 2 * M)),                        # spectral w
                full((HW, 2 * M)),                                   # fwd 2D DFT
                full((2 * M, HW)),                                   # inv 2D DFT
                full((128, width)),                                  # w1^T
                full((128, 1)),                                      # b1
                full((Cout, 128)),                                   # w2^T
                full((Cout, 1)),                                     # b2
            ],
            out_specs=pl.BlockSpec((Bt, Cout, HW), lambda b: (b, 0, 0)),
            scratch_shapes=[pltpu.VMEM((Bt * width, HW), jnp.float32)],
        ),
        compiler_params=pltpu.CompilerParams(
            dimension_semantics=("parallel",),
            vmem_limit_bytes=48 * 1024 * 1024),
    )(x3, w0t, b0, wf2, f2, g2, w1t, b1, w2t, b2)

    return out[:B].reshape(B, Cout, H, W)


# --------------------------- pure-JAX reference ----------------------------
def fno2d_reference(x, params, m1, m2):
    t = jnp.transpose(x, (0, 2, 3, 1))
    t = t @ params['w0'] + params['b0']
    h = jnp.transpose(t, (0, 3, 1, 2))
    for wspec in params['fourier']:
        x_ft = jnp.fft.fftn(h, axes=(-2, -1))
        out_ft = jnp.zeros_like(x_ft)
        out_ft = out_ft.at[:, :, :m1, :m2].set(x_ft[:, :, :m1, :m2] * wspec[None])
        h = jax.nn.gelu(jnp.fft.ifftn(out_ft, axes=(-2, -1)).real,
                        approximate=False)
    t = jnp.transpose(h, (0, 2, 3, 1))
    t = jax.nn.gelu(t @ params['w1'] + params['b1'], approximate=False)
    t = t @ params['w2'] + params['b2']
    return jnp.transpose(t, (0, 3, 1, 2))


if __name__ == "__main__":
    B, Cin, Cout = 2, 4, 3
    H = W = 16
    m1 = m2 = 8
    width = 32

    key = jax.random.PRNGKey(0)
    ks = jax.random.split(key, 12)

    def lin_init(kw, kb, fan_in, fan_out):
        bound = 1.0 / np.sqrt(fan_in)
        w = jax.random.uniform(kw, (fan_in, fan_out), jnp.float32, -bound, bound)
        b = jax.random.uniform(kb, (1, fan_out), jnp.float32, -bound, bound)
        return w, b

    w0, b0 = lin_init(ks[0], ks[1], Cin, width)     # fc0: Linear(in, width)
    w1, b1 = lin_init(ks[2], ks[3], width, 128)     # fc1: Linear(width, 128)
    w2, b2 = lin_init(ks[4], ks[5], 128, Cout)      # fc2: Linear(128, out)
    fourier = [jax.random.normal(ks[6 + i], (width, m1, m2), jnp.float32)
               for i in range(4)]                   # 4 x FourierLayer2D weights
    params = dict(w0=w0, b0=b0, w1=w1, b1=b1, w2=w2, b2=b2, fourier=fourier)

    x = jax.random.normal(ks[10], (B, Cin, H, W), jnp.float32)

    out = jax.block_until_ready(fno2d_forward(x, params, m1, m2))
    ref = jax.block_until_ready(fno2d_reference(x, params, m1, m2))

    assert out.shape == (B, Cout, H, W), out.shape
    err = float(np.max(np.abs(np.asarray(out) - np.asarray(ref))))
    # Tolerance accounts for bf16 MXU operands (f32 accumulation) vs f32 FFT ref.
    assert np.allclose(np.asarray(out), np.asarray(ref), atol=2e-2, rtol=2e-2), err
    print("KERNEL_OK")
</pallas_src>

<mosaic_0001>
module attributes {stable_mosaic.version = 11 : i64} {
  func.func @_fno2d_kernel(%arg0: i32, %arg1: memref<2x8x256xbf16, #tpu.memory_space<vmem>>, %arg2: memref<32x8xbf16, #tpu.memory_space<vmem>>, %arg3: memref<32x1xf32, #tpu.memory_space<vmem>>, %arg4: memref<4x64x128xf32, #tpu.memory_space<vmem>>, %arg5: memref<256x128xbf16, #tpu.memory_space<vmem>>, %arg6: memref<128x256xbf16, #tpu.memory_space<vmem>>, %arg7: memref<128x32xbf16, #tpu.memory_space<vmem>>, %arg8: memref<128x1xf32, #tpu.memory_space<vmem>>, %arg9: memref<3x128xbf16, #tpu.memory_space<vmem>>, %arg10: memref<3x1xf32, #tpu.memory_space<vmem>>, %arg11: memref<2x3x256xf32, #tpu.memory_space<vmem>>, %arg12: memref<64x256xf32, #tpu.memory_space<vmem>>) attributes {dimension_semantics = [#tpu.dimension_semantics<parallel>], iteration_bounds = array<i64: 1>, scalar_prefetch = 0 : i64, scratch_operands = 1 : i64, tpu.core_type = #tpu.core_type<tc>, window_params = [{transform_indices = @transform_0, window_bounds = array<i64: 2, 8, 256>}, {pipeline_mode = #tpu.pipeline_mode<synchronous>, transform_indices = @transform_1, window_bounds = array<i64: 32, 8>}, {pipeline_mode = #tpu.pipeline_mode<synchronous>, transform_indices = @transform_2, window_bounds = array<i64: 32, 1>}, {pipeline_mode = #tpu.pipeline_mode<synchronous>, transform_indices = @transform_3, window_bounds = array<i64: 4, 64, 128>}, {pipeline_mode = #tpu.pipeline_mode<synchronous>, transform_indices = @transform_4, window_bounds = array<i64: 256, 128>}, {pipeline_mode = #tpu.pipeline_mode<synchronous>, transform_indices = @transform_5, window_bounds = array<i64: 128, 256>}, {pipeline_mode = #tpu.pipeline_mode<synchronous>, transform_indices = @transform_6, window_bounds = array<i64: 128, 32>}, {pipeline_mode = #tpu.pipeline_mode<synchronous>, transform_indices = @transform_7, window_bounds = array<i64: 128, 1>}, {pipeline_mode = #tpu.pipeline_mode<synchronous>, transform_indices = @transform_8, window_bounds = array<i64: 3, 128>}, {pipeline_mode = #tpu.pipeline_mode<synchronous>, transform_indices = @transform_9, window_bounds = array<i64: 3, 1>}, {transform_indices = @transform_10, window_bounds = array<i64: 2, 3, 256>}]} {
    %c0 = arith.constant 0 : index
    %c0_0 = arith.constant 0 : index
    %0 = vector.load %arg2[%c0, %c0_0] : memref<32x8xbf16, #tpu.memory_space<vmem>>, vector<32x8xbf16>
    %c0_1 = arith.constant 0 : index
    %c0_2 = arith.constant 0 : index
    %c0_3 = arith.constant 0 : index
    %1 = vector.load %arg1[%c0_1, %c0_2, %c0_3] : memref<2x8x256xbf16, #tpu.memory_space<vmem>>, vector<1x8x256xbf16>
    %2 = vector.shape_cast %1 : vector<1x8x256xbf16> to vector<8x256xbf16>
    %cst = arith.constant dense<0.000000e+00> : vector<32x256xf32>
    %3 = tpu.matmul %0, %2, %cst {dimension_numbers = #tpu.dot_dimension_numbers<[1], [0], [0], [1], [0, 0, 1, 1], [], []>} : vector<32x8xbf16>, vector<8x256xbf16>, vector<32x256xf32> -> vector<32x256xf32>
    %c0_4 = arith.constant 0 : index
    %c0_5 = arith.constant 0 : index
    %4 = vector.load %arg3[%c0_4, %c0_5] : memref<32x1xf32, #tpu.memory_space<vmem>>, vector<32x1xf32>
    %5 = vector.broadcast %4 : vector<32x1xf32> to vector<32x256xf32>
    %6 = arith.addf %3, %5 : vector<32x256xf32>
    %c0_6 = arith.constant 0 : index
    %c0_7 = arith.constant 0 : index
    %7 = vector.load %arg12[%c0_6, %c0_7] : memref<64x256xf32, #tpu.memory_space<vmem>>, vector<32x256xf32>
    tpu.vector_store %arg12[%c0_6, %c0_7], %6 {strides = array<i32>} : memref<64x256xf32, #tpu.memory_space<vmem>>, vector<32x256xf32>,
    %c0_8 = arith.constant 0 : index
    %c0_9 = arith.constant 0 : index
    %8 = vector.load %arg2[%c0_8, %c0_9] : memref<32x8xbf16, #tpu.memory_space<vmem>>, vector<32x8xbf16>
    %c1 = arith.constant 1 : index
    %c0_10 = arith.constant 0 : index
    %c0_11 = arith.constant 0 : index
    %9 = vector.load %arg1[%c1, %c0_10, %c0_11] : memref<2x8x256xbf16, #tpu.memory_space<vmem>>, vector<1x8x256xbf16>
    %10 = vector.shape_cast %9 : vector<1x8x256xbf16> to vector<8x256xbf16>
    %cst_12 = arith.constant dense<0.000000e+00> : vector<32x256xf32>
    %11 = tpu.matmul %8, %10, %cst_12 {dimension_numbers = #tpu.dot_dimension_numbers<[1], [0], [0], [1], [0, 0, 1, 1], [], []>} : vector<32x8xbf16>, vector<8x256xbf16>, vector<32x256xf32> -> vector<32x256xf32>
    %c0_13 = arith.constant 0 : index
    %c0_14 = arith.constant 0 : index
    %12 = vector.load %arg3[%c0_13, %c0_14] : memref<32x1xf32, #tpu.memory_space<vmem>>, vector<32x1xf32>
    %13 = vector.broadcast %12 : vector<32x1xf32> to vector<32x256xf32>
    %14 = arith.addf %11, %13 : vector<32x256xf32>
    %c32 = arith.constant 32 : index
    %c0_15 = arith.constant 0 : index
    %15 = vector.load %arg12[%c32, %c0_15] : memref<64x256xf32, #tpu.memory_space<vmem>>, vector<32x256xf32>
    tpu.vector_store %arg12[%c32, %c0_15], %14 {strides = array<i32>} : memref<64x256xf32, #tpu.memory_space<vmem>>, vector<32x256xf32>,
    %c0_16 = arith.constant 0 : index
    %c0_17 = arith.constant 0 : index
    %16 = vector.load %arg12[%c0_16, %c0_17] : memref<64x256xf32, #tpu.memory_space<vmem>>, vector<64x256xf32>
    %17 = arith.truncf %16 : vector<64x256xf32> to vector<64x256xbf16>
    %c0_18 = arith.constant 0 : index
    %c0_19 = arith.constant 0 : index
    %18 = vector.load %arg5[%c0_18, %c0_19] : memref<256x128xbf16, #tpu.memory_space<vmem>>, vector<256x128xbf16>
    %cst_20 = arith.constant dense<0.000000e+00> : vector<64x128xf32>
    %19 = tpu.matmul %17, %18, %cst_20 {dimension_numbers = #tpu.dot_dimension_numbers<[1], [0], [0], [1], [0, 0, 1, 1], [], []>} : vector<64x256xbf16>, vector<256x128xbf16>, vector<64x128xf32> -> vector<64x128xf32>
    %c0_21 = arith.constant 0 : index
    %c0_22 = arith.constant 0 : index
    %c0_23 = arith.constant 0 : index
    %20 = vector.load %arg4[%c0_21, %c0_22, %c0_23] : memref<4x64x128xf32, #tpu.memory_space<vmem>>, vector<1x64x128xf32>
    %21 = vector.shape_cast %20 : vector<1x64x128xf32> to vector<64x128xf32>
    %22 = arith.mulf %19, %21 : vector<64x128xf32>
    %23 = arith.truncf %22 : vector<64x128xf32> to vector<64x128xbf16>
    %c0_24 = arith.constant 0 : index
    %c0_25 = arith.constant 0 : index
    %24 = vector.load %arg6[%c0_24, %c0_25] : memref<128x256xbf16, #tpu.memory_space<vmem>>, vector<128x256xbf16>
    %cst_26 = arith.constant dense<0.000000e+00> : vector<64x256xf32>
    %25 = tpu.matmul %23, %24, %cst_26 {dimension_numbers = #tpu.dot_dimension_numbers<[1], [0], [0], [1], [0, 0, 1, 1], [], []>} : vector<64x128xbf16>, vector<128x256xbf16>, vector<64x256xf32> -> vector<64x256xf32>
    %cst_27 = arith.constant 5.000000e-01 : f32
    %26 = vector.broadcast %cst_27 : f32 to vector<64x256xf32>
    %27 = arith.mulf %26, %25 : vector<64x256xf32>
    %cst_28 = arith.constant 0.707106769 : f32
    %28 = vector.broadcast %cst_28 : f32 to vector<64x256xf32>
    %29 = arith.mulf %25, %28 : vector<64x256xf32>
    %cst_29 = arith.constant 0.000000e+00 : f32
    %30 = vector.broadcast %cst_29 : f32 to vector<64x256xf32>
    %31 = arith.cmpf oge, %29, %30 : vector<64x256xf32>
    %cst_30 = arith.constant 1.000000e+00 : f32
    %cst_31 = arith.constant -1.000000e+00 : f32
    %32 = vector.broadcast %cst_30 : f32 to vector<64x256xf32>
    %33 = vector.broadcast %cst_31 : f32 to vector<64x256xf32>
    %34 = arith.select %31, %32, %33 : vector<64x256xi1>, vector<64x256xf32>
    %35 = math.absf %29 : vector<64x256xf32>
    %cst_32 = arith.constant 0.327591091 : f32
    %36 = vector.broadcast %cst_32 : f32 to vector<64x256xf32>
    %37 = arith.mulf %36, %35 : vector<64x256xf32>
    %cst_33 = arith.constant 1.000000e+00 : f32
    %38 = vector.broadcast %cst_33 : f32 to vector<64x256xf32>
    %39 = arith.addf %38, %37 : vector<64x256xf32>
    %40 = tpu.reciprocal %39 {approx = true} : vector<64x256xf32> -> vector<64x256xf32>
    %cst_34 = arith.constant 1.06140542 : f32
    %41 = vector.broadcast %cst_34 : f32 to vector<64x256xf32>
    %42 = arith.mulf %41, %40 : vector<64x256xf32>
    %cst_35 = arith.constant -1.45315206 : f32
    %43 = vector.broadcast %cst_35 : f32 to vector<64x256xf32>
    %44 = arith.addf %42, %43 : vector<64x256xf32>
    %45 = arith.mulf %44, %40 : vector<64x256xf32>
    %cst_36 = arith.constant 1.42141378 : f32
    %46 = vector.broadcast %cst_36 : f32 to vector<64x256xf32>
    %47 = arith.addf %45, %46 : vector<64x256xf32>
    %48 = arith.mulf %47, %40 : vector<64x256xf32>
    %cst_37 = arith.constant -0.284496725 : f32
    %49 = vector.broadcast %cst_37 : f32 to vector<64x256xf32>
    %50 = arith.addf %48, %49 : vector<64x256xf32>
    %51 = arith.mulf %50, %40 : vector<64x256xf32>
    %cst_38 = arith.constant 0.254829586 : f32
    %52 = vector.broadcast %cst_38 : f32 to vector<64x256xf32>
    %53 = arith.addf %51, %52 : vector<64x256xf32>
    %54 = arith.mulf %53, %40 : vector<64x256xf32>
    %cst_39 = arith.constant 0.000000e+00 : f32
    %55 = vector.broadcast %cst_39 : f32 to vector<64x256xf32>
    %56 = arith.subf %55, %35 : vector<64x256xf32>
    %57 = arith.mulf %56, %35 : vector<64x256xf32>
    %58 = math.exp %57 : vector<64x256xf32>
    %59 = arith.mulf %54, %58 : vector<64x256xf32>
    %cst_40 = arith.constant 1.000000e+00 : f32
    %60 = vector.broadcast %cst_40 : f32 to vector<64x256xf32>
    %61 = arith.subf %60, %59 : vector<64x256xf32>
    %62 = arith.mulf %34, %61 : vector<64x256xf32>
    %cst_41 = arith.constant 1.000000e+00 : f32
    %63 = vector.broadcast %cst_41 : f32 to vector<64x256xf32>
    %64 = arith.addf %63, %62 : vector<64x256xf32>
    %65 = arith.mulf %27, %64 : vector<64x256xf32>
    %c0_42 = arith.constant 0 : index
    %c0_43 = arith.constant 0 : index
    %66 = vector.load %arg12[%c0_42, %c0_43] : memref<64x256xf32, #tpu.memory_space<vmem>>, vector<64x256xf32>
    tpu.vector_store %arg12[%c0_42, %c0_43], %65 {strides = array<i32>} : memref<64x256xf32, #tpu.memory_space<vmem>>, vector<64x256xf32>,
    %c0_44 = arith.constant 0 : index
    %c0_45 = arith.constant 0 : index
    %67 = vector.load %arg12[%c0_44, %c0_45] : memref<64x256xf32, #tpu.memory_space<vmem>>, vector<64x256xf32>
    %68 = arith.truncf %67 : vector<64x256xf32> to vector<64x256xbf16>
    %c0_46 = arith.constant 0 : index
    %c0_47 = arith.constant 0 : index
    %69 = vector.load %arg5[%c0_46, %c0_47] : memref<256x128xbf16, #tpu.memory_space<vmem>>, vector<256x128xbf16>
    %cst_48 = arith.constant dense<0.000000e+00> : vector<64x128xf32>
    %70 = tpu.matmul %68, %69, %cst_48 {dimension_numbers = #tpu.dot_dimension_numbers<[1], [0], [0], [1], [0, 0, 1, 1], [], []>} : vector<64x256xbf16>, vector<256x128xbf16>, vector<64x128xf32> -> vector<64x128xf32>
    %c1_49 = arith.constant 1 : index
    %c0_50 = arith.constant 0 : index
    %c0_51 = arith.constant 0 : index
    %71 = vector.load %arg4[%c1_49, %c0_50, %c0_51] : memref<4x64x128xf32, #tpu.memory_space<vmem>>, vector<1x64x128xf32>
    %72 = vector.shape_cast %71 : vector<1x64x128xf32> to vector<64x128xf32>
    %73 = arith.mulf %70, %72 : vector<64x128xf32>
    %74 = arith.truncf %73 : vector<64x128xf32> to vector<64x128xbf16>
    %c0_52 = arith.constant 0 : index
    %c0_53 = arith.constant 0 : index
    %75 = vector.load %arg6[%c0_52, %c0_53] : memref<128x256xbf16, #tpu.memory_space<vmem>>, vector<128x256xbf16>
    %cst_54 = arith.constant dense<0.000000e+00> : vector<64x256xf32>
    %76 = tpu.matmul %74, %75, %cst_54 {dimension_numbers = #tpu.dot_dimension_numbers<[1], [0], [0], [1], [0, 0, 1, 1], [], []>} : vector<64x128xbf16>, vector<128x256xbf16>, vector<64x256xf32> -> vector<64x256xf32>
    %cst_55 = arith.constant 5.000000e-01 : f32
    %77 = vector.broadcast %cst_55 : f32 to vector<64x256xf32>
    %78 = arith.mulf %77, %76 : vector<64x256xf32>
    %cst_56 = arith.constant 0.707106769 : f32
    %79 = vector.broadcast %cst_56 : f32 to vector<64x256xf32>
    %80 = arith.mulf %76, %79 : vector<64x256xf32>
    %cst_57 = arith.constant 0.000000e+00 : f32
    %81 = vector.broadcast %cst_57 : f32 to vector<64x256xf32>
    %82 = arith.cmpf oge, %80, %81 : vector<64x256xf32>
    %cst_58 = arith.constant 1.000000e+00 : f32
    %cst_59 = arith.constant -1.000000e+00 : f32
    %83 = vector.broadcast %cst_58 : f32 to vector<64x256xf32>
    %84 = vector.broadcast %cst_59 : f32 to vector<64x256xf32>
    %85 = arith.select %82, %83, %84 : vector<64x256xi1>, vector<64x256xf32>
    %86 = math.absf %80 : vector<64x256xf32>
    %cst_60 = arith.constant 0.327591091 : f32
    %87 = vector.broadcast %cst_60 : f32 to vector<64x256xf32>
    %88 = arith.mulf %87, %86 : vector<64x256xf32>
    %cst_61 = arith.constant 1.000000e+00 : f32
    %89 = vector.broadcast %cst_61 : f32 to vector<64x256xf32>
    %90 = arith.addf %89, %88 : vector<64x256xf32>
    %91 = tpu.reciprocal %90 {approx = true} : vector<64x256xf32> -> vector<64x256xf32>
    %cst_62 = arith.constant 1.06140542 : f32
    %92 = vector.broadcast %cst_62 : f32 to vector<64x256xf32>
    %93 = arith.mulf %92, %91 : vector<64x256xf32>
    %cst_63 = arith.constant -1.45315206 : f32
    %94 = vector.broadcast %cst_63 : f32 to vector<64x256xf32>
    %95 = arith.addf %93, %94 : vector<64x256xf32>
    %96 = arith.mulf %95, %91 : vector<64x256xf32>
    %cst_64 = arith.constant 1.42141378 : f32
    %97 = vector.broadcast %cst_64 : f32 to vector<64x256xf32>
    %98 = arith.addf %96, %97 : vector<64x256xf32>
    %99 = arith.mulf %98, %91 : vector<64x256xf32>
    %cst_65 = arith.constant -0.284496725 : f32
    %100 = vector.broadcast %cst_65 : f32 to vector<64x256xf32>
    %101 = arith.addf %99, %100 : vector<64x256xf32>
    %102 = arith.mulf %101, %91 : vector<64x256xf32>
    %cst_66 = arith.constant 0.254829586 : f32
    %103 = vector.broadcast %cst_66 : f32 to vector<64x256xf32>
    %104 = arith.addf %102, %103 : vector<64x256xf32>
    %105 = arith.mulf %104, %91 : vector<64x256xf32>
    %cst_67 = arith.constant 0.000000e+00 : f32
    %106 = vector.broadcast %cst_67 : f32 to vector<64x256xf32>
    %107 = arith.subf %106, %86 : vector<64x256xf32>
    %108 = arith.mulf %107, %86 : vector<64x256xf32>
    %109 = math.exp %108 : vector<64x256xf32>
    %110 = arith.mulf %105, %109 : vector<64x256xf32>
    %cst_68 = arith.constant 1.000000e+00 : f32
    %111 = vector.broadcast %cst_68 : f32 to vector<64x256xf32>
    %112 = arith.subf %111, %110 : vector<64x256xf32>
    %113 = arith.mulf %85, %112 : vector<64x256xf32>
    %cst_69 = arith.constant 1.000000e+00 : f32
    %114 = vector.broadcast %cst_69 : f32 to vector<64x256xf32>
    %115 = arith.addf %114, %113 : vector<64x256xf32>
    %116 = arith.mulf %78, %115 : vector<64x256xf32>
    %c0_70 = arith.constant 0 : index
    %c0_71 = arith.constant 0 : index
    %117 = vector.load %arg12[%c0_70, %c0_71] : memref<64x256xf32, #tpu.memory_space<vmem>>, vector<64x256xf32>
    tpu.vector_store %arg12[%c0_70, %c0_71], %116 {strides = array<i32>} : memref<64x256xf32, #tpu.memory_space<vmem>>, vector<64x256xf32>,
    %c0_72 = arith.constant 0 : index
    %c0_73 = arith.constant 0 : index
    %118 = vector.load %arg12[%c0_72, %c0_73] : memref<64x256xf32, #tpu.memory_space<vmem>>, vector<64x256xf32>
    %119 = arith.truncf %118 : vector<64x256xf32> to vector<64x256xbf16>
    %c0_74 = arith.constant 0 : index
    %c0_75 = arith.constant 0 : index
    %120 = vector.load %arg5[%c0_74, %c0_75] : memref<256x128xbf16, #tpu.memory_space<vmem>>, vector<256x128xbf16>
    %cst_76 = arith.constant dense<0.000000e+00> : vector<64x128xf32>
    %121 = tpu.matmul %119, %120, %cst_76 {dimension_numbers = #tpu.dot_dimension_numbers<[1], [0], [0], [1], [0, 0, 1, 1], [], []>} : vector<64x256xbf16>, vector<256x128xbf16>, vector<64x128xf32> -> vector<64x128xf32>
    %c2 = arith.constant 2 : index
    %c0_77 = arith.constant 0 : index
    %c0_78 = arith.constant 0 : index
    %122 = vector.load %arg4[%c2, %c0_77, %c0_78] : memref<4x64x128xf32, #tpu.memory_space<vmem>>, vector<1x64x128xf32>
    %123 = vector.shape_cast %122 : vector<1x64x128xf32> to vector<64x128xf32>
    %124 = arith.mulf %121, %123 : vector<64x128xf32>
    %125 = arith.truncf %124 : vector<64x128xf32> to vector<64x128xbf16>
    %c0_79 = arith.constant 0 : index
    %c0_80 = arith.constant 0 : index
    %126 = vector.load %arg6[%c0_79, %c0_80] : memref<128x256xbf16, #tpu.memory_space<vmem>>, vector<128x256xbf16>
    %cst_81 = arith.constant dense<0.000000e+00> : vector<64x256xf32>
    %127 = tpu.matmul %125, %126, %cst_81 {dimension_numbers = #tpu.dot_dimension_numbers<[1], [0], [0], [1], [0, 0, 1, 1], [], []>} : vector<64x128xbf16>, vector<128x256xbf16>, vector<64x256xf32> -> vector<64x256xf32>
    %cst_82 = arith.constant 5.000000e-01 : f32
    %128 = vector.broadcast %cst_82 : f32 to vector<64x256xf32>
    %129 = arith.mulf %128, %127 : vector<64x256xf32>
    %cst_83 = arith.constant 0.707106769 : f32
    %130 = vector.broadcast %cst_83 : f32 to vector<64x256xf32>
    %131 = arith.mulf %127, %130 : vector<64x256xf32>
    %cst_84 = arith.constant 0.000000e+00 : f32
    %132 = vector.broadcast %cst_84 : f32 to vector<64x256xf32>
    %133 = arith.cmpf oge, %131, %132 : vector<64x256xf32>
    %cst_85 = arith.constant 1.000000e+00 : f32
    %cst_86 = arith.constant -1.000000e+00 : f32
    %134 = vector.broadcast %cst_85 : f32 to vector<64x256xf32>
    %135 = vector.broadcast %cst_86 : f32 to vector<64x256xf32>
    %136 = arith.select %133, %134, %135 : vector<64x256xi1>, vector<64x256xf32>
    %137 = math.absf %131 : vector<64x256xf32>
    %cst_87 = arith.constant 0.327591091 : f32
    %138 = vector.broadcast %cst_87 : f32 to vector<64x256xf32>
    %139 = arith.mulf %138, %137 : vector<64x256xf32>
    %cst_88 = arith.constant 1.000000e+00 : f32
    %140 = vector.broadcast %cst_88 : f32 to vector<64x256xf32>
    %141 = arith.addf %140, %139 : vector<64x256xf32>
    %142 = tpu.reciprocal %141 {approx = true} : vector<64x256xf32> -> vector<64x256xf32>
    %cst_89 = arith.constant 1.06140542 : f32
    %143 = vector.broadcast %cst_89 : f32 to vector<64x256xf32>
    %144 = arith.mulf %143, %142 : vector<64x256xf32>
    %cst_90 = arith.constant -1.45315206 : f32
    %145 = vector.broadcast %cst_90 : f32 to vector<64x256xf32>
    %146 = arith.addf %144, %145 : vector<64x256xf32>
    %147 = arith.mulf %146, %142 : vector<64x256xf32>
    %cst_91 = arith.constant 1.42141378 : f32
    %148 = vector.broadcast %cst_91 : f32 to vector<64x256xf32>
    %149 = arith.addf %147, %148 : vector<64x256xf32>
    %150 = arith.mulf %149, %142 : vector<64x256xf32>
    %cst_92 = arith.constant -0.284496725 : f32
    %151 = vector.broadcast %cst_92 : f32 to vector<64x256xf32>
    %152 = arith.addf %150, %151 : vector<64x256xf32>
    %153 = arith.mulf %152, %142 : vector<64x256xf32>
    %cst_93 = arith.constant 0.254829586 : f32
    %154 = vector.broadcast %cst_93 : f32 to vector<64x256xf32>
    %155 = arith.addf %153, %154 : vector<64x256xf32>
    %156 = arith.mulf %155, %142 : vector<64x256xf32>
    %cst_94 = arith.constant 0.000000e+00 : f32
    %157 = vector.broadcast %cst_94 : f32 to vector<64x256xf32>
    %158 = arith.subf %157, %137 : vector<64x256xf32>
    %159 = arith.mulf %158, %137 : vector<64x256xf32>
    %160 = math.exp %159 : vector<64x256xf32>
    %161 = arith.mulf %156, %160 : vector<64x256xf32>
    %cst_95 = arith.constant 1.000000e+00 : f32
    %162 = vector.broadcast %cst_95 : f32 to vector<64x256xf32>
    %163 = arith.subf %162, %161 : vector<64x256xf32>
    %164 = arith.mulf %136, %163 : vector<64x256xf32>
    %cst_96 = arith.constant 1.000000e+00 : f32
    %165 = vector.broadcast %cst_96 : f32 to vector<64x256xf32>
    %166 = arith.addf %165, %164 : vector<64x256xf32>
    %167 = arith.mulf %129, %166 : vector<64x256xf32>
    %c0_97 = arith.constant 0 : index
    %c0_98 = arith.constant 0 : index
    %168 = vector.load %arg12[%c0_97, %c0_98] : memref<64x256xf32, #tpu.memory_space<vmem>>, vector<64x256xf32>
    tpu.vector_store %arg12[%c0_97, %c0_98], %167 {strides = array<i32>} : memref<64x256xf32, #tpu.memory_space<vmem>>, vector<64x256xf32>,
    %c0_99 = arith.constant 0 : index
    %c0_100 = arith.constant 0 : index
    %169 = vector.load %arg12[%c0_99, %c0_100] : memref<64x256xf32, #tpu.memory_space<vmem>>, vector<64x256xf32>
    %170 = arith.truncf %169 : vector<64x256xf32> to vector<64x256xbf16>
    %c0_101 = arith.constant 0 : index
    %c0_102 = arith.constant 0 : index
    %171 = vector.load %arg5[%c0_101, %c0_102] : memref<256x128xbf16, #tpu.memory_space<vmem>>, vector<256x128xbf16>
    %cst_103 = arith.constant dense<0.000000e+00> : vector<64x128xf32>
    %172 = tpu.matmul %170, %171, %cst_103 {dimension_numbers = #tpu.dot_dimension_numbers<[1], [0], [0], [1], [0, 0, 1, 1], [], []>} : vector<64x256xbf16>, vector<256x128xbf16>, vector<64x128xf32> -> vector<64x128xf32>
    %c3 = arith.constant 3 : index
    %c0_104 = arith.constant 0 : index
    %c0_105 = arith.constant 0 : index
    %173 = vector.load %arg4[%c3, %c0_104, %c0_105] : memref<4x64x128xf32, #tpu.memory_space<vmem>>, vector<1x64x128xf32>
    %174 = vector.shape_cast %173 : vector<1x64x128xf32> to vector<64x128xf32>
    %175 = arith.mulf %172, %174 : vector<64x128xf32>
    %176 = arith.truncf %175 : vector<64x128xf32> to vector<64x128xbf16>
    %c0_106 = arith.constant 0 : index
    %c0_107 = arith.constant 0 : index
    %177 = vector.load %arg6[%c0_106, %c0_107] : memref<128x256xbf16, #tpu.memory_space<vmem>>, vector<128x256xbf16>
    %cst_108 = arith.constant dense<0.000000e+00> : vector<64x256xf32>
    %178 = tpu.matmul %176, %177, %cst_108 {dimension_numbers = #tpu.dot_dimension_numbers<[1], [0], [0], [1], [0, 0, 1, 1], [], []>} : vector<64x128xbf16>, vector<128x256xbf16>, vector<64x256xf32> -> vector<64x256xf32>
    %cst_109 = arith.constant 5.000000e-01 : f32
    %179 = vector.broadcast %cst_109 : f32 to vector<64x256xf32>
    %180 = arith.mulf %179, %178 : vector<64x256xf32>
    %cst_110 = arith.constant 0.707106769 : f32
    %181 = vector.broadcast %cst_110 : f32 to vector<64x256xf32>
    %182 = arith.mulf %178, %181 : vector<64x256xf32>
    %cst_111 = arith.constant 0.000000e+00 : f32
    %183 = vector.broadcast %cst_111 : f32 to vector<64x256xf32>
    %184 = arith.cmpf oge, %182, %183 : vector<64x256xf32>
    %cst_112 = arith.constant 1.000000e+00 : f32
    %cst_113 = arith.constant -1.000000e+00 : f32
    %185 = vector.broadcast %cst_112 : f32 to vector<64x256xf32>
    %186 = vector.broadcast %cst_113 : f32 to vector<64x256xf32>
    %187 = arith.select %184, %185, %186 : vector<64x256xi1>, vector<64x256xf32>
    %188 = math.absf %182 : vector<64x256xf32>
    %cst_114 = arith.constant 0.327591091 : f32
    %189 = vector.broadcast %cst_114 : f32 to vector<64x256xf32>
    %190 = arith.mulf %189, %188 : vector<64x256xf32>
    %cst_115 = arith.constant 1.000000e+00 : f32
    %191 = vector.broadcast %cst_115 : f32 to vector<64x256xf32>
    %192 = arith.addf %191, %190 : vector<64x256xf32>
    %193 = tpu.reciprocal %192 {approx = true} : vector<64x256xf32> -> vector<64x256xf32>
    %cst_116 = arith.constant 1.06140542 : f32
    %194 = vector.broadcast %cst_116 : f32 to vector<64x256xf32>
    %195 = arith.mulf %194, %193 : vector<64x256xf32>
    %cst_117 = arith.constant -1.45315206 : f32
    %196 = vector.broadcast %cst_117 : f32 to vector<64x256xf32>
    %197 = arith.addf %195, %196 : vector<64x256xf32>
    %198 = arith.mulf %197, %193 : vector<64x256xf32>
    %cst_118 = arith.constant 1.42141378 : f32
    %199 = vector.broadcast %cst_118 : f32 to vector<64x256xf32>
    %200 = arith.addf %198, %199 : vector<64x256xf32>
    %201 = arith.mulf %200, %193 : vector<64x256xf32>
    %cst_119 = arith.constant -0.284496725 : f32
    %202 = vector.broadcast %cst_119 : f32 to vector<64x256xf32>
    %203 = arith.addf %201, %202 : vector<64x256xf32>
    %204 = arith.mulf %203, %193 : vector<64x256xf32>
    %cst_120 = arith.constant 0.254829586 : f32
    %205 = vector.broadcast %cst_120 : f32 to vector<64x256xf32>
    %206 = arith.addf %204, %205 : vector<64x256xf32>
    %207 = arith.mulf %206, %193 : vector<64x256xf32>
    %cst_121 = arith.constant 0.000000e+00 : f32
    %208 = vector.broadcast %cst_121 : f32 to vector<64x256xf32>
    %209 = arith.subf %208, %188 : vector<64x256xf32>
    %210 = arith.mulf %209, %188 : vector<64x256xf32>
    %211 = math.exp %210 : vector<64x256xf32>
    %212 = arith.mulf %207, %211 : vector<64x256xf32>
    %cst_122 = arith.constant 1.000000e+00 : f32
    %213 = vector.broadcast %cst_122 : f32 to vector<64x256xf32>
    %214 = arith.subf %213, %212 : vector<64x256xf32>
    %215 = arith.mulf %187, %214 : vector<64x256xf32>
    %cst_123 = arith.constant 1.000000e+00 : f32
    %216 = vector.broadcast %cst_123 : f32 to vector<64x256xf32>
    %217 = arith.addf %216, %215 : vector<64x256xf32>
    %218 = arith.mulf %180, %217 : vector<64x256xf32>
    %c0_124 = arith.constant 0 : index
    %c0_125 = arith.constant 0 : index
    %219 = vector.load %arg12[%c0_124, %c0_125] : memref<64x256xf32, #tpu.memory_space<vmem>>, vector<64x256xf32>
    tpu.vector_store %arg12[%c0_124, %c0_125], %218 {strides = array<i32>} : memref<64x256xf32, #tpu.memory_space<vmem>>, vector<64x256xf32>,
    %c0_126 = arith.constant 0 : index
    %c0_127 = arith.constant 0 : index
    %220 = vector.load %arg12[%c0_126, %c0_127] : memref<64x256xf32, #tpu.memory_space<vmem>>, vector<32x256xf32>
    %221 = arith.truncf %220 : vector<32x256xf32> to vector<32x256xbf16>
    %c0_128 = arith.constant 0 : index
    %c0_129 = arith.constant 0 : index
    %222 = vector.load %arg7[%c0_128, %c0_129] : memref<128x32xbf16, #tpu.memory_space<vmem>>, vector<128x32xbf16>
    %cst_130 = arith.constant dense<0.000000e+00> : vector<128x256xf32>
    %223 = tpu.matmul %222, %221, %cst_130 {dimension_numbers = #tpu.dot_dimension_numbers<[1], [0], [0], [1], [0, 0, 1, 1], [], []>} : vector<128x32xbf16>, vector<32x256xbf16>, vector<128x256xf32> -> vector<128x256xf32>
    %c0_131 = arith.constant 0 : index
    %c0_132 = arith.constant 0 : index
    %224 = vector.load %arg8[%c0_131, %c0_132] : memref<128x1xf32, #tpu.memory_space<vmem>>, vector<128x1xf32>
    %225 = vector.broadcast %224 : vector<128x1xf32> to vector<128x256xf32>
    %226 = arith.addf %223, %225 : vector<128x256xf32>
    %cst_133 = arith.constant 5.000000e-01 : f32
    %227 = vector.broadcast %cst_133 : f32 to vector<128x256xf32>
    %228 = arith.mulf %227, %226 : vector<128x256xf32>
    %cst_134 = arith.constant 0.707106769 : f32
    %229 = vector.broadcast %cst_134 : f32 to vector<128x256xf32>
    %230 = arith.mulf %226, %229 : vector<128x256xf32>
    %cst_135 = arith.constant 0.000000e+00 : f32
    %231 = vector.broadcast %cst_135 : f32 to vector<128x256xf32>
    %232 = arith.cmpf oge, %230, %231 : vector<128x256xf32>
    %cst_136 = arith.constant 1.000000e+00 : f32
    %cst_137 = arith.constant -1.000000e+00 : f32
    %233 = vector.broadcast %cst_136 : f32 to vector<128x256xf32>
    %234 = vector.broadcast %cst_137 : f32 to vector<128x256xf32>
    %235 = arith.select %232, %233, %234 : vector<128x256xi1>, vector<128x256xf32>
    %236 = math.absf %230 : vector<128x256xf32>
    %cst_138 = arith.constant 0.327591091 : f32
    %237 = vector.broadcast %cst_138 : f32 to vector<128x256xf32>
    %238 = arith.mulf %237, %236 : vector<128x256xf32>
    %cst_139 = arith.constant 1.000000e+00 : f32
    %239 = vector.broadcast %cst_139 : f32 to vector<128x256xf32>
    %240 = arith.addf %239, %238 : vector<128x256xf32>
    %241 = tpu.reciprocal %240 {approx = true} : vector<128x256xf32> -> vector<128x256xf32>
    %cst_140 = arith.constant 1.06140542 : f32
    %242 = vector.broadcast %cst_140 : f32 to vector<128x256xf32>
    %243 = arith.mulf %242, %241 : vector<128x256xf32>
    %cst_141 = arith.constant -1.45315206 : f32
    %244 = vector.broadcast %cst_141 : f32 to vector<128x256xf32>
    %245 = arith.addf %243, %244 : vector<128x256xf32>
    %246 = arith.mulf %245, %241 : vector<128x256xf32>
    %cst_142 = arith.constant 1.42141378 : f32
    %247 = vector.broadcast %cst_142 : f32 to vector<128x256xf32>
    %248 = arith.addf %246, %247 : vector<128x256xf32>
    %249 = arith.mulf %248, %241 : vector<128x256xf32>
    %cst_143 = arith.constant -0.284496725 : f32
    %250 = vector.broadcast %cst_143 : f32 to vector<128x256xf32>
    %251 = arith.addf %249, %250 : vector<128x256xf32>
    %252 = arith.mulf %251, %241 : vector<128x256xf32>
    %cst_144 = arith.constant 0.254829586 : f32
    %253 = vector.broadcast %cst_144 : f32 to vector<128x256xf32>
    %254 = arith.addf %252, %253 : vector<128x256xf32>
    %255 = arith.mulf %254, %241 : vector<128x256xf32>
    %cst_145 = arith.constant 0.000000e+00 : f32
    %256 = vector.broadcast %cst_145 : f32 to vector<128x256xf32>
    %257 = arith.subf %256, %236 : vector<128x256xf32>
    %258 = arith.mulf %257, %236 : vector<128x256xf32>
    %259 = math.exp %258 : vector<128x256xf32>
    %260 = arith.mulf %255, %259 : vector<128x256xf32>
    %cst_146 = arith.constant 1.000000e+00 : f32
    %261 = vector.broadcast %cst_146 : f32 to vector<128x256xf32>
    %262 = arith.subf %261, %260 : vector<128x256xf32>
    %263 = arith.mulf %235, %262 : vector<128x256xf32>
    %cst_147 = arith.constant 1.000000e+00 : f32
    %264 = vector.broadcast %cst_147 : f32 to vector<128x256xf32>
    %265 = arith.addf %264, %263 : vector<128x256xf32>
    %266 = arith.mulf %228, %265 : vector<128x256xf32>
    %c0_148 = arith.constant 0 : index
    %c0_149 = arith.constant 0 : index
    %267 = vector.load %arg9[%c0_148, %c0_149] : memref<3x128xbf16, #tpu.memory_space<vmem>>, vector<3x128xbf16>
    %268 = arith.truncf %266 : vector<128x256xf32> to vector<128x256xbf16>
    %cst_150 = arith.constant dense<0.000000e+00> : vector<3x256xf32>
    %269 = tpu.matmul %267, %268, %cst_150 {dimension_numbers = #tpu.dot_dimension_numbers<[1], [0], [0], [1], [0, 0, 1, 1], [], []>} : vector<3x128xbf16>, vector<128x256xbf16>, vector<3x256xf32> -> vector<3x256xf32>
    %c0_151 = arith.constant 0 : index
    %c0_152 = arith.constant 0 : index
    %270 = vector.load %arg10[%c0_151, %c0_152] : memref<3x1xf32, #tpu.memory_space<vmem>>, vector<3x1xf32>
    %271 = vector.broadcast %270 : vector<3x1xf32> to vector<3x256xf32>
    %272 = arith.addf %269, %271 : vector<3x256xf32>
    %c0_153 = arith.constant 0 : index
    %c0_154 = arith.constant 0 : index
    %c0_155 = arith.constant 0 : index
    %273 = vector.load %arg11[%c0_153, %c0_154, %c0_155] : memref<2x3x256xf32, #tpu.memory_space<vmem>>, vector<1x3x256xf32>
    %274 = vector.shape_cast %273 : vector<1x3x256xf32> to vector<3x256xf32>
    %275 = vector.shape_cast %272 : vector<3x256xf32> to vector<1x3x256xf32>
    tpu.vector_store %arg11[%c0_153, %c0_154, %c0_155], %275 {strides = array<i32>} : memref<2x3x256xf32, #tpu.memory_space<vmem>>, vector<1x3x256xf32>,
    %c32_156 = arith.constant 32 : index
    %c0_157 = arith.constant 0 : index
    %276 = vector.load %arg12[%c32_156, %c0_157] : memref<64x256xf32, #tpu.memory_space<vmem>>, vector<32x256xf32>
    %277 = arith.truncf %276 : vector<32x256xf32> to vector<32x256xbf16>
    %c0_158 = arith.constant 0 : index
    %c0_159 = arith.constant 0 : index
    %278 = vector.load %arg7[%c0_158, %c0_159] : memref<128x32xbf16, #tpu.memory_space<vmem>>, vector<128x32xbf16>
    %cst_160 = arith.constant dense<0.000000e+00> : vector<128x256xf32>
    %279 = tpu.matmul %278, %277, %cst_160 {dimension_numbers = #tpu.dot_dimension_numbers<[1], [0], [0], [1], [0, 0, 1, 1], [], []>} : vector<128x32xbf16>, vector<32x256xbf16>, vector<128x256xf32> -> vector<128x256xf32>
    %c0_161 = arith.constant 0 : index
    %c0_162 = arith.constant 0 : index
    %280 = vector.load %arg8[%c0_161, %c0_162] : memref<128x1xf32, #tpu.memory_space<vmem>>, vector<128x1xf32>
    %281 = vector.broadcast %280 : vector<128x1xf32> to vector<128x256xf32>
    %282 = arith.addf %279, %281 : vector<128x256xf32>
    %cst_163 = arith.constant 5.000000e-01 : f32
    %283 = vector.broadcast %cst_163 : f32 to vector<128x256xf32>
    %284 = arith.mulf %283, %282 : vector<128x256xf32>
    %cst_164 = arith.constant 0.707106769 : f32
    %285 = vector.broadcast %cst_164 : f32 to vector<128x256xf32>
    %286 = arith.mulf %282, %285 : vector<128x256xf32>
    %cst_165 = arith.constant 0.000000e+00 : f32
    %287 = vector.broadcast %cst_165 : f32 to vector<128x256xf32>
    %288 = arith.cmpf oge, %286, %287 : vector<128x256xf32>
    %cst_166 = arith.constant 1.000000e+00 : f32
    %cst_167 = arith.constant -1.000000e+00 : f32
    %289 = vector.broadcast %cst_166 : f32 to vector<128x256xf32>
    %290 = vector.broadcast %cst_167 : f32 to vector<128x256xf32>
    %291 = arith.select %288, %289, %290 : vector<128x256xi1>, vector<128x256xf32>
    %292 = math.absf %286 : vector<128x256xf32>
    %cst_168 = arith.constant 0.327591091 : f32
    %293 = vector.broadcast %cst_168 : f32 to vector<128x256xf32>
    %294 = arith.mulf %293, %292 : vector<128x256xf32>
    %cst_169 = arith.constant 1.000000e+00 : f32
    %295 = vector.broadcast %cst_169 : f32 to vector<128x256xf32>
    %296 = arith.addf %295, %294 : vector<128x256xf32>
    %297 = tpu.reciprocal %296 {approx = true} : vector<128x256xf32> -> vector<128x256xf32>
    %cst_170 = arith.constant 1.06140542 : f32
    %298 = vector.broadcast %cst_170 : f32 to vector<128x256xf32>
    %299 = arith.mulf %298, %297 : vector<128x256xf32>
    %cst_171 = arith.constant -1.45315206 : f32
    %300 = vector.broadcast %cst_171 : f32 to vector<128x256xf32>
    %301 = arith.addf %299, %300 : vector<128x256xf32>
    %302 = arith.mulf %301, %297 : vector<128x256xf32>
    %cst_172 = arith.constant 1.42141378 : f32
    %303 = vector.broadcast %cst_172 : f32 to vector<128x256xf32>
    %304 = arith.addf %302, %303 : vector<128x256xf32>
    %305 = arith.mulf %304, %297 : vector<128x256xf32>
    %cst_173 = arith.constant -0.284496725 : f32
    %306 = vector.broadcast %cst_173 : f32 to vector<128x256xf32>
    %307 = arith.addf %305, %306 : vector<128x256xf32>
    %308 = arith.mulf %307, %297 : vector<128x256xf32>
    %cst_174 = arith.constant 0.254829586 : f32
    %309 = vector.broadcast %cst_174 : f32 to vector<128x256xf32>
    %310 = arith.addf %308, %309 : vector<128x256xf32>
    %311 = arith.mulf %310, %297 : vector<128x256xf32>
    %cst_175 = arith.constant 0.000000e+00 : f32
    %312 = vector.broadcast %cst_175 : f32 to vector<128x256xf32>
    %313 = arith.subf %312, %292 : vector<128x256xf32>
    %314 = arith.mulf %313, %292 : vector<128x256xf32>
    %315 = math.exp %314 : vector<128x256xf32>
    %316 = arith.mulf %311, %315 : vector<128x256xf32>
    %cst_176 = arith.constant 1.000000e+00 : f32
    %317 = vector.broadcast %cst_176 : f32 to vector<128x256xf32>
    %318 = arith.subf %317, %316 : vector<128x256xf32>
    %319 = arith.mulf %291, %318 : vector<128x256xf32>
    %cst_177 = arith.constant 1.000000e+00 : f32
    %320 = vector.broadcast %cst_177 : f32 to vector<128x256xf32>
    %321 = arith.addf %320, %319 : vector<128x256xf32>
    %322 = arith.mulf %284, %321 : vector<128x256xf32>
    %c0_178 = arith.constant 0 : index
    %c0_179 = arith.constant 0 : index
    %323 = vector.load %arg9[%c0_178, %c0_179] : memref<3x128xbf16, #tpu.memory_space<vmem>>, vector<3x128xbf16>
    %324 = arith.truncf %322 : vector<128x256xf32> to vector<128x256xbf16>
    %cst_180 = arith.constant dense<0.000000e+00> : vector<3x256xf32>
    %325 = tpu.matmul %323, %324, %cst_180 {dimension_numbers = #tpu.dot_dimension_numbers<[1], [0], [0], [1], [0, 0, 1, 1], [], []>} : vector<3x128xbf16>, vector<128x256xbf16>, vector<3x256xf32> -> vector<3x256xf32>
    %c0_181 = arith.constant 0 : index
    %c0_182 = arith.constant 0 : index
    %326 = vector.load %arg10[%c0_181, %c0_182] : memref<3x1xf32, #tpu.memory_space<vmem>>, vector<3x1xf32>
    %327 = vector.broadcast %326 : vector<3x1xf32> to vector<3x256xf32>
    %328 = arith.addf %325, %327 : vector<3x256xf32>
    %c1_183 = arith.constant 1 : index
    %c0_184 = arith.constant 0 : index
    %c0_185 = arith.constant 0 : index
    %329 = vector.load %arg11[%c1_183, %c0_184, %c0_185] : memref<2x3x256xf32, #tpu.memory_space<vmem>>, vector<1x3x256xf32>
    %330 = vector.shape_cast %329 : vector<1x3x256xf32> to vector<3x256xf32>
    %331 = vector.shape_cast %328 : vector<3x256xf32> to vector<1x3x256xf32>
    tpu.vector_store %arg11[%c1_183, %c0_184, %c0_185], %331 {strides = array<i32>} : memref<2x3x256xf32, #tpu.memory_space<vmem>>, vector<1x3x256xf32>,
    return
  }
  func.func @transform_0(%arg0: i32) -> (i32, i32, i32) {
    %c0_i32 = arith.constant 0 : i32
    %c0_i32_0 = arith.constant 0 : i32
    %c0_i32_1 = arith.constant 0 : i32
    return %arg0, %c0_i32, %c0_i32_0 : i32, i32, i32
  }
  func.func @transform_1(%arg0: i32) -> (i32, i32) {
    %c0_i32 = arith.constant 0 : i32
    %c0_i32_0 = arith.constant 0 : i32
    %c0_i32_1 = arith.constant 0 : i32
    return %c0_i32, %c0_i32_0 : i32, i32
  }
  func.func @transform_2(%arg0: i32) -> (i32, i32) {
    %c0_i32 = arith.constant 0 : i32
    %c0_i32_0 = arith.constant 0 : i32
    %c0_i32_1 = arith.constant 0 : i32
    return %c0_i32, %c0_i32_0 : i32, i32
  }
  func.func @transform_3(%arg0: i32) -> (i32, i32, i32) {
    %c0_i32 = arith.constant 0 : i32
    %c0_i32_0 = arith.constant 0 : i32
    %c0_i32_1 = arith.constant 0 : i32
    %c0_i32_2 = arith.constant 0 : i32
    return %c0_i32, %c0_i32_0, %c0_i32_1 : i32, i32, i32
  }
  func.func @transform_4(%arg0: i32) -> (i32, i32) {
    %c0_i32 = arith.constant 0 : i32
    %c0_i32_0 = arith.constant 0 : i32
    %c0_i32_1 = arith.constant 0 : i32
    return %c0_i32, %c0_i32_0 : i32, i32
  }
  func.func @transform_5(%arg0: i32) -> (i32, i32) {
    %c0_i32 = arith.constant 0 : i32
    %c0_i32_0 = arith.constant 0 : i32
    %c0_i32_1 = arith.constant 0 : i32
    return %c0_i32, %c0_i32_0 : i32, i32
  }
  func.func @transform_6(%arg0: i32) -> (i32, i32) {
    %c0_i32 = arith.constant 0 : i32
    %c0_i32_0 = arith.constant 0 : i32
    %c0_i32_1 = arith.constant 0 : i32
    return %c0_i32, %c0_i32_0 : i32, i32
  }
  func.func @transform_7(%arg0: i32) -> (i32, i32) {
    %c0_i32 = arith.constant 0 : i32
    %c0_i32_0 = arith.constant 0 : i32
    %c0_i32_1 = arith.constant 0 : i32
    return %c0_i32, %c0_i32_0 : i32, i32
  }
  func.func @transform_8(%arg0: i32) -> (i32, i32) {
    %c0_i32 = arith.constant 0 : i32
    %c0_i32_0 = arith.constant 0 : i32
    %c0_i32_1 = arith.constant 0 : i32
    return %c0_i32, %c0_i32_0 : i32, i32
  }
  func.func @transform_9(%arg0: i32) -> (i32, i32) {
    %c0_i32 = arith.constant 0 : i32
    %c0_i32_0 = arith.constant 0 : i32
    %c0_i32_1 = arith.constant 0 : i32
    return %c0_i32, %c0_i32_0 : i32, i32
  }
  func.func @transform_10(%arg0: i32) -> (i32, i32, i32) {
    %c0_i32 = arith.constant 0 : i32
    %c0_i32_0 = arith.constant 0 : i32
    %c0_i32_1 = arith.constant 0 : i32
    return %arg0, %c0_i32, %c0_i32_0 : i32, i32, i32
  }
}

</mosaic_0001>

<llo_original>
// kernel: tpu_custom_call.1
$region0: #{tpu_custom_call.1}
  #allocation0 [shape = 'u32[]', space=smem, size = 0x4, offset = 0x4, fixed_abs, tag = 'smem constant byte address 0x4 - core index']
  #allocation1 [shape = 'u32[144,128]{1,0:T(1,128)}', space=vmem, size = 0x12000, scoped, tag = 'internal scratch']
  #allocation2 [shape = 'f32[64,256]{1,0:T(8,128)}', space=vmem, size = 0x10000, scoped, tag = 'scratch operand']
  %s0 = inlined_call_operand.hbm [shape: bf16[2,8,256], index: 0, kind: input, shape index: {}]
  %s1 = inlined_call_operand.vmem [shape: bf16[32,8], index: 1, kind: input, shape index: {}]
  %s2 = inlined_call_operand.vmem [shape: f32[32,1], index: 2, kind: input, shape index: {}]
  %s3 = inlined_call_operand.vmem [shape: f32[4,64,128], index: 3, kind: input, shape index: {}]
  %s4 = inlined_call_operand.hbm [shape: bf16[256,128], index: 4, kind: input, shape index: {}]
  %s5 = inlined_call_operand.hbm [shape: bf16[128,256], index: 5, kind: input, shape index: {}]
  %s6 = inlined_call_operand.vmem [shape: bf16[128,32], index: 6, kind: input, shape index: {}]
  %s7 = inlined_call_operand.vmem [shape: f32[128,1], index: 7, kind: input, shape index: {}]
  %s8 = inlined_call_operand.vmem [shape: bf16[3,128], index: 8, kind: input, shape index: {}]
  %s9 = inlined_call_operand.vmem [shape: f32[3,1], index: 9, kind: input, shape index: {}]
  %s10 = inlined_call_operand.vmem [shape: f32[2,3,256], index: 10, kind: output, shape index: {}]
  %s11 = sld [smem:[#allocation0]]
  $region62: #{tpu_custom_call.1} parent=0
    _
  %s13 = ssub.s32 1, %s11
  %s14 = scalar_select 0, %s13, %s11
  $region1: #{tpu_custom_call.1} parent=0
    #allocation3 [shape = 'u8[8192]{0}', space=vmem, size = 0x2000, scoped, tag = 'input window, operand 0, single buffered']
    #allocation4 [shape = 's32[1]{0}', space=sflag, size = 0x4, scoped, tag = 'scoped memory for tpu_custom_call.1']
    #allocation5 [shape = 'u8[65536]{0}', space=vmem, size = 0x10000, scoped, tag = 'input window, operand 4, single buffered']
    #allocation6 [shape = 's32[1]{0}', space=sflag, size = 0x4, scoped, tag = 'scoped memory for tpu_custom_call.1']
    #allocation7 [shape = 'u8[65536]{0}', space=vmem, size = 0x10000, scoped, tag = 'input window, operand 5, single buffered']
    %15 = vsyncpa [#allocation4], 0
    %16 = vsyncpa [#allocation6], 0
    // Predicated region
    $region2: #{tpu_custom_call.1} parent=1 // pred_check
      _
    $region3: #{tpu_custom_call.1} parent=1 // pred_check_branch
      %18 = sbr.rel (0) target = $region5
    $region4: #{tpu_custom_call.1} parent=1 // pred_region
      %s20 = ssub.s32 256, 256
      %21 = vsyncadd [#allocation4], %s20
      %s22 = sshll.u32 [#allocation3], 4
      %s23 = int_to_ptr.vmem [resolvable:$true] %s22
      %28 = dma.hbm_to_vmem [thread:$0]  %s0, 256, %s23, [#allocation4], 128, 128, 8
    $region5: #{tpu_custom_call.1} parent=1 // pred_fallthru
      _
    // Predicated region
    $region6: #{tpu_custom_call.1} parent=1 // pred_check
      _
    $region7: #{tpu_custom_call.1} parent=1 // pred_check_branch
      %30 = sbr.rel (0) target = $region9
    $region8: #{tpu_custom_call.1} parent=1 // pred_region
      _
    $region9: #{tpu_custom_call.1} parent=1 // pred_fallthru
      _
    // Predicated region
    $region10: #{tpu_custom_call.1} parent=1 // pred_check
      _
    $region11: #{tpu_custom_call.1} parent=1 // pred_check_branch
      %32 = sbr.rel (0) target = $region13
    $region12: #{tpu_custom_call.1} parent=1 // pred_region
      _
    $region13: #{tpu_custom_call.1} parent=1 // pred_fallthru
      _
    // Predicated region
    $region14: #{tpu_custom_call.1} parent=1 // pred_check
      _
    $region15: #{tpu_custom_call.1} parent=1 // pred_check_branch
      %34 = sbr.rel (0) target = $region17
    $region16: #{tpu_custom_call.1} parent=1 // pred_region
      _
    $region17: #{tpu_custom_call.1} parent=1 // pred_fallthru
      _
    // Predicated region
    $region18: #{tpu_custom_call.1} parent=1 // pred_check
      _
    $region19: #{tpu_custom_call.1} parent=1 // pred_check_branch
      %36 = sbr.rel (0) target = $region21
    $region20: #{tpu_custom_call.1} parent=1 // pred_region
      %s38 = ssub.s32 2048, 2048
      %39 = vsyncadd [#allocation6], %s38
      %s40 = sshll.u32 [#allocation5], 4
      %s41 = int_to_ptr.vmem [resolvable:$true] %s40
      %46 = dma.hbm_to_vmem [thread:$0]  %s4, 2048, %s41, [#allocation6], 64, 64, 4
    $region21: #{tpu_custom_call.1} parent=1 // pred_fallthru
      _
    // Predicated region
    $region22: #{tpu_custom_call.1} parent=1 // pred_check
      _
    $region23: #{tpu_custom_call.1} parent=1 // pred_check_branch
      %48 = sbr.rel (0) target = $region25
    $region24: #{tpu_custom_call.1} parent=1 // pred_region
      %s50 = ssub.s32 2048, 2048
      %51 = vsyncadd [#allocation6], %s50
      %s52 = sshll.u32 [#allocation7], 4
      %s53 = int_to_ptr.vmem [resolvable:$true] %s52
      %58 = dma.hbm_to_vmem [thread:$0]  %s5, 2048, %s53, [#allocation6], 128, 128, 8
    $region25: #{tpu_custom_call.1} parent=1 // pred_fallthru
      _
    // Predicated region
    $region26: #{tpu_custom_call.1} parent=1 // pred_check
      _
    $region27: #{tpu_custom_call.1} parent=1 // pred_check_branch
      %60 = sbr.rel (0) target = $region29
    $region28: #{tpu_custom_call.1} parent=1 // pred_region
      _
    $region29: #{tpu_custom_call.1} parent=1 // pred_fallthru
      _
    // Predicated region
    $region30: #{tpu_custom_call.1} parent=1 // pred_check
      _
    $region31: #{tpu_custom_call.1} parent=1 // pred_check_branch
      %62 = sbr.rel (0) target = $region33
    $region32: #{tpu_custom_call.1} parent=1 // pred_region
      _
    $region33: #{tpu_custom_call.1} parent=1 // pred_fallthru
      _
    // Predicated region
    $region34: #{tpu_custom_call.1} parent=1 // pred_check
      _
    $region35: #{tpu_custom_call.1} parent=1 // pred_check_branch
      %64 = sbr.rel (0) target = $region37
    $region36: #{tpu_custom_call.1} parent=1 // pred_region
      _
    $region37: #{tpu_custom_call.1} parent=1 // pred_fallthru
      _
    // Predicated region
    $region38: #{tpu_custom_call.1} parent=1 // pred_check
      _
    $region39: #{tpu_custom_call.1} parent=1 // pred_check_branch
      %66 = sbr.rel (0) target = $region41
    $region40: #{tpu_custom_call.1} parent=1 // pred_region
      _
    $region41: #{tpu_custom_call.1} parent=1 // pred_fallthru
      _
    // Predicated region
    $region42: #{tpu_custom_call.1} parent=1 // pred_check
      _
    $region43: #{tpu_custom_call.1} parent=1 // pred_check_branch
      %68 = sbr.rel (0) target = $region45
    $region44: #{tpu_custom_call.1} parent=1 // pred_region
      %69 = dma.done [#allocation4], 256
    $region45: #{tpu_custom_call.1} parent=1 // pred_fallthru
      _
    // Predicated region
    $region46: #{tpu_custom_call.1} parent=1 // pred_check
      _
    $region47: #{tpu_custom_call.1} parent=1 // pred_check_branch
      %71 = sbr.rel (0) target = $region49
    $region48: #{tpu_custom_call.1} parent=1 // pred_region
      %72 = dma.done [#allocation6], 2048
    $region49: #{tpu_custom_call.1} parent=1 // pred_fallthru
      _
    // Predicated region
    $region50: #{tpu_custom_call.1} parent=1 // pred_check
      _
    $region51: #{tpu_custom_call.1} parent=1 // pred_check_branch
      %74 = sbr.rel (0) target = $region53
    $region52: #{tpu_custom_call.1} parent=1 // pred_region
      %75 = dma.done [#allocation6], 2048
    $region53: #{tpu_custom_call.1} parent=1 // pred_fallthru
      _
    %v77 = vld [vmem:[%s1] sm:$0xf]
    %v78 = vld [vmem:[%s1 + $0x4] sm:$0xf]
    %v79 = vld [vmem:[%s1 + $0x8] sm:$0xf]
    %v80 = vld [vmem:[%s1 + $0xc] sm:$0xf]
    %v81 = vld [vmem:[#allocation3] sm:$0xff]
    %v82 = vld [vmem:[%s2] sm:$0xff]
    %v83 = vld [vmem:[%s2 + $0x8] sm:$0xff]
    %v84 = vld [vmem:[%s2 + $0x10] sm:$0xff]
    %v85 = vld [vmem:[%s2 + $0x18] sm:$0xff]
    %87 = vset.pattern.permute.xlu0 0
    %88 = vperm.xlu0 %87, %v82
    %v89 = vpop.permute.xlu0 %88
    %92 = vset.pattern.permute.xlu0 0
    %93 = vperm.xlu0 %92, %v83
    %v94 = vpop.permute.xlu0 %93
    %97 = vset.pattern.permute.xlu0 0
    %98 = vperm.xlu0 %97, %v84
    %v99 = vpop.permute.xlu0 %98
    %102 = vset.pattern.permute.xlu0 0
    %103 = vperm.xlu0 %102, %v85
    %v104 = vpop.permute.xlu0 %103
    %v110 = vunpack.c.l.b16 %v77
    %v111 = vunpack.c.l.b16 %v78
    %v112 = vunpack.c.l.b16 %v79
    %v113 = vunpack.c.l.b16 %v80
    %v114 = vpack.c.b16 %v111, %v110
    %v115 = vpack.c.b16 %v113, %v112
    %v117 = vunpack.c.l.b16 %v81
    %v118 = vunpack.c.h.b16 %v81
    %v119 = vpack.c.b16 %v117, %v117
    %v120 = vpack.c.b16 %v118, %v118
    %vm121 = vcmask 64512
    %v123 = vsel %vm121, %v114, 0
    %v126 = vsel %vm121, %v115, 0
    %vm128 = vcmask 1043456
    %v130 = vsel %vm128, %v119, 0
    %v133 = vsel %vm128, %v120, 0
    %135 = vmatprep.subr.bf16.mxu0 %v133
    %136 = vmatpush1.bf16.msra.mxu0 %v130
    %137 = vmatprep.subr.bf16.mxu0 0
    %138 = vmatpush1.bf16.msra.mxu0 0
    %139 = vmatprep.subr.bf16.mxu0 0
    %140 = vmatpush1.bf16.msra.mxu0 0
    %141 = vmatprep.subr.bf16.mxu0 0
    %142 = vmatpush1.bf16.msra.mxu0 0
    %143 = vmatprep.subr.bf16.mxu0 0
    %144 = vmatpush1.bf16.msra.mxu0 0
    %145 = vmatprep.subr.bf16.mxu0 0
    %146 = vmatpush1.bf16.msra.mxu0 0
    %147 = vmatprep.subr.bf16.mxu0 0
    %148 = vmatpush1.bf16.msra.mxu0 0
    %149 = vmatprep.subr.bf16.mxu0 0
    %150 = vmatpush1.bf16.msra.mxu0 0
    %151 = vmatprep.subr.bf16.mxu0 0
    %152 = vmatpush1.bf16.msra.mxu0 0
    %153 = vmatprep.subr.bf16.mxu0 0
    %154 = vmatpush1.bf16.msra.mxu0 0
    %155 = vmatprep.subr.bf16.mxu0 0
    %156 = vmatpush1.bf16.msra.mxu0 0
    %157 = vmatprep.subr.bf16.mxu0 0
    %158 = vmatpush1.bf16.msra.mxu0 0
    %159 = vmatprep.subr.bf16.mxu0 0
    %160 = vmatpush1.bf16.msra.mxu0 0
    %161 = vmatprep.subr.bf16.mxu0 0
    %162 = vmatpush1.bf16.msra.mxu0 0
    %163 = vmatprep.subr.bf16.mxu0 0
    %164 = vmatpush1.bf16.msra.mxu0 0
    %165 = vmatprep.subr.bf16.mxu0 0
    %166 = vmatpush1.bf16.msra.mxu0 0
    %167 = vmatprep.mubr.bf16.mxu0 0
    %168 = vmatmul.mubr.bf16.gmra.mrb[0].mxu0 %v123
    %v169 = vpop.f32.mrb[0].mxu0
    %v170 = vadd.f32 %v89, %v169
    %v171 = vpop.f32.mrb[0].mxu0
    %v172 = vadd.f32 %v89, %v171
    %v173 = vpop.f32.mrb[0].mxu0
    %v174 = vadd.f32 %v94, %v173
    %v175 = vpop.f32.mrb[0].mxu0
    %v176 = vadd.f32 %v94, %v175
    %177 = vmatprep.mubr.bf16.mxu0 0
    %178 = vmatmul.mubr.bf16.gmra.mrb[0].mxu0 %v126
    %v179 = vpop.f32.mrb[0].mxu0
    %v180 = vadd.f32 %v99, %v179
    %v181 = vpop.f32.mrb[0].mxu0
    %v182 = vadd.f32 %v99, %v181
    %v183 = vpop.f32.mrb[0].mxu0
    %v184 = vadd.f32 %v104, %v183
    %v185 = vpop.f32.mrb[0].mxu0
    %v186 = vadd.f32 %v104, %v185
    %187 = vdwg.mxu0
    %188 = vst [vmem:[#allocation2] sm:$0xff] %v170
    %189 = vst [vmem:[#allocation2 + $0x8] sm:$0xff] %v172
    %190 = vst [vmem:[#allocation2 + $0x10] sm:$0xff] %v174
    %191 = vst [vmem:[#allocation2 + $0x18] sm:$0xff] %v176
    %192 = vst [vmem:[#allocation2 + $0x20] sm:$0xff] %v180
    %193 = vst [vmem:[#allocation2 + $0x28] sm:$0xff] %v182
    %194 = vst [vmem:[#allocation2 + $0x30] sm:$0xff] %v184
    %195 = vst [vmem:[#allocation2 + $0x38] sm:$0xff] %v186
    %v196 = vld [vmem:[%s1] sm:$0xf]
    %v197 = vld [vmem:[%s1 + $0x4] sm:$0xf]
    %v198 = vld [vmem:[%s1 + $0x8] sm:$0xf]
    %v199 = vld [vmem:[%s1 + $0xc] sm:$0xf]
    %s200 = scalar_lea.vmem [#allocation3], 8
    %v201 = vld [vmem:[%s200] sm:$0xff]
    %v202 = vld [vmem:[%s2] sm:$0xff]
    %v203 = vld [vmem:[%s2 + $0x8] sm:$0xff]
    %v204 = vld [vmem:[%s2 + $0x10] sm:$0xff]
    %v205 = vld [vmem:[%s2 + $0x18] sm:$0xff]
    %207 = vset.pattern.permute.xlu0 0
    %208 = vperm.xlu0 %207, %v202
    %v209 = vpop.permute.xlu0 %208
    %212 = vset.pattern.permute.xlu0 0
    %213 = vperm.xlu0 %212, %v203
    %v214 = vpop.permute.xlu0 %213
    %217 = vset.pattern.permute.xlu0 0
    %218 = vperm.xlu0 %217, %v204
    %v219 = vpop.permute.xlu0 %218
    %222 = vset.pattern.permute.xlu0 0
    %223 = vperm.xlu0 %222, %v205
    %v224 = vpop.permute.xlu0 %223
    %v230 = vunpack.c.l.b16 %v196
    %v231 = vunpack.c.l.b16 %v197
    %v232 = vunpack.c.l.b16 %v198
    %v233 = vunpack.c.l.b16 %v199
    %v234 = vpack.c.b16 %v231, %v230
    %v235 = vpack.c.b16 %v233, %v232
    %v237 = vunpack.c.l.b16 %v201
    %v238 = vunpack.c.h.b16 %v201
    %v239 = vpack.c.b16 %v237, %v237
    %v240 = vpack.c.b16 %v238, %v238
    %v242 = vsel %vm121, %v234, 0
    %v245 = vsel %vm121, %v235, 0
    %v248 = vsel %vm128, %v239, 0
    %v251 = vsel %vm128, %v240, 0
    %253 = vmatprep.subr.bf16.mxu0 %v251
    %254 = vmatpush1.bf16.msra.mxu0 %v248
    %255 = vmatprep.subr.bf16.mxu0 0
    %256 = vmatpush1.bf16.msra.mxu0 0
    %257 = vmatprep.subr.bf16.mxu0 0
    %258 = vmatpush1.bf16.msra.mxu0 0
    %259 = vmatprep.subr.bf16.mxu0 0
    %260 = vmatpush1.bf16.msra.mxu0 0
    %261 = vmatprep.subr.bf16.mxu0 0
    %262 = vmatpush1.bf16.msra.mxu0 0
    %263 = vmatprep.subr.bf16.mxu0 0
    %264 = vmatpush1.bf16.msra.mxu0 0
    %265 = vmatprep.subr.bf16.mxu0 0
    %266 = vmatpush1.bf16.msra.mxu0 0
    %267 = vmatprep.subr.bf16.mxu0 0
    %268 = vmatpush1.bf16.msra.mxu0 0
    %269 = vmatprep.subr.bf16.mxu0 0
    %270 = vmatpush1.bf16.msra.mxu0 0
    %271 = vmatprep.subr.bf16.mxu0 0
    %272 = vmatpush1.bf16.msra.mxu0 0
    %273 = vmatprep.subr.bf16.mxu0 0
    %274 = vmatpush1.bf16.msra.mxu0 0
    %275 = vmatprep.subr.bf16.mxu0 0
    %276 = vmatpush1.bf16.msra.mxu0 0
    %277 = vmatprep.subr.bf16.mxu0 0
    %278 = vmatpush1.bf16.msra.mxu0 0
    %279 = vmatprep.subr.bf16.mxu0 0
    %280 = vmatpush1.bf16.msra.mxu0 0
    %281 = vmatprep.subr.bf16.mxu0 0
    %282 = vmatpush1.bf16.msra.mxu0 0
    %283 = vmatprep.subr.bf16.mxu0 0
    %284 = vmatpush1.bf16.msra.mxu0 0
    %285 = vmatprep.mubr.bf16.mxu0 0
    %286 = vmatmul.mubr.bf16.gmra.mrb[0].mxu0 %v242
    %v287 = vpop.f32.mrb[0].mxu0
    %v288 = vadd.f32 %v209, %v287
    %v289 = vpop.f32.mrb[0].mxu0
    %v290 = vadd.f32 %v209, %v289
    %v291 = vpop.f32.mrb[0].mxu0
    %v292 = vadd.f32 %v214, %v291
    %v293 = vpop.f32.mrb[0].mxu0
    %v294 = vadd.f32 %v214, %v293
    %295 = vmatprep.mubr.bf16.mxu0 0
    %296 = vmatmul.mubr.bf16.gmra.mrb[0].mxu0 %v245
    %v297 = vpop.f32.mrb[0].mxu0
    %v298 = vadd.f32 %v219, %v297
    %v299 = vpop.f32.mrb[0].mxu0
    %v300 = vadd.f32 %v219, %v299
    %v301 = vpop.f32.mrb[0].mxu0
    %v302 = vadd.f32 %v224, %v301
    %v303 = vpop.f32.mrb[0].mxu0
    %v304 = vadd.f32 %v224, %v303
    %305 = vdwg.mxu0
    %306 = vst [vmem:[#allocation2 + $0x40] sm:$0xff] %v288
    %307 = vst [vmem:[#allocation2 + $0x48] sm:$0xff] %v290
    %308 = vst [vmem:[#allocation2 + $0x50] sm:$0xff] %v292
    %309 = vst [vmem:[#allocation2 + $0x58] sm:$0xff] %v294
    %310 = vst [vmem:[#allocation2 + $0x60] sm:$0xff] %v298
    %311 = vst [vmem:[#allocation2 + $0x68] sm:$0xff] %v300
    %312 = vst [vmem:[#allocation2 + $0x70] sm:$0xff] %v302
    %313 = vst [vmem:[#allocation2 + $0x78] sm:$0xff] %v304
    %v314 = vld [vmem:[#allocation2] sm:$0xff]
    %v315 = vld [vmem:[#allocation2 + $0x8] sm:$0xff]
    %v316 = vld [vmem:[#allocation2 + $0x10] sm:$0xff]
    %v317 = vld [vmem:[#allocation2 + $0x18] sm:$0xff]
    %v318 = vld [vmem:[#allocation2 + $0x20] sm:$0xff]
    %v319 = vld [vmem:[#allocation2 + $0x28] sm:$0xff]
    %v320 = vld [vmem:[#allocation2 + $0x30] sm:$0xff]
    %v321 = vld [vmem:[#allocation2 + $0x38] sm:$0xff]
    %v322 = vld [vmem:[#allocation2 + $0x40] sm:$0xff]
    %v323 = vld [vmem:[#allocation2 + $0x48] sm:$0xff]
    %v324 = vld [vmem:[#allocation2 + $0x50] sm:$0xff]
    %v325 = vld [vmem:[#allocation2 + $0x58] sm:$0xff]
    %v326 = vld [vmem:[#allocation2 + $0x60] sm:$0xff]
    %v327 = vld [vmem:[#allocation2 + $0x68] sm:$0xff]
    %v328 = vld [vmem:[#allocation2 + $0x70] sm:$0xff]
    %v329 = vld [vmem:[#allocation2 + $0x78] sm:$0xff]
    %v330 = vpack.c.bf16 %v316, %v314
    %v331 = vpack.c.bf16 %v317, %v315
    %v332 = vpack.c.bf16 %v320, %v318
    %v333 = vpack.c.bf16 %v321, %v319
    %v334 = vpack.c.bf16 %v324, %v322
    %v335 = vpack.c.bf16 %v325, %v323
    %v336 = vpack.c.bf16 %v328, %v326
    %v337 = vpack.c.bf16 %v329, %v327
    %v338 = vld [vmem:[#allocation5] sm:$0xf]
    %v339 = vld [vmem:[#allocation5 + $0x4] sm:$0xf]
    %v340 = vld [vmem:[#allocation5 + $0x8] sm:$0xf]
    %v341 = vld [vmem:[#allocation5 + $0xc] sm:$0xf]
    %v342 = vld [vmem:[#allocation5 + $0x10] sm:$0xf]
    %v343 = vld [vmem:[#allocation5 + $0x14] sm:$0xf]
    %v344 = vld [vmem:[#allocation5 + $0x18] sm:$0xf]
    %v345 = vld [vmem:[#allocation5 + $0x1c] sm:$0xf]
    %v346 = vld [vmem:[#allocation5 + $0x20] sm:$0xf]
    %v347 = vld [vmem:[#allocation5 + $0x24] sm:$0xf]
    %v348 = vld [vmem:[#allocation5 + $0x28] sm:$0xf]
    %v349 = vld [vmem:[#allocation5 + $0x2c] sm:$0xf]
    %v350 = vld [vmem:[#allocation5 + $0x30] sm:$0xf]
    %v351 = vld [vmem:[#allocation5 + $0x34] sm:$0xf]
    %v352 = vld [vmem:[#allocation5 + $0x38] sm:$0xf]
    %v353 = vld [vmem:[#allocation5 + $0x3c] sm:$0xf]
    %v354 = vld [vmem:[#allocation5 + $0x40] sm:$0xf]
    %v355 = vld [vmem:[#allocation5 + $0x44] sm:$0xf]
    %v356 = vld [vmem:[#allocation5 + $0x48] sm:$0xf]
    %v357 = vld [vmem:[#allocation5 + $0x4c] sm:$0xf]
    %v358 = vld [vmem:[#allocation5 + $0x50] sm:$0xf]
    %v359 = vld [vmem:[#allocation5 + $0x54] sm:$0xf]
    %v360 = vld [vmem:[#allocation5 + $0x58] sm:$0xf]
    %v361 = vld [vmem:[#allocation5 + $0x5c] sm:$0xf]
    %v362 = vld [vmem:[#allocation5 + $0x60] sm:$0xf]
    %v363 = vld [vmem:[#allocation5 + $0x64] sm:$0xf]
    %v364 = vld [vmem:[#allocation5 + $0x68] sm:$0xf]
    %v365 = vld [vmem:[#allocation5 + $0x6c] sm:$0xf]
    %v366 = vld [vmem:[#allocation5 + $0x70] sm:$0xf]
    %v367 = vld [vmem:[#allocation5 + $0x74] sm:$0xf]
    %v368 = vld [vmem:[#allocation5 + $0x78] sm:$0xf]
    %v369 = vld [vmem:[#allocation5 + $0x7c] sm:$0xf]
    %v402 = vunpack.c.l.b16 %v338
    %v403 = vunpack.c.l.b16 %v339
    %v404 = vunpack.c.l.b16 %v340
    %v405 = vunpack.c.l.b16 %v341
    %v406 = vunpack.c.l.b16 %v342
    %v407 = vunpack.c.l.b16 %v343
    %v408 = vunpack.c.l.b16 %v344
    %v409 = vunpack.c.l.b16 %v345
    %v410 = vunpack.c.l.b16 %v346
    %v411 = vunpack.c.l.b16 %v347
    %v412 = vunpack.c.l.b16 %v348
    %v413 = vunpack.c.l.b16 %v349
    %v414 = vunpack.c.l.b16 %v350
    %v415 = vunpack.c.l.b16 %v351
    %v416 = vunpack.c.l.b16 %v352
    %v417 = vunpack.c.l.b16 %v353
    %v418 = vunpack.c.l.b16 %v354
    %v419 = vunpack.c.l.b16 %v355
    %v420 = vunpack.c.l.b16 %v356
    %v421 = vunpack.c.l.b16 %v357
    %v422 = vunpack.c.l.b16 %v358
    %v423 = vunpack.c.l.b16 %v359
    %v424 = vunpack.c.l.b16 %v360
    %v425 = vunpack.c.l.b16 %v361
    %v426 = vunpack.c.l.b16 %v362
    %v427 = vunpack.c.l.b16 %v363
    %v428 = vunpack.c.l.b16 %v364
    %v429 = vunpack.c.l.b16 %v365
    %v430 = vunpack.c.l.b16 %v366
    %v431 = vunpack.c.l.b16 %v367
    %v432 = vunpack.c.l.b16 %v368
    %v433 = vunpack.c.l.b16 %v369
    %v434 = vpack.c.b16 %v403, %v402
    %v435 = vpack.c.b16 %v405, %v404
    %v436 = vpack.c.b16 %v407, %v406
    %v437 = vpack.c.b16 %v409, %v408
    %v438 = vpack.c.b16 %v411, %v410
    %v439 = vpack.c.b16 %v413, %v412
    %v440 = vpack.c.b16 %v415, %v414
    %v441 = vpack.c.b16 %v417, %v416
    %v442 = vpack.c.b16 %v419, %v418
    %v443 = vpack.c.b16 %v421, %v420
    %v444 = vpack.c.b16 %v423, %v422
    %v445 = vpack.c.b16 %v425, %v424
    %v446 = vpack.c.b16 %v427, %v426
    %v447 = vpack.c.b16 %v429, %v428
    %v448 = vpack.c.b16 %v431, %v430
    %v449 = vpack.c.b16 %v433, %v432
    %466 = vmatprep.subr.bf16.mxu0 0
    %467 = vmatpush1.bf16.msra.mxu0 %v434
    %468 = vmatprep.subr.bf16.mxu0 0
    %469 = vmatpush1.bf16.msra.mxu0 %v435
    %470 = vmatprep.subr.bf16.mxu0 0
    %471 = vmatpush1.bf16.msra.mxu0 %v436
    %472 = vmatprep.subr.bf16.mxu0 0
    %473 = vmatpush1.bf16.msra.mxu0 %v437
    %474 = vmatprep.subr.bf16.mxu0 0
    %475 = vmatpush1.bf16.msra.mxu0 %v438
    %476 = vmatprep.subr.bf16.mxu0 0
    %477 = vmatpush1.bf16.msra.mxu0 %v439
    %478 = vmatprep.subr.bf16.mxu0 0
    %479 = vmatpush1.bf16.msra.mxu0 %v440
    %480 = vmatprep.subr.bf16.mxu0 0
    %481 = vmatpush1.bf16.msra.mxu0 %v441
    %482 = vmatprep.subr.bf16.mxu0 0
    %483 = vmatpush1.bf16.msra.mxu0 %v442
    %484 = vmatprep.subr.bf16.mxu0 0
    %485 = vmatpush1.bf16.msra.mxu0 %v443
    %486 = vmatprep.subr.bf16.mxu0 0
    %487 = vmatpush1.bf16.msra.mxu0 %v444
    %488 = vmatprep.subr.bf16.mxu0 0
    %489 = vmatpush1.bf16.msra.mxu0 %v445
    %490 = vmatprep.subr.bf16.mxu0 0
    %491 = vmatpush1.bf16.msra.mxu0 %v446
    %492 = vmatprep.subr.bf16.mxu0 0
    %493 = vmatpush1.bf16.msra.mxu0 %v447
    %494 = vmatprep.subr.bf16.mxu0 0
    %495 = vmatpush1.bf16.msra.mxu0 %v448
    %496 = vmatprep.subr.bf16.mxu0 0
    %497 = vmatpush1.bf16.msra.mxu0 %v449
    %498 = vmatprep.mubr.bf16.mxu0 %v331
    %499 = vmatmul.mubr.bf16.gmra.mrb[0].mxu0 %v330
    %v500 = vpop.f32.mrb[0].mxu0
    %v501 = vadd.f32 0.0, %v500
    %v502 = vpop.f32.mrb[0].mxu0
    %v503 = vpop.f32.mrb[0].mxu0
    %v504 = vadd.f32 0.0, %v503
    %v505 = vpop.f32.mrb[0].mxu0
    %506 = vmatprep.mubr.bf16.mxu0 %v333
    %507 = vmatmul.mubr.bf16.gmra.mrb[0].mxu0 %v332
    %v508 = vpop.f32.mrb[0].mxu0
    %v509 = vadd.f32 0.0, %v508
    %v510 = vpop.f32.mrb[0].mxu0
    %v511 = vpop.f32.mrb[0].mxu0
    %v512 = vadd.f32 0.0, %v511
    %v513 = vpop.f32.mrb[0].mxu0
    %514 = vmatprep.mubr.bf16.mxu0 %v335
    %515 = vmatmul.mubr.bf16.gmra.mrb[0].mxu0 %v334
    %v516 = vpop.f32.mrb[0].mxu0
    %v517 = vadd.f32 0.0, %v516
    %v518 = vpop.f32.mrb[0].mxu0
    %v519 = vpop.f32.mrb[0].mxu0
    %v520 = vadd.f32 0.0, %v519
    %v521 = vpop.f32.mrb[0].mxu0
    %522 = vmatprep.mubr.bf16.mxu0 %v337
    %523 = vmatmul.mubr.bf16.gmra.mrb[0].mxu0 %v336
    %v524 = vpop.f32.mrb[0].mxu0
    %v525 = vadd.f32 0.0, %v524
    %v526 = vpop.f32.mrb[0].mxu0
    %v527 = vpop.f32.mrb[0].mxu0
    %v528 = vadd.f32 0.0, %v527
    %v529 = vpop.f32.mrb[0].mxu0
    %530 = vdwg.mxu0
    %v531 = vld [vmem:[%s3] sm:$0xff]
    %v532 = vld [vmem:[%s3 + $0x8] sm:$0xff]
    %v533 = vld [vmem:[%s3 + $0x10] sm:$0xff]
    %v534 = vld [vmem:[%s3 + $0x18] sm:$0xff]
    %v535 = vld [vmem:[%s3 + $0x20] sm:$0xff]
    %v536 = vld [vmem:[%s3 + $0x28] sm:$0xff]
    %v537 = vld [vmem:[%s3 + $0x30] sm:$0xff]
    %v538 = vld [vmem:[%s3 + $0x38] sm:$0xff]
    %v539 = vmul.f32 %v501, %v531
    %v540 = vmul.f32 %v504, %v532
    %v541 = vmul.f32 %v509, %v533
    %v542 = vmul.f32 %v512, %v534
    %v543 = vmul.f32 %v517, %v535
    %v544 = vmul.f32 %v520, %v536
    %v545 = vmul.f32 %v525, %v537
    %v546 = vmul.f32 %v528, %v538
    %v547 = vpack.c.bf16 %v540, %v539
    %v548 = vpack.c.bf16 %v542, %v541
    %v549 = vpack.c.bf16 %v544, %v543
    %v550 = vpack.c.bf16 %v546, %v545
    %v551 = vld [vmem:[#allocation7] sm:$0xff]
    %v552 = vld [vmem:[#allocation7 + $0x8] sm:$0xff]
    %v553 = vld [vmem:[#allocation7 + $0x10] sm:$0xff]
    %v554 = vld [vmem:[#allocation7 + $0x18] sm:$0xff]
    %v555 = vld [vmem:[#allocation7 + $0x20] sm:$0xff]
    %v556 = vld [vmem:[#allocation7 + $0x28] sm:$0xff]
    %v557 = vld [vmem:[#allocation7 + $0x30] sm:$0xff]
    %v558 = vld [vmem:[#allocation7 + $0x38] sm:$0xff]
    %v559 = vld [vmem:[#allocation7 + $0x40] sm:$0xff]
    %v560 = vld [vmem:[#allocation7 + $0x48] sm:$0xff]
    %v561 = vld [vmem:[#allocation7 + $0x50] sm:$0xff]
    %v562 = vld [vmem:[#allocation7 + $0x58] sm:$0xff]
    %v563 = vld [vmem:[#allocation7 + $0x60] sm:$0xff]
    %v564 = vld [vmem:[#allocation7 + $0x68] sm:$0xff]
    %v565 = vld [vmem:[#allocation7 + $0x70] sm:$0xff]
    %v566 = vld [vmem:[#allocation7 + $0x78] sm:$0xff]
    %v583 = vunpack.c.l.b16 %v551
    %v584 = vunpack.c.h.b16 %v551
    %v585 = vunpack.c.l.b16 %v552
    %v586 = vunpack.c.h.b16 %v552
    %v587 = vunpack.c.l.b16 %v553
    %v588 = vunpack.c.h.b16 %v553
    %v589 = vunpack.c.l.b16 %v554
    %v590 = vunpack.c.h.b16 %v554
    %v591 = vunpack.c.l.b16 %v555
    %v592 = vunpack.c.h.b16 %v555
    %v593 = vunpack.c.l.b16 %v556
    %v594 = vunpack.c.h.b16 %v556
    %v595 = vunpack.c.l.b16 %v557
    %v596 = vunpack.c.h.b16 %v557
    %v597 = vunpack.c.l.b16 %v558
    %v598 = vunpack.c.h.b16 %v558
    %v599 = vunpack.c.l.b16 %v559
    %v600 = vunpack.c.h.b16 %v559
    %v601 = vunpack.c.l.b16 %v560
    %v602 = vunpack.c.h.b16 %v560
    %v603 = vunpack.c.l.b16 %v561
    %v604 = vunpack.c.h.b16 %v561
    %v605 = vunpack.c.l.b16 %v562
    %v606 = vunpack.c.h.b16 %v562
    %v607 = vunpack.c.l.b16 %v563
    %v608 = vunpack.c.h.b16 %v563
    %v609 = vunpack.c.l.b16 %v564
    %v610 = vunpack.c.h.b16 %v564
    %v611 = vunpack.c.l.b16 %v565
    %v612 = vunpack.c.h.b16 %v565
    %v613 = vunpack.c.l.b16 %v566
    %v614 = vunpack.c.h.b16 %v566
    %v615 = vpack.c.b16 %v585, %v583
    %v616 = vpack.c.b16 %v586, %v584
    %v617 = vpack.c.b16 %v589, %v587
    %v618 = vpack.c.b16 %v590, %v588
    %v619 = vpack.c.b16 %v593, %v591
    %v620 = vpack.c.b16 %v594, %v592
    %v621 = vpack.c.b16 %v597, %v595
    %v622 = vpack.c.b16 %v598, %v596
    %v623 = vpack.c.b16 %v601, %v599
    %v624 = vpack.c.b16 %v602, %v600
    %v625 = vpack.c.b16 %v605, %v603
    %v626 = vpack.c.b16 %v606, %v604
    %v627 = vpack.c.b16 %v609, %v607
    %v628 = vpack.c.b16 %v610, %v608
    %v629 = vpack.c.b16 %v613, %v611
    %v630 = vpack.c.b16 %v614, %v612
    %647 = vmatprep.subr.bf16.mxu0 %v616
    %648 = vmatpush1.bf16.msra.mxu0 %v615
    %649 = vmatprep.subr.bf16.mxu0 %v618
    %650 = vmatpush1.bf16.msra.mxu0 %v617
    %651 = vmatprep.subr.bf16.mxu0 %v620
    %652 = vmatpush1.bf16.msra.mxu0 %v619
    %653 = vmatprep.subr.bf16.mxu0 %v622
    %654 = vmatpush1.bf16.msra.mxu0 %v621
    %655 = vmatprep.subr.bf16.mxu0 %v624
    %656 = vmatpush1.bf16.msra.mxu0 %v623
    %657 = vmatprep.subr.bf16.mxu0 %v626
    %658 = vmatpush1.bf16.msra.mxu0 %v625
    %659 = vmatprep.subr.bf16.mxu0 %v628
    %660 = vmatpush1.bf16.msra.mxu0 %v627
    %661 = vmatprep.subr.bf16.mxu0 %v630
    %662 = vmatpush1.bf16.msra.mxu0 %v629
    %663 = vmatprep.subr.bf16.mxu0 0
    %664 = vmatpush1.bf16.msra.mxu0 0
    %665 = vmatprep.subr.bf16.mxu0 0
    %666 = vmatpush1.bf16.msra.mxu0 0
    %667 = vmatprep.subr.bf16.mxu0 0
    %668 = vmatpush1.bf16.msra.mxu0 0
    %669 = vmatprep.subr.bf16.mxu0 0
    %670 = vmatpush1.bf16.msra.mxu0 0
    %671 = vmatprep.subr.bf16.mxu0 0
    %672 = vmatpush1.bf16.msra.mxu0 0
    %673 = vmatprep.subr.bf16.mxu0 0
    %674 = vmatpush1.bf16.msra.mxu0 0
    %675 = vmatprep.subr.bf16.mxu0 0
    %676 = vmatpush1.bf16.msra.mxu0 0
    %677 = vmatprep.subr.bf16.mxu0 0
    %678 = vmatpush1.bf16.msra.mxu0 0
    %679 = vmatprep.mubr.bf16.mxu0 0
    %680 = vmatmul.mubr.bf16.gmra.mrb[0].mxu0 %v547
    %v681 = vpop.f32.mrb[0].mxu0
    %v682 = vadd.f32 0.0, %v681
    %v683 = vpop.f32.mrb[0].mxu0
    %v684 = vadd.f32 0.0, %v683
    %v685 = vpop.f32.mrb[0].mxu0
    %v686 = vadd.f32 0.0, %v685
    %v687 = vpop.f32.mrb[0].mxu0
    %v688 = vadd.f32 0.0, %v687
    %689 = vmatprep.mubr.bf16.mxu0 0
    %690 = vmatmul.mubr.bf16.gmra.mrb[0].mxu0 %v548
    %v691 = vpop.f32.mrb[0].mxu0
    %v692 = vadd.f32 0.0, %v691
    %v693 = vpop.f32.mrb[0].mxu0
    %v694 = vadd.f32 0.0, %v693
    %v695 = vpop.f32.mrb[0].mxu0
    %v696 = vadd.f32 0.0, %v695
    %v697 = vpop.f32.mrb[0].mxu0
    %v698 = vadd.f32 0.0, %v697
    %699 = vmatprep.mubr.bf16.mxu0 0
    %700 = vmatmul.mubr.bf16.gmra.mrb[0].mxu0 %v549
    %v701 = vpop.f32.mrb[0].mxu0
    %v702 = vadd.f32 0.0, %v701
    %v703 = vpop.f32.mrb[0].mxu0
    %v704 = vadd.f32 0.0, %v703
    %v705 = vpop.f32.mrb[0].mxu0
    %v706 = vadd.f32 0.0, %v705
    %v707 = vpop.f32.mrb[0].mxu0
    %v708 = vadd.f32 0.0, %v707
    %709 = vmatprep.mubr.bf16.mxu0 0
    %710 = vmatmul.mubr.bf16.gmra.mrb[0].mxu0 %v550
    %v711 = vpop.f32.mrb[0].mxu0
    %v712 = vadd.f32 0.0, %v711
    %v713 = vpop.f32.mrb[0].mxu0
    %v714 = vadd.f32 0.0, %v713
    %v715 = vpop.f32.mrb[0].mxu0
    %v716 = vadd.f32 0.0, %v715
    %v717 = vpop.f32.mrb[0].mxu0
    %v718 = vadd.f32 0.0, %v717
    %719 = vdwg.mxu0
    %v720 = vmul.f32 %v682, 0.5
    %v721 = vmul.f32 %v684, 0.5
    %v722 = vmul.f32 %v686, 0.5
    %v723 = vmul.f32 %v688, 0.5
    %v724 = vmul.f32 %v692, 0.5
    %v725 = vmul.f32 %v694, 0.5
    %v726 = vmul.f32 %v696, 0.5
    %v727 = vmul.f32 %v698, 0.5
    %v728 = vmul.f32 %v702, 0.5
    %v729 = vmul.f32 %v704, 0.5
    %v730 = vmul.f32 %v706, 0.5
    %v731 = vmul.f32 %v708, 0.5
    %v732 = vmul.f32 %v712, 0.5
    %v733 = vmul.f32 %v714, 0.5
    %v734 = vmul.f32 %v716, 0.5
    %v735 = vmul.f32 %v718, 0.5
    %v736 = vmul.f32 %v682, 0.70710677
    %v737 = vmul.f32 %v684, 0.70710677
    %v738 = vmul.f32 %v686, 0.70710677
    %v739 = vmul.f32 %v688, 0.70710677
    %v740 = vmul.f32 %v692, 0.70710677
    %v741 = vmul.f32 %v694, 0.70710677
    %v742 = vmul.f32 %v696, 0.70710677
    %v743 = vmul.f32 %v698, 0.70710677
    %v744 = vmul.f32 %v702, 0.70710677
    %v745 = vmul.f32 %v704, 0.70710677
    %v746 = vmul.f32 %v706, 0.70710677
    %v747 = vmul.f32 %v708, 0.70710677
    %v748 = vmul.f32 %v712, 0.70710677
    %v749 = vmul.f32 %v714, 0.70710677
    %v750 = vmul.f32 %v716, 0.70710677
    %v751 = vmul.f32 %v718, 0.70710677
    %vm752 = vcmp.ge.f32.partialorder %v736, 0.0
    %vm753 = vcmp.ge.f32.partialorder %v737, 0.0
    %vm754 = vcmp.ge.f32.partialorder %v738, 0.0
    %vm755 = vcmp.ge.f32.partialorder %v739, 0.0
    %vm756 = vcmp.ge.f32.partialorder %v740, 0.0
    %vm757 = vcmp.ge.f32.partialorder %v741, 0.0
    %vm758 = vcmp.ge.f32.partialorder %v742, 0.0
    %vm759 = vcmp.ge.f32.partialorder %v743, 0.0
    %vm760 = vcmp.ge.f32.partialorder %v744, 0.0
    %vm761 = vcmp.ge.f32.partialorder %v745, 0.0
    %vm762 = vcmp.ge.f32.partialorder %v746, 0.0
    %vm763 = vcmp.ge.f32.partialorder %v747, 0.0
    %vm764 = vcmp.ge.f32.partialorder %v748, 0.0
    %vm765 = vcmp.ge.f32.partialorder %v749, 0.0
    %vm766 = vcmp.ge.f32.partialorder %v750, 0.0
    %vm767 = vcmp.ge.f32.partialorder %v751, 0.0
    %v768 = vsel %vm752, 1.0, -1.0
    %v769 = vsel %vm753, 1.0, -1.0
    %v770 = vsel %vm754, 1.0, -1.0
    %v771 = vsel %vm755, 1.0, -1.0
    %v772 = vsel %vm756, 1.0, -1.0
    %v773 = vsel %vm757, 1.0, -1.0
    %v774 = vsel %vm758, 1.0, -1.0
    %v775 = vsel %vm759, 1.0, -1.0
    %v776 = vsel %vm760, 1.0, -1.0
    %v777 = vsel %vm761, 1.0, -1.0
    %v778 = vsel %vm762, 1.0, -1.0
    %v779 = vsel %vm763, 1.0, -1.0
    %v780 = vsel %vm764, 1.0, -1.0
    %v781 = vsel %vm765, 1.0, -1.0
    %v782 = vsel %vm766, 1.0, -1.0
    %v783 = vsel %vm767, 1.0, -1.0
    %v784 = vand.u32 2147483647, %v736
    %v785 = vand.u32 2147483647, %v737
    %v786 = vand.u32 2147483647, %v738
    %v787 = vand.u32 2147483647, %v739
    %v788 = vand.u32 2147483647, %v740
    %v789 = vand.u32 2147483647, %v741
    %v790 = vand.u32 2147483647, %v742
    %v791 = vand.u32 2147483647, %v743
    %v792 = vand.u32 2147483647, %v744
    %v793 = vand.u32 2147483647, %v745
    %v794 = vand.u32 2147483647, %v746
    %v795 = vand.u32 2147483647, %v747
    %v796 = vand.u32 2147483647, %v748
    %v797 = vand.u32 2147483647, %v749
    %v798 = vand.u32 2147483647, %v750
    %v799 = vand.u32 2147483647, %v751
    %v800 = vmul.f32 %v784, 0.3275911
    %v801 = vmul.f32 %v785, 0.3275911
    %v802 = vmul.f32 %v786, 0.3275911
    %v803 = vmul.f32 %v787, 0.3275911
    %v804 = vmul.f32 %v788, 0.3275911
    %v805 = vmul.f32 %v789, 0.3275911
    %v806 = vmul.f32 %v790, 0.3275911
    %v807 = vmul.f32 %v791, 0.3275911
    %v808 = vmul.f32 %v792, 0.3275911
    %v809 = vmul.f32 %v793, 0.3275911
    %v810 = vmul.f32 %v794, 0.3275911
    %v811 = vmul.f32 %v795, 0.3275911
    %v812 = vmul.f32 %v796, 0.3275911
    %v813 = vmul.f32 %v797, 0.3275911
    %v814 = vmul.f32 %v798, 0.3275911
    %v815 = vmul.f32 %v799, 0.3275911
    %v816 = vadd.f32 %v800, 1.0
    %v817 = vadd.f32 %v801, 1.0
    %v818 = vadd.f32 %v802, 1.0
    %v819 = vadd.f32 %v803, 1.0
    %v820 = vadd.f32 %v804, 1.0
    %v821 = vadd.f32 %v805, 1.0
    %v822 = vadd.f32 %v806, 1.0
    %v823 = vadd.f32 %v807, 1.0
    %v824 = vadd.f32 %v808, 1.0
    %v825 = vadd.f32 %v809, 1.0
    %v826 = vadd.f32 %v810, 1.0
    %v827 = vadd.f32 %v811, 1.0
    %v828 = vadd.f32 %v812, 1.0
    %v829 = vadd.f32 %v813, 1.0
    %v830 = vadd.f32 %v814, 1.0
    %v831 = vadd.f32 %v815, 1.0
    %v832 = vrcp.pop %v816
    %v833 = vrcp.pop %v817
    %v834 = vrcp.pop %v818
    %v835 = vrcp.pop %v819
    %v836 = vrcp.pop %v820
    %v837 = vrcp.pop %v821
    %v838 = vrcp.pop %v822
    %v839 = vrcp.pop %v823
    %v840 = vrcp.pop %v824
    %v841 = vrcp.pop %v825
    %v842 = vrcp.pop %v826
    %v843 = vrcp.pop %v827
    %v844 = vrcp.pop %v828
    %v845 = vrcp.pop %v829
    %v846 = vrcp.pop %v830
    %v847 = vrcp.pop %v831
    %v848 = vmul.f32 %v832, 1.0614054
    %v849 = vmul.f32 %v833, 1.0614054
    %v850 = vmul.f32 %v834, 1.0614054
    %v851 = vmul.f32 %v835, 1.0614054
    %v852 = vmul.f32 %v836, 1.0614054
    %v853 = vmul.f32 %v837, 1.0614054
    %v854 = vmul.f32 %v838, 1.0614054
    %v855 = vmul.f32 %v839, 1.0614054
    %v856 = vmul.f32 %v840, 1.0614054
    %v857 = vmul.f32 %v841, 1.0614054
    %v858 = vmul.f32 %v842, 1.0614054
    %v859 = vmul.f32 %v843, 1.0614054
    %v860 = vmul.f32 %v844, 1.0614054
    %v861 = vmul.f32 %v845, 1.0614054
    %v862 = vmul.f32 %v846, 1.0614054
    %v863 = vmul.f32 %v847, 1.0614054
    %v864 = vadd.f32 %v848, -1.4531521
    %v865 = vadd.f32 %v849, -1.4531521
    %v866 = vadd.f32 %v850, -1.4531521
    %v867 = vadd.f32 %v851, -1.4531521
    %v868 = vadd.f32 %v852, -1.4531521
    %v869 = vadd.f32 %v853, -1.4531521
    %v870 = vadd.f32 %v854, -1.4531521
    %v871 = vadd.f32 %v855, -1.4531521
    %v872 = vadd.f32 %v856, -1.4531521
    %v873 = vadd.f32 %v857, -1.4531521
    %v874 = vadd.f32 %v858, -1.4531521
    %v875 = vadd.f32 %v859, -1.4531521
    %v876 = vadd.f32 %v860, -1.4531521
    %v877 = vadd.f32 %v861, -1.4531521
    %v878 = vadd.f32 %v862, -1.4531521
    %v879 = vadd.f32 %v863, -1.4531521
    %v880 = vmul.f32 %v864, %v832
    %v881 = vmul.f32 %v865, %v833
    %v882 = vmul.f32 %v866, %v834
    %v883 = vmul.f32 %v867, %v835
    %v884 = vmul.f32 %v868, %v836
    %v885 = vmul.f32 %v869, %v837
    %v886 = vmul.f32 %v870, %v838
    %v887 = vmul.f32 %v871, %v839
    %v888 = vmul.f32 %v872, %v840
    %v889 = vmul.f32 %v873, %v841
    %v890 = vmul.f32 %v874, %v842
    %v891 = vmul.f32 %v875, %v843
    %v892 = vmul.f32 %v876, %v844
    %v893 = vmul.f32 %v877, %v845
    %v894 = vmul.f32 %v878, %v846
    %v895 = vmul.f32 %v879, %v847
    %v896 = vadd.f32 %v880, 1.4214138
    %v897 = vadd.f32 %v881, 1.4214138
    %v898 = vadd.f32 %v882, 1.4214138
    %v899 = vadd.f32 %v883, 1.4214138
    %v900 = vadd.f32 %v884, 1.4214138
    %v901 = vadd.f32 %v885, 1.4214138
    %v902 = vadd.f32 %v886, 1.4214138
    %v903 = vadd.f32 %v887, 1.4214138
    %v904 = vadd.f32 %v888, 1.4214138
    %v905 = vadd.f32 %v889, 1.4214138
    %v906 = vadd.f32 %v890, 1.4214138
    %v907 = vadd.f32 %v891, 1.4214138
    %v908 = vadd.f32 %v892, 1.4214138
    %v909 = vadd.f32 %v893, 1.4214138
    %v910 = vadd.f32 %v894, 1.4214138
    %v911 = vadd.f32 %v895, 1.4214138
    %v912 = vmul.f32 %v896, %v832
    %v913 = vmul.f32 %v897, %v833
    %v914 = vmul.f32 %v898, %v834
    %v915 = vmul.f32 %v899, %v835
    %v916 = vmul.f32 %v900, %v836
    %v917 = vmul.f32 %v901, %v837
    %v918 = vmul.f32 %v902, %v838
    %v919 = vmul.f32 %v903, %v839
    %v920 = vmul.f32 %v904, %v840
    %v921 = vmul.f32 %v905, %v841
    %v922 = vmul.f32 %v906, %v842
    %v923 = vmul.f32 %v907, %v843
    %v924 = vmul.f32 %v908, %v844
    %v925 = vmul.f32 %v909, %v845
    %v926 = vmul.f32 %v910, %v846
    %v927 = vmul.f32 %v911, %v847
    %v928 = vadd.f32 %v912, -0.28449672
    %v929 = vadd.f32 %v913, -0.28449672
    %v930 = vadd.f32 %v914, -0.28449672
    %v931 = vadd.f32 %v915, -0.28449672
    %v932 = vadd.f32 %v916, -0.28449672
    %v933 = vadd.f32 %v917, -0.28449672
    %v934 = vadd.f32 %v918, -0.28449672
    %v935 = vadd.f32 %v919, -0.28449672
    %v936 = vadd.f32 %v920, -0.28449672
    %v937 = vadd.f32 %v921, -0.28449672
    %v938 = vadd.f32 %v922, -0.28449672
    %v939 = vadd.f32 %v923, -0.28449672
    %v940 = vadd.f32 %v924, -0.28449672
    %v941 = vadd.f32 %v925, -0.28449672
    %v942 = vadd.f32 %v926, -0.28449672
    %v943 = vadd.f32 %v927, -0.28449672
    %v944 = vmul.f32 %v928, %v832
    %v945 = vmul.f32 %v929, %v833
    %v946 = vmul.f32 %v930, %v834
    %v947 = vmul.f32 %v931, %v835
    %v948 = vmul.f32 %v932, %v836
    %v949 = vmul.f32 %v933, %v837
    %v950 = vmul.f32 %v934, %v838
    %v951 = vmul.f32 %v935, %v839
    %v952 = vmul.f32 %v936, %v840
    %v953 = vmul.f32 %v937, %v841
    %v954 = vmul.f32 %v938, %v842
    %v955 = vmul.f32 %v939, %v843
    %v956 = vmul.f32 %v940, %v844
    %v957 = vmul.f32 %v941, %v845
    %v958 = vmul.f32 %v942, %v846
    %v959 = vmul.f32 %v943, %v847
    %v960 = vadd.f32 %v944, 0.2548296
    %v961 = vadd.f32 %v945, 0.2548296
    %v962 = vadd.f32 %v946, 0.2548296
    %v963 = vadd.f32 %v947, 0.2548296
    %v964 = vadd.f32 %v948, 0.2548296
    %v965 = vadd.f32 %v949, 0.2548296
    %v966 = vadd.f32 %v950, 0.2548296
    %v967 = vadd.f32 %v951, 0.2548296
    %v968 = vadd.f32 %v952, 0.2548296
    %v969 = vadd.f32 %v953, 0.2548296
    %v970 = vadd.f32 %v954, 0.2548296
    %v971 = vadd.f32 %v955, 0.2548296
    %v972 = vadd.f32 %v956, 0.2548296
    %v973 = vadd.f32 %v957, 0.2548296
    %v974 = vadd.f32 %v958, 0.2548296
    %v975 = vadd.f32 %v959, 0.2548296
    %v976 = vmul.f32 %v960, %v832
    %v977 = vmul.f32 %v961, %v833
    %v978 = vmul.f32 %v962, %v834
    %v979 = vmul.f32 %v963, %v835
    %v980 = vmul.f32 %v964, %v836
    %v981 = vmul.f32 %v965, %v837
    %v982 = vmul.f32 %v966, %v838
    %v983 = vmul.f32 %v967, %v839
    %v984 = vmul.f32 %v968, %v840
    %v985 = vmul.f32 %v969, %v841
    %v986 = vmul.f32 %v970, %v842
    %v987 = vmul.f32 %v971, %v843
    %v988 = vmul.f32 %v972, %v844
    %v989 = vmul.f32 %v973, %v845
    %v990 = vmul.f32 %v974, %v846
    %v991 = vmul.f32 %v975, %v847
    %v992 = vsub.f32 0.0, %v784
    %v993 = vsub.f32 0.0, %v785
    %v994 = vsub.f32 0.0, %v786
    %v995 = vsub.f32 0.0, %v787
    %v996 = vsub.f32 0.0, %v788
    %v997 = vsub.f32 0.0, %v789
    %v998 = vsub.f32 0.0, %v790
    %v999 = vsub.f32 0.0, %v791
    %v1000 = vsub.f32 0.0, %v792
    %v1001 = vsub.f32 0.0, %v793
    %v1002 = vsub.f32 0.0, %v794
    %v1003 = vsub.f32 0.0, %v795
    %v1004 = vsub.f32 0.0, %v796
    %v1005 = vsub.f32 0.0, %v797
    %v1006 = vsub.f32 0.0, %v798
    %v1007 = vsub.f32 0.0, %v799
    %v1008 = vmul.f32 %v992, %v784
    %v1009 = vmul.f32 %v993, %v785
    %v1010 = vmul.f32 %v994, %v786
    %v1011 = vmul.f32 %v995, %v787
    %v1012 = vmul.f32 %v996, %v788
    %v1013 = vmul.f32 %v997, %v789
    %v1014 = vmul.f32 %v998, %v790
    %v1015 = vmul.f32 %v999, %v791
    %v1016 = vmul.f32 %v1000, %v792
    %v1017 = vmul.f32 %v1001, %v793
    %v1018 = vmul.f32 %v1002, %v794
    %v1019 = vmul.f32 %v1003, %v795
    %v1020 = vmul.f32 %v1004, %v796
    %v1021 = vmul.f32 %v1005, %v797
    %v1022 = vmul.f32 %v1006, %v798
    %v1023 = vmul.f32 %v1007, %v799
    %v1024 = vmul.f32 %v1008, 1.442695
    %v1025 = vpow.pop %v1024
    %v1026 = vmul.f32 %v1009, 1.442695
    %v1027 = vpow.pop %v1026
    %v1028 = vmul.f32 %v1010, 1.442695
    %v1029 = vpow.pop %v1028
    %v1030 = vmul.f32 %v1011, 1.442695
    %v1031 = vpow.pop %v1030
    %v1032 = vmul.f32 %v1012, 1.442695
    %v1033 = vpow.pop %v1032
    %v1034 = vmul.f32 %v1013, 1.442695
    %v1035 = vpow.pop %v1034
    %v1036 = vmul.f32 %v1014, 1.442695
    %v1037 = vpow.pop %v1036
    %v1038 = vmul.f32 %v1015, 1.442695
    %v1039 = vpow.pop %v1038
    %v1040 = vmul.f32 %v1016, 1.442695
    %v1041 = vpow.pop %v1040
    %v1042 = vmul.f32 %v1017, 1.442695
    %v1043 = vpow.pop %v1042
    %v1044 = vmul.f32 %v1018, 1.442695
    %v1045 = vpow.pop %v1044
    %v1046 = vmul.f32 %v1019, 1.442695
    %v1047 = vpow.pop %v1046
    %v1048 = vmul.f32 %v1020, 1.442695
    %v1049 = vpow.pop %v1048
    %v1050 = vmul.f32 %v1021, 1.442695
    %v1051 = vpow.pop %v1050
    %v1052 = vmul.f32 %v1022, 1.442695
    %v1053 = vpow.pop %v1052
    %v1054 = vmul.f32 %v1023, 1.442695
    %v1055 = vpow.pop %v1054
    %v1056 = vmul.f32 %v976, %v1025
    %v1057 = vmul.f32 %v977, %v1027
    %v1058 = vmul.f32 %v978, %v1029
    %v1059 = vmul.f32 %v979, %v1031
    %v1060 = vmul.f32 %v980, %v1033
    %v1061 = vmul.f32 %v981, %v1035
    %v1062 = vmul.f32 %v982, %v1037
    %v1063 = vmul.f32 %v983, %v1039
    %v1064 = vmul.f32 %v984, %v1041
    %v1065 = vmul.f32 %v985, %v1043
    %v1066 = vmul.f32 %v986, %v1045
    %v1067 = vmul.f32 %v987, %v1047
    %v1068 = vmul.f32 %v988, %v1049
    %v1069 = vmul.f32 %v989, %v1051
    %v1070 = vmul.f32 %v990, %v1053
    %v1071 = vmul.f32 %v991, %v1055
    %v1072 = vsub.f32 1.0, %v1056
    %v1073 = vsub.f32 1.0, %v1057
    %v1074 = vsub.f32 1.0, %v1058
    %v1075 = vsub.f32 1.0, %v1059
    %v1076 = vsub.f32 1.0, %v1060
    %v1077 = vsub.f32 1.0, %v1061
    %v1078 = vsub.f32 1.0, %v1062
    %v1079 = vsub.f32 1.0, %v1063
    %v1080 = vsub.f32 1.0, %v1064
    %v1081 = vsub.f32 1.0, %v1065
    %v1082 = vsub.f32 1.0, %v1066
    %v1083 = vsub.f32 1.0, %v1067
    %v1084 = vsub.f32 1.0, %v1068
    %v1085 = vsub.f32 1.0, %v1069
    %v1086 = vsub.f32 1.0, %v1070
    %v1087 = vsub.f32 1.0, %v1071
    %v1088 = vmul.f32 %v768, %v1072
    %v1089 = vmul.f32 %v769, %v1073
    %v1090 = vmul.f32 %v770, %v1074
    %v1091 = vmul.f32 %v771, %v1075
    %v1092 = vmul.f32 %v772, %v1076
    %v1093 = vmul.f32 %v773, %v1077
    %v1094 = vmul.f32 %v774, %v1078
    %v1095 = vmul.f32 %v775, %v1079
    %v1096 = vmul.f32 %v776, %v1080
    %v1097 = vmul.f32 %v777, %v1081
    %v1098 = vmul.f32 %v778, %v1082
    %v1099 = vmul.f32 %v779, %v1083
    %v1100 = vmul.f32 %v780, %v1084
    %v1101 = vmul.f32 %v781, %v1085
    %v1102 = vmul.f32 %v782, %v1086
    %v1103 = vmul.f32 %v783, %v1087
    %v1104 = vadd.f32 %v1088, 1.0
    %v1105 = vadd.f32 %v1089, 1.0
    %v1106 = vadd.f32 %v1090, 1.0
    %v1107 = vadd.f32 %v1091, 1.0
    %v1108 = vadd.f32 %v1092, 1.0
    %v1109 = vadd.f32 %v1093, 1.0
    %v1110 = vadd.f32 %v1094, 1.0
    %v1111 = vadd.f32 %v1095, 1.0
    %v1112 = vadd.f32 %v1096, 1.0
    %v1113 = vadd.f32 %v1097, 1.0
    %v1114 = vadd.f32 %v1098, 1.0
    %v1115 = vadd.f32 %v1099, 1.0
    %v1116 = vadd.f32 %v1100, 1.0
    %v1117 = vadd.f32 %v1101, 1.0
    %v1118 = vadd.f32 %v1102, 1.0
    %v1119 = vadd.f32 %v1103, 1.0
    %v1120 = vmul.f32 %v720, %v1104
    %v1121 = vmul.f32 %v721, %v1105
    %v1122 = vmul.f32 %v722, %v1106
    %v1123 = vmul.f32 %v723, %v1107
    %v1124 = vmul.f32 %v724, %v1108
    %v1125 = vmul.f32 %v725, %v1109
    %v1126 = vmul.f32 %v726, %v1110
    %v1127 = vmul.f32 %v727, %v1111
    %v1128 = vmul.f32 %v728, %v1112
    %v1129 = vmul.f32 %v729, %v1113
    %v1130 = vmul.f32 %v730, %v1114
    %v1131 = vmul.f32 %v731, %v1115
    %v1132 = vmul.f32 %v732, %v1116
    %v1133 = vmul.f32 %v733, %v1117
    %v1134 = vmul.f32 %v734, %v1118
    %v1135 = vmul.f32 %v735, %v1119
    %1136 = vst [vmem:[#allocation2] sm:$0xff] %v1120
    %1137 = vst [vmem:[#allocation2 + $0x8] sm:$0xff] %v1121
    %1138 = vst [vmem:[#allocation2 + $0x10] sm:$0xff] %v1122
    %1139 = vst [vmem:[#allocation2 + $0x18] sm:$0xff] %v1123
    %1140 = vst [vmem:[#allocation2 + $0x20] sm:$0xff] %v1124
    %1141 = vst [vmem:[#allocation2 + $0x28] sm:$0xff] %v1125
    %1142 = vst [vmem:[#allocation2 + $0x30] sm:$0xff] %v1126
    %1143 = vst [vmem:[#allocation2 + $0x38] sm:$0xff] %v1127
    %1144 = vst [vmem:[#allocation2 + $0x40] sm:$0xff] %v1128
    %1145 = vst [vmem:[#allocation2 + $0x48] sm:$0xff] %v1129
    %1146 = vst [vmem:[#allocation2 + $0x50] sm:$0xff] %v1130
    %1147 = vst [vmem:[#allocation2 + $0x58] sm:$0xff] %v1131
    %1148 = vst [vmem:[#allocation2 + $0x60] sm:$0xff] %v1132
    %1149 = vst [vmem:[#allocation2 + $0x68] sm:$0xff] %v1133
    %1150 = vst [vmem:[#allocation2 + $0x70] sm:$0xff] %v1134
    %1151 = vst [vmem:[#allocation2 + $0x78] sm:$0xff] %v1135
    %v1152 = vld [vmem:[#allocation2] sm:$0xff]
    %v1153 = vld [vmem:[#allocation2 + $0x8] sm:$0xff]
    %v1154 = vld [vmem:[#allocation2 + $0x10] sm:$0xff]
    %v1155 = vld [vmem:[#allocation2 + $0x18] sm:$0xff]
    %v1156 = vld [vmem:[#allocation2 + $0x20] sm:$0xff]
    %v1157 = vld [vmem:[#allocation2 + $0x28] sm:$0xff]
    %v1158 = vld [vmem:[#allocation2 + $0x30] sm:$0xff]
    %v1159 = vld [vmem:[#allocation2 + $0x38] sm:$0xff]
    %v1160 = vld [vmem:[#allocation2 + $0x40] sm:$0xff]
    %v1161 = vld [vmem:[#allocation2 + $0x48] sm:$0xff]
    %v1162 = vld [vmem:[#allocation2 + $0x50] sm:$0xff]
    %v1163 = vld [vmem:[#allocation2 + $0x58] sm:$0xff]
    %v1164 = vld [vmem:[#allocation2 + $0x60] sm:$0xff]
    %v1165 = vld [vmem:[#allocation2 + $0x68] sm:$0xff]
    %v1166 = vld [vmem:[#allocation2 + $0x70] sm:$0xff]
    %v1167 = vld [vmem:[#allocation2 + $0x78] sm:$0xff]
    %v1168 = vpack.c.bf16 %v1154, %v1152
    %v1169 = vpack.c.bf16 %v1155, %v1153
    %v1170 = vpack.c.bf16 %v1158, %v1156
    %v1171 = vpack.c.bf16 %v1159, %v1157
    %v1172 = vpack.c.bf16 %v1162, %v1160
    %v1173 = vpack.c.bf16 %v1163, %v1161
    %v1174 = vpack.c.bf16 %v1166, %v1164
    %v1175 = vpack.c.bf16 %v1167, %v1165
    %v1176 = vld [vmem:[#allocation5] sm:$0xf]
    %v1177 = vld [vmem:[#allocation5 + $0x4] sm:$0xf]
    %v1178 = vld [vmem:[#allocation5 + $0x8] sm:$0xf]
    %v1179 = vld [vmem:[#allocation5 + $0xc] sm:$0xf]
    %v1180 = vld [vmem:[#allocation5 + $0x10] sm:$0xf]
    %v1181 = vld [vmem:[#allocation5 + $0x14] sm:$0xf]
    %v1182 = vld [vmem:[#allocation5 + $0x18] sm:$0xf]
    %v1183 = vld [vmem:[#allocation5 + $0x1c] sm:$0xf]
    %v1184 = vld [vmem:[#allocation5 + $0x20] sm:$0xf]
    %v1185 = vld [vmem:[#allocation5 + $0x24] sm:$0xf]
    %v1186 = vld [vmem:[#allocation5 + $0x28] sm:$0xf]
    %v1187 = vld [vmem:[#allocation5 + $0x2c] sm:$0xf]
    %v1188 = vld [vmem:[#allocation5 + $0x30] sm:$0xf]
    %v1189 = vld [vmem:[#allocation5 + $0x34] sm:$0xf]
    %v1190 = vld [vmem:[#allocation5 + $0x38] sm:$0xf]
    %v1191 = vld [vmem:[#allocation5 + $0x3c] sm:$0xf]
    %v1192 = vld [vmem:[#allocation5 + $0x40] sm:$0xf]
    %v1193 = vld [vmem:[#allocation5 + $0x44] sm:$0xf]
    %v1194 = vld [vmem:[#allocation5 + $0x48] sm:$0xf]
    %v1195 = vld [vmem:[#allocation5 + $0x4c] sm:$0xf]
    %v1196 = vld [vmem:[#allocation5 + $0x50] sm:$0xf]
    %v1197 = vld [vmem:[#allocation5 + $0x54] sm:$0xf]
    %v1198 = vld [vmem:[#allocation5 + $0x58] sm:$0xf]
    %v1199 = vld [vmem:[#allocation5 + $0x5c] sm:$0xf]
    %v1200 = vld [vmem:[#allocation5 + $0x60] sm:$0xf]
    %v1201 = vld [vmem:[#allocation5 + $0x64] sm:$0xf]
    %v1202 = vld [vmem:[#allocation5 + $0x68] sm:$0xf]
    %v1203 = vld [vmem:[#allocation5 + $0x6c] sm:$0xf]
    %v1204 = vld [vmem:[#allocation5 + $0x70] sm:$0xf]
    %v1205 = vld [vmem:[#allocation5 + $0x74] sm:$0xf]
    %v1206 = vld [vmem:[#allocation5 + $0x78] sm:$0xf]
    %v1207 = vld [vmem:[#allocation5 + $0x7c] sm:$0xf]
    %v1240 = vunpack.c.l.b16 %v1176
    %v1241 = vunpack.c.l.b16 %v1177
    %v1242 = vunpack.c.l.b16 %v1178
    %v1243 = vunpack.c.l.b16 %v1179
    %v1244 = vunpack.c.l.b16 %v1180
    %v1245 = vunpack.c.l.b16 %v1181
    %v1246 = vunpack.c.l.b16 %v1182
    %v1247 = vunpack.c.l.b16 %v1183
    %v1248 = vunpack.c.l.b16 %v1184
    %v1249 = vunpack.c.l.b16 %v1185
    %v1250 = vunpack.c.l.b16 %v1186
    %v1251 = vunpack.c.l.b16 %v1187
    %v1252 = vunpack.c.l.b16 %v1188
    %v1253 = vunpack.c.l.b16 %v1189
    %v1254 = vunpack.c.l.b16 %v1190
    %v1255 = vunpack.c.l.b16 %v1191
    %v1256 = vunpack.c.l.b16 %v1192
    %v1257 = vunpack.c.l.b16 %v1193
    %v1258 = vunpack.c.l.b16 %v1194
    %v1259 = vunpack.c.l.b16 %v1195
    %v1260 = vunpack.c.l.b16 %v1196
    %v1261 = vunpack.c.l.b16 %v1197
    %v1262 = vunpack.c.l.b16 %v1198
    %v1263 = vunpack.c.l.b16 %v1199
    %v1264 = vunpack.c.l.b16 %v1200
    %v1265 = vunpack.c.l.b16 %v1201
    %v1266 = vunpack.c.l.b16 %v1202
    %v1267 = vunpack.c.l.b16 %v1203
    %v1268 = vunpack.c.l.b16 %v1204
    %v1269 = vunpack.c.l.b16 %v1205
    %v1270 = vunpack.c.l.b16 %v1206
    %v1271 = vunpack.c.l.b16 %v1207
    %v1272 = vpack.c.b16 %v1241, %v1240
    %v1273 = vpack.c.b16 %v1243, %v1242
    %v1274 = vpack.c.b16 %v1245, %v1244
    %v1275 = vpack.c.b16 %v1247, %v1246
    %v1276 = vpack.c.b16 %v1249, %v1248
    %v1277 = vpack.c.b16 %v1251, %v1250
    %v1278 = vpack.c.b16 %v1253, %v1252
    %v1279 = vpack.c.b16 %v1255, %v1254
    %v1280 = vpack.c.b16 %v1257, %v1256
    %v1281 = vpack.c.b16 %v1259, %v1258
    %v1282 = vpack.c.b16 %v1261, %v1260
    %v1283 = vpack.c.b16 %v1263, %v1262
    %v1284 = vpack.c.b16 %v1265, %v1264
    %v1285 = vpack.c.b16 %v1267, %v1266
    %v1286 = vpack.c.b16 %v1269, %v1268
    %v1287 = vpack.c.b16 %v1271, %v1270
    %1304 = vmatprep.subr.bf16.mxu0 0
    %1305 = vmatpush1.bf16.msra.mxu0 %v1272
    %1306 = vmatprep.subr.bf16.mxu0 0
    %1307 = vmatpush1.bf16.msra.mxu0 %v1273
    %1308 = vmatprep.subr.bf16.mxu0 0
    %1309 = vmatpush1.bf16.msra.mxu0 %v1274
    %1310 = vmatprep.subr.bf16.mxu0 0
    %1311 = vmatpush1.bf16.msra.mxu0 %v1275
    %1312 = vmatprep.subr.bf16.mxu0 0
    %1313 = vmatpush1.bf16.msra.mxu0 %v1276
    %1314 = vmatprep.subr.bf16.mxu0 0
    %1315 = vmatpush1.bf16.msra.mxu0 %v1277
    %1316 = vmatprep.subr.bf16.mxu0 0
    %1317 = vmatpush1.bf16.msra.mxu0 %v1278
    %1318 = vmatprep.subr.bf16.mxu0 0
    %1319 = vmatpush1.bf16.msra.mxu0 %v1279
    %1320 = vmatprep.subr.bf16.mxu0 0
    %1321 = vmatpush1.bf16.msra.mxu0 %v1280
    %1322 = vmatprep.subr.bf16.mxu0 0
    %1323 = vmatpush1.bf16.msra.mxu0 %v1281
    %1324 = vmatprep.subr.bf16.mxu0 0
    %1325 = vmatpush1.bf16.msra.mxu0 %v1282
    %1326 = vmatprep.subr.bf16.mxu0 0
    %1327 = vmatpush1.bf16.msra.mxu0 %v1283
    %1328 = vmatprep.subr.bf16.mxu0 0
    %1329 = vmatpush1.bf16.msra.mxu0 %v1284
    %1330 = vmatprep.subr.bf16.mxu0 0
    %1331 = vmatpush1.bf16.msra.mxu0 %v1285
    %1332 = vmatprep.subr.bf16.mxu0 0
    %1333 = vmatpush1.bf16.msra.mxu0 %v1286
    %1334 = vmatprep.subr.bf16.mxu0 0
    %1335 = vmatpush1.bf16.msra.mxu0 %v1287
    %1336 = vmatprep.mubr.bf16.mxu0 %v1169
    %1337 = vmatmul.mubr.bf16.gmra.mrb[0].mxu0 %v1168
    %v1338 = vpop.f32.mrb[0].mxu0
    %v1339 = vadd.f32 0.0, %v1338
    %v1340 = vpop.f32.mrb[0].mxu0
    %v1341 = vpop.f32.mrb[0].mxu0
    %v1342 = vadd.f32 0.0, %v1341
    %v1343 = vpop.f32.mrb[0].mxu0
    %1344 = vmatprep.mubr.bf16.mxu0 %v1171
    %1345 = vmatmul.mubr.bf16.gmra.mrb[0].mxu0 %v1170
    %v1346 = vpop.f32.mrb[0].mxu0
    %v1347 = vadd.f32 0.0, %v1346
    %v1348 = vpop.f32.mrb[0].mxu0
    %v1349 = vpop.f32.mrb[0].mxu0
    %v1350 = vadd.f32 0.0, %v1349
    %v1351 = vpop.f32.mrb[0].mxu0
    %1352 = vmatprep.mubr.bf16.mxu0 %v1173
    %1353 = vmatmul.mubr.bf16.gmra.mrb[0].mxu0 %v1172
    %v1354 = vpop.f32.mrb[0].mxu0
    %v1355 = vadd.f32 0.0, %v1354
    %v1356 = vpop.f32.mrb[0].mxu0
    %v1357 = vpop.f32.mrb[0].mxu0
    %v1358 = vadd.f32 0.0, %v1357
    %v1359 = vpop.f32.mrb[0].mxu0
    %1360 = vmatprep.mubr.bf16.mxu0 %v1175
    %1361 = vmatmul.mubr.bf16.gmra.mrb[0].mxu0 %v1174
    %v1362 = vpop.f32.mrb[0].mxu0
    %v1363 = vadd.f32 0.0, %v1362
    %v1364 = vpop.f32.mrb[0].mxu0
    %v1365 = vpop.f32.mrb[0].mxu0
    %v1366 = vadd.f32 0.0, %v1365
    %v1367 = vpop.f32.mrb[0].mxu0
    %1368 = vdwg.mxu0
    %s1369 = scalar_lea.vmem %s3, 64
    %v1370 = vld [vmem:[%s1369] sm:$0xff]
    %v1371 = vld [vmem:[%s1369 + $0x8] sm:$0xff]
    %v1372 = vld [vmem:[%s1369 + $0x10] sm:$0xff]
    %v1373 = vld [vmem:[%s1369 + $0x18] sm:$0xff]
    %v1374 = vld [vmem:[%s1369 + $0x20] sm:$0xff]
    %v1375 = vld [vmem:[%s1369 + $0x28] sm:$0xff]
    %v1376 = vld [vmem:[%s1369 + $0x30] sm:$0xff]
    %v1377 = vld [vmem:[%s1369 + $0x38] sm:$0xff]
    %v1378 = vmul.f32 %v1339, %v1370
    %v1379 = vmul.f32 %v1342, %v1371
    %v1380 = vmul.f32 %v1347, %v1372
    %v1381 = vmul.f32 %v1350, %v1373
    %v1382 = vmul.f32 %v1355, %v1374
    %v1383 = vmul.f32 %v1358, %v1375
    %v1384 = vmul.f32 %v1363, %v1376
    %v1385 = vmul.f32 %v1366, %v1377
    %v1386 = vpack.c.bf16 %v1379, %v1378
    %v1387 = vpack.c.bf16 %v1381, %v1380
    %v1388 = vpack.c.bf16 %v1383, %v1382
    %v1389 = vpack.c.bf16 %v1385, %v1384
    %v1390 = vld [vmem:[#allocation7] sm:$0xff]
    %v1391 = vld [vmem:[#allocation7 + $0x8] sm:$0xff]
    %v1392 = vld [vmem:[#allocation7 + $0x10] sm:$0xff]
    %v1393 = vld [vmem:[#allocation7 + $0x18] sm:$0xff]
    %v1394 = vld [vmem:[#allocation7 + $0x20] sm:$0xff]
    %v1395 = vld [vmem:[#allocation7 + $0x28] sm:$0xff]
    %v1396 = vld [vmem:[#allocation7 + $0x30] sm:$0xff]
    %v1397 = vld [vmem:[#allocation7 + $0x38] sm:$0xff]
    %v1398 = vld [vmem:[#allocation7 + $0x40] sm:$0xff]
    %v1399 = vld [vmem:[#allocation7 + $0x48] sm:$0xff]
    %v1400 = vld [vmem:[#allocation7 + $0x50] sm:$0xff]
    %v1401 = vld [vmem:[#allocation7 + $0x58] sm:$0xff]
    %v1402 = vld [vmem:[#allocation7 + $0x60] sm:$0xff]
    %v1403 = vld [vmem:[#allocation7 + $0x68] sm:$0xff]
    %v1404 = vld [vmem:[#allocation7 + $0x70] sm:$0xff]
    %v1405 = vld [vmem:[#allocation7 + $0x78] sm:$0xff]
    %v1422 = vunpack.c.l.b16 %v1390
    %v1423 = vunpack.c.h.b16 %v1390
    %v1424 = vunpack.c.l.b16 %v1391
    %v1425 = vunpack.c.h.b16 %v1391
    %v1426 = vunpack.c.l.b16 %v1392
    %v1427 = vunpack.c.h.b16 %v1392
    %v1428 = vunpack.c.l.b16 %v1393
    %v1429 = vunpack.c.h.b16 %v1393
    %v1430 = vunpack.c.l.b16 %v1394
    %v1431 = vunpack.c.h.b16 %v1394
    %v1432 = vunpack.c.l.b16 %v1395
    %v1433 = vunpack.c.h.b16 %v1395
    %v1434 = vunpack.c.l.b16 %v1396
    %v1435 = vunpack.c.h.b16 %v1396
    %v1436 = vunpack.c.l.b16 %v1397
    %v1437 = vunpack.c.h.b16 %v1397
    %v1438 = vunpack.c.l.b16 %v1398
    %v1439 = vunpack.c.h.b16 %v1398
    %v1440 = vunpack.c.l.b16 %v1399
    %v1441 = vunpack.c.h.b16 %v1399
    %v1442 = vunpack.c.l.b16 %v1400
    %v1443 = vunpack.c.h.b16 %v1400
    %v1444 = vunpack.c.l.b16 %v1401
    %v1445 = vunpack.c.h.b16 %v1401
    %v1446 = vunpack.c.l.b16 %v1402
    %v1447 = vunpack.c.h.b16 %v1402
    %v1448 = vunpack.c.l.b16 %v1403
    %v1449 = vunpack.c.h.b16 %v1403
    %v1450 = vunpack.c.l.b16 %v1404
    %v1451 = vunpack.c.h.b16 %v1404
    %v1452 = vunpack.c.l.b16 %v1405
    %v1453 = vunpack.c.h.b16 %v1405
    %v1454 = vpack.c.b16 %v1424, %v1422
    %v1455 = vpack.c.b16 %v1425, %v1423
    %v1456 = vpack.c.b16 %v1428, %v1426
    %v1457 = vpack.c.b16 %v1429, %v1427
    %v1458 = vpack.c.b16 %v1432, %v1430
    %v1459 = vpack.c.b16 %v1433, %v1431
    %v1460 = vpack.c.b16 %v1436, %v1434
    %v1461 = vpack.c.b16 %v1437, %v1435
    %v1462 = vpack.c.b16 %v1440, %v1438
    %v1463 = vpack.c.b16 %v1441, %v1439
    %v1464 = vpack.c.b16 %v1444, %v1442
    %v1465 = vpack.c.b16 %v1445, %v1443
    %v1466 = vpack.c.b16 %v1448, %v1446
    %v1467 = vpack.c.b16 %v1449, %v1447
    %v1468 = vpack.c.b16 %v1452, %v1450
    %v1469 = vpack.c.b16 %v1453, %v1451
    %1486 = vmatprep.subr.bf16.mxu0 %v1455
    %1487 = vmatpush1.bf16.msra.mxu0 %v1454
    %1488 = vmatprep.subr.bf16.mxu0 %v1457
    %1489 = vmatpush1.bf16.msra.mxu0 %v1456
    %1490 = vmatprep.subr.bf16.mxu0 %v1459
    %1491 = vmatpush1.bf16.msra.mxu0 %v1458
    %1492 = vmatprep.subr.bf16.mxu0 %v1461
    %1493 = vmatpush1.bf16.msra.mxu0 %v1460
    %1494 = vmatprep.subr.bf16.mxu0 %v1463
    %1495 = vmatpush1.bf16.msra.mxu0 %v1462
    %1496 = vmatprep.subr.bf16.mxu0 %v1465
    %1497 = vmatpush1.bf16.msra.mxu0 %v1464
    %1498 = vmatprep.subr.bf16.mxu0 %v1467
    %1499 = vmatpush1.bf16.msra.mxu0 %v1466
    %1500 = vmatprep.subr.bf16.mxu0 %v1469
    %1501 = vmatpush1.bf16.msra.mxu0 %v1468
    %1502 = vmatprep.subr.bf16.mxu0 0
    %1503 = vmatpush1.bf16.msra.mxu0 0
    %1504 = vmatprep.subr.bf16.mxu0 0
    %1505 = vmatpush1.bf16.msra.mxu0 0
    %1506 = vmatprep.subr.bf16.mxu0 0
    %1507 = vmatpush1.bf16.msra.mxu0 0
    %1508 = vmatprep.subr.bf16.mxu0 0
    %1509 = vmatpush1.bf16.msra.mxu0 0
    %1510 = vmatprep.subr.bf16.mxu0 0
    %1511 = vmatpush1.bf16.msra.mxu0 0
    %1512 = vmatprep.subr.bf16.mxu0 0
    %1513 = vmatpush1.bf16.msra.mxu0 0
    %1514 = vmatprep.subr.bf16.mxu0 0
    %1515 = vmatpush1.bf16.msra.mxu0 0
    %1516 = vmatprep.subr.bf16.mxu0 0
    %1517 = vmatpush1.bf16.msra.mxu0 0
    %1518 = vmatprep.mubr.bf16.mxu0 0
    %1519 = vmatmul.mubr.bf16.gmra.mrb[0].mxu0 %v1386
    %v1520 = vpop.f32.mrb[0].mxu0
    %v1521 = vadd.f32 0.0, %v1520
    %v1522 = vpop.f32.mrb[0].mxu0
    %v1523 = vadd.f32 0.0, %v1522
    %v1524 = vpop.f32.mrb[0].mxu0
    %v1525 = vadd.f32 0.0, %v1524
    %v1526 = vpop.f32.mrb[0].mxu0
    %v1527 = vadd.f32 0.0, %v1526
    %1528 = vmatprep.mubr.bf16.mxu0 0
    %1529 = vmatmul.mubr.bf16.gmra.mrb[0].mxu0 %v1387
    %v1530 = vpop.f32.mrb[0].mxu0
    %v1531 = vadd.f32 0.0, %v1530
    %v1532 = vpop.f32.mrb[0].mxu0
    %v1533 = vadd.f32 0.0, %v1532
    %v1534 = vpop.f32.mrb[0].mxu0
    %v1535 = vadd.f32 0.0, %v1534
    %v1536 = vpop.f32.mrb[0].mxu0
    %v1537 = vadd.f32 0.0, %v1536
    %1538 = vmatprep.mubr.bf16.mxu0 0
    %1539 = vmatmul.mubr.bf16.gmra.mrb[0].mxu0 %v1388
    %v1540 = vpop.f32.mrb[0].mxu0
    %v1541 = vadd.f32 0.0, %v1540
    %v1542 = vpop.f32.mrb[0].mxu0
    %v1543 = vadd.f32 0.0, %v1542
    %v1544 = vpop.f32.mrb[0].mxu0
    %v1545 = vadd.f32 0.0, %v1544
    %v1546 = vpop.f32.mrb[0].mxu0
    %v1547 = vadd.f32 0.0, %v1546
    %1548 = vmatprep.mubr.bf16.mxu0 0
    %1549 = vmatmul.mubr.bf16.gmra.mrb[0].mxu0 %v1389
    %v1550 = vpop.f32.mrb[0].mxu0
    %v1551 = vadd.f32 0.0, %v1550
    %v1552 = vpop.f32.mrb[0].mxu0
    %v1553 = vadd.f32 0.0, %v1552
    %v1554 = vpop.f32.mrb[0].mxu0
    %v1555 = vadd.f32 0.0, %v1554
    %v1556 = vpop.f32.mrb[0].mxu0
    %v1557 = vadd.f32 0.0, %v1556
    %1558 = vdwg.mxu0
    %v1559 = vmul.f32 %v1521, 0.5
    %v1560 = vmul.f32 %v1523, 0.5
    %v1561 = vmul.f32 %v1525, 0.5
    %v1562 = vmul.f32 %v1527, 0.5
    %v1563 = vmul.f32 %v1531, 0.5
    %v1564 = vmul.f32 %v1533, 0.5
    %v1565 = vmul.f32 %v1535, 0.5
    %v1566 = vmul.f32 %v1537, 0.5
    %v1567 = vmul.f32 %v1541, 0.5
    %v1568 = vmul.f32 %v1543, 0.5
    %v1569 = vmul.f32 %v1545, 0.5
    %v1570 = vmul.f32 %v1547, 0.5
    %v1571 = vmul.f32 %v1551, 0.5
    %v1572 = vmul.f32 %v1553, 0.5
    %v1573 = vmul.f32 %v1555, 0.5
    %v1574 = vmul.f32 %v1557, 0.5
    %v1575 = vmul.f32 %v1521, 0.70710677
    %v1576 = vmul.f32 %v1523, 0.70710677
    %v1577 = vmul.f32 %v1525, 0.70710677
    %v1578 = vmul.f32 %v1527, 0.70710677
    %v1579 = vmul.f32 %v1531, 0.70710677
    %v1580 = vmul.f32 %v1533, 0.70710677
    %v1581 = vmul.f32 %v1535, 0.70710677
    %v1582 = vmul.f32 %v1537, 0.70710677
    %v1583 = vmul.f32 %v1541, 0.70710677
    %v1584 = vmul.f32 %v1543, 0.70710677
    %v1585 = vmul.f32 %v1545, 0.70710677
    %v1586 = vmul.f32 %v1547, 0.70710677
    %v1587 = vmul.f32 %v1551, 0.70710677
    %v1588 = vmul.f32 %v1553, 0.70710677
    %v1589 = vmul.f32 %v1555, 0.70710677
    %v1590 = vmul.f32 %v1557, 0.70710677
    %vm1591 = vcmp.ge.f32.partialorder %v1575, 0.0
    %vm1592 = vcmp.ge.f32.partialorder %v1576, 0.0
    %vm1593 = vcmp.ge.f32.partialorder %v1577, 0.0
    %vm1594 = vcmp.ge.f32.partialorder %v1578, 0.0
    %vm1595 = vcmp.ge.f32.partialorder %v1579, 0.0
    %vm1596 = vcmp.ge.f32.partialorder %v1580, 0.0
    %vm1597 = vcmp.ge.f32.partialorder %v1581, 0.0
    %vm1598 = vcmp.ge.f32.partialorder %v1582, 0.0
    %vm1599 = vcmp.ge.f32.partialorder %v1583, 0.0
    %vm1600 = vcmp.ge.f32.partialorder %v1584, 0.0
    %vm1601 = vcmp.ge.f32.partialorder %v1585, 0.0
    %vm1602 = vcmp.ge.f32.partialorder %v1586, 0.0
    %vm1603 = vcmp.ge.f32.partialorder %v1587, 0.0
    %vm1604 = vcmp.ge.f32.partialorder %v1588, 0.0
    %vm1605 = vcmp.ge.f32.partialorder %v1589, 0.0
    %vm1606 = vcmp.ge.f32.partialorder %v1590, 0.0
    %v1607 = vsel %vm1591, 1.0, -1.0
    %v1608 = vsel %vm1592, 1.0, -1.0
    %v1609 = vsel %vm1593, 1.0, -1.0
    %v1610 = vsel %vm1594, 1.0, -1.0
    %v1611 = vsel %vm1595, 1.0, -1.0
    %v1612 = vsel %vm1596, 1.0, -1.0
    %v1613 = vsel %vm1597, 1.0, -1.0
    %v1614 = vsel %vm1598, 1.0, -1.0
    %v1615 = vsel %vm1599, 1.0, -1.0
    %v1616 = vsel %vm1600, 1.0, -1.0
    %v1617 = vsel %vm1601, 1.0, -1.0
    %v1618 = vsel %vm1602, 1.0, -1.0
    %v1619 = vsel %vm1603, 1.0, -1.0
    %v1620 = vsel %vm1604, 1.0, -1.0
    %v1621 = vsel %vm1605, 1.0, -1.0
    %v1622 = vsel %vm1606, 1.0, -1.0
    %v1623 = vand.u32 2147483647, %v1575
    %v1624 = vand.u32 2147483647, %v1576
    %v1625 = vand.u32 2147483647, %v1577
    %v1626 = vand.u32 2147483647, %v1578
    %v1627 = vand.u32 2147483647, %v1579
    %v1628 = vand.u32 2147483647, %v1580
    %v1629 = vand.u32 2147483647, %v1581
    %v1630 = vand.u32 2147483647, %v1582
    %v1631 = vand.u32 2147483647, %v1583
    %v1632 = vand.u32 2147483647, %v1584
    %v1633 = vand.u32 2147483647, %v1585
    %v1634 = vand.u32 2147483647, %v1586
    %v1635 = vand.u32 2147483647, %v1587
    %v1636 = vand.u32 2147483647, %v1588
    %v1637 = vand.u32 2147483647, %v1589
    %v1638 = vand.u32 2147483647, %v1590
    %v1639 = vmul.f32 %v1623, 0.3275911
    %v1640 = vmul.f32 %v1624, 0.3275911
    %v1641 = vmul.f32 %v1625, 0.3275911
    %v1642 = vmul.f32 %v1626, 0.3275911
    %v1643 = vmul.f32 %v1627, 0.3275911
    %v1644 = vmul.f32 %v1628, 0.3275911
    %v1645 = vmul.f32 %v1629, 0.3275911
    %v1646 = vmul.f32 %v1630, 0.3275911
    %v1647 = vmul.f32 %v1631, 0.3275911
    %v1648 = vmul.f32 %v1632, 0.3275911
    %v1649 = vmul.f32 %v1633, 0.3275911
    %v1650 = vmul.f32 %v1634, 0.3275911
    %v1651 = vmul.f32 %v1635, 0.3275911
    %v1652 = vmul.f32 %v1636, 0.3275911
    %v1653 = vmul.f32 %v1637, 0.3275911
    %v1654 = vmul.f32 %v1638, 0.3275911
    %v1655 = vadd.f32 %v1639, 1.0
    %v1656 = vadd.f32 %v1640, 1.0
    %v1657 = vadd.f32 %v1641, 1.0
    %v1658 = vadd.f32 %v1642, 1.0
    %v1659 = vadd.f32 %v1643, 1.0
    %v1660 = vadd.f32 %v1644, 1.0
    %v1661 = vadd.f32 %v1645, 1.0
    %v1662 = vadd.f32 %v1646, 1.0
    %v1663 = vadd.f32 %v1647, 1.0
    %v1664 = vadd.f32 %v1648, 1.0
    %v1665 = vadd.f32 %v1649, 1.0
    %v1666 = vadd.f32 %v1650, 1.0
    %v1667 = vadd.f32 %v1651, 1.0
    %v1668 = vadd.f32 %v1652, 1.0
    %v1669 = vadd.f32 %v1653, 1.0
    %v1670 = vadd.f32 %v1654, 1.0
    %v1671 = vrcp.pop %v1655
    %v1672 = vrcp.pop %v1656
    %v1673 = vrcp.pop %v1657
    %v1674 = vrcp.pop %v1658
    %v1675 = vrcp.pop %v1659
    %v1676 = vrcp.pop %v1660
    %v1677 = vrcp.pop %v1661
    %v1678 = vrcp.pop %v1662
    %v1679 = vrcp.pop %v1663
    %v1680 = vrcp.pop %v1664
    %v1681 = vrcp.pop %v1665
    %v1682 = vrcp.pop %v1666
    %v1683 = vrcp.pop %v1667
    %v1684 = vrcp.pop %v1668
    %v1685 = vrcp.pop %v1669
    %v1686 = vrcp.pop %v1670
    %v1687 = vmul.f32 %v1671, 1.0614054
    %v1688 = vmul.f32 %v1672, 1.0614054
    %v1689 = vmul.f32 %v1673, 1.0614054
    %v1690 = vmul.f32 %v1674, 1.0614054
    %v1691 = vmul.f32 %v1675, 1.0614054
    %v1692 = vmul.f32 %v1676, 1.0614054
    %v1693 = vmul.f32 %v1677, 1.0614054
    %v1694 = vmul.f32 %v1678, 1.0614054
    %v1695 = vmul.f32 %v1679, 1.0614054
    %v1696 = vmul.f32 %v1680, 1.0614054
    %v1697 = vmul.f32 %v1681, 1.0614054
    %v1698 = vmul.f32 %v1682, 1.0614054
    %v1699 = vmul.f32 %v1683, 1.0614054
    %v1700 = vmul.f32 %v1684, 1.0614054
    %v1701 = vmul.f32 %v1685, 1.0614054
    %v1702 = vmul.f32 %v1686, 1.0614054
    %v1703 = vadd.f32 %v1687, -1.4531521
    %v1704 = vadd.f32 %v1688, -1.4531521
    %v1705 = vadd.f32 %v1689, -1.4531521
    %v1706 = vadd.f32 %v1690, -1.4531521
    %v1707 = vadd.f32 %v1691, -1.4531521
    %v1708 = vadd.f32 %v1692, -1.4531521
    %v1709 = vadd.f32 %v1693, -1.4531521
    %v1710 = vadd.f32 %v1694, -1.4531521
    %v1711 = vadd.f32 %v1695, -1.4531521
    %v1712 = vadd.f32 %v1696, -1.4531521
    %v1713 = vadd.f32 %v1697, -1.4531521
    %v1714 = vadd.f32 %v1698, -1.4531521
    %v1715 = vadd.f32 %v1699, -1.4531521
    %v1716 = vadd.f32 %v1700, -1.4531521
    %v1717 = vadd.f32 %v1701, -1.4531521
    %v1718 = vadd.f32 %v1702, -1.4531521
    %v1719 = vmul.f32 %v1703, %v1671
    %v1720 = vmul.f32 %v1704, %v1672
    %v1721 = vmul.f32 %v1705, %v1673
    %v1722 = vmul.f32 %v1706, %v1674
    %v1723 = vmul.f32 %v1707, %v1675
    %v1724 = vmul.f32 %v1708, %v1676
    %v1725 = vmul.f32 %v1709, %v1677
    %v1726 = vmul.f32 %v1710, %v1678
    %v1727 = vmul.f32 %v1711, %v1679
    %v1728 = vmul.f32 %v1712, %v1680
    %v1729 = vmul.f32 %v1713, %v1681
    %v1730 = vmul.f32 %v1714, %v1682
    %v1731 = vmul.f32 %v1715, %v1683
    %v1732 = vmul.f32 %v1716, %v1684
    %v1733 = vmul.f32 %v1717, %v1685
    %v1734 = vmul.f32 %v1718, %v1686
    %v1735 = vadd.f32 %v1719, 1.4214138
    %v1736 = vadd.f32 %v1720, 1.4214138
    %v1737 = vadd.f32 %v1721, 1.4214138
    %v1738 = vadd.f32 %v1722, 1.4214138
    %v1739 = vadd.f32 %v1723, 1.4214138
    %v1740 = vadd.f32 %v1724, 1.4214138
    %v1741 = vadd.f32 %v1725, 1.4214138
    %v1742 = vadd.f32 %v1726, 1.4214138
    %v1743 = vadd.f32 %v1727, 1.4214138
    %v1744 = vadd.f32 %v1728, 1.4214138
    %v1745 = vadd.f32 %v1729, 1.4214138
    %v1746 = vadd.f32 %v1730, 1.4214138
    %v1747 = vadd.f32 %v1731, 1.4214138
    %v1748 = vadd.f32 %v1732, 1.4214138
    %v1749 = vadd.f32 %v1733, 1.4214138
    %v1750 = vadd.f32 %v1734, 1.4214138
    %v1751 = vmul.f32 %v1735, %v1671
    %v1752 = vmul.f32 %v1736, %v1672
    %v1753 = vmul.f32 %v1737, %v1673
    %v1754 = vmul.f32 %v1738, %v1674
    %v1755 = vmul.f32 %v1739, %v1675
    %v1756 = vmul.f32 %v1740, %v1676
    %v1757 = vmul.f32 %v1741, %v1677
    %v1758 = vmul.f32 %v1742, %v1678
    %v1759 = vmul.f32 %v1743, %v1679
    %v1760 = vmul.f32 %v1744, %v1680
    %v1761 = vmul.f32 %v1745, %v1681
    %v1762 = vmul.f32 %v1746, %v1682
    %v1763 = vmul.f32 %v1747, %v1683
    %v1764 = vmul.f32 %v1748, %v1684
    %v1765 = vmul.f32 %v1749, %v1685
    %v1766 = vmul.f32 %v1750, %v1686
    %v1767 = vadd.f32 %v1751, -0.28449672
    %v1768 = vadd.f32 %v1752, -0.28449672
    %v1769 = vadd.f32 %v1753, -0.28449672
    %v1770 = vadd.f32 %v1754, -0.28449672
    %v1771 = vadd.f32 %v1755, -0.28449672
    %v1772 = vadd.f32 %v1756, -0.28449672
    %v1773 = vadd.f32 %v1757, -0.28449672
    %v1774 = vadd.f32 %v1758, -0.28449672
    %v1775 = vadd.f32 %v1759, -0.28449672
    %v1776 = vadd.f32 %v1760, -0.28449672
    %v1777 = vadd.f32 %v1761, -0.28449672
    %v1778 = vadd.f32 %v1762, -0.28449672
    %v1779 = vadd.f32 %v1763, -0.28449672
    %v1780 = vadd.f32 %v1764, -0.28449672
    %v1781 = vadd.f32 %v1765, -0.28449672
    %v1782 = vadd.f32 %v1766, -0.28449672
    %v1783 = vmul.f32 %v1767, %v1671
    %v1784 = vmul.f32 %v1768, %v1672
    %v1785 = vmul.f32 %v1769, %v1673
    %v1786 = vmul.f32 %v1770, %v1674
    %v1787 = vmul.f32 %v1771, %v1675
    %v1788 = vmul.f32 %v1772, %v1676
    %v1789 = vmul.f32 %v1773, %v1677
    %v1790 = vmul.f32 %v1774, %v1678
    %v1791 = vmul.f32 %v1775, %v1679
    %v1792 = vmul.f32 %v1776, %v1680
    %v1793 = vmul.f32 %v1777, %v1681
    %v1794 = vmul.f32 %v1778, %v1682
    %v1795 = vmul.f32 %v1779, %v1683
    %v1796 = vmul.f32 %v1780, %v1684
    %v1797 = vmul.f32 %v1781, %v1685
    %v1798 = vmul.f32 %v1782, %v1686
    %v1799 = vadd.f32 %v1783, 0.2548296
    %v1800 = vadd.f32 %v1784, 0.2548296
    %v1801 = vadd.f32 %v1785, 0.2548296
    %v1802 = vadd.f32 %v1786, 0.2548296
    %v1803 = vadd.f32 %v1787, 0.2548296
    %v1804 = vadd.f32 %v1788, 0.2548296
    %v1805 = vadd.f32 %v1789, 0.2548296
    %v1806 = vadd.f32 %v1790, 0.2548296
    %v1807 = vadd.f32 %v1791, 0.2548296
    %v1808 = vadd.f32 %v1792, 0.2548296
    %v1809 = vadd.f32 %v1793, 0.2548296
    %v1810 = vadd.f32 %v1794, 0.2548296
    %v1811 = vadd.f32 %v1795, 0.2548296
    %v1812 = vadd.f32 %v1796, 0.2548296
    %v1813 = vadd.f32 %v1797, 0.2548296
    %v1814 = vadd.f32 %v1798, 0.2548296
    %v1815 = vmul.f32 %v1799, %v1671
    %v1816 = vmul.f32 %v1800, %v1672
    %v1817 = vmul.f32 %v1801, %v1673
    %v1818 = vmul.f32 %v1802, %v1674
    %v1819 = vmul.f32 %v1803, %v1675
    %v1820 = vmul.f32 %v1804, %v1676
    %v1821 = vmul.f32 %v1805, %v1677
    %v1822 = vmul.f32 %v1806, %v1678
    %v1823 = vmul.f32 %v1807, %v1679
    %v1824 = vmul.f32 %v1808, %v1680
    %v1825 = vmul.f32 %v1809, %v1681
    %v1826 = vmul.f32 %v1810, %v1682
    %v1827 = vmul.f32 %v1811, %v1683
    %v1828 = vmul.f32 %v1812, %v1684
    %v1829 = vmul.f32 %v1813, %v1685
    %v1830 = vmul.f32 %v1814, %v1686
    %v1831 = vsub.f32 0.0, %v1623
    %v1832 = vsub.f32 0.0, %v1624
    %v1833 = vsub.f32 0.0, %v1625
    %v1834 = vsub.f32 0.0, %v1626
    %v1835 = vsub.f32 0.0, %v1627
    %v1836 = vsub.f32 0.0, %v1628
    %v1837 = vsub.f32 0.0, %v1629
    %v1838 = vsub.f32 0.0, %v1630
    %v1839 = vsub.f32 0.0, %v1631
    %v1840 = vsub.f32 0.0, %v1632
    %v1841 = vsub.f32 0.0, %v1633
    %v1842 = vsub.f32 0.0, %v1634
    %v1843 = vsub.f32 0.0, %v1635
    %v1844 = vsub.f32 0.0, %v1636
    %v1845 = vsub.f32 0.0, %v1637
    %v1846 = vsub.f32 0.0, %v1638
    %v1847 = vmul.f32 %v1831, %v1623
    %v1848 = vmul.f32 %v1832, %v1624
    %v1849 = vmul.f32 %v1833, %v1625
    %v1850 = vmul.f32 %v1834, %v1626
    %v1851 = vmul.f32 %v1835, %v1627
    %v1852 = vmul.f32 %v1836, %v1628
    %v1853 = vmul.f32 %v1837, %v1629
    %v1854 = vmul.f32 %v1838, %v1630
    %v1855 = vmul.f32 %v1839, %v1631
    %v1856 = vmul.f32 %v1840, %v1632
    %v1857 = vmul.f32 %v1841, %v1633
    %v1858 = vmul.f32 %v1842, %v1634
    %v1859 = vmul.f32 %v1843, %v1635
    %v1860 = vmul.f32 %v1844, %v1636
    %v1861 = vmul.f32 %v1845, %v1637
    %v1862 = vmul.f32 %v1846, %v1638
    %v1863 = vmul.f32 %v1847, 1.442695
    %v1864 = vpow.pop %v1863
    %v1865 = vmul.f32 %v1848, 1.442695
    %v1866 = vpow.pop %v1865
    %v1867 = vmul.f32 %v1849, 1.442695
    %v1868 = vpow.pop %v1867
    %v1869 = vmul.f32 %v1850, 1.442695
    %v1870 = vpow.pop %v1869
    %v1871 = vmul.f32 %v1851, 1.442695
    %v1872 = vpow.pop %v1871
    %v1873 = vmul.f32 %v1852, 1.442695
    %v1874 = vpow.pop %v1873
    %v1875 = vmul.f32 %v1853, 1.442695
    %v1876 = vpow.pop %v1875
    %v1877 = vmul.f32 %v1854, 1.442695
    %v1878 = vpow.pop %v1877
    %v1879 = vmul.f32 %v1855, 1.442695
    %v1880 = vpow.pop %v1879
    %v1881 = vmul.f32 %v1856, 1.442695
    %v1882 = vpow.pop %v1881
    %v1883 = vmul.f32 %v1857, 1.442695
    %v1884 = vpow.pop %v1883
    %v1885 = vmul.f32 %v1858, 1.442695
    %v1886 = vpow.pop %v1885
    %v1887 = vmul.f32 %v1859, 1.442695
    %v1888 = vpow.pop %v1887
    %v1889 = vmul.f32 %v1860, 1.442695
    %v1890 = vpow.pop %v1889
    %v1891 = vmul.f32 %v1861, 1.442695
    %v1892 = vpow.pop %v1891
    %v1893 = vmul.f32 %v1862, 1.442695
    %v1894 = vpow.pop %v1893
    %v1895 = vmul.f32 %v1815, %v1864
    %v1896 = vmul.f32 %v1816, %v1866
    %v1897 = vmul.f32 %v1817, %v1868
    %v1898 = vmul.f32 %v1818, %v1870
    %v1899 = vmul.f32 %v1819, %v1872
    %v1900 = vmul.f32 %v1820, %v1874
    %v1901 = vmul.f32 %v1821, %v1876
    %v1902 = vmul.f32 %v1822, %v1878
    %v1903 = vmul.f32 %v1823, %v1880
    %v1904 = vmul.f32 %v1824, %v1882
    %v1905 = vmul.f32 %v1825, %v1884
    %v1906 = vmul.f32 %v1826, %v1886
    %v1907 = vmul.f32 %v1827, %v1888
    %v1908 = vmul.f32 %v1828, %v1890
    %v1909 = vmul.f32 %v1829, %v1892
    %v1910 = vmul.f32 %v1830, %v1894
    %v1911 = vsub.f32 1.0, %v1895
    %v1912 = vsub.f32 1.0, %v1896
    %v1913 = vsub.f32 1.0, %v1897
    %v1914 = vsub.f32 1.0, %v1898
    %v1915 = vsub.f32 1.0, %v1899
    %v1916 = vsub.f32 1.0, %v1900
    %v1917 = vsub.f32 1.0, %v1901
    %v1918 = vsub.f32 1.0, %v1902
    %v1919 = vsub.f32 1.0, %v1903
    %v1920 = vsub.f32 1.0, %v1904
    %v1921 = vsub.f32 1.0, %v1905
    %v1922 = vsub.f32 1.0, %v1906
    %v1923 = vsub.f32 1.0, %v1907
    %v1924 = vsub.f32 1.0, %v1908
    %v1925 = vsub.f32 1.0, %v1909
    %v1926 = vsub.f32 1.0, %v1910
    %v1927 = vmul.f32 %v1607, %v1911
    %v1928 = vmul.f32 %v1608, %v1912
    %v1929 = vmul.f32 %v1609, %v1913
    %v1930 = vmul.f32 %v1610, %v1914
    %v1931 = vmul.f32 %v1611, %v1915
    %v1932 = vmul.f32 %v1612, %v1916
    %v1933 = vmul.f32 %v1613, %v1917
    %v1934 = vmul.f32 %v1614, %v1918
    %v1935 = vmul.f32 %v1615, %v1919
    %v1936 = vmul.f32 %v1616, %v1920
    %v1937 = vmul.f32 %v1617, %v1921
    %v1938 = vmul.f32 %v1618, %v1922
    %v1939 = vmul.f32 %v1619, %v1923
    %v1940 = vmul.f32 %v1620, %v1924
    %v1941 = vmul.f32 %v1621, %v1925
    %v1942 = vmul.f32 %v1622, %v1926
    %v1943 = vadd.f32 %v1927, 1.0
    %v1944 = vadd.f32 %v1928, 1.0
    %v1945 = vadd.f32 %v1929, 1.0
    %v1946 = vadd.f32 %v1930, 1.0
    %v1947 = vadd.f32 %v1931, 1.0
    %v1948 = vadd.f32 %v1932, 1.0
    %v1949 = vadd.f32 %v1933, 1.0
    %v1950 = vadd.f32 %v1934, 1.0
    %v1951 = vadd.f32 %v1935, 1.0
    %v1952 = vadd.f32 %v1936, 1.0
    %v1953 = vadd.f32 %v1937, 1.0
    %v1954 = vadd.f32 %v1938, 1.0
    %v1955 = vadd.f32 %v1939, 1.0
    %v1956 = vadd.f32 %v1940, 1.0
    %v1957 = vadd.f32 %v1941, 1.0
    %v1958 = vadd.f32 %v1942, 1.0
    %v1959 = vmul.f32 %v1559, %v1943
    %v1960 = vmul.f32 %v1560, %v1944
    %v1961 = vmul.f32 %v1561, %v1945
    %v1962 = vmul.f32 %v1562, %v1946
    %v1963 = vmul.f32 %v1563, %v1947
    %v1964 = vmul.f32 %v1564, %v1948
    %v1965 = vmul.f32 %v1565, %v1949
    %v1966 = vmul.f32 %v1566, %v1950
    %v1967 = vmul.f32 %v1567, %v1951
    %v1968 = vmul.f32 %v1568, %v1952
    %v1969 = vmul.f32 %v1569, %v1953
    %v1970 = vmul.f32 %v1570, %v1954
    %v1971 = vmul.f32 %v1571, %v1955
    %v1972 = vmul.f32 %v1572, %v1956
    %v1973 = vmul.f32 %v1573, %v1957
    %v1974 = vmul.f32 %v1574, %v1958
    %1975 = vst [vmem:[#allocation2] sm:$0xff] %v1959
    %1976 = vst [vmem:[#allocation2 + $0x8] sm:$0xff] %v1960
    %1977 = vst [vmem:[#allocation2 + $0x10] sm:$0xff] %v1961
    %1978 = vst [vmem:[#allocation2 + $0x18] sm:$0xff] %v1962
    %1979 = vst [vmem:[#allocation2 + $0x20] sm:$0xff] %v1963
    %1980 = vst [vmem:[#allocation2 + $0x28] sm:$0xff] %v1964
    %1981 = vst [vmem:[#allocation2 + $0x30] sm:$0xff] %v1965
    %1982 = vst [vmem:[#allocation2 + $0x38] sm:$0xff] %v1966
    %1983 = vst [vmem:[#allocation2 + $0x40] sm:$0xff] %v1967
    %1984 = vst [vmem:[#allocation2 + $0x48] sm:$0xff] %v1968
    %1985 = vst [vmem:[#allocation2 + $0x50] sm:$0xff] %v1969
    %1986 = vst [vmem:[#allocation2 + $0x58] sm:$0xff] %v1970
    %1987 = vst [vmem:[#allocation2 + $0x60] sm:$0xff] %v1971
    %1988 = vst [vmem:[#allocation2 + $0x68] sm:$0xff] %v1972
    %1989 = vst [vmem:[#allocation2 + $0x70] sm:$0xff] %v1973
    %1990 = vst [vmem:[#allocation2 + $0x78] sm:$0xff] %v1974
    %v1991 = vld [vmem:[#allocation2] sm:$0xff]
    %v1992 = vld [vmem:[#allocation2 + $0x8] sm:$0xff]
    %v1993 = vld [vmem:[#allocation2 + $0x10] sm:$0xff]
    %v1994 = vld [vmem:[#allocation2 + $0x18] sm:$0xff]
    %v1995 = vld [vmem:[#allocation2 + $0x20] sm:$0xff]
    %v1996 = vld [vmem:[#allocation2 + $0x28] sm:$0xff]
    %v1997 = vld [vmem:[#allocation2 + $0x30] sm:$0xff]
    %v1998 = vld [vmem:[#allocation2 + $0x38] sm:$0xff]
    %v1999 = vld [vmem:[#allocation2 + $0x40] sm:$0xff]
    %v2000 = vld [vmem:[#allocation2 + $0x48] sm:$0xff]
    %v2001 = vld [vmem:[#allocation2 + $0x50] sm:$0xff]
    %v2002 = vld [vmem:[#allocation2 + $0x58] sm:$0xff]
    %v2003 = vld [vmem:[#allocation2 + $0x60] sm:$0xff]
    %v2004 = vld [vmem:[#allocation2 + $0x68] sm:$0xff]
    %v2005 = vld [vmem:[#allocation2 + $0x70] sm:$0xff]
    %v2006 = vld [vmem:[#allocation2 + $0x78] sm:$0xff]
    %v2007 = vpack.c.bf16 %v1993, %v1991
    %v2008 = vpack.c.bf16 %v1994, %v1992
    %v2009 = vpack.c.bf16 %v1997, %v1995
    %v2010 = vpack.c.bf16 %v1998, %v1996
    %v2011 = vpack.c.bf16 %v2001, %v1999
    %v2012 = vpack.c.bf16 %v2002, %v2000
    %v2013 = vpack.c.bf16 %v2005, %v2003
    %v2014 = vpack.c.bf16 %v2006, %v2004
    %v2015 = vld [vmem:[#allocation5] sm:$0xf]
    %v2016 = vld [vmem:[#allocation5 + $0x4] sm:$0xf]
    %v2017 = vld [vmem:[#allocation5 + $0x8] sm:$0xf]
    %v2018 = vld [vmem:[#allocation5 + $0xc] sm:$0xf]
    %v2019 = vld [vmem:[#allocation5 + $0x10] sm:$0xf]
    %v2020 = vld [vmem:[#allocation5 + $0x14] sm:$0xf]
    %v2021 = vld [vmem:[#allocation5 + $0x18] sm:$0xf]
    %v2022 = vld [vmem:[#allocation5 + $0x1c] sm:$0xf]
    %v2023 = vld [vmem:[#allocation5 + $0x20] sm:$0xf]
    %v2024 = vld [vmem:[#allocation5 + $0x24] sm:$0xf]
    %v2025 = vld [vmem:[#allocation5 + $0x28] sm:$0xf]
    %v2026 = vld [vmem:[#allocation5 + $0x2c] sm:$0xf]
    %v2027 = vld [vmem:[#allocation5 + $0x30] sm:$0xf]
    %v2028 = vld [vmem:[#allocation5 + $0x34] sm:$0xf]
    %v2029 = vld [vmem:[#allocation5 + $0x38] sm:$0xf]
    %v2030 = vld [vmem:[#allocation5 + $0x3c] sm:$0xf]
    %v2031 = vld [vmem:[#allocation5 + $0x40] sm:$0xf]
    %v2032 = vld [vmem:[#allocation5 + $0x44] sm:$0xf]
    %v2033 = vld [vmem:[#allocation5 + $0x48] sm:$0xf]
    %v2034 = vld [vmem:[#allocation5 + $0x4c] sm:$0xf]
    %v2035 = vld [vmem:[#allocation5 + $0x50] sm:$0xf]
    %v2036 = vld [vmem:[#allocation5 + $0x54] sm:$0xf]
    %v2037 = vld [vmem:[#allocation5 + $0x58] sm:$0xf]
    %v2038 = vld [vmem:[#allocation5 + $0x5c] sm:$0xf]
    %v2039 = vld [vmem:[#allocation5 + $0x60] sm:$0xf]
    %v2040 = vld [vmem:[#allocation5 + $0x64] sm:$0xf]
    %v2041 = vld [vmem:[#allocation5 + $0x68] sm:$0xf]
    %v2042 = vld [vmem:[#allocation5 + $0x6c] sm:$0xf]
    %v2043 = vld [vmem:[#allocation5 + $0x70] sm:$0xf]
    %v2044 = vld [vmem:[#allocation5 + $0x74] sm:$0xf]
    %v2045 = vld [vmem:[#allocation5 + $0x78] sm:$0xf]
    %v2046 = vld [vmem:[#allocation5 + $0x7c] sm:$0xf]
    %v2079 = vunpack.c.l.b16 %v2015
    %v2080 = vunpack.c.l.b16 %v2016
    %v2081 = vunpack.c.l.b16 %v2017
    %v2082 = vunpack.c.l.b16 %v2018
    %v2083 = vunpack.c.l.b16 %v2019
    %v2084 = vunpack.c.l.b16 %v2020
    %v2085 = vunpack.c.l.b16 %v2021
    %v2086 = vunpack.c.l.b16 %v2022
    %v2087 = vunpack.c.l.b16 %v2023
    %v2088 = vunpack.c.l.b16 %v2024
    %v2089 = vunpack.c.l.b16 %v2025
    %v2090 = vunpack.c.l.b16 %v2026
    %v2091 = vunpack.c.l.b16 %v2027
    %v2092 = vunpack.c.l.b16 %v2028
    %v2093 = vunpack.c.l.b16 %v2029
    %v2094 = vunpack.c.l.b16 %v2030
    %v2095 = vunpack.c.l.b16 %v2031
    %v2096 = vunpack.c.l.b16 %v2032
    %v2097 = vunpack.c.l.b16 %v2033
    %v2098 = vunpack.c.l.b16 %v2034
    %v2099 = vunpack.c.l.b16 %v2035
    %v2100 = vunpack.c.l.b16 %v2036
    %v2101 = vunpack.c.l.b16 %v2037
    %v2102 = vunpack.c.l.b16 %v2038
    %v2103 = vunpack.c.l.b16 %v2039
    %v2104 = vunpack.c.l.b16 %v2040
    %v2105 = vunpack.c.l.b16 %v2041
    %v2106 = vunpack.c.l.b16 %v2042
    %v2107 = vunpack.c.l.b16 %v2043
    %v2108 = vunpack.c.l.b16 %v2044
    %v2109 = vunpack.c.l.b16 %v2045
    %v2110 = vunpack.c.l.b16 %v2046
    %v2111 = vpack.c.b16 %v2080, %v2079
    %v2112 = vpack.c.b16 %v2082, %v2081
    %v2113 = vpack.c.b16 %v2084, %v2083
    %v2114 = vpack.c.b16 %v2086, %v2085
    %v2115 = vpack.c.b16 %v2088, %v2087
    %v2116 = vpack.c.b16 %v2090, %v2089
    %v2117 = vpack.c.b16 %v2092, %v2091
    %v2118 = vpack.c.b16 %v2094, %v2093
    %v2119 = vpack.c.b16 %v2096, %v2095
    %v2120 = vpack.c.b16 %v2098, %v2097
    %v2121 = vpack.c.b16 %v2100, %v2099
    %v2122 = vpack.c.b16 %v2102, %v2101
    %v2123 = vpack.c.b16 %v2104, %v2103
    %v2124 = vpack.c.b16 %v2106, %v2105
    %v2125 = vpack.c.b16 %v2108, %v2107
    %v2126 = vpack.c.b16 %v2110, %v2109
    %2143 = vmatprep.subr.bf16.mxu0 0
    %2144 = vmatpush1.bf16.msra.mxu0 %v2111
    %2145 = vmatprep.subr.bf16.mxu0 0
    %2146 = vmatpush1.bf16.msra.mxu0 %v2112
    %2147 = vmatprep.subr.bf16.mxu0 0
    %2148 = vmatpush1.bf16.msra.mxu0 %v2113
    %2149 = vmatprep.subr.bf16.mxu0 0
    %2150 = vmatpush1.bf16.msra.mxu0 %v2114
    %2151 = vmatprep.subr.bf16.mxu0 0
    %2152 = vmatpush1.bf16.msra.mxu0 %v2115
    %2153 = vmatprep.subr.bf16.mxu0 0
    %2154 = vmatpush1.bf16.msra.mxu0 %v2116
    %2155 = vmatprep.subr.bf16.mxu0 0
    %2156 = vmatpush1.bf16.msra.mxu0 %v2117
    %2157 = vmatprep.subr.bf16.mxu0 0
    %2158 = vmatpush1.bf16.msra.mxu0 %v2118
    %2159 = vmatprep.subr.bf16.mxu0 0
    %2160 = vmatpush1.bf16.msra.mxu0 %v2119
    %2161 = vmatprep.subr.bf16.mxu0 0
    %2162 = vmatpush1.bf16.msra.mxu0 %v2120
    %2163 = vmatprep.subr.bf16.mxu0 0
    %2164 = vmatpush1.bf16.msra.mxu0 %v2121
    %2165 = vmatprep.subr.bf16.mxu0 0
    %2166 = vmatpush1.bf16.msra.mxu0 %v2122
    %2167 = vmatprep.subr.bf16.mxu0 0
    %2168 = vmatpush1.bf16.msra.mxu0 %v2123
    %2169 = vmatprep.subr.bf16.mxu0 0
    %2170 = vmatpush1.bf16.msra.mxu0 %v2124
    %2171 = vmatprep.subr.bf16.mxu0 0
    %2172 = vmatpush1.bf16.msra.mxu0 %v2125
    %2173 = vmatprep.subr.bf16.mxu0 0
    %2174 = vmatpush1.bf16.msra.mxu0 %v2126
    %2175 = vmatprep.mubr.bf16.mxu0 %v2008
    %2176 = vmatmul.mubr.bf16.gmra.mrb[0].mxu0 %v2007
    %v2177 = vpop.f32.mrb[0].mxu0
    %v2178 = vadd.f32 0.0, %v2177
    %v2179 = vpop.f32.mrb[0].mxu0
    %v2180 = vpop.f32.mrb[0].mxu0
    %v2181 = vadd.f32 0.0, %v2180
    %v2182 = vpop.f32.mrb[0].mxu0
    %2183 = vmatprep.mubr.bf16.mxu0 %v2010
    %2184 = vmatmul.mubr.bf16.gmra.mrb[0].mxu0 %v2009
    %v2185 = vpop.f32.mrb[0].mxu0
    %v2186 = vadd.f32 0.0, %v2185
    %v2187 = vpop.f32.mrb[0].mxu0
    %v2188 = vpop.f32.mrb[0].mxu0
    %v2189 = vadd.f32 0.0, %v2188
    %v2190 = vpop.f32.mrb[0].mxu0
    %2191 = vmatprep.mubr.bf16.mxu0 %v2012
    %2192 = vmatmul.mubr.bf16.gmra.mrb[0].mxu0 %v2011
    %v2193 = vpop.f32.mrb[0].mxu0
    %v2194 = vadd.f32 0.0, %v2193
    %v2195 = vpop.f32.mrb[0].mxu0
    %v2196 = vpop.f32.mrb[0].mxu0
    %v2197 = vadd.f32 0.0, %v2196
    %v2198 = vpop.f32.mrb[0].mxu0
    %2199 = vmatprep.mubr.bf16.mxu0 %v2014
    %2200 = vmatmul.mubr.bf16.gmra.mrb[0].mxu0 %v2013
    %v2201 = vpop.f32.mrb[0].mxu0
    %v2202 = vadd.f32 0.0, %v2201
    %v2203 = vpop.f32.mrb[0].mxu0
    %v2204 = vpop.f32.mrb[0].mxu0
    %v2205 = vadd.f32 0.0, %v2204
    %v2206 = vpop.f32.mrb[0].mxu0
    %2207 = vdwg.mxu0
    %s2208 = scalar_lea.vmem %s3, 128
    %v2209 = vld [vmem:[%s2208] sm:$0xff]
    %v2210 = vld [vmem:[%s2208 + $0x8] sm:$0xff]
    %v2211 = vld [vmem:[%s2208 + $0x10] sm:$0xff]
    %v2212 = vld [vmem:[%s2208 + $0x18] sm:$0xff]
    %v2213 = vld [vmem:[%s2208 + $0x20] sm:$0xff]
    %v2214 = vld [vmem:[%s2208 + $0x28] sm:$0xff]
    %v2215 = vld [vmem:[%s2208 + $0x30] sm:$0xff]
    %v2216 = vld [vmem:[%s2208 + $0x38] sm:$0xff]
    %v2217 = vmul.f32 %v2178, %v2209
    %v2218 = vmul.f32 %v2181, %v2210
    %v2219 = vmul.f32 %v2186, %v2211
    %v2220 = vmul.f32 %v2189, %v2212
    %v2221 = vmul.f32 %v2194, %v2213
    %v2222 = vmul.f32 %v2197, %v2214
    %v2223 = vmul.f32 %v2202, %v2215
    %v2224 = vmul.f32 %v2205, %v2216
    %v2225 = vpack.c.bf16 %v2218, %v2217
    %v2226 = vpack.c.bf16 %v2220, %v2219
    %v2227 = vpack.c.bf16 %v2222, %v2221
    %v2228 = vpack.c.bf16 %v2224, %v2223
    %v2229 = vld [vmem:[#allocation7] sm:$0xff]
    %v2230 = vld [vmem:[#allocation7 + $0x8] sm:$0xff]
    %v2231 = vld [vmem:[#allocation7 + $0x10] sm:$0xff]
    %v2232 = vld [vmem:[#allocation7 + $0x18] sm:$0xff]
    %v2233 = vld [vmem:[#allocation7 + $0x20] sm:$0xff]
    %v2234 = vld [vmem:[#allocation7 + $0x28] sm:$0xff]
    %v2235 = vld [vmem:[#allocation7 + $0x30] sm:$0xff]
    %v2236 = vld [vmem:[#allocation7 + $0x38] sm:$0xff]
    %v2237 = vld [vmem:[#allocation7 + $0x40] sm:$0xff]
    %v2238 = vld [vmem:[#allocation7 + $0x48] sm:$0xff]
    %v2239 = vld [vmem:[#allocation7 + $0x50] sm:$0xff]
    %v2240 = vld [vmem:[#allocation7 + $0x58] sm:$0xff]
    %v2241 = vld [vmem:[#allocation7 + $0x60] sm:$0xff]
    %v2242 = vld [vmem:[#allocation7 + $0x68] sm:$0xff]
    %v2243 = vld [vmem:[#allocation7 + $0x70] sm:$0xff]
    %v2244 = vld [vmem:[#allocation7 + $0x78] sm:$0xff]
    %v2261 = vunpack.c.l.b16 %v2229
    %v2262 = vunpack.c.h.b16 %v2229
    %v2263 = vunpack.c.l.b16 %v2230
    %v2264 = vunpack.c.h.b16 %v2230
    %v2265 = vunpack.c.l.b16 %v2231
    %v2266 = vunpack.c.h.b16 %v2231
    %v2267 = vunpack.c.l.b16 %v2232
    %v2268 = vunpack.c.h.b16 %v2232
    %v2269 = vunpack.c.l.b16 %v2233
    %v2270 = vunpack.c.h.b16 %v2233
    %v2271 = vunpack.c.l.b16 %v2234
    %v2272 = vunpack.c.h.b16 %v2234
    %v2273 = vunpack.c.l.b16 %v2235
    %v2274 = vunpack.c.h.b16 %v2235
    %v2275 = vunpack.c.l.b16 %v2236
    %v2276 = vunpack.c.h.b16 %v2236
    %v2277 = vunpack.c.l.b16 %v2237
    %v2278 = vunpack.c.h.b16 %v2237
    %v2279 = vunpack.c.l.b16 %v2238
    %v2280 = vunpack.c.h.b16 %v2238
    %v2281 = vunpack.c.l.b16 %v2239
    %v2282 = vunpack.c.h.b16 %v2239
    %v2283 = vunpack.c.l.b16 %v2240
    %v2284 = vunpack.c.h.b16 %v2240
    %v2285 = vunpack.c.l.b16 %v2241
    %v2286 = vunpack.c.h.b16 %v2241
    %v2287 = vunpack.c.l.b16 %v2242
    %v2288 = vunpack.c.h.b16 %v2242
    %v2289 = vunpack.c.l.b16 %v2243
    %v2290 = vunpack.c.h.b16 %v2243
    %v2291 = vunpack.c.l.b16 %v2244
    %v2292 = vunpack.c.h.b16 %v2244
    %v2293 = vpack.c.b16 %v2263, %v2261
    %v2294 = vpack.c.b16 %v2264, %v2262
    %v2295 = vpack.c.b16 %v2267, %v2265
    %v2296 = vpack.c.b16 %v2268, %v2266
    %v2297 = vpack.c.b16 %v2271, %v2269
    %v2298 = vpack.c.b16 %v2272, %v2270
    %v2299 = vpack.c.b16 %v2275, %v2273
    %v2300 = vpack.c.b16 %v2276, %v2274
    %v2301 = vpack.c.b16 %v2279, %v2277
    %v2302 = vpack.c.b16 %v2280, %v2278
    %v2303 = vpack.c.b16 %v2283, %v2281
    %v2304 = vpack.c.b16 %v2284, %v2282
    %v2305 = vpack.c.b16 %v2287, %v2285
    %v2306 = vpack.c.b16 %v2288, %v2286
    %v2307 = vpack.c.b16 %v2291, %v2289
    %v2308 = vpack.c.b16 %v2292, %v2290
    %2325 = vmatprep.subr.bf16.mxu0 %v2294
    %2326 = vmatpush1.bf16.msra.mxu0 %v2293
    %2327 = vmatprep.subr.bf16.mxu0 %v2296
    %2328 = vmatpush1.bf16.msra.mxu0 %v2295
    %2329 = vmatprep.subr.bf16.mxu0 %v2298
    %2330 = vmatpush1.bf16.msra.mxu0 %v2297
    %2331 = vmatprep.subr.bf16.mxu0 %v2300
    %2332 = vmatpush1.bf16.msra.mxu0 %v2299
    %2333 = vmatprep.subr.bf16.mxu0 %v2302
    %2334 = vmatpush1.bf16.msra.mxu0 %v2301
    %2335 = vmatprep.subr.bf16.mxu0 %v2304
    %2336 = vmatpush1.bf16.msra.mxu0 %v2303
    %2337 = vmatprep.subr.bf16.mxu0 %v2306
    %2338 = vmatpush1.bf16.msra.mxu0 %v2305
    %2339 = vmatprep.subr.bf16.mxu0 %v2308
    %2340 = vmatpush1.bf16.msra.mxu0 %v2307
    %2341 = vmatprep.subr.bf16.mxu0 0
    %2342 = vmatpush1.bf16.msra.mxu0 0
    %2343 = vmatprep.subr.bf16.mxu0 0
    %2344 = vmatpush1.bf16.msra.mxu0 0
    %2345 = vmatprep.subr.bf16.mxu0 0
    %2346 = vmatpush1.bf16.msra.mxu0 0
    %2347 = vmatprep.subr.bf16.mxu0 0
    %2348 = vmatpush1.bf16.msra.mxu0 0
    %2349 = vmatprep.subr.bf16.mxu0 0
    %2350 = vmatpush1.bf16.msra.mxu0 0
    %2351 = vmatprep.subr.bf16.mxu0 0
    %2352 = vmatpush1.bf16.msra.mxu0 0
    %2353 = vmatprep.subr.bf16.mxu0 0
    %2354 = vmatpush1.bf16.msra.mxu0 0
    %2355 = vmatprep.subr.bf16.mxu0 0
    %2356 = vmatpush1.bf16.msra.mxu0 0
    %2357 = vmatprep.mubr.bf16.mxu0 0
    %2358 = vmatmul.mubr.bf16.gmra.mrb[0].mxu0 %v2225
    %v2359 = vpop.f32.mrb[0].mxu0
    %v2360 = vadd.f32 0.0, %v2359
    %v2361 = vpop.f32.mrb[0].mxu0
    %v2362 = vadd.f32 0.0, %v2361
    %v2363 = vpop.f32.mrb[0].mxu0
    %v2364 = vadd.f32 0.0, %v2363
    %v2365 = vpop.f32.mrb[0].mxu0
    %v2366 = vadd.f32 0.0, %v2365
    %2367 = vmatprep.mubr.bf16.mxu0 0
    %2368 = vmatmul.mubr.bf16.gmra.mrb[0].mxu0 %v2226
    %v2369 = vpop.f32.mrb[0].mxu0
    %v2370 = vadd.f32 0.0, %v2369
    %v2371 = vpop.f32.mrb[0].mxu0
    %v2372 = vadd.f32 0.0, %v2371
    %v2373 = vpop.f32.mrb[0].mxu0
    %v2374 = vadd.f32 0.0, %v2373
    %v2375 = vpop.f32.mrb[0].mxu0
    %v2376 = vadd.f32 0.0, %v2375
    %2377 = vmatprep.mubr.bf16.mxu0 0
    %2378 = vmatmul.mubr.bf16.gmra.mrb[0].mxu0 %v2227
    %v2379 = vpop.f32.mrb[0].mxu0
    %v2380 = vadd.f32 0.0, %v2379
    %v2381 = vpop.f32.mrb[0].mxu0
    %v2382 = vadd.f32 0.0, %v2381
    %v2383 = vpop.f32.mrb[0].mxu0
    %v2384 = vadd.f32 0.0, %v2383
    %v2385 = vpop.f32.mrb[0].mxu0
    %v2386 = vadd.f32 0.0, %v2385
    %2387 = vmatprep.mubr.bf16.mxu0 0
    %2388 = vmatmul.mubr.bf16.gmra.mrb[0].mxu0 %v2228
    %v2389 = vpop.f32.mrb[0].mxu0
    %v2390 = vadd.f32 0.0, %v2389
    %v2391 = vpop.f32.mrb[0].mxu0
    %v2392 = vadd.f32 0.0, %v2391
    %v2393 = vpop.f32.mrb[0].mxu0
    %v2394 = vadd.f32 0.0, %v2393
    %v2395 = vpop.f32.mrb[0].mxu0
    %v2396 = vadd.f32 0.0, %v2395
    %2397 = vdwg.mxu0
    %v2398 = vmul.f32 %v2360, 0.5
    %v2399 = vmul.f32 %v2362, 0.5
    %v2400 = vmul.f32 %v2364, 0.5
    %v2401 = vmul.f32 %v2366, 0.5
    %v2402 = vmul.f32 %v2370, 0.5
    %v2403 = vmul.f32 %v2372, 0.5
    %v2404 = vmul.f32 %v2374, 0.5
    %v2405 = vmul.f32 %v2376, 0.5
    %v2406 = vmul.f32 %v2380, 0.5
    %v2407 = vmul.f32 %v2382, 0.5
    %v2408 = vmul.f32 %v2384, 0.5
    %v2409 = vmul.f32 %v2386, 0.5
    %v2410 = vmul.f32 %v2390, 0.5
    %v2411 = vmul.f32 %v2392, 0.5
    %v2412 = vmul.f32 %v2394, 0.5
    %v2413 = vmul.f32 %v2396, 0.5
    %v2414 = vmul.f32 %v2360, 0.70710677
    %v2415 = vmul.f32 %v2362, 0.70710677
    %v2416 = vmul.f32 %v2364, 0.70710677
    %v2417 = vmul.f32 %v2366, 0.70710677
    %v2418 = vmul.f32 %v2370, 0.70710677
    %v2419 = vmul.f32 %v2372, 0.70710677
    %v2420 = vmul.f32 %v2374, 0.70710677
    %v2421 = vmul.f32 %v2376, 0.70710677
    %v2422 = vmul.f32 %v2380, 0.70710677
    %v2423 = vmul.f32 %v2382, 0.70710677
    %v2424 = vmul.f32 %v2384, 0.70710677
    %v2425 = vmul.f32 %v2386, 0.70710677
    %v2426 = vmul.f32 %v2390, 0.70710677
    %v2427 = vmul.f32 %v2392, 0.70710677
    %v2428 = vmul.f32 %v2394, 0.70710677
    %v2429 = vmul.f32 %v2396, 0.70710677
    %vm2430 = vcmp.ge.f32.partialorder %v2414, 0.0
    %vm2431 = vcmp.ge.f32.partialorder %v2415, 0.0
    %vm2432 = vcmp.ge.f32.partialorder %v2416, 0.0
    %vm2433 = vcmp.ge.f32.partialorder %v2417, 0.0
    %vm2434 = vcmp.ge.f32.partialorder %v2418, 0.0
    %vm2435 = vcmp.ge.f32.partialorder %v2419, 0.0
    %vm2436 = vcmp.ge.f32.partialorder %v2420, 0.0
    %vm2437 = vcmp.ge.f32.partialorder %v2421, 0.0
    %vm2438 = vcmp.ge.f32.partialorder %v2422, 0.0
    %vm2439 = vcmp.ge.f32.partialorder %v2423, 0.0
    %vm2440 = vcmp.ge.f32.partialorder %v2424, 0.0
    %vm2441 = vcmp.ge.f32.partialorder %v2425, 0.0
    %vm2442 = vcmp.ge.f32.partialorder %v2426, 0.0
    %vm2443 = vcmp.ge.f32.partialorder %v2427, 0.0
    %vm2444 = vcmp.ge.f32.partialorder %v2428, 0.0
    %vm2445 = vcmp.ge.f32.partialorder %v2429, 0.0
    %v2446 = vsel %vm2430, 1.0, -1.0
    %v2447 = vsel %vm2431, 1.0, -1.0
    %v2448 = vsel %vm2432, 1.0, -1.0
    %v2449 = vsel %vm2433, 1.0, -1.0
    %v2450 = vsel %vm2434, 1.0, -1.0
    %v2451 = vsel %vm2435, 1.0, -1.0
    %v2452 = vsel %vm2436, 1.0, -1.0
    %v2453 = vsel %vm2437, 1.0, -1.0
    %v2454 = vsel %vm2438, 1.0, -1.0
    %v2455 = vsel %vm2439, 1.0, -1.0
    %v2456 = vsel %vm2440, 1.0, -1.0
    %v2457 = vsel %vm2441, 1.0, -1.0
    %v2458 = vsel %vm2442, 1.0, -1.0
    %v2459 = vsel %vm2443, 1.0, -1.0
    %v2460 = vsel %vm2444, 1.0, -1.0
    %v2461 = vsel %vm2445, 1.0, -1.0
    %v2462 = vand.u32 2147483647, %v2414
    %v2463 = vand.u32 2147483647, %v2415
    %v2464 = vand.u32 2147483647, %v2416
    %v2465 = vand.u32 2147483647, %v2417
    %v2466 = vand.u32 2147483647, %v2418
    %v2467 = vand.u32 2147483647, %v2419
    %v2468 = vand.u32 2147483647, %v2420
    %v2469 = vand.u32 2147483647, %v2421
    %v2470 = vand.u32 2147483647, %v2422
    %v2471 = vand.u32 2147483647, %v2423
    %v2472 = vand.u32 2147483647, %v2424
    %v2473 = vand.u32 2147483647, %v2425
    %v2474 = vand.u32 2147483647, %v2426
    %v2475 = vand.u32 2147483647, %v2427
    %v2476 = vand.u32 2147483647, %v2428
    %v2477 = vand.u32 2147483647, %v2429
    %v2478 = vmul.f32 %v2462, 0.3275911
    %v2479 = vmul.f32 %v2463, 0.3275911
    %v2480 = vmul.f32 %v2464, 0.3275911
    %v2481 = vmul.f32 %v2465, 0.3275911
    %v2482 = vmul.f32 %v2466, 0.3275911
    %v2483 = vmul.f32 %v2467, 0.3275911
    %v2484 = vmul.f32 %v2468, 0.3275911
    %v2485 = vmul.f32 %v2469, 0.3275911
    %v2486 = vmul.f32 %v2470, 0.3275911
    %v2487 = vmul.f32 %v2471, 0.3275911
    %v2488 = vmul.f32 %v2472, 0.3275911
    %v2489 = vmul.f32 %v2473, 0.3275911
    %v2490 = vmul.f32 %v2474, 0.3275911
    %v2491 = vmul.f32 %v2475, 0.3275911
    %v2492 = vmul.f32 %v2476, 0.3275911
    %v2493 = vmul.f32 %v2477, 0.3275911
    %v2494 = vadd.f32 %v2478, 1.0
    %v2495 = vadd.f32 %v2479, 1.0
    %v2496 = vadd.f32 %v2480, 1.0
    %v2497 = vadd.f32 %v2481, 1.0
    %v2498 = vadd.f32 %v2482, 1.0
    %v2499 = vadd.f32 %v2483, 1.0
    %v2500 = vadd.f32 %v2484, 1.0
    %v2501 = vadd.f32 %v2485, 1.0
    %v2502 = vadd.f32 %v2486, 1.0
    %v2503 = vadd.f32 %v2487, 1.0
    %v2504 = vadd.f32 %v2488, 1.0
    %v2505 = vadd.f32 %v2489, 1.0
    %v2506 = vadd.f32 %v2490, 1.0
    %v2507 = vadd.f32 %v2491, 1.0
    %v2508 = vadd.f32 %v2492, 1.0
    %v2509 = vadd.f32 %v2493, 1.0
    %v2510 = vrcp.pop %v2494
    %v2511 = vrcp.pop %v2495
    %v2512 = vrcp.pop %v2496
    %v2513 = vrcp.pop %v2497
    %v2514 = vrcp.pop %v2498
    %v2515 = vrcp.pop %v2499
    %v2516 = vrcp.pop %v2500
    %v2517 = vrcp.pop %v2501
    %v2518 = vrcp.pop %v2502
    %v2519 = vrcp.pop %v2503
    %v2520 = vrcp.pop %v2504
    %v2521 = vrcp.pop %v2505
    %v2522 = vrcp.pop %v2506
    %v2523 = vrcp.pop %v2507
    %v2524 = vrcp.pop %v2508
    %v2525 = vrcp.pop %v2509
    %v2526 = vmul.f32 %v2510, 1.0614054
    %v2527 = vmul.f32 %v2511, 1.0614054
    %v2528 = vmul.f32 %v2512, 1.0614054
    %v2529 = vmul.f32 %v2513, 1.0614054
    %v2530 = vmul.f32 %v2514, 1.0614054
    %v2531 = vmul.f32 %v2515, 1.0614054
    %v2532 = vmul.f32 %v2516, 1.0614054
    %v2533 = vmul.f32 %v2517, 1.0614054
    %v2534 = vmul.f32 %v2518, 1.0614054
    %v2535 = vmul.f32 %v2519, 1.0614054
    %v2536 = vmul.f32 %v2520, 1.0614054
    %v2537 = vmul.f32 %v2521, 1.0614054
    %v2538 = vmul.f32 %v2522, 1.0614054
    %v2539 = vmul.f32 %v2523, 1.0614054
    %v2540 = vmul.f32 %v2524, 1.0614054
    %v2541 = vmul.f32 %v2525, 1.0614054
    %v2542 = vadd.f32 %v2526, -1.4531521
    %v2543 = vadd.f32 %v2527, -1.4531521
    %v2544 = vadd.f32 %v2528, -1.4531521
    %v2545 = vadd.f32 %v2529, -1.4531521
    %v2546 = vadd.f32 %v2530, -1.4531521
    %v2547 = vadd.f32 %v2531, -1.4531521
    %v2548 = vadd.f32 %v2532, -1.4531521
    %v2549 = vadd.f32 %v2533, -1.4531521
    %v2550 = vadd.f32 %v2534, -1.4531521
    %v2551 = vadd.f32 %v2535, -1.4531521
    %v2552 = vadd.f32 %v2536, -1.4531521
    %v2553 = vadd.f32 %v2537, -1.4531521
    %v2554 = vadd.f32 %v2538, -1.4531521
    %v2555 = vadd.f32 %v2539, -1.4531521
    %v2556 = vadd.f32 %v2540, -1.4531521
    %v2557 = vadd.f32 %v2541, -1.4531521
    %v2558 = vmul.f32 %v2542, %v2510
    %v2559 = vmul.f32 %v2543, %v2511
    %v2560 = vmul.f32 %v2544, %v2512
    %v2561 = vmul.f32 %v2545, %v2513
    %v2562 = vmul.f32 %v2546, %v2514
    %v2563 = vmul.f32 %v2547, %v2515
    %v2564 = vmul.f32 %v2548, %v2516
    %v2565 = vmul.f32 %v2549, %v2517
    %v2566 = vmul.f32 %v2550, %v2518
    %v2567 = vmul.f32 %v2551, %v2519
    %v2568 = vmul.f32 %v2552, %v2520
    %v2569 = vmul.f32 %v2553, %v2521
    %v2570 = vmul.f32 %v2554, %v2522
    %v2571 = vmul.f32 %v2555, %v2523
    %v2572 = vmul.f32 %v2556, %v2524
    %v2573 = vmul.f32 %v2557, %v2525
    %v2574 = vadd.f32 %v2558, 1.4214138
    %v2575 = vadd.f32 %v2559, 1.4214138
    %v2576 = vadd.f32 %v2560, 1.4214138
    %v2577 = vadd.f32 %v2561, 1.4214138
    %v2578 = vadd.f32 %v2562, 1.4214138
    %v2579 = vadd.f32 %v2563, 1.4214138
    %v2580 = vadd.f32 %v2564, 1.4214138
    %v2581 = vadd.f32 %v2565, 1.4214138
    %v2582 = vadd.f32 %v2566, 1.4214138
    %v2583 = vadd.f32 %v2567, 1.4214138
    %v2584 = vadd.f32 %v2568, 1.4214138
    %v2585 = vadd.f32 %v2569, 1.4214138
    %v2586 = vadd.f32 %v2570, 1.4214138
    %v2587 = vadd.f32 %v2571, 1.4214138
    %v2588 = vadd.f32 %v2572, 1.4214138
    %v2589 = vadd.f32 %v2573, 1.4214138
    %v2590 = vmul.f32 %v2574, %v2510
    %v2591 = vmul.f32 %v2575, %v2511
    %v2592 = vmul.f32 %v2576, %v2512
    %v2593 = vmul.f32 %v2577, %v2513
    %v2594 = vmul.f32 %v2578, %v2514
    %v2595 = vmul.f32 %v2579, %v2515
    %v2596 = vmul.f32 %v2580, %v2516
    %v2597 = vmul.f32 %v2581, %v2517
    %v2598 = vmul.f32 %v2582, %v2518
    %v2599 = vmul.f32 %v2583, %v2519
    %v2600 = vmul.f32 %v2584, %v2520
    %v2601 = vmul.f32 %v2585, %v2521
    %v2602 = vmul.f32 %v2586, %v2522
    %v2603 = vmul.f32 %v2587, %v2523
    %v2604 = vmul.f32 %v2588, %v2524
    %v2605 = vmul.f32 %v2589, %v2525
    %v2606 = vadd.f32 %v2590, -0.28449672
    %v2607 = vadd.f32 %v2591, -0.28449672
    %v2608 = vadd.f32 %v2592, -0.28449672
    %v2609 = vadd.f32 %v2593, -0.28449672
    %v2610 = vadd.f32 %v2594, -0.28449672
    %v2611 = vadd.f32 %v2595, -0.28449672
    %v2612 = vadd.f32 %v2596, -0.28449672
    %v2613 = vadd.f32 %v2597, -0.28449672
    %v2614 = vadd.f32 %v2598, -0.28449672
    %v2615 = vadd.f32 %v2599, -0.28449672
    %v2616 = vadd.f32 %v2600, -0.28449672
    %v2617 = vadd.f32 %v2601, -0.28449672
    %v2618 = vadd.f32 %v2602, -0.28449672
    %v2619 = vadd.f32 %v2603, -0.28449672
    %v2620 = vadd.f32 %v2604, -0.28449672
    %v2621 = vadd.f32 %v2605, -0.28449672
    %v2622 = vmul.f32 %v2606, %v2510
    %v2623 = vmul.f32 %v2607, %v2511
    %v2624 = vmul.f32 %v2608, %v2512
    %v2625 = vmul.f32 %v2609, %v2513
    %v2626 = vmul.f32 %v2610, %v2514
    %v2627 = vmul.f32 %v2611, %v2515
    %v2628 = vmul.f32 %v2612, %v2516
    %v2629 = vmul.f32 %v2613, %v2517
    %v2630 = vmul.f32 %v2614, %v2518
    %v2631 = vmul.f32 %v2615, %v2519
    %v2632 = vmul.f32 %v2616, %v2520
    %v2633 = vmul.f32 %v2617, %v2521
    %v2634 = vmul.f32 %v2618, %v2522
    %v2635 = vmul.f32 %v2619, %v2523
    %v2636 = vmul.f32 %v2620, %v2524
    %v2637 = vmul.f32 %v2621, %v2525
    %v2638 = vadd.f32 %v2622, 0.2548296
    %v2639 = vadd.f32 %v2623, 0.2548296
    %v2640 = vadd.f32 %v2624, 0.2548296
    %v2641 = vadd.f32 %v2625, 0.2548296
    %v2642 = vadd.f32 %v2626, 0.2548296
    %v2643 = vadd.f32 %v2627, 0.2548296
    %v2644 = vadd.f32 %v2628, 0.2548296
    %v2645 = vadd.f32 %v2629, 0.2548296
    %v2646 = vadd.f32 %v2630, 0.2548296
    %v2647 = vadd.f32 %v2631, 0.2548296
    %v2648 = vadd.f32 %v2632, 0.2548296
    %v2649 = vadd.f32 %v2633, 0.2548296
    %v2650 = vadd.f32 %v2634, 0.2548296
    %v2651 = vadd.f32 %v2635, 0.2548296
    %v2652 = vadd.f32 %v2636, 0.2548296
    %v2653 = vadd.f32 %v2637, 0.2548296
    %v2654 = vmul.f32 %v2638, %v2510
    %v2655 = vmul.f32 %v2639, %v2511
    %v2656 = vmul.f32 %v2640, %v2512
    %v2657 = vmul.f32 %v2641, %v2513
    %v2658 = vmul.f32 %v2642, %v2514
    %v2659 = vmul.f32 %v2643, %v2515
    %v2660 = vmul.f32 %v2644, %v2516
    %v2661 = vmul.f32 %v2645, %v2517
    %v2662 = vmul.f32 %v2646, %v2518
    %v2663 = vmul.f32 %v2647, %v2519
    %v2664 = vmul.f32 %v2648, %v2520
    %v2665 = vmul.f32 %v2649, %v2521
    %v2666 = vmul.f32 %v2650, %v2522
    %v2667 = vmul.f32 %v2651, %v2523
    %v2668 = vmul.f32 %v2652, %v2524
    %v2669 = vmul.f32 %v2653, %v2525
    %v2670 = vsub.f32 0.0, %v2462
    %v2671 = vsub.f32 0.0, %v2463
    %v2672 = vsub.f32 0.0, %v2464
    %v2673 = vsub.f32 0.0, %v2465
    %v2674 = vsub.f32 0.0, %v2466
    %v2675 = vsub.f32 0.0, %v2467
    %v2676 = vsub.f32 0.0, %v2468
    %v2677 = vsub.f32 0.0, %v2469
    %v2678 = vsub.f32 0.0, %v2470
    %v2679 = vsub.f32 0.0, %v2471
    %v2680 = vsub.f32 0.0, %v2472
    %v2681 = vsub.f32 0.0, %v2473
    %v2682 = vsub.f32 0.0, %v2474
    %v2683 = vsub.f32 0.0, %v2475
    %v2684 = vsub.f32 0.0, %v2476
    %v2685 = vsub.f32 0.0, %v2477
    %v2686 = vmul.f32 %v2670, %v2462
    %v2687 = vmul.f32 %v2671, %v2463
    %v2688 = vmul.f32 %v2672, %v2464
    %v2689 = vmul.f32 %v2673, %v2465
    %v2690 = vmul.f32 %v2674, %v2466
    %v2691 = vmul.f32 %v2675, %v2467
    %v2692 = vmul.f32 %v2676, %v2468
    %v2693 = vmul.f32 %v2677, %v2469
    %v2694 = vmul.f32 %v2678, %v2470
    %v2695 = vmul.f32 %v2679, %v2471
    %v2696 = vmul.f32 %v2680, %v2472
    %v2697 = vmul.f32 %v2681, %v2473
    %v2698 = vmul.f32 %v2682, %v2474
    %v2699 = vmul.f32 %v2683, %v2475
    %v2700 = vmul.f32 %v2684, %v2476
    %v2701 = vmul.f32 %v2685, %v2477
    %v2702 = vmul.f32 %v2686, 1.442695
    %v2703 = vpow.pop %v2702
    %v2704 = vmul.f32 %v2687, 1.442695
    %v2705 = vpow.pop %v2704
    %v2706 = vmul.f32 %v2688, 1.442695
    %v2707 = vpow.pop %v2706
    %v2708 = vmul.f32 %v2689, 1.442695
    %v2709 = vpow.pop %v2708
    %v2710 = vmul.f32 %v2690, 1.442695
    %v2711 = vpow.pop %v2710
    %v2712 = vmul.f32 %v2691, 1.442695
    %v2713 = vpow.pop %v2712
    %v2714 = vmul.f32 %v2692, 1.442695
    %v2715 = vpow.pop %v2714
    %v2716 = vmul.f32 %v2693, 1.442695
    %v2717 = vpow.pop %v2716
    %v2718 = vmul.f32 %v2694, 1.442695
    %v2719 = vpow.pop %v2718
    %v2720 = vmul.f32 %v2695, 1.442695
    %v2721 = vpow.pop %v2720
    %v2722 = vmul.f32 %v2696, 1.442695
    %v2723 = vpow.pop %v2722
    %v2724 = vmul.f32 %v2697, 1.442695
    %v2725 = vpow.pop %v2724
    %v2726 = vmul.f32 %v2698, 1.442695
    %v2727 = vpow.pop %v2726
    %v2728 = vmul.f32 %v2699, 1.442695
    %v2729 = vpow.pop %v2728
    %v2730 = vmul.f32 %v2700, 1.442695
    %v2731 = vpow.pop %v2730
    %v2732 = vmul.f32 %v2701, 1.442695
    %v2733 = vpow.pop %v2732
    %v2734 = vmul.f32 %v2654, %v2703
    %v2735 = vmul.f32 %v2655, %v2705
    %v2736 = vmul.f32 %v2656, %v2707
    %v2737 = vmul.f32 %v2657, %v2709
    %v2738 = vmul.f32 %v2658, %v2711
    %v2739 = vmul.f32 %v2659, %v2713
    %v2740 = vmul.f32 %v2660, %v2715
    %v2741 = vmul.f32 %v2661, %v2717
    %v2742 = vmul.f32 %v2662, %v2719
    %v2743 = vmul.f32 %v2663, %v2721
    %v2744 = vmul.f32 %v2664, %v2723
    %v2745 = vmul.f32 %v2665, %v2725
    %v2746 = vmul.f32 %v2666, %v2727
    %v2747 = vmul.f32 %v2667, %v2729
    %v2748 = vmul.f32 %v2668, %v2731
    %v2749 = vmul.f32 %v2669, %v2733
    %v2750 = vsub.f32 1.0, %v2734
    %v2751 = vsub.f32 1.0, %v2735
    %v2752 = vsub.f32 1.0, %v2736
    %v2753 = vsub.f32 1.0, %v2737
    %v2754 = vsub.f32 1.0, %v2738
    %v2755 = vsub.f32 1.0, %v2739
    %v2756 = vsub.f32 1.0, %v2740
    %v2757 = vsub.f32 1.0, %v2741
    %v2758 = vsub.f32 1.0, %v2742
    %v2759 = vsub.f32 1.0, %v2743
    %v2760 = vsub.f32 1.0, %v2744
    %v2761 = vsub.f32 1.0, %v2745
    %v2762 = vsub.f32 1.0, %v2746
    %v2763 = vsub.f32 1.0, %v2747
    %v2764 = vsub.f32 1.0, %v2748
    %v2765 = vsub.f32 1.0, %v2749
    %v2766 = vmul.f32 %v2446, %v2750
    %v2767 = vmul.f32 %v2447, %v2751
    %v2768 = vmul.f32 %v2448, %v2752
    %v2769 = vmul.f32 %v2449, %v2753
    %v2770 = vmul.f32 %v2450, %v2754
    %v2771 = vmul.f32 %v2451, %v2755
    %v2772 = vmul.f32 %v2452, %v2756
    %v2773 = vmul.f32 %v2453, %v2757
    %v2774 = vmul.f32 %v2454, %v2758
    %v2775 = vmul.f32 %v2455, %v2759
    %v2776 = vmul.f32 %v2456, %v2760
    %v2777 = vmul.f32 %v2457, %v2761
    %v2778 = vmul.f32 %v2458, %v2762
    %v2779 = vmul.f32 %v2459, %v2763
    %v2780 = vmul.f32 %v2460, %v2764
    %v2781 = vmul.f32 %v2461, %v2765
    %v2782 = vadd.f32 %v2766, 1.0
    %v2783 = vadd.f32 %v2767, 1.0
    %v2784 = vadd.f32 %v2768, 1.0
    %v2785 = vadd.f32 %v2769, 1.0
    %v2786 = vadd.f32 %v2770, 1.0
    %v2787 = vadd.f32 %v2771, 1.0
    %v2788 = vadd.f32 %v2772, 1.0
    %v2789 = vadd.f32 %v2773, 1.0
    %v2790 = vadd.f32 %v2774, 1.0
    %v2791 = vadd.f32 %v2775, 1.0
    %v2792 = vadd.f32 %v2776, 1.0
    %v2793 = vadd.f32 %v2777, 1.0
    %v2794 = vadd.f32 %v2778, 1.0
    %v2795 = vadd.f32 %v2779, 1.0
    %v2796 = vadd.f32 %v2780, 1.0
    %v2797 = vadd.f32 %v2781, 1.0
    %v2798 = vmul.f32 %v2398, %v2782
    %v2799 = vmul.f32 %v2399, %v2783
    %v2800 = vmul.f32 %v2400, %v2784
    %v2801 = vmul.f32 %v2401, %v2785
    %v2802 = vmul.f32 %v2402, %v2786
    %v2803 = vmul.f32 %v2403, %v2787
    %v2804 = vmul.f32 %v2404, %v2788
    %v2805 = vmul.f32 %v2405, %v2789
    %v2806 = vmul.f32 %v2406, %v2790
    %v2807 = vmul.f32 %v2407, %v2791
    %v2808 = vmul.f32 %v2408, %v2792
    %v2809 = vmul.f32 %v2409, %v2793
    %v2810 = vmul.f32 %v2410, %v2794
    %v2811 = vmul.f32 %v2411, %v2795
    %v2812 = vmul.f32 %v2412, %v2796
    %v2813 = vmul.f32 %v2413, %v2797
    %2814 = vst [vmem:[#allocation2] sm:$0xff] %v2798
    %2815 = vst [vmem:[#allocation2 + $0x8] sm:$0xff] %v2799
    %2816 = vst [vmem:[#allocation2 + $0x10] sm:$0xff] %v2800
    %2817 = vst [vmem:[#allocation2 + $0x18] sm:$0xff] %v2801
    %2818 = vst [vmem:[#allocation2 + $0x20] sm:$0xff] %v2802
    %2819 = vst [vmem:[#allocation2 + $0x28] sm:$0xff] %v2803
    %2820 = vst [vmem:[#allocation2 + $0x30] sm:$0xff] %v2804
    %2821 = vst [vmem:[#allocation2 + $0x38] sm:$0xff] %v2805
    %2822 = vst [vmem:[#allocation2 + $0x40] sm:$0xff] %v2806
    %2823 = vst [vmem:[#allocation2 + $0x48] sm:$0xff] %v2807
    %2824 = vst [vmem:[#allocation2 + $0x50] sm:$0xff] %v2808
    %2825 = vst [vmem:[#allocation2 + $0x58] sm:$0xff] %v2809
    %2826 = vst [vmem:[#allocation2 + $0x60] sm:$0xff] %v2810
    %2827 = vst [vmem:[#allocation2 + $0x68] sm:$0xff] %v2811
    %2828 = vst [vmem:[#allocation2 + $0x70] sm:$0xff] %v2812
    %2829 = vst [vmem:[#allocation2 + $0x78] sm:$0xff] %v2813
    %v2830 = vld [vmem:[#allocation2] sm:$0xff]
    %v2831 = vld [vmem:[#allocation2 + $0x8] sm:$0xff]
    %v2832 = vld [vmem:[#allocation2 + $0x10] sm:$0xff]
    %v2833 = vld [vmem:[#allocation2 + $0x18] sm:$0xff]
    %v2834 = vld [vmem:[#allocation2 + $0x20] sm:$0xff]
    %v2835 = vld [vmem:[#allocation2 + $0x28] sm:$0xff]
    %v2836 = vld [vmem:[#allocation2 + $0x30] sm:$0xff]
    %v2837 = vld [vmem:[#allocation2 + $0x38] sm:$0xff]
    %v2838 = vld [vmem:[#allocation2 + $0x40] sm:$0xff]
    %v2839 = vld [vmem:[#allocation2 + $0x48] sm:$0xff]
    %v2840 = vld [vmem:[#allocation2 + $0x50] sm:$0xff]
    %v2841 = vld [vmem:[#allocation2 + $0x58] sm:$0xff]
    %v2842 = vld [vmem:[#allocation2 + $0x60] sm:$0xff]
    %v2843 = vld [vmem:[#allocation2 + $0x68] sm:$0xff]
    %v2844 = vld [vmem:[#allocation2 + $0x70] sm:$0xff]
    %v2845 = vld [vmem:[#allocation2 + $0x78] sm:$0xff]
    %v2846 = vpack.c.bf16 %v2832, %v2830
    %v2847 = vpack.c.bf16 %v2833, %v2831
    %v2848 = vpack.c.bf16 %v2836, %v2834
    %v2849 = vpack.c.bf16 %v2837, %v2835
    %v2850 = vpack.c.bf16 %v2840, %v2838
    %v2851 = vpack.c.bf16 %v2841, %v2839
    %v2852 = vpack.c.bf16 %v2844, %v2842
    %v2853 = vpack.c.bf16 %v2845, %v2843
    %v2854 = vld [vmem:[#allocation5] sm:$0xf]
    %v2855 = vld [vmem:[#allocation5 + $0x4] sm:$0xf]
    %v2856 = vld [vmem:[#allocation5 + $0x8] sm:$0xf]
    %v2857 = vld [vmem:[#allocation5 + $0xc] sm:$0xf]
    %v2858 = vld [vmem:[#allocation5 + $0x10] sm:$0xf]
    %v2859 = vld [vmem:[#allocation5 + $0x14] sm:$0xf]
    %v2860 = vld [vmem:[#allocation5 + $0x18] sm:$0xf]
    %v2861 = vld [vmem:[#allocation5 + $0x1c] sm:$0xf]
    %v2862 = vld [vmem:[#allocation5 + $0x20] sm:$0xf]
    %v2863 = vld [vmem:[#allocation5 + $0x24] sm:$0xf]
    %v2864 = vld [vmem:[#allocation5 + $0x28] sm:$0xf]
    %v2865 = vld [vmem:[#allocation5 + $0x2c] sm:$0xf]
    %v2866 = vld [vmem:[#allocation5 + $0x30] sm:$0xf]
    %v2867 = vld [vmem:[#allocation5 + $0x34] sm:$0xf]
    %v2868 = vld [vmem:[#allocation5 + $0x38] sm:$0xf]
    %v2869 = vld [vmem:[#allocation5 + $0x3c] sm:$0xf]
    %v2870 = vld [vmem:[#allocation5 + $0x40] sm:$0xf]
    %v2871 = vld [vmem:[#allocation5 + $0x44] sm:$0xf]
    %v2872 = vld [vmem:[#allocation5 + $0x48] sm:$0xf]
    %v2873 = vld [vmem:[#allocation5 + $0x4c] sm:$0xf]
    %v2874 = vld [vmem:[#allocation5 + $0x50] sm:$0xf]
    %v2875 = vld [vmem:[#allocation5 + $0x54] sm:$0xf]
    %v2876 = vld [vmem:[#allocation5 + $0x58] sm:$0xf]
    %v2877 = vld [vmem:[#allocation5 + $0x5c] sm:$0xf]
    %v2878 = vld [vmem:[#allocation5 + $0x60] sm:$0xf]
    %v2879 = vld [vmem:[#allocation5 + $0x64] sm:$0xf]
    %v2880 = vld [vmem:[#allocation5 + $0x68] sm:$0xf]
    %v2881 = vld [vmem:[#allocation5 + $0x6c] sm:$0xf]
    %v2882 = vld [vmem:[#allocation5 + $0x70] sm:$0xf]
    %v2883 = vld [vmem:[#allocation5 + $0x74] sm:$0xf]
    %v2884 = vld [vmem:[#allocation5 + $0x78] sm:$0xf]
    %v2885 = vld [vmem:[#allocation5 + $0x7c] sm:$0xf]
    %v2918 = vunpack.c.l.b16 %v2854
    %v2919 = vunpack.c.l.b16 %v2855
    %v2920 = vunpack.c.l.b16 %v2856
    %v2921 = vunpack.c.l.b16 %v2857
    %v2922 = vunpack.c.l.b16 %v2858
    %v2923 = vunpack.c.l.b16 %v2859
    %v2924 = vunpack.c.l.b16 %v2860
    %v2925 = vunpack.c.l.b16 %v2861
    %v2926 = vunpack.c.l.b16 %v2862
    %v2927 = vunpack.c.l.b16 %v2863
    %v2928 = vunpack.c.l.b16 %v2864
    %v2929 = vunpack.c.l.b16 %v2865
    %v2930 = vunpack.c.l.b16 %v2866
    %v2931 = vunpack.c.l.b16 %v2867
    %v2932 = vunpack.c.l.b16 %v2868
    %v2933 = vunpack.c.l.b16 %v2869
    %v2934 = vunpack.c.l.b16 %v2870
    %v2935 = vunpack.c.l.b16 %v2871
    %v2936 = vunpack.c.l.b16 %v2872
    %v2937 = vunpack.c.l.b16 %v2873
    %v2938 = vunpack.c.l.b16 %v2874
    %v2939 = vunpack.c.l.b16 %v2875
    %v2940 = vunpack.c.l.b16 %v2876
    %v2941 = vunpack.c.l.b16 %v2877
    %v2942 = vunpack.c.l.b16 %v2878
    %v2943 = vunpack.c.l.b16 %v2879
    %v2944 = vunpack.c.l.b16 %v2880
    %v2945 = vunpack.c.l.b16 %v2881
    %v2946 = vunpack.c.l.b16 %v2882
    %v2947 = vunpack.c.l.b16 %v2883
    %v2948 = vunpack.c.l.b16 %v2884
    %v2949 = vunpack.c.l.b16 %v2885
    %v2950 = vpack.c.b16 %v2919, %v2918
    %v2951 = vpack.c.b16 %v2921, %v2920
    %v2952 = vpack.c.b16 %v2923, %v2922
    %v2953 = vpack.c.b16 %v2925, %v2924
    %v2954 = vpack.c.b16 %v2927, %v2926
    %v2955 = vpack.c.b16 %v2929, %v2928
    %v2956 = vpack.c.b16 %v2931, %v2930
    %v2957 = vpack.c.b16 %v2933, %v2932
    %v2958 = vpack.c.b16 %v2935, %v2934
    %v2959 = vpack.c.b16 %v2937, %v2936
    %v2960 = vpack.c.b16 %v2939, %v2938
    %v2961 = vpack.c.b16 %v2941, %v2940
    %v2962 = vpack.c.b16 %v2943, %v2942
    %v2963 = vpack.c.b16 %v2945, %v2944
    %v2964 = vpack.c.b16 %v2947, %v2946
    %v2965 = vpack.c.b16 %v2949, %v2948
    %2982 = vmatprep.subr.bf16.mxu0 0
    %2983 = vmatpush1.bf16.msra.mxu0 %v2950
    %2984 = vmatprep.subr.bf16.mxu0 0
    %2985 = vmatpush1.bf16.msra.mxu0 %v2951
    %2986 = vmatprep.subr.bf16.mxu0 0
    %2987 = vmatpush1.bf16.msra.mxu0 %v2952
    %2988 = vmatprep.subr.bf16.mxu0 0
    %2989 = vmatpush1.bf16.msra.mxu0 %v2953
    %2990 = vmatprep.subr.bf16.mxu0 0
    %2991 = vmatpush1.bf16.msra.mxu0 %v2954
    %2992 = vmatprep.subr.bf16.mxu0 0
    %2993 = vmatpush1.bf16.msra.mxu0 %v2955
    %2994 = vmatprep.subr.bf16.mxu0 0
    %2995 = vmatpush1.bf16.msra.mxu0 %v2956
    %2996 = vmatprep.subr.bf16.mxu0 0
    %2997 = vmatpush1.bf16.msra.mxu0 %v2957
    %2998 = vmatprep.subr.bf16.mxu0 0
    %2999 = vmatpush1.bf16.msra.mxu0 %v2958
    %3000 = vmatprep.subr.bf16.mxu0 0
    %3001 = vmatpush1.bf16.msra.mxu0 %v2959
    %3002 = vmatprep.subr.bf16.mxu0 0
    %3003 = vmatpush1.bf16.msra.mxu0 %v2960
    %3004 = vmatprep.subr.bf16.mxu0 0
    %3005 = vmatpush1.bf16.msra.mxu0 %v2961
    %3006 = vmatprep.subr.bf16.mxu0 0
    %3007 = vmatpush1.bf16.msra.mxu0 %v2962
    %3008 = vmatprep.subr.bf16.mxu0 0
    %3009 = vmatpush1.bf16.msra.mxu0 %v2963
    %3010 = vmatprep.subr.bf16.mxu0 0
    %3011 = vmatpush1.bf16.msra.mxu0 %v2964
    %3012 = vmatprep.subr.bf16.mxu0 0
    %3013 = vmatpush1.bf16.msra.mxu0 %v2965
    %3014 = vmatprep.mubr.bf16.mxu0 %v2847
    %3015 = vmatmul.mubr.bf16.gmra.mrb[0].mxu0 %v2846
    %v3016 = vpop.f32.mrb[0].mxu0
    %v3017 = vadd.f32 0.0, %v3016
    %v3018 = vpop.f32.mrb[0].mxu0
    %v3019 = vpop.f32.mrb[0].mxu0
    %v3020 = vadd.f32 0.0, %v3019
    %v3021 = vpop.f32.mrb[0].mxu0
    %3022 = vmatprep.mubr.bf16.mxu0 %v2849
    %3023 = vmatmul.mubr.bf16.gmra.mrb[0].mxu0 %v2848
    %v3024 = vpop.f32.mrb[0].mxu0
    %v3025 = vadd.f32 0.0, %v3024
    %v3026 = vpop.f32.mrb[0].mxu0
    %v3027 = vpop.f32.mrb[0].mxu0
    %v3028 = vadd.f32 0.0, %v3027
    %v3029 = vpop.f32.mrb[0].mxu0
    %3030 = vmatprep.mubr.bf16.mxu0 %v2851
    %3031 = vmatmul.mubr.bf16.gmra.mrb[0].mxu0 %v2850
    %v3032 = vpop.f32.mrb[0].mxu0
    %v3033 = vadd.f32 0.0, %v3032
    %v3034 = vpop.f32.mrb[0].mxu0
    %v3035 = vpop.f32.mrb[0].mxu0
    %v3036 = vadd.f32 0.0, %v3035
    %v3037 = vpop.f32.mrb[0].mxu0
    %3038 = vmatprep.mubr.bf16.mxu0 %v2853
    %3039 = vmatmul.mubr.bf16.gmra.mrb[0].mxu0 %v2852
    %v3040 = vpop.f32.mrb[0].mxu0
    %v3041 = vadd.f32 0.0, %v3040
    %v3042 = vpop.f32.mrb[0].mxu0
    %v3043 = vpop.f32.mrb[0].mxu0
    %v3044 = vadd.f32 0.0, %v3043
    %v3045 = vpop.f32.mrb[0].mxu0
    %3046 = vdwg.mxu0
    %s3047 = scalar_lea.vmem %s3, 192
    %v3048 = vld [vmem:[%s3047] sm:$0xff]
    %v3049 = vld [vmem:[%s3047 + $0x8] sm:$0xff]
    %v3050 = vld [vmem:[%s3047 + $0x10] sm:$0xff]
    %v3051 = vld [vmem:[%s3047 + $0x18] sm:$0xff]
    %v3052 = vld [vmem:[%s3047 + $0x20] sm:$0xff]
    %v3053 = vld [vmem:[%s3047 + $0x28] sm:$0xff]
    %v3054 = vld [vmem:[%s3047 + $0x30] sm:$0xff]
    %v3055 = vld [vmem:[%s3047 + $0x38] sm:$0xff]
    %v3056 = vmul.f32 %v3017, %v3048
    %v3057 = vmul.f32 %v3020, %v3049
    %v3058 = vmul.f32 %v3025, %v3050
    %v3059 = vmul.f32 %v3028, %v3051
    %v3060 = vmul.f32 %v3033, %v3052
    %v3061 = vmul.f32 %v3036, %v3053
    %v3062 = vmul.f32 %v3041, %v3054
    %v3063 = vmul.f32 %v3044, %v3055
    %v3064 = vpack.c.bf16 %v3057, %v3056
    %v3065 = vpack.c.bf16 %v3059, %v3058
    %v3066 = vpack.c.bf16 %v3061, %v3060
    %v3067 = vpack.c.bf16 %v3063, %v3062
    %v3068 = vld [vmem:[#allocation7] sm:$0xff]
    %v3069 = vld [vmem:[#allocation7 + $0x8] sm:$0xff]
    %v3070 = vld [vmem:[#allocation7 + $0x10] sm:$0xff]
    %v3071 = vld [vmem:[#allocation7 + $0x18] sm:$0xff]
    %v3072 = vld [vmem:[#allocation7 + $0x20] sm:$0xff]
    %v3073 = vld [vmem:[#allocation7 + $0x28] sm:$0xff]
    %v3074 = vld [vmem:[#allocation7 + $0x30] sm:$0xff]
    %v3075 = vld [vmem:[#allocation7 + $0x38] sm:$0xff]
    %v3076 = vld [vmem:[#allocation7 + $0x40] sm:$0xff]
    %v3077 = vld [vmem:[#allocation7 + $0x48] sm:$0xff]
    %v3078 = vld [vmem:[#allocation7 + $0x50] sm:$0xff]
    %v3079 = vld [vmem:[#allocation7 + $0x58] sm:$0xff]
    %v3080 = vld [vmem:[#allocation7 + $0x60] sm:$0xff]
    %v3081 = vld [vmem:[#allocation7 + $0x68] sm:$0xff]
    %v3082 = vld [vmem:[#allocation7 + $0x70] sm:$0xff]
    %v3083 = vld [vmem:[#allocation7 + $0x78] sm:$0xff]
    %v3100 = vunpack.c.l.b16 %v3068
    %v3101 = vunpack.c.h.b16 %v3068
    %v3102 = vunpack.c.l.b16 %v3069
    %v3103 = vunpack.c.h.b16 %v3069
    %v3104 = vunpack.c.l.b16 %v3070
    %v3105 = vunpack.c.h.b16 %v3070
    %v3106 = vunpack.c.l.b16 %v3071
    %v3107 = vunpack.c.h.b16 %v3071
    %v3108 = vunpack.c.l.b16 %v3072
    %v3109 = vunpack.c.h.b16 %v3072
    %v3110 = vunpack.c.l.b16 %v3073
    %v3111 = vunpack.c.h.b16 %v3073
    %v3112 = vunpack.c.l.b16 %v3074
    %v3113 = vunpack.c.h.b16 %v3074
    %v3114 = vunpack.c.l.b16 %v3075
    %v3115 = vunpack.c.h.b16 %v3075
    %v3116 = vunpack.c.l.b16 %v3076
    %v3117 = vunpack.c.h.b16 %v3076
    %v3118 = vunpack.c.l.b16 %v3077
    %v3119 = vunpack.c.h.b16 %v3077
    %v3120 = vunpack.c.l.b16 %v3078
    %v3121 = vunpack.c.h.b16 %v3078
    %v3122 = vunpack.c.l.b16 %v3079
    %v3123 = vunpack.c.h.b16 %v3079
    %v3124 = vunpack.c.l.b16 %v3080
    %v3125 = vunpack.c.h.b16 %v3080
    %v3126 = vunpack.c.l.b16 %v3081
    %v3127 = vunpack.c.h.b16 %v3081
    %v3128 = vunpack.c.l.b16 %v3082
    %v3129 = vunpack.c.h.b16 %v3082
    %v3130 = vunpack.c.l.b16 %v3083
    %v3131 = vunpack.c.h.b16 %v3083
    %v3132 = vpack.c.b16 %v3102, %v3100
    %v3133 = vpack.c.b16 %v3103, %v3101
    %v3134 = vpack.c.b16 %v3106, %v3104
    %v3135 = vpack.c.b16 %v3107, %v3105
    %v3136 = vpack.c.b16 %v3110, %v3108
    %v3137 = vpack.c.b16 %v3111, %v3109
    %v3138 = vpack.c.b16 %v3114, %v3112
    %v3139 = vpack.c.b16 %v3115, %v3113
    %v3140 = vpack.c.b16 %v3118, %v3116
    %v3141 = vpack.c.b16 %v3119, %v3117
    %v3142 = vpack.c.b16 %v3122, %v3120
    %v3143 = vpack.c.b16 %v3123, %v3121
    %v3144 = vpack.c.b16 %v3126, %v3124
    %v3145 = vpack.c.b16 %v3127, %v3125
    %v3146 = vpack.c.b16 %v3130, %v3128
    %v3147 = vpack.c.b16 %v3131, %v3129
    %3164 = vmatprep.subr.bf16.mxu0 %v3133
    %3165 = vmatpush1.bf16.msra.mxu0 %v3132
    %3166 = vmatprep.subr.bf16.mxu0 %v3135
    %3167 = vmatpush1.bf16.msra.mxu0 %v3134
    %3168 = vmatprep.subr.bf16.mxu0 %v3137
    %3169 = vmatpush1.bf16.msra.mxu0 %v3136
    %3170 = vmatprep.subr.bf16.mxu0 %v3139
    %3171 = vmatpush1.bf16.msra.mxu0 %v3138
    %3172 = vmatprep.subr.bf16.mxu0 %v3141
    %3173 = vmatpush1.bf16.msra.mxu0 %v3140
    %3174 = vmatprep.subr.bf16.mxu0 %v3143
    %3175 = vmatpush1.bf16.msra.mxu0 %v3142
    %3176 = vmatprep.subr.bf16.mxu0 %v3145
    %3177 = vmatpush1.bf16.msra.mxu0 %v3144
    %3178 = vmatprep.subr.bf16.mxu0 %v3147
    %3179 = vmatpush1.bf16.msra.mxu0 %v3146
    %3180 = vmatprep.subr.bf16.mxu0 0
    %3181 = vmatpush1.bf16.msra.mxu0 0
    %3182 = vmatprep.subr.bf16.mxu0 0
    %3183 = vmatpush1.bf16.msra.mxu0 0
    %3184 = vmatprep.subr.bf16.mxu0 0
    %3185 = vmatpush1.bf16.msra.mxu0 0
    %3186 = vmatprep.subr.bf16.mxu0 0
    %3187 = vmatpush1.bf16.msra.mxu0 0
    %3188 = vmatprep.subr.bf16.mxu0 0
    %3189 = vmatpush1.bf16.msra.mxu0 0
    %3190 = vmatprep.subr.bf16.mxu0 0
    %3191 = vmatpush1.bf16.msra.mxu0 0
    %3192 = vmatprep.subr.bf16.mxu0 0
    %3193 = vmatpush1.bf16.msra.mxu0 0
    %3194 = vmatprep.subr.bf16.mxu0 0
    %3195 = vmatpush1.bf16.msra.mxu0 0
    %3196 = vmatprep.mubr.bf16.mxu0 0
    %3197 = vmatmul.mubr.bf16.gmra.mrb[0].mxu0 %v3064
    %v3198 = vpop.f32.mrb[0].mxu0
    %v3199 = vadd.f32 0.0, %v3198
    %v3200 = vpop.f32.mrb[0].mxu0
    %v3201 = vadd.f32 0.0, %v3200
    %v3202 = vpop.f32.mrb[0].mxu0
    %v3203 = vadd.f32 0.0, %v3202
    %v3204 = vpop.f32.mrb[0].mxu0
    %v3205 = vadd.f32 0.0, %v3204
    %3206 = vmatprep.mubr.bf16.mxu0 0
    %3207 = vmatmul.mubr.bf16.gmra.mrb[0].mxu0 %v3065
    %v3208 = vpop.f32.mrb[0].mxu0
    %v3209 = vadd.f32 0.0, %v3208
    %v3210 = vpop.f32.mrb[0].mxu0
    %v3211 = vadd.f32 0.0, %v3210
    %v3212 = vpop.f32.mrb[0].mxu0
    %v3213 = vadd.f32 0.0, %v3212
    %v3214 = vpop.f32.mrb[0].mxu0
    %v3215 = vadd.f32 0.0, %v3214
    %3216 = vmatprep.mubr.bf16.mxu0 0
    %3217 = vmatmul.mubr.bf16.gmra.mrb[0].mxu0 %v3066
    %v3218 = vpop.f32.mrb[0].mxu0
    %v3219 = vadd.f32 0.0, %v3218
    %v3220 = vpop.f32.mrb[0].mxu0
    %v3221 = vadd.f32 0.0, %v3220
    %v3222 = vpop.f32.mrb[0].mxu0
    %v3223 = vadd.f32 0.0, %v3222
    %v3224 = vpop.f32.mrb[0].mxu0
    %v3225 = vadd.f32 0.0, %v3224
    %3226 = vmatprep.mubr.bf16.mxu0 0
    %3227 = vmatmul.mubr.bf16.gmra.mrb[0].mxu0 %v3067
    %v3228 = vpop.f32.mrb[0].mxu0
    %v3229 = vadd.f32 0.0, %v3228
    %v3230 = vpop.f32.mrb[0].mxu0
    %v3231 = vadd.f32 0.0, %v3230
    %v3232 = vpop.f32.mrb[0].mxu0
    %v3233 = vadd.f32 0.0, %v3232
    %v3234 = vpop.f32.mrb[0].mxu0
    %v3235 = vadd.f32 0.0, %v3234
    %3236 = vdwg.mxu0
    %v3237 = vmul.f32 %v3199, 0.5
    %v3238 = vmul.f32 %v3201, 0.5
    %v3239 = vmul.f32 %v3203, 0.5
    %v3240 = vmul.f32 %v3205, 0.5
    %v3241 = vmul.f32 %v3209, 0.5
    %v3242 = vmul.f32 %v3211, 0.5
    %v3243 = vmul.f32 %v3213, 0.5
    %v3244 = vmul.f32 %v3215, 0.5
    %v3245 = vmul.f32 %v3219, 0.5
    %v3246 = vmul.f32 %v3221, 0.5
    %v3247 = vmul.f32 %v3223, 0.5
    %v3248 = vmul.f32 %v3225, 0.5
    %v3249 = vmul.f32 %v3229, 0.5
    %v3250 = vmul.f32 %v3231, 0.5
    %v3251 = vmul.f32 %v3233, 0.5
    %v3252 = vmul.f32 %v3235, 0.5
    %v3253 = vmul.f32 %v3199, 0.70710677
    %v3254 = vmul.f32 %v3201, 0.70710677
    %v3255 = vmul.f32 %v3203, 0.70710677
    %v3256 = vmul.f32 %v3205, 0.70710677
    %v3257 = vmul.f32 %v3209, 0.70710677
    %v3258 = vmul.f32 %v3211, 0.70710677
    %v3259 = vmul.f32 %v3213, 0.70710677
    %v3260 = vmul.f32 %v3215, 0.70710677
    %v3261 = vmul.f32 %v3219, 0.70710677
    %v3262 = vmul.f32 %v3221, 0.70710677
    %v3263 = vmul.f32 %v3223, 0.70710677
    %v3264 = vmul.f32 %v3225, 0.70710677
    %v3265 = vmul.f32 %v3229, 0.70710677
    %v3266 = vmul.f32 %v3231, 0.70710677
    %v3267 = vmul.f32 %v3233, 0.70710677
    %v3268 = vmul.f32 %v3235, 0.70710677
    %vm3269 = vcmp.ge.f32.partialorder %v3253, 0.0
    %vm3270 = vcmp.ge.f32.partialorder %v3254, 0.0
    %vm3271 = vcmp.ge.f32.partialorder %v3255, 0.0
    %vm3272 = vcmp.ge.f32.partialorder %v3256, 0.0
    %vm3273 = vcmp.ge.f32.partialorder %v3257, 0.0
    %vm3274 = vcmp.ge.f32.partialorder %v3258, 0.0
    %vm3275 = vcmp.ge.f32.partialorder %v3259, 0.0
    %vm3276 = vcmp.ge.f32.partialorder %v3260, 0.0
    %vm3277 = vcmp.ge.f32.partialorder %v3261, 0.0
    %vm3278 = vcmp.ge.f32.partialorder %v3262, 0.0
    %vm3279 = vcmp.ge.f32.partialorder %v3263, 0.0
    %vm3280 = vcmp.ge.f32.partialorder %v3264, 0.0
    %vm3281 = vcmp.ge.f32.partialorder %v3265, 0.0
    %vm3282 = vcmp.ge.f32.partialorder %v3266, 0.0
    %vm3283 = vcmp.ge.f32.partialorder %v3267, 0.0
    %vm3284 = vcmp.ge.f32.partialorder %v3268, 0.0
    %v3285 = vsel %vm3269, 1.0, -1.0
    %v3286 = vsel %vm3270, 1.0, -1.0
    %v3287 = vsel %vm3271, 1.0, -1.0
    %v3288 = vsel %vm3272, 1.0, -1.0
    %v3289 = vsel %vm3273, 1.0, -1.0
    %v3290 = vsel %vm3274, 1.0, -1.0
    %v3291 = vsel %vm3275, 1.0, -1.0
    %v3292 = vsel %vm3276, 1.0, -1.0
    %v3293 = vsel %vm3277, 1.0, -1.0
    %v3294 = vsel %vm3278, 1.0, -1.0
    %v3295 = vsel %vm3279, 1.0, -1.0
    %v3296 = vsel %vm3280, 1.0, -1.0
    %v3297 = vsel %vm3281, 1.0, -1.0
    %v3298 = vsel %vm3282, 1.0, -1.0
    %v3299 = vsel %vm3283, 1.0, -1.0
    %v3300 = vsel %vm3284, 1.0, -1.0
    %v3301 = vand.u32 2147483647, %v3253
    %v3302 = vand.u32 2147483647, %v3254
    %v3303 = vand.u32 2147483647, %v3255
    %v3304 = vand.u32 2147483647, %v3256
    %v3305 = vand.u32 2147483647, %v3257
    %v3306 = vand.u32 2147483647, %v3258
    %v3307 = vand.u32 2147483647, %v3259
    %v3308 = vand.u32 2147483647, %v3260
    %v3309 = vand.u32 2147483647, %v3261
    %v3310 = vand.u32 2147483647, %v3262
    %v3311 = vand.u32 2147483647, %v3263
    %v3312 = vand.u32 2147483647, %v3264
    %v3313 = vand.u32 2147483647, %v3265
    %v3314 = vand.u32 2147483647, %v3266
    %v3315 = vand.u32 2147483647, %v3267
    %v3316 = vand.u32 2147483647, %v3268
    %v3317 = vmul.f32 %v3301, 0.3275911
    %v3318 = vmul.f32 %v3302, 0.3275911
    %v3319 = vmul.f32 %v3303, 0.3275911
    %v3320 = vmul.f32 %v3304, 0.3275911
    %v3321 = vmul.f32 %v3305, 0.3275911
    %v3322 = vmul.f32 %v3306, 0.3275911
    %v3323 = vmul.f32 %v3307, 0.3275911
    %v3324 = vmul.f32 %v3308, 0.3275911
    %v3325 = vmul.f32 %v3309, 0.3275911
    %v3326 = vmul.f32 %v3310, 0.3275911
    %v3327 = vmul.f32 %v3311, 0.3275911
    %v3328 = vmul.f32 %v3312, 0.3275911
    %v3329 = vmul.f32 %v3313, 0.3275911
    %v3330 = vmul.f32 %v3314, 0.3275911
    %v3331 = vmul.f32 %v3315, 0.3275911
    %v3332 = vmul.f32 %v3316, 0.3275911
    %v3333 = vadd.f32 %v3317, 1.0
    %v3334 = vadd.f32 %v3318, 1.0
    %v3335 = vadd.f32 %v3319, 1.0
    %v3336 = vadd.f32 %v3320, 1.0
    %v3337 = vadd.f32 %v3321, 1.0
    %v3338 = vadd.f32 %v3322, 1.0
    %v3339 = vadd.f32 %v3323, 1.0
    %v3340 = vadd.f32 %v3324, 1.0
    %v3341 = vadd.f32 %v3325, 1.0
    %v3342 = vadd.f32 %v3326, 1.0
    %v3343 = vadd.f32 %v3327, 1.0
    %v3344 = vadd.f32 %v3328, 1.0
    %v3345 = vadd.f32 %v3329, 1.0
    %v3346 = vadd.f32 %v3330, 1.0
    %v3347 = vadd.f32 %v3331, 1.0
    %v3348 = vadd.f32 %v3332, 1.0
    %v3349 = vrcp.pop %v3333
    %v3350 = vrcp.pop %v3334
    %v3351 = vrcp.pop %v3335
    %v3352 = vrcp.pop %v3336
    %v3353 = vrcp.pop %v3337
    %v3354 = vrcp.pop %v3338
    %v3355 = vrcp.pop %v3339
    %v3356 = vrcp.pop %v3340
    %v3357 = vrcp.pop %v3341
    %v3358 = vrcp.pop %v3342
    %v3359 = vrcp.pop %v3343
    %v3360 = vrcp.pop %v3344
    %v3361 = vrcp.pop %v3345
    %v3362 = vrcp.pop %v3346
    %v3363 = vrcp.pop %v3347
    %v3364 = vrcp.pop %v3348
    %v3365 = vmul.f32 %v3349, 1.0614054
    %v3366 = vmul.f32 %v3350, 1.0614054
    %v3367 = vmul.f32 %v3351, 1.0614054
    %v3368 = vmul.f32 %v3352, 1.0614054
    %v3369 = vmul.f32 %v3353, 1.0614054
    %v3370 = vmul.f32 %v3354, 1.0614054
    %v3371 = vmul.f32 %v3355, 1.0614054
    %v3372 = vmul.f32 %v3356, 1.0614054
    %v3373 = vmul.f32 %v3357, 1.0614054
    %v3374 = vmul.f32 %v3358, 1.0614054
    %v3375 = vmul.f32 %v3359, 1.0614054
    %v3376 = vmul.f32 %v3360, 1.0614054
    %v3377 = vmul.f32 %v3361, 1.0614054
    %v3378 = vmul.f32 %v3362, 1.0614054
    %v3379 = vmul.f32 %v3363, 1.0614054
    %v3380 = vmul.f32 %v3364, 1.0614054
    %v3381 = vadd.f32 %v3365, -1.4531521
    %v3382 = vadd.f32 %v3366, -1.4531521
    %v3383 = vadd.f32 %v3367, -1.4531521
    %v3384 = vadd.f32 %v3368, -1.4531521
    %v3385 = vadd.f32 %v3369, -1.4531521
    %v3386 = vadd.f32 %v3370, -1.4531521
    %v3387 = vadd.f32 %v3371, -1.4531521
    %v3388 = vadd.f32 %v3372, -1.4531521
    %v3389 = vadd.f32 %v3373, -1.4531521
    %v3390 = vadd.f32 %v3374, -1.4531521
    %v3391 = vadd.f32 %v3375, -1.4531521
    %v3392 = vadd.f32 %v3376, -1.4531521
    %v3393 = vadd.f32 %v3377, -1.4531521
    %v3394 = vadd.f32 %v3378, -1.4531521
    %v3395 = vadd.f32 %v3379, -1.4531521
    %v3396 = vadd.f32 %v3380, -1.4531521
    %v3397 = vmul.f32 %v3381, %v3349
    %v3398 = vmul.f32 %v3382, %v3350
    %v3399 = vmul.f32 %v3383, %v3351
    %v3400 = vmul.f32 %v3384, %v3352
    %v3401 = vmul.f32 %v3385, %v3353
    %v3402 = vmul.f32 %v3386, %v3354
    %v3403 = vmul.f32 %v3387, %v3355
    %v3404 = vmul.f32 %v3388, %v3356
    %v3405 = vmul.f32 %v3389, %v3357
    %v3406 = vmul.f32 %v3390, %v3358
    %v3407 = vmul.f32 %v3391, %v3359
    %v3408 = vmul.f32 %v3392, %v3360
    %v3409 = vmul.f32 %v3393, %v3361
    %v3410 = vmul.f32 %v3394, %v3362
    %v3411 = vmul.f32 %v3395, %v3363
    %v3412 = vmul.f32 %v3396, %v3364
    %v3413 = vadd.f32 %v3397, 1.4214138
    %v3414 = vadd.f32 %v3398, 1.4214138
    %v3415 = vadd.f32 %v3399, 1.4214138
    %v3416 = vadd.f32 %v3400, 1.4214138
    %v3417 = vadd.f32 %v3401, 1.4214138
    %v3418 = vadd.f32 %v3402, 1.4214138
    %v3419 = vadd.f32 %v3403, 1.4214138
    %v3420 = vadd.f32 %v3404, 1.4214138
    %v3421 = vadd.f32 %v3405, 1.4214138
    %v3422 = vadd.f32 %v3406, 1.4214138
    %v3423 = vadd.f32 %v3407, 1.4214138
    %v3424 = vadd.f32 %v3408, 1.4214138
    %v3425 = vadd.f32 %v3409, 1.4214138
    %v3426 = vadd.f32 %v3410, 1.4214138
    %v3427 = vadd.f32 %v3411, 1.4214138
    %v3428 = vadd.f32 %v3412, 1.4214138
    %v3429 = vmul.f32 %v3413, %v3349
    %v3430 = vmul.f32 %v3414, %v3350
    %v3431 = vmul.f32 %v3415, %v3351
    %v3432 = vmul.f32 %v3416, %v3352
    %v3433 = vmul.f32 %v3417, %v3353
    %v3434 = vmul.f32 %v3418, %v3354
    %v3435 = vmul.f32 %v3419, %v3355
    %v3436 = vmul.f32 %v3420, %v3356
    %v3437 = vmul.f32 %v3421, %v3357
    %v3438 = vmul.f32 %v3422, %v3358
    %v3439 = vmul.f32 %v3423, %v3359
    %v3440 = vmul.f32 %v3424, %v3360
    %v3441 = vmul.f32 %v3425, %v3361
    %v3442 = vmul.f32 %v3426, %v3362
    %v3443 = vmul.f32 %v3427, %v3363
    %v3444 = vmul.f32 %v3428, %v3364
    %v3445 = vadd.f32 %v3429, -0.28449672
    %v3446 = vadd.f32 %v3430, -0.28449672
    %v3447 = vadd.f32 %v3431, -0.28449672
    %v3448 = vadd.f32 %v3432, -0.28449672
    %v3449 = vadd.f32 %v3433, -0.28449672
    %v3450 = vadd.f32 %v3434, -0.28449672
    %v3451 = vadd.f32 %v3435, -0.28449672
    %v3452 = vadd.f32 %v3436, -0.28449672
    %v3453 = vadd.f32 %v3437, -0.28449672
    %v3454 = vadd.f32 %v3438, -0.28449672
    %v3455 = vadd.f32 %v3439, -0.28449672
    %v3456 = vadd.f32 %v3440, -0.28449672
    %v3457 = vadd.f32 %v3441, -0.28449672
    %v3458 = vadd.f32 %v3442, -0.28449672
    %v3459 = vadd.f32 %v3443, -0.28449672
    %v3460 = vadd.f32 %v3444, -0.28449672
    %v3461 = vmul.f32 %v3445, %v3349
    %v3462 = vmul.f32 %v3446, %v3350
    %v3463 = vmul.f32 %v3447, %v3351
    %v3464 = vmul.f32 %v3448, %v3352
    %v3465 = vmul.f32 %v3449, %v3353
    %v3466 = vmul.f32 %v3450, %v3354
    %v3467 = vmul.f32 %v3451, %v3355
    %v3468 = vmul.f32 %v3452, %v3356
    %v3469 = vmul.f32 %v3453, %v3357
    %v3470 = vmul.f32 %v3454, %v3358
    %v3471 = vmul.f32 %v3455, %v3359
    %v3472 = vmul.f32 %v3456, %v3360
    %v3473 = vmul.f32 %v3457, %v3361
    %v3474 = vmul.f32 %v3458, %v3362
    %v3475 = vmul.f32 %v3459, %v3363
    %v3476 = vmul.f32 %v3460, %v3364
    %v3477 = vadd.f32 %v3461, 0.2548296
    %v3478 = vadd.f32 %v3462, 0.2548296
    %v3479 = vadd.f32 %v3463, 0.2548296
    %v3480 = vadd.f32 %v3464, 0.2548296
    %v3481 = vadd.f32 %v3465, 0.2548296
    %v3482 = vadd.f32 %v3466, 0.2548296
    %v3483 = vadd.f32 %v3467, 0.2548296
    %v3484 = vadd.f32 %v3468, 0.2548296
    %v3485 = vadd.f32 %v3469, 0.2548296
    %v3486 = vadd.f32 %v3470, 0.2548296
    %v3487 = vadd.f32 %v3471, 0.2548296
    %v3488 = vadd.f32 %v3472, 0.2548296
    %v3489 = vadd.f32 %v3473, 0.2548296
    %v3490 = vadd.f32 %v3474, 0.2548296
    %v3491 = vadd.f32 %v3475, 0.2548296
    %v3492 = vadd.f32 %v3476, 0.2548296
    %v3493 = vmul.f32 %v3477, %v3349
    %v3494 = vmul.f32 %v3478, %v3350
    %v3495 = vmul.f32 %v3479, %v3351
    %v3496 = vmul.f32 %v3480, %v3352
    %v3497 = vmul.f32 %v3481, %v3353
    %v3498 = vmul.f32 %v3482, %v3354
    %v3499 = vmul.f32 %v3483, %v3355
    %v3500 = vmul.f32 %v3484, %v3356
    %v3501 = vmul.f32 %v3485, %v3357
    %v3502 = vmul.f32 %v3486, %v3358
    %v3503 = vmul.f32 %v3487, %v3359
    %v3504 = vmul.f32 %v3488, %v3360
    %v3505 = vmul.f32 %v3489, %v3361
    %v3506 = vmul.f32 %v3490, %v3362
    %v3507 = vmul.f32 %v3491, %v3363
    %v3508 = vmul.f32 %v3492, %v3364
    %v3509 = vsub.f32 0.0, %v3301
    %v3510 = vsub.f32 0.0, %v3302
    %v3511 = vsub.f32 0.0, %v3303
    %v3512 = vsub.f32 0.0, %v3304
    %v3513 = vsub.f32 0.0, %v3305
    %v3514 = vsub.f32 0.0, %v3306
    %v3515 = vsub.f32 0.0, %v3307
    %v3516 = vsub.f32 0.0, %v3308
    %v3517 = vsub.f32 0.0, %v3309
    %v3518 = vsub.f32 0.0, %v3310
    %v3519 = vsub.f32 0.0, %v3311
    %v3520 = vsub.f32 0.0, %v3312
    %v3521 = vsub.f32 0.0, %v3313
    %v3522 = vsub.f32 0.0, %v3314
    %v3523 = vsub.f32 0.0, %v3315
    %v3524 = vsub.f32 0.0, %v3316
    %v3525 = vmul.f32 %v3509, %v3301
    %v3526 = vmul.f32 %v3510, %v3302
    %v3527 = vmul.f32 %v3511, %v3303
    %v3528 = vmul.f32 %v3512, %v3304
    %v3529 = vmul.f32 %v3513, %v3305
    %v3530 = vmul.f32 %v3514, %v3306
    %v3531 = vmul.f32 %v3515, %v3307
    %v3532 = vmul.f32 %v3516, %v3308
    %v3533 = vmul.f32 %v3517, %v3309
    %v3534 = vmul.f32 %v3518, %v3310
    %v3535 = vmul.f32 %v3519, %v3311
    %v3536 = vmul.f32 %v3520, %v3312
    %v3537 = vmul.f32 %v3521, %v3313
    %v3538 = vmul.f32 %v3522, %v3314
    %v3539 = vmul.f32 %v3523, %v3315
    %v3540 = vmul.f32 %v3524, %v3316
    %v3541 = vmul.f32 %v3525, 1.442695
    %v3542 = vpow.pop %v3541
    %v3543 = vmul.f32 %v3526, 1.442695
    %v3544 = vpow.pop %v3543
    %v3545 = vmul.f32 %v3527, 1.442695
    %v3546 = vpow.pop %v3545
    %v3547 = vmul.f32 %v3528, 1.442695
    %v3548 = vpow.pop %v3547
    %v3549 = vmul.f32 %v3529, 1.442695
    %v3550 = vpow.pop %v3549
    %v3551 = vmul.f32 %v3530, 1.442695
    %v3552 = vpow.pop %v3551
    %v3553 = vmul.f32 %v3531, 1.442695
    %v3554 = vpow.pop %v3553
    %v3555 = vmul.f32 %v3532, 1.442695
    %v3556 = vpow.pop %v3555
    %v3557 = vmul.f32 %v3533, 1.442695
    %v3558 = vpow.pop %v3557
    %v3559 = vmul.f32 %v3534, 1.442695
    %v3560 = vpow.pop %v3559
    %v3561 = vmul.f32 %v3535, 1.442695
    %v3562 = vpow.pop %v3561
    %v3563 = vmul.f32 %v3536, 1.442695
    %v3564 = vpow.pop %v3563
    %v3565 = vmul.f32 %v3537, 1.442695
    %v3566 = vpow.pop %v3565
    %v3567 = vmul.f32 %v3538, 1.442695
    %v3568 = vpow.pop %v3567
    %v3569 = vmul.f32 %v3539, 1.442695
    %v3570 = vpow.pop %v3569
    %v3571 = vmul.f32 %v3540, 1.442695
    %v3572 = vpow.pop %v3571
    %v3573 = vmul.f32 %v3493, %v3542
    %v3574 = vmul.f32 %v3494, %v3544
    %v3575 = vmul.f32 %v3495, %v3546
    %v3576 = vmul.f32 %v3496, %v3548
    %v3577 = vmul.f32 %v3497, %v3550
    %v3578 = vmul.f32 %v3498, %v3552
    %v3579 = vmul.f32 %v3499, %v3554
    %v3580 = vmul.f32 %v3500, %v3556
    %v3581 = vmul.f32 %v3501, %v3558
    %v3582 = vmul.f32 %v3502, %v3560
    %v3583 = vmul.f32 %v3503, %v3562
    %v3584 = vmul.f32 %v3504, %v3564
    %v3585 = vmul.f32 %v3505, %v3566
    %v3586 = vmul.f32 %v3506, %v3568
    %v3587 = vmul.f32 %v3507, %v3570
    %v3588 = vmul.f32 %v3508, %v3572
    %v3589 = vsub.f32 1.0, %v3573
    %v3590 = vsub.f32 1.0, %v3574
    %v3591 = vsub.f32 1.0, %v3575
    %v3592 = vsub.f32 1.0, %v3576
    %v3593 = vsub.f32 1.0, %v3577
    %v3594 = vsub.f32 1.0, %v3578
    %v3595 = vsub.f32 1.0, %v3579
    %v3596 = vsub.f32 1.0, %v3580
    %v3597 = vsub.f32 1.0, %v3581
    %v3598 = vsub.f32 1.0, %v3582
    %v3599 = vsub.f32 1.0, %v3583
    %v3600 = vsub.f32 1.0, %v3584
    %v3601 = vsub.f32 1.0, %v3585
    %v3602 = vsub.f32 1.0, %v3586
    %v3603 = vsub.f32 1.0, %v3587
    %v3604 = vsub.f32 1.0, %v3588
    %v3605 = vmul.f32 %v3285, %v3589
    %v3606 = vmul.f32 %v3286, %v3590
    %v3607 = vmul.f32 %v3287, %v3591
    %v3608 = vmul.f32 %v3288, %v3592
    %v3609 = vmul.f32 %v3289, %v3593
    %v3610 = vmul.f32 %v3290, %v3594
    %v3611 = vmul.f32 %v3291, %v3595
    %v3612 = vmul.f32 %v3292, %v3596
    %v3613 = vmul.f32 %v3293, %v3597
    %v3614 = vmul.f32 %v3294, %v3598
    %v3615 = vmul.f32 %v3295, %v3599
    %v3616 = vmul.f32 %v3296, %v3600
    %v3617 = vmul.f32 %v3297, %v3601
    %v3618 = vmul.f32 %v3298, %v3602
    %v3619 = vmul.f32 %v3299, %v3603
    %v3620 = vmul.f32 %v3300, %v3604
    %v3621 = vadd.f32 %v3605, 1.0
    %v3622 = vadd.f32 %v3606, 1.0
    %v3623 = vadd.f32 %v3607, 1.0
    %v3624 = vadd.f32 %v3608, 1.0
    %v3625 = vadd.f32 %v3609, 1.0
    %v3626 = vadd.f32 %v3610, 1.0
    %v3627 = vadd.f32 %v3611, 1.0
    %v3628 = vadd.f32 %v3612, 1.0
    %v3629 = vadd.f32 %v3613, 1.0
    %v3630 = vadd.f32 %v3614, 1.0
    %v3631 = vadd.f32 %v3615, 1.0
    %v3632 = vadd.f32 %v3616, 1.0
    %v3633 = vadd.f32 %v3617, 1.0
    %v3634 = vadd.f32 %v3618, 1.0
    %v3635 = vadd.f32 %v3619, 1.0
    %v3636 = vadd.f32 %v3620, 1.0
    %v3637 = vmul.f32 %v3237, %v3621
    %v3638 = vmul.f32 %v3238, %v3622
    %v3639 = vmul.f32 %v3239, %v3623
    %v3640 = vmul.f32 %v3240, %v3624
    %v3641 = vmul.f32 %v3241, %v3625
    %v3642 = vmul.f32 %v3242, %v3626
    %v3643 = vmul.f32 %v3243, %v3627
    %v3644 = vmul.f32 %v3244, %v3628
    %v3645 = vmul.f32 %v3245, %v3629
    %v3646 = vmul.f32 %v3246, %v3630
    %v3647 = vmul.f32 %v3247, %v3631
    %v3648 = vmul.f32 %v3248, %v3632
    %v3649 = vmul.f32 %v3249, %v3633
    %v3650 = vmul.f32 %v3250, %v3634
    %v3651 = vmul.f32 %v3251, %v3635
    %v3652 = vmul.f32 %v3252, %v3636
    %3653 = vst [vmem:[#allocation2] sm:$0xff] %v3637
    %3654 = vst [vmem:[#allocation2 + $0x8] sm:$0xff] %v3638
    %3655 = vst [vmem:[#allocation2 + $0x10] sm:$0xff] %v3639
    %3656 = vst [vmem:[#allocation2 + $0x18] sm:$0xff] %v3640
    %3657 = vst [vmem:[#allocation2 + $0x20] sm:$0xff] %v3641
    %3658 = vst [vmem:[#allocation2 + $0x28] sm:$0xff] %v3642
    %3659 = vst [vmem:[#allocation2 + $0x30] sm:$0xff] %v3643
    %3660 = vst [vmem:[#allocation2 + $0x38] sm:$0xff] %v3644
    %3661 = vst [vmem:[#allocation2 + $0x40] sm:$0xff] %v3645
    %3662 = vst [vmem:[#allocation2 + $0x48] sm:$0xff] %v3646
    %3663 = vst [vmem:[#allocation2 + $0x50] sm:$0xff] %v3647
    %3664 = vst [vmem:[#allocation2 + $0x58] sm:$0xff] %v3648
    %3665 = vst [vmem:[#allocation2 + $0x60] sm:$0xff] %v3649
    %3666 = vst [vmem:[#allocation2 + $0x68] sm:$0xff] %v3650
    %3667 = vst [vmem:[#allocation2 + $0x70] sm:$0xff] %v3651
    %3668 = vst [vmem:[#allocation2 + $0x78] sm:$0xff] %v3652
    %v3669 = vld [vmem:[#allocation2] sm:$0xff]
    %v3670 = vld [vmem:[#allocation2 + $0x8] sm:$0xff]
    %v3671 = vld [vmem:[#allocation2 + $0x10] sm:$0xff]
    %v3672 = vld [vmem:[#allocation2 + $0x18] sm:$0xff]
    %v3673 = vld [vmem:[#allocation2 + $0x20] sm:$0xff]
    %v3674 = vld [vmem:[#allocation2 + $0x28] sm:$0xff]
    %v3675 = vld [vmem:[#allocation2 + $0x30] sm:$0xff]
    %v3676 = vld [vmem:[#allocation2 + $0x38] sm:$0xff]
    %v3677 = vpack.c.bf16 %v3671, %v3669
    %v3678 = vpack.c.bf16 %v3672, %v3670
    %v3679 = vpack.c.bf16 %v3675, %v3673
    %v3680 = vpack.c.bf16 %v3676, %v3674
    %v3681 = vld [vmem:[%s6] sm:$0xf]
    %v3682 = vld [vmem:[%s6 + $0x4] sm:$0xf]
    %v3683 = vld [vmem:[%s6 + $0x8] sm:$0xf]
    %v3684 = vld [vmem:[%s6 + $0xc] sm:$0xf]
    %v3685 = vld [vmem:[%s6 + $0x10] sm:$0xf]
    %v3686 = vld [vmem:[%s6 + $0x14] sm:$0xf]
    %v3687 = vld [vmem:[%s6 + $0x18] sm:$0xf]
    %v3688 = vld [vmem:[%s6 + $0x1c] sm:$0xf]
    %v3689 = vld [vmem:[%s6 + $0x20] sm:$0xf]
    %v3690 = vld [vmem:[%s6 + $0x24] sm:$0xf]
    %v3691 = vld [vmem:[%s6 + $0x28] sm:$0xf]
    %v3692 = vld [vmem:[%s6 + $0x2c] sm:$0xf]
    %v3693 = vld [vmem:[%s6 + $0x30] sm:$0xf]
    %v3694 = vld [vmem:[%s6 + $0x34] sm:$0xf]
    %v3695 = vld [vmem:[%s6 + $0x38] sm:$0xf]
    %v3696 = vld [vmem:[%s6 + $0x3c] sm:$0xf]
    %v3697 = vld [vmem:[%s7] sm:$0xff]
    %v3698 = vld [vmem:[%s7 + $0x8] sm:$0xff]
    %v3699 = vld [vmem:[%s7 + $0x10] sm:$0xff]
    %v3700 = vld [vmem:[%s7 + $0x18] sm:$0xff]
    %v3701 = vld [vmem:[%s7 + $0x20] sm:$0xff]
    %v3702 = vld [vmem:[%s7 + $0x28] sm:$0xff]
    %v3703 = vld [vmem:[%s7 + $0x30] sm:$0xff]
    %v3704 = vld [vmem:[%s7 + $0x38] sm:$0xff]
    %v3705 = vld [vmem:[%s7 + $0x40] sm:$0xff]
    %v3706 = vld [vmem:[%s7 + $0x48] sm:$0xff]
    %v3707 = vld [vmem:[%s7 + $0x50] sm:$0xff]
    %v3708 = vld [vmem:[%s7 + $0x58] sm:$0xff]
    %v3709 = vld [vmem:[%s7 + $0x60] sm:$0xff]
    %v3710 = vld [vmem:[%s7 + $0x68] sm:$0xff]
    %v3711 = vld [vmem:[%s7 + $0x70] sm:$0xff]
    %v3712 = vld [vmem:[%s7 + $0x78] sm:$0xff]
    %3714 = vset.pattern.permute.xlu0 0
    %3715 = vperm.xlu0 %3714, %v3697
    %v3716 = vpop.permute.xlu0 %3715
    %3719 = vset.pattern.permute.xlu0 0
    %3720 = vperm.xlu0 %3719, %v3698
    %v3721 = vpop.permute.xlu0 %3720
    %3724 = vset.pattern.permute.xlu0 0
    %3725 = vperm.xlu0 %3724, %v3699
    %v3726 = vpop.permute.xlu0 %3725
    %3729 = vset.pattern.permute.xlu0 0
    %3730 = vperm.xlu0 %3729, %v3700
    %v3731 = vpop.permute.xlu0 %3730
    %3734 = vset.pattern.permute.xlu0 0
    %3735 = vperm.xlu0 %3734, %v3701
    %v3736 = vpop.permute.xlu0 %3735
    %3739 = vset.pattern.permute.xlu0 0
    %3740 = vperm.xlu0 %3739, %v3702
    %v3741 = vpop.permute.xlu0 %3740
    %3744 = vset.pattern.permute.xlu0 0
    %3745 = vperm.xlu0 %3744, %v3703
    %v3746 = vpop.permute.xlu0 %3745
    %3749 = vset.pattern.permute.xlu0 0
    %3750 = vperm.xlu0 %3749, %v3704
    %v3751 = vpop.permute.xlu0 %3750
    %3754 = vset.pattern.permute.xlu0 0
    %3755 = vperm.xlu0 %3754, %v3705
    %v3756 = vpop.permute.xlu0 %3755
    %3759 = vset.pattern.permute.xlu0 0
    %3760 = vperm.xlu0 %3759, %v3706
    %v3761 = vpop.permute.xlu0 %3760
    %3764 = vset.pattern.permute.xlu0 0
    %3765 = vperm.xlu0 %3764, %v3707
    %v3766 = vpop.permute.xlu0 %3765
    %3769 = vset.pattern.permute.xlu0 0
    %3770 = vperm.xlu0 %3769, %v3708
    %v3771 = vpop.permute.xlu0 %3770
    %3774 = vset.pattern.permute.xlu0 0
    %3775 = vperm.xlu0 %3774, %v3709
    %v3776 = vpop.permute.xlu0 %3775
    %3779 = vset.pattern.permute.xlu0 0
    %3780 = vperm.xlu0 %3779, %v3710
    %v3781 = vpop.permute.xlu0 %3780
    %3784 = vset.pattern.permute.xlu0 0
    %3785 = vperm.xlu0 %3784, %v3711
    %v3786 = vpop.permute.xlu0 %3785
    %3789 = vset.pattern.permute.xlu0 0
    %3790 = vperm.xlu0 %3789, %v3712
    %v3791 = vpop.permute.xlu0 %3790
    %v3809 = vunpack.c.l.b16 %v3681
    %v3810 = vunpack.c.l.b16 %v3682
    %v3811 = vunpack.c.l.b16 %v3683
    %v3812 = vunpack.c.l.b16 %v3684
    %v3813 = vunpack.c.l.b16 %v3685
    %v3814 = vunpack.c.l.b16 %v3686
    %v3815 = vunpack.c.l.b16 %v3687
    %v3816 = vunpack.c.l.b16 %v3688
    %v3817 = vunpack.c.l.b16 %v3689
    %v3818 = vunpack.c.l.b16 %v3690
    %v3819 = vunpack.c.l.b16 %v3691
    %v3820 = vunpack.c.l.b16 %v3692
    %v3821 = vunpack.c.l.b16 %v3693
    %v3822 = vunpack.c.l.b16 %v3694
    %v3823 = vunpack.c.l.b16 %v3695
    %v3824 = vunpack.c.l.b16 %v3696
    %v3825 = vpack.c.b16 %v3810, %v3809
    %v3826 = vpack.c.b16 %v3812, %v3811
    %v3827 = vpack.c.b16 %v3814, %v3813
    %v3828 = vpack.c.b16 %v3816, %v3815
    %v3829 = vpack.c.b16 %v3818, %v3817
    %v3830 = vpack.c.b16 %v3820, %v3819
    %v3831 = vpack.c.b16 %v3822, %v3821
    %v3832 = vpack.c.b16 %v3824, %v3823
    %vm3833 = vcmask 261120
    %v3835 = vsel %vm3833, %v3825, 0
    %v3838 = vsel %vm3833, %v3826, 0
    %v3841 = vsel %vm3833, %v3827, 0
    %v3844 = vsel %vm3833, %v3828, 0
    %v3847 = vsel %vm3833, %v3829, 0
    %v3850 = vsel %vm3833, %v3830, 0
    %v3853 = vsel %vm3833, %v3831, 0
    %v3856 = vsel %vm3833, %v3832, 0
    %3858 = vmatprep.subr.bf16.mxu0 %v3678
    %3859 = vmatpush1.bf16.msra.mxu0 %v3677
    %3860 = vmatprep.subr.bf16.mxu0 %v3680
    %3861 = vmatpush1.bf16.msra.mxu0 %v3679
    %3862 = vmatprep.subr.bf16.mxu0 0
    %3863 = vmatpush1.bf16.msra.mxu0 0
    %3864 = vmatprep.subr.bf16.mxu0 0
    %3865 = vmatpush1.bf16.msra.mxu0 0
    %3866 = vmatprep.subr.bf16.mxu0 0
    %3867 = vmatpush1.bf16.msra.mxu0 0
    %3868 = vmatprep.subr.bf16.mxu0 0
    %3869 = vmatpush1.bf16.msra.mxu0 0
    %3870 = vmatprep.subr.bf16.mxu0 0
    %3871 = vmatpush1.bf16.msra.mxu0 0
    %3872 = vmatprep.subr.bf16.mxu0 0
    %3873 = vmatpush1.bf16.msra.mxu0 0
    %3874 = vmatprep.subr.bf16.mxu0 0
    %3875 = vmatpush1.bf16.msra.mxu0 0
    %3876 = vmatprep.subr.bf16.mxu0 0
    %3877 = vmatpush1.bf16.msra.mxu0 0
    %3878 = vmatprep.subr.bf16.mxu0 0
    %3879 = vmatpush1.bf16.msra.mxu0 0
    %3880 = vmatprep.subr.bf16.mxu0 0
    %3881 = vmatpush1.bf16.msra.mxu0 0
    %3882 = vmatprep.subr.bf16.mxu0 0
    %3883 = vmatpush1.bf16.msra.mxu0 0
    %3884 = vmatprep.subr.bf16.mxu0 0
    %3885 = vmatpush1.bf16.msra.mxu0 0
    %3886 = vmatprep.subr.bf16.mxu0 0
    %3887 = vmatpush1.bf16.msra.mxu0 0
    %3888 = vmatprep.subr.bf16.mxu0 0
    %3889 = vmatpush1.bf16.msra.mxu0 0
    %3890 = vmatprep.mubr.bf16.mxu0 0
    %3891 = vmatmul.mubr.bf16.gmra.mrb[0].mxu0 %v3835
    %v3892 = vpop.f32.mrb[0].mxu0
    %v3893 = vadd.f32 %v3716, %v3892
    %v3894 = vpop.f32.mrb[0].mxu0
    %v3895 = vadd.f32 %v3716, %v3894
    %v3896 = vpop.f32.mrb[0].mxu0
    %v3897 = vadd.f32 %v3721, %v3896
    %v3898 = vpop.f32.mrb[0].mxu0
    %v3899 = vadd.f32 %v3721, %v3898
    %3900 = vmatprep.mubr.bf16.mxu0 0
    %3901 = vmatmul.mubr.bf16.gmra.mrb[0].mxu0 %v3838
    %v3902 = vpop.f32.mrb[0].mxu0
    %v3903 = vadd.f32 %v3726, %v3902
    %v3904 = vpop.f32.mrb[0].mxu0
    %v3905 = vadd.f32 %v3726, %v3904
    %v3906 = vpop.f32.mrb[0].mxu0
    %v3907 = vadd.f32 %v3731, %v3906
    %v3908 = vpop.f32.mrb[0].mxu0
    %v3909 = vadd.f32 %v3731, %v3908
    %3910 = vmatprep.mubr.bf16.mxu0 0
    %3911 = vmatmul.mubr.bf16.gmra.mrb[0].mxu0 %v3841
    %v3912 = vpop.f32.mrb[0].mxu0
    %v3913 = vadd.f32 %v3736, %v3912
    %v3914 = vpop.f32.mrb[0].mxu0
    %v3915 = vadd.f32 %v3736, %v3914
    %v3916 = vpop.f32.mrb[0].mxu0
    %v3917 = vadd.f32 %v3741, %v3916
    %v3918 = vpop.f32.mrb[0].mxu0
    %v3919 = vadd.f32 %v3741, %v3918
    %3920 = vmatprep.mubr.bf16.mxu0 0
    %3921 = vmatmul.mubr.bf16.gmra.mrb[0].mxu0 %v3844
    %v3922 = vpop.f32.mrb[0].mxu0
    %v3923 = vadd.f32 %v3746, %v3922
    %v3924 = vpop.f32.mrb[0].mxu0
    %v3925 = vadd.f32 %v3746, %v3924
    %v3926 = vpop.f32.mrb[0].mxu0
    %v3927 = vadd.f32 %v3751, %v3926
    %v3928 = vpop.f32.mrb[0].mxu0
    %v3929 = vadd.f32 %v3751, %v3928
    %3930 = vmatprep.mubr.bf16.mxu0 0
    %3931 = vmatmul.mubr.bf16.gmra.mrb[0].mxu0 %v3847
    %v3932 = vpop.f32.mrb[0].mxu0
    %v3933 = vadd.f32 %v3756, %v3932
    %v3934 = vpop.f32.mrb[0].mxu0
    %v3935 = vadd.f32 %v3756, %v3934
    %v3936 = vpop.f32.mrb[0].mxu0
    %v3937 = vadd.f32 %v3761, %v3936
    %v3938 = vpop.f32.mrb[0].mxu0
    %v3939 = vadd.f32 %v3761, %v3938
    %3940 = vmatprep.mubr.bf16.mxu0 0
    %3941 = vmatmul.mubr.bf16.gmra.mrb[0].mxu0 %v3850
    %v3942 = vpop.f32.mrb[0].mxu0
    %v3943 = vadd.f32 %v3766, %v3942
    %v3944 = vpop.f32.mrb[0].mxu0
    %v3945 = vadd.f32 %v3766, %v3944
    %v3946 = vpop.f32.mrb[0].mxu0
    %v3947 = vadd.f32 %v3771, %v3946
    %v3948 = vpop.f32.mrb[0].mxu0
    %v3949 = vadd.f32 %v3771, %v3948
    %3950 = vmatprep.mubr.bf16.mxu0 0
    %3951 = vmatmul.mubr.bf16.gmra.mrb[0].mxu0 %v3853
    %v3952 = vpop.f32.mrb[0].mxu0
    %v3953 = vadd.f32 %v3776, %v3952
    %v3954 = vpop.f32.mrb[0].mxu0
    %v3955 = vadd.f32 %v3776, %v3954
    %v3956 = vpop.f32.mrb[0].mxu0
    %v3957 = vadd.f32 %v3781, %v3956
    %v3958 = vpop.f32.mrb[0].mxu0
    %v3959 = vadd.f32 %v3781, %v3958
    %3960 = vmatprep.mubr.bf16.mxu0 0
    %3961 = vmatmul.mubr.bf16.gmra.mrb[0].mxu0 %v3856
    %v3962 = vpop.f32.mrb[0].mxu0
    %v3963 = vadd.f32 %v3786, %v3962
    %v3964 = vpop.f32.mrb[0].mxu0
    %v3965 = vadd.f32 %v3786, %v3964
    %v3966 = vpop.f32.mrb[0].mxu0
    %v3967 = vadd.f32 %v3791, %v3966
    %v3968 = vpop.f32.mrb[0].mxu0
    %v3969 = vadd.f32 %v3791, %v3968
    %3970 = vdwg.mxu0
    %v3971 = vmul.f32 %v3893, 0.5
    %v3972 = vmul.f32 %v3895, 0.5
    %v3973 = vmul.f32 %v3897, 0.5
    %v3974 = vmul.f32 %v3899, 0.5
    %v3975 = vmul.f32 %v3903, 0.5
    %v3976 = vmul.f32 %v3905, 0.5
    %v3977 = vmul.f32 %v3907, 0.5
    %v3978 = vmul.f32 %v3909, 0.5
    %v3979 = vmul.f32 %v3913, 0.5
    %v3980 = vmul.f32 %v3915, 0.5
    %v3981 = vmul.f32 %v3917, 0.5
    %v3982 = vmul.f32 %v3919, 0.5
    %v3983 = vmul.f32 %v3923, 0.5
    %v3984 = vmul.f32 %v3925, 0.5
    %v3985 = vmul.f32 %v3927, 0.5
    %v3986 = vmul.f32 %v3929, 0.5
    %v3987 = vmul.f32 %v3933, 0.5
    %v3988 = vmul.f32 %v3935, 0.5
    %v3989 = vmul.f32 %v3937, 0.5
    %v3990 = vmul.f32 %v3939, 0.5
    %v3991 = vmul.f32 %v3943, 0.5
    %v3992 = vmul.f32 %v3945, 0.5
    %v3993 = vmul.f32 %v3947, 0.5
    %v3994 = vmul.f32 %v3949, 0.5
    %v3995 = vmul.f32 %v3953, 0.5
    %v3996 = vmul.f32 %v3955, 0.5
    %v3997 = vmul.f32 %v3957, 0.5
    %v3998 = vmul.f32 %v3959, 0.5
    %v3999 = vmul.f32 %v3963, 0.5
    %v4000 = vmul.f32 %v3965, 0.5
    %v4001 = vmul.f32 %v3967, 0.5
    %v4002 = vmul.f32 %v3969, 0.5
    %v4003 = vmul.f32 %v3893, 0.70710677
    %v4004 = vmul.f32 %v3895, 0.70710677
    %v4005 = vmul.f32 %v3897, 0.70710677
    %v4006 = vmul.f32 %v3899, 0.70710677
    %v4007 = vmul.f32 %v3903, 0.70710677
    %v4008 = vmul.f32 %v3905, 0.70710677
    %v4009 = vmul.f32 %v3907, 0.70710677
    %v4010 = vmul.f32 %v3909, 0.70710677
    %v4011 = vmul.f32 %v3913, 0.70710677
    %v4012 = vmul.f32 %v3915, 0.70710677
    %v4013 = vmul.f32 %v3917, 0.70710677
    %v4014 = vmul.f32 %v3919, 0.70710677
    %v4015 = vmul.f32 %v3923, 0.70710677
    %v4016 = vmul.f32 %v3925, 0.70710677
    %v4017 = vmul.f32 %v3927, 0.70710677
    %v4018 = vmul.f32 %v3929, 0.70710677
    %v4019 = vmul.f32 %v3933, 0.70710677
    %v4020 = vmul.f32 %v3935, 0.70710677
    %v4021 = vmul.f32 %v3937, 0.70710677
    %v4022 = vmul.f32 %v3939, 0.70710677
    %v4023 = vmul.f32 %v3943, 0.70710677
    %v4024 = vmul.f32 %v3945, 0.70710677
    %v4025 = vmul.f32 %v3947, 0.70710677
    %v4026 = vmul.f32 %v3949, 0.70710677
    %v4027 = vmul.f32 %v3953, 0.70710677
    %v4028 = vmul.f32 %v3955, 0.70710677
    %v4029 = vmul.f32 %v3957, 0.70710677
    %v4030 = vmul.f32 %v3959, 0.70710677
    %v4031 = vmul.f32 %v3963, 0.70710677
    %v4032 = vmul.f32 %v3965, 0.70710677
    %v4033 = vmul.f32 %v3967, 0.70710677
    %v4034 = vmul.f32 %v3969, 0.70710677
    %vm4035 = vcmp.ge.f32.partialorder %v4003, 0.0
    %vm4036 = vcmp.ge.f32.partialorder %v4004, 0.0
    %vm4037 = vcmp.ge.f32.partialorder %v4005, 0.0
    %vm4038 = vcmp.ge.f32.partialorder %v4006, 0.0
    %vm4039 = vcmp.ge.f32.partialorder %v4007, 0.0
    %vm4040 = vcmp.ge.f32.partialorder %v4008, 0.0
    %vm4041 = vcmp.ge.f32.partialorder %v4009, 0.0
    %vm4042 = vcmp.ge.f32.partialorder %v4010, 0.0
    %vm4043 = vcmp.ge.f32.partialorder %v4011, 0.0
    %vm4044 = vcmp.ge.f32.partialorder %v4012, 0.0
    %vm4045 = vcmp.ge.f32.partialorder %v4013, 0.0
    %vm4046 = vcmp.ge.f32.partialorder %v4014, 0.0
    %vm4047 = vcmp.ge.f32.partialorder %v4015, 0.0
    %vm4048 = vcmp.ge.f32.partialorder %v4016, 0.0
    %vm4049 = vcmp.ge.f32.partialorder %v4017, 0.0
    %vm4050 = vcmp.ge.f32.partialorder %v4018, 0.0
    %vm4051 = vcmp.ge.f32.partialorder %v4019, 0.0
    %vm4052 = vcmp.ge.f32.partialorder %v4020, 0.0
    %vm4053 = vcmp.ge.f32.partialorder %v4021, 0.0
    %vm4054 = vcmp.ge.f32.partialorder %v4022, 0.0
    %vm4055 = vcmp.ge.f32.partialorder %v4023, 0.0
    %vm4056 = vcmp.ge.f32.partialorder %v4024, 0.0
    %vm4057 = vcmp.ge.f32.partialorder %v4025, 0.0
    %vm4058 = vcmp.ge.f32.partialorder %v4026, 0.0
    %vm4059 = vcmp.ge.f32.partialorder %v4027, 0.0
    %vm4060 = vcmp.ge.f32.partialorder %v4028, 0.0
    %vm4061 = vcmp.ge.f32.partialorder %v4029, 0.0
    %vm4062 = vcmp.ge.f32.partialorder %v4030, 0.0
    %vm4063 = vcmp.ge.f32.partialorder %v4031, 0.0
    %vm4064 = vcmp.ge.f32.partialorder %v4032, 0.0
    %vm4065 = vcmp.ge.f32.partialorder %v4033, 0.0
    %vm4066 = vcmp.ge.f32.partialorder %v4034, 0.0
    %v4067 = vsel %vm4035, 1.0, -1.0
    %v4068 = vsel %vm4036, 1.0, -1.0
    %v4069 = vsel %vm4037, 1.0, -1.0
    %v4070 = vsel %vm4038, 1.0, -1.0
    %v4071 = vsel %vm4039, 1.0, -1.0
    %v4072 = vsel %vm4040, 1.0, -1.0
    %v4073 = vsel %vm4041, 1.0, -1.0
    %v4074 = vsel %vm4042, 1.0, -1.0
    %v4075 = vsel %vm4043, 1.0, -1.0
    %v4076 = vsel %vm4044, 1.0, -1.0
    %v4077 = vsel %vm4045, 1.0, -1.0
    %v4078 = vsel %vm4046, 1.0, -1.0
    %v4079 = vsel %vm4047, 1.0, -1.0
    %v4080 = vsel %vm4048, 1.0, -1.0
    %v4081 = vsel %vm4049, 1.0, -1.0
    %v4082 = vsel %vm4050, 1.0, -1.0
    %v4083 = vsel %vm4051, 1.0, -1.0
    %v4084 = vsel %vm4052, 1.0, -1.0
    %v4085 = vsel %vm4053, 1.0, -1.0
    %v4086 = vsel %vm4054, 1.0, -1.0
    %v4087 = vsel %vm4055, 1.0, -1.0
    %v4088 = vsel %vm4056, 1.0, -1.0
    %v4089 = vsel %vm4057, 1.0, -1.0
    %v4090 = vsel %vm4058, 1.0, -1.0
    %v4091 = vsel %vm4059, 1.0, -1.0
    %v4092 = vsel %vm4060, 1.0, -1.0
    %v4093 = vsel %vm4061, 1.0, -1.0
    %v4094 = vsel %vm4062, 1.0, -1.0
    %v4095 = vsel %vm4063, 1.0, -1.0
    %v4096 = vsel %vm4064, 1.0, -1.0
    %v4097 = vsel %vm4065, 1.0, -1.0
    %v4098 = vsel %vm4066, 1.0, -1.0
    %v4099 = vand.u32 2147483647, %v4003
    %v4100 = vand.u32 2147483647, %v4004
    %v4101 = vand.u32 2147483647, %v4005
    %v4102 = vand.u32 2147483647, %v4006
    %v4103 = vand.u32 2147483647, %v4007
    %v4104 = vand.u32 2147483647, %v4008
    %v4105 = vand.u32 2147483647, %v4009
    %v4106 = vand.u32 2147483647, %v4010
    %v4107 = vand.u32 2147483647, %v4011
    %v4108 = vand.u32 2147483647, %v4012
    %v4109 = vand.u32 2147483647, %v4013
    %v4110 = vand.u32 2147483647, %v4014
    %v4111 = vand.u32 2147483647, %v4015
    %v4112 = vand.u32 2147483647, %v4016
    %v4113 = vand.u32 2147483647, %v4017
    %v4114 = vand.u32 2147483647, %v4018
    %v4115 = vand.u32 2147483647, %v4019
    %v4116 = vand.u32 2147483647, %v4020
    %v4117 = vand.u32 2147483647, %v4021
    %v4118 = vand.u32 2147483647, %v4022
    %v4119 = vand.u32 2147483647, %v4023
    %v4120 = vand.u32 2147483647, %v4024
    %v4121 = vand.u32 2147483647, %v4025
    %v4122 = vand.u32 2147483647, %v4026
    %v4123 = vand.u32 2147483647, %v4027
    %v4124 = vand.u32 2147483647, %v4028
    %v4125 = vand.u32 2147483647, %v4029
    %v4126 = vand.u32 2147483647, %v4030
    %v4127 = vand.u32 2147483647, %v4031
    %v4128 = vand.u32 2147483647, %v4032
    %v4129 = vand.u32 2147483647, %v4033
    %v4130 = vand.u32 2147483647, %v4034
    %v4131 = vmul.f32 %v4099, 0.3275911
    %v4132 = vmul.f32 %v4100, 0.3275911
    %v4133 = vmul.f32 %v4101, 0.3275911
    %v4134 = vmul.f32 %v4102, 0.3275911
    %v4135 = vmul.f32 %v4103, 0.3275911
    %v4136 = vmul.f32 %v4104, 0.3275911
    %v4137 = vmul.f32 %v4105, 0.3275911
    %v4138 = vmul.f32 %v4106, 0.3275911
    %v4139 = vmul.f32 %v4107, 0.3275911
    %v4140 = vmul.f32 %v4108, 0.3275911
    %v4141 = vmul.f32 %v4109, 0.3275911
    %v4142 = vmul.f32 %v4110, 0.3275911
    %v4143 = vmul.f32 %v4111, 0.3275911
    %v4144 = vmul.f32 %v4112, 0.3275911
    %v4145 = vmul.f32 %v4113, 0.3275911
    %v4146 = vmul.f32 %v4114, 0.3275911
    %v4147 = vmul.f32 %v4115, 0.3275911
    %v4148 = vmul.f32 %v4116, 0.3275911
    %v4149 = vmul.f32 %v4117, 0.3275911
    %v4150 = vmul.f32 %v4118, 0.3275911
    %v4151 = vmul.f32 %v4119, 0.3275911
    %v4152 = vmul.f32 %v4120, 0.3275911
    %v4153 = vmul.f32 %v4121, 0.3275911
    %v4154 = vmul.f32 %v4122, 0.3275911
    %v4155 = vmul.f32 %v4123, 0.3275911
    %v4156 = vmul.f32 %v4124, 0.3275911
    %v4157 = vmul.f32 %v4125, 0.3275911
    %v4158 = vmul.f32 %v4126, 0.3275911
    %v4159 = vmul.f32 %v4127, 0.3275911
    %v4160 = vmul.f32 %v4128, 0.3275911
    %v4161 = vmul.f32 %v4129, 0.3275911
    %v4162 = vmul.f32 %v4130, 0.3275911
    %v4163 = vadd.f32 %v4131, 1.0
    %v4164 = vadd.f32 %v4132, 1.0
    %v4165 = vadd.f32 %v4133, 1.0
    %v4166 = vadd.f32 %v4134, 1.0
    %v4167 = vadd.f32 %v4135, 1.0
    %v4168 = vadd.f32 %v4136, 1.0
    %v4169 = vadd.f32 %v4137, 1.0
    %v4170 = vadd.f32 %v4138, 1.0
    %v4171 = vadd.f32 %v4139, 1.0
    %v4172 = vadd.f32 %v4140, 1.0
    %v4173 = vadd.f32 %v4141, 1.0
    %v4174 = vadd.f32 %v4142, 1.0
    %v4175 = vadd.f32 %v4143, 1.0
    %v4176 = vadd.f32 %v4144, 1.0
    %v4177 = vadd.f32 %v4145, 1.0
    %v4178 = vadd.f32 %v4146, 1.0
    %v4179 = vadd.f32 %v4147, 1.0
    %v4180 = vadd.f32 %v4148, 1.0
    %v4181 = vadd.f32 %v4149, 1.0
    %v4182 = vadd.f32 %v4150, 1.0
    %v4183 = vadd.f32 %v4151, 1.0
    %v4184 = vadd.f32 %v4152, 1.0
    %v4185 = vadd.f32 %v4153, 1.0
    %v4186 = vadd.f32 %v4154, 1.0
    %v4187 = vadd.f32 %v4155, 1.0
    %v4188 = vadd.f32 %v4156, 1.0
    %v4189 = vadd.f32 %v4157, 1.0
    %v4190 = vadd.f32 %v4158, 1.0
    %v4191 = vadd.f32 %v4159, 1.0
    %v4192 = vadd.f32 %v4160, 1.0
    %v4193 = vadd.f32 %v4161, 1.0
    %v4194 = vadd.f32 %v4162, 1.0
    %v4195 = vrcp.pop %v4163
    %v4196 = vrcp.pop %v4164
    %v4197 = vrcp.pop %v4165
    %v4198 = vrcp.pop %v4166
    %v4199 = vrcp.pop %v4167
    %v4200 = vrcp.pop %v4168
    %v4201 = vrcp.pop %v4169
    %v4202 = vrcp.pop %v4170
    %v4203 = vrcp.pop %v4171
    %v4204 = vrcp.pop %v4172
    %v4205 = vrcp.pop %v4173
    %v4206 = vrcp.pop %v4174
    %v4207 = vrcp.pop %v4175
    %v4208 = vrcp.pop %v4176
    %v4209 = vrcp.pop %v4177
    %v4210 = vrcp.pop %v4178
    %v4211 = vrcp.pop %v4179
    %v4212 = vrcp.pop %v4180
    %v4213 = vrcp.pop %v4181
    %v4214 = vrcp.pop %v4182
    %v4215 = vrcp.pop %v4183
    %v4216 = vrcp.pop %v4184
    %v4217 = vrcp.pop %v4185
    %v4218 = vrcp.pop %v4186
    %v4219 = vrcp.pop %v4187
    %v4220 = vrcp.pop %v4188
    %v4221 = vrcp.pop %v4189
    %v4222 = vrcp.pop %v4190
    %v4223 = vrcp.pop %v4191
    %v4224 = vrcp.pop %v4192
    %v4225 = vrcp.pop %v4193
    %v4226 = vrcp.pop %v4194
    %v4227 = vmul.f32 %v4195, 1.0614054
    %v4228 = vmul.f32 %v4196, 1.0614054
    %v4229 = vmul.f32 %v4197, 1.0614054
    %v4230 = vmul.f32 %v4198, 1.0614054
    %v4231 = vmul.f32 %v4199, 1.0614054
    %v4232 = vmul.f32 %v4200, 1.0614054
    %v4233 = vmul.f32 %v4201, 1.0614054
    %v4234 = vmul.f32 %v4202, 1.0614054
    %v4235 = vmul.f32 %v4203, 1.0614054
    %v4236 = vmul.f32 %v4204, 1.0614054
    %v4237 = vmul.f32 %v4205, 1.0614054
    %v4238 = vmul.f32 %v4206, 1.0614054
    %v4239 = vmul.f32 %v4207, 1.0614054
    %v4240 = vmul.f32 %v4208, 1.0614054
    %v4241 = vmul.f32 %v4209, 1.0614054
    %v4242 = vmul.f32 %v4210, 1.0614054
    %v4243 = vmul.f32 %v4211, 1.0614054
    %v4244 = vmul.f32 %v4212, 1.0614054
    %v4245 = vmul.f32 %v4213, 1.0614054
    %v4246 = vmul.f32 %v4214, 1.0614054
    %v4247 = vmul.f32 %v4215, 1.0614054
    %v4248 = vmul.f32 %v4216, 1.0614054
    %v4249 = vmul.f32 %v4217, 1.0614054
    %v4250 = vmul.f32 %v4218, 1.0614054
    %v4251 = vmul.f32 %v4219, 1.0614054
    %v4252 = vmul.f32 %v4220, 1.0614054
    %v4253 = vmul.f32 %v4221, 1.0614054
    %v4254 = vmul.f32 %v4222, 1.0614054
    %v4255 = vmul.f32 %v4223, 1.0614054
    %v4256 = vmul.f32 %v4224, 1.0614054
    %v4257 = vmul.f32 %v4225, 1.0614054
    %v4258 = vmul.f32 %v4226, 1.0614054
    %v4259 = vadd.f32 %v4227, -1.4531521
    %v4260 = vadd.f32 %v4228, -1.4531521
    %v4261 = vadd.f32 %v4229, -1.4531521
    %v4262 = vadd.f32 %v4230, -1.4531521
    %v4263 = vadd.f32 %v4231, -1.4531521
    %v4264 = vadd.f32 %v4232, -1.4531521
    %v4265 = vadd.f32 %v4233, -1.4531521
    %v4266 = vadd.f32 %v4234, -1.4531521
    %v4267 = vadd.f32 %v4235, -1.4531521
    %v4268 = vadd.f32 %v4236, -1.4531521
    %v4269 = vadd.f32 %v4237, -1.4531521
    %v4270 = vadd.f32 %v4238, -1.4531521
    %v4271 = vadd.f32 %v4239, -1.4531521
    %v4272 = vadd.f32 %v4240, -1.4531521
    %v4273 = vadd.f32 %v4241, -1.4531521
    %v4274 = vadd.f32 %v4242, -1.4531521
    %v4275 = vadd.f32 %v4243, -1.4531521
    %v4276 = vadd.f32 %v4244, -1.4531521
    %v4277 = vadd.f32 %v4245, -1.4531521
    %v4278 = vadd.f32 %v4246, -1.4531521
    %v4279 = vadd.f32 %v4247, -1.4531521
    %v4280 = vadd.f32 %v4248, -1.4531521
    %v4281 = vadd.f32 %v4249, -1.4531521
    %v4282 = vadd.f32 %v4250, -1.4531521
    %v4283 = vadd.f32 %v4251, -1.4531521
    %v4284 = vadd.f32 %v4252, -1.4531521
    %v4285 = vadd.f32 %v4253, -1.4531521
    %v4286 = vadd.f32 %v4254, -1.4531521
    %v4287 = vadd.f32 %v4255, -1.4531521
    %v4288 = vadd.f32 %v4256, -1.4531521
    %v4289 = vadd.f32 %v4257, -1.4531521
    %v4290 = vadd.f32 %v4258, -1.4531521
    %v4291 = vmul.f32 %v4259, %v4195
    %v4292 = vmul.f32 %v4260, %v4196
    %v4293 = vmul.f32 %v4261, %v4197
    %v4294 = vmul.f32 %v4262, %v4198
    %v4295 = vmul.f32 %v4263, %v4199
    %v4296 = vmul.f32 %v4264, %v4200
    %v4297 = vmul.f32 %v4265, %v4201
    %v4298 = vmul.f32 %v4266, %v4202
    %v4299 = vmul.f32 %v4267, %v4203
    %v4300 = vmul.f32 %v4268, %v4204
    %v4301 = vmul.f32 %v4269, %v4205
    %v4302 = vmul.f32 %v4270, %v4206
    %v4303 = vmul.f32 %v4271, %v4207
    %v4304 = vmul.f32 %v4272, %v4208
    %v4305 = vmul.f32 %v4273, %v4209
    %v4306 = vmul.f32 %v4274, %v4210
    %v4307 = vmul.f32 %v4275, %v4211
    %v4308 = vmul.f32 %v4276, %v4212
    %v4309 = vmul.f32 %v4277, %v4213
    %v4310 = vmul.f32 %v4278, %v4214
    %v4311 = vmul.f32 %v4279, %v4215
    %v4312 = vmul.f32 %v4280, %v4216
    %v4313 = vmul.f32 %v4281, %v4217
    %v4314 = vmul.f32 %v4282, %v4218
    %v4315 = vmul.f32 %v4283, %v4219
    %v4316 = vmul.f32 %v4284, %v4220
    %v4317 = vmul.f32 %v4285, %v4221
    %v4318 = vmul.f32 %v4286, %v4222
    %v4319 = vmul.f32 %v4287, %v4223
    %v4320 = vmul.f32 %v4288, %v4224
    %v4321 = vmul.f32 %v4289, %v4225
    %v4322 = vmul.f32 %v4290, %v4226
    %v4323 = vadd.f32 %v4291, 1.4214138
    %v4324 = vadd.f32 %v4292, 1.4214138
    %v4325 = vadd.f32 %v4293, 1.4214138
    %v4326 = vadd.f32 %v4294, 1.4214138
    %v4327 = vadd.f32 %v4295, 1.4214138
    %v4328 = vadd.f32 %v4296, 1.4214138
    %v4329 = vadd.f32 %v4297, 1.4214138
    %v4330 = vadd.f32 %v4298, 1.4214138
    %v4331 = vadd.f32 %v4299, 1.4214138
    %v4332 = vadd.f32 %v4300, 1.4214138
    %v4333 = vadd.f32 %v4301, 1.4214138
    %v4334 = vadd.f32 %v4302, 1.4214138
    %v4335 = vadd.f32 %v4303, 1.4214138
    %v4336 = vadd.f32 %v4304, 1.4214138
    %v4337 = vadd.f32 %v4305, 1.4214138
    %v4338 = vadd.f32 %v4306, 1.4214138
    %v4339 = vadd.f32 %v4307, 1.4214138
    %v4340 = vadd.f32 %v4308, 1.4214138
    %v4341 = vadd.f32 %v4309, 1.4214138
    %v4342 = vadd.f32 %v4310, 1.4214138
    %v4343 = vadd.f32 %v4311, 1.4214138
    %v4344 = vadd.f32 %v4312, 1.4214138
    %v4345 = vadd.f32 %v4313, 1.4214138
    %v4346 = vadd.f32 %v4314, 1.4214138
    %v4347 = vadd.f32 %v4315, 1.4214138
    %v4348 = vadd.f32 %v4316, 1.4214138
    %v4349 = vadd.f32 %v4317, 1.4214138
    %v4350 = vadd.f32 %v4318, 1.4214138
    %v4351 = vadd.f32 %v4319, 1.4214138
    %v4352 = vadd.f32 %v4320, 1.4214138
    %v4353 = vadd.f32 %v4321, 1.4214138
    %v4354 = vadd.f32 %v4322, 1.4214138
    %v4355 = vmul.f32 %v4323, %v4195
    %v4356 = vmul.f32 %v4324, %v4196
    %v4357 = vmul.f32 %v4325, %v4197
    %v4358 = vmul.f32 %v4326, %v4198
    %v4359 = vmul.f32 %v4327, %v4199
    %v4360 = vmul.f32 %v4328, %v4200
    %v4361 = vmul.f32 %v4329, %v4201
    %v4362 = vmul.f32 %v4330, %v4202
    %v4363 = vmul.f32 %v4331, %v4203
    %v4364 = vmul.f32 %v4332, %v4204
    %v4365 = vmul.f32 %v4333, %v4205
    %v4366 = vmul.f32 %v4334, %v4206
    %v4367 = vmul.f32 %v4335, %v4207
    %v4368 = vmul.f32 %v4336, %v4208
    %v4369 = vmul.f32 %v4337, %v4209
    %v4370 = vmul.f32 %v4338, %v4210
    %v4371 = vmul.f32 %v4339, %v4211
    %v4372 = vmul.f32 %v4340, %v4212
    %v4373 = vmul.f32 %v4341, %v4213
    %v4374 = vmul.f32 %v4342, %v4214
    %v4375 = vmul.f32 %v4343, %v4215
    %v4376 = vmul.f32 %v4344, %v4216
    %v4377 = vmul.f32 %v4345, %v4217
    %v4378 = vmul.f32 %v4346, %v4218
    %v4379 = vmul.f32 %v4347, %v4219
    %v4380 = vmul.f32 %v4348, %v4220
    %v4381 = vmul.f32 %v4349, %v4221
    %v4382 = vmul.f32 %v4350, %v4222
    %v4383 = vmul.f32 %v4351, %v4223
    %v4384 = vmul.f32 %v4352, %v4224
    %v4385 = vmul.f32 %v4353, %v4225
    %v4386 = vmul.f32 %v4354, %v4226
    %v4387 = vadd.f32 %v4355, -0.28449672
    %v4388 = vadd.f32 %v4356, -0.28449672
    %v4389 = vadd.f32 %v4357, -0.28449672
    %v4390 = vadd.f32 %v4358, -0.28449672
    %v4391 = vadd.f32 %v4359, -0.28449672
    %v4392 = vadd.f32 %v4360, -0.28449672
    %v4393 = vadd.f32 %v4361, -0.28449672
    %v4394 = vadd.f32 %v4362, -0.28449672
    %v4395 = vadd.f32 %v4363, -0.28449672
    %v4396 = vadd.f32 %v4364, -0.28449672
    %v4397 = vadd.f32 %v4365, -0.28449672
    %v4398 = vadd.f32 %v4366, -0.28449672
    %v4399 = vadd.f32 %v4367, -0.28449672
    %v4400 = vadd.f32 %v4368, -0.28449672
    %v4401 = vadd.f32 %v4369, -0.28449672
    %v4402 = vadd.f32 %v4370, -0.28449672
    %v4403 = vadd.f32 %v4371, -0.28449672
    %v4404 = vadd.f32 %v4372, -0.28449672
    %v4405 = vadd.f32 %v4373, -0.28449672
    %v4406 = vadd.f32 %v4374, -0.28449672
    %v4407 = vadd.f32 %v4375, -0.28449672
    %v4408 = vadd.f32 %v4376, -0.28449672
    %v4409 = vadd.f32 %v4377, -0.28449672
    %v4410 = vadd.f32 %v4378, -0.28449672
    %v4411 = vadd.f32 %v4379, -0.28449672
    %v4412 = vadd.f32 %v4380, -0.28449672
    %v4413 = vadd.f32 %v4381, -0.28449672
    %v4414 = vadd.f32 %v4382, -0.28449672
    %v4415 = vadd.f32 %v4383, -0.28449672
    %v4416 = vadd.f32 %v4384, -0.28449672
    %v4417 = vadd.f32 %v4385, -0.28449672
    %v4418 = vadd.f32 %v4386, -0.28449672
    %v4419 = vmul.f32 %v4387, %v4195
    %v4420 = vmul.f32 %v4388, %v4196
    %v4421 = vmul.f32 %v4389, %v4197
    %v4422 = vmul.f32 %v4390, %v4198
    %v4423 = vmul.f32 %v4391, %v4199
    %v4424 = vmul.f32 %v4392, %v4200
    %v4425 = vmul.f32 %v4393, %v4201
    %v4426 = vmul.f32 %v4394, %v4202
    %v4427 = vmul.f32 %v4395, %v4203
    %v4428 = vmul.f32 %v4396, %v4204
    %v4429 = vmul.f32 %v4397, %v4205
    %v4430 = vmul.f32 %v4398, %v4206
    %v4431 = vmul.f32 %v4399, %v4207
    %v4432 = vmul.f32 %v4400, %v4208
    %v4433 = vmul.f32 %v4401, %v4209
    %v4434 = vmul.f32 %v4402, %v4210
    %v4435 = vmul.f32 %v4403, %v4211
    %v4436 = vmul.f32 %v4404, %v4212
    %v4437 = vmul.f32 %v4405, %v4213
    %v4438 = vmul.f32 %v4406, %v4214
    %v4439 = vmul.f32 %v4407, %v4215
    %v4440 = vmul.f32 %v4408, %v4216
    %v4441 = vmul.f32 %v4409, %v4217
    %v4442 = vmul.f32 %v4410, %v4218
    %v4443 = vmul.f32 %v4411, %v4219
    %v4444 = vmul.f32 %v4412, %v4220
    %v4445 = vmul.f32 %v4413, %v4221
    %v4446 = vmul.f32 %v4414, %v4222
    %v4447 = vmul.f32 %v4415, %v4223
    %v4448 = vmul.f32 %v4416, %v4224
    %v4449 = vmul.f32 %v4417, %v4225
    %v4450 = vmul.f32 %v4418, %v4226
    %v4451 = vadd.f32 %v4419, 0.2548296
    %v4452 = vadd.f32 %v4420, 0.2548296
    %v4453 = vadd.f32 %v4421, 0.2548296
    %v4454 = vadd.f32 %v4422, 0.2548296
    %v4455 = vadd.f32 %v4423, 0.2548296
    %v4456 = vadd.f32 %v4424, 0.2548296
    %v4457 = vadd.f32 %v4425, 0.2548296
    %v4458 = vadd.f32 %v4426, 0.2548296
    %v4459 = vadd.f32 %v4427, 0.2548296
    %v4460 = vadd.f32 %v4428, 0.2548296
    %v4461 = vadd.f32 %v4429, 0.2548296
    %v4462 = vadd.f32 %v4430, 0.2548296
    %v4463 = vadd.f32 %v4431, 0.2548296
    %v4464 = vadd.f32 %v4432, 0.2548296
    %v4465 = vadd.f32 %v4433, 0.2548296
    %v4466 = vadd.f32 %v4434, 0.2548296
    %v4467 = vadd.f32 %v4435, 0.2548296
    %v4468 = vadd.f32 %v4436, 0.2548296
    %v4469 = vadd.f32 %v4437, 0.2548296
    %v4470 = vadd.f32 %v4438, 0.2548296
    %v4471 = vadd.f32 %v4439, 0.2548296
    %v4472 = vadd.f32 %v4440, 0.2548296
    %v4473 = vadd.f32 %v4441, 0.2548296
    %v4474 = vadd.f32 %v4442, 0.2548296
    %v4475 = vadd.f32 %v4443, 0.2548296
    %v4476 = vadd.f32 %v4444, 0.2548296
    %v4477 = vadd.f32 %v4445, 0.2548296
    %v4478 = vadd.f32 %v4446, 0.2548296
    %v4479 = vadd.f32 %v4447, 0.2548296
    %v4480 = vadd.f32 %v4448, 0.2548296
    %v4481 = vadd.f32 %v4449, 0.2548296
    %v4482 = vadd.f32 %v4450, 0.2548296
    %v4483 = vmul.f32 %v4451, %v4195
    %v4484 = vmul.f32 %v4452, %v4196
    %v4485 = vmul.f32 %v4453, %v4197
    %v4486 = vmul.f32 %v4454, %v4198
    %v4487 = vmul.f32 %v4455, %v4199
    %v4488 = vmul.f32 %v4456, %v4200
    %v4489 = vmul.f32 %v4457, %v4201
    %v4490 = vmul.f32 %v4458, %v4202
    %v4491 = vmul.f32 %v4459, %v4203
    %v4492 = vmul.f32 %v4460, %v4204
    %v4493 = vmul.f32 %v4461, %v4205
    %v4494 = vmul.f32 %v4462, %v4206
    %v4495 = vmul.f32 %v4463, %v4207
    %v4496 = vmul.f32 %v4464, %v4208
    %v4497 = vmul.f32 %v4465, %v4209
    %v4498 = vmul.f32 %v4466, %v4210
    %v4499 = vmul.f32 %v4467, %v4211
    %v4500 = vmul.f32 %v4468, %v4212
    %v4501 = vmul.f32 %v4469, %v4213
    %v4502 = vmul.f32 %v4470, %v4214
    %v4503 = vmul.f32 %v4471, %v4215
    %v4504 = vmul.f32 %v4472, %v4216
    %v4505 = vmul.f32 %v4473, %v4217
    %v4506 = vmul.f32 %v4474, %v4218
    %v4507 = vmul.f32 %v4475, %v4219
    %v4508 = vmul.f32 %v4476, %v4220
    %v4509 = vmul.f32 %v4477, %v4221
    %v4510 = vmul.f32 %v4478, %v4222
    %v4511 = vmul.f32 %v4479, %v4223
    %v4512 = vmul.f32 %v4480, %v4224
    %v4513 = vmul.f32 %v4481, %v4225
    %v4514 = vmul.f32 %v4482, %v4226
    %v4515 = vsub.f32 0.0, %v4099
    %v4516 = vsub.f32 0.0, %v4100
    %v4517 = vsub.f32 0.0, %v4101
    %v4518 = vsub.f32 0.0, %v4102
    %v4519 = vsub.f32 0.0, %v4103
    %v4520 = vsub.f32 0.0, %v4104
    %v4521 = vsub.f32 0.0, %v4105
    %v4522 = vsub.f32 0.0, %v4106
    %v4523 = vsub.f32 0.0, %v4107
    %v4524 = vsub.f32 0.0, %v4108
    %v4525 = vsub.f32 0.0, %v4109
    %v4526 = vsub.f32 0.0, %v4110
    %v4527 = vsub.f32 0.0, %v4111
    %v4528 = vsub.f32 0.0, %v4112
    %v4529 = vsub.f32 0.0, %v4113
    %v4530 = vsub.f32 0.0, %v4114
    %v4531 = vsub.f32 0.0, %v4115
    %v4532 = vsub.f32 0.0, %v4116
    %v4533 = vsub.f32 0.0, %v4117
    %v4534 = vsub.f32 0.0, %v4118
    %v4535 = vsub.f32 0.0, %v4119
    %v4536 = vsub.f32 0.0, %v4120
    %v4537 = vsub.f32 0.0, %v4121
    %v4538 = vsub.f32 0.0, %v4122
    %v4539 = vsub.f32 0.0, %v4123
    %v4540 = vsub.f32 0.0, %v4124
    %v4541 = vsub.f32 0.0, %v4125
    %v4542 = vsub.f32 0.0, %v4126
    %v4543 = vsub.f32 0.0, %v4127
    %v4544 = vsub.f32 0.0, %v4128
    %v4545 = vsub.f32 0.0, %v4129
    %v4546 = vsub.f32 0.0, %v4130
    %v4547 = vmul.f32 %v4515, %v4099
    %v4548 = vmul.f32 %v4516, %v4100
    %v4549 = vmul.f32 %v4517, %v4101
    %v4550 = vmul.f32 %v4518, %v4102
    %v4551 = vmul.f32 %v4519, %v4103
    %v4552 = vmul.f32 %v4520, %v4104
    %v4553 = vmul.f32 %v4521, %v4105
    %v4554 = vmul.f32 %v4522, %v4106
    %v4555 = vmul.f32 %v4523, %v4107
    %v4556 = vmul.f32 %v4524, %v4108
    %v4557 = vmul.f32 %v4525, %v4109
    %v4558 = vmul.f32 %v4526, %v4110
    %v4559 = vmul.f32 %v4527, %v4111
    %v4560 = vmul.f32 %v4528, %v4112
    %v4561 = vmul.f32 %v4529, %v4113
    %v4562 = vmul.f32 %v4530, %v4114
    %v4563 = vmul.f32 %v4531, %v4115
    %v4564 = vmul.f32 %v4532, %v4116
    %v4565 = vmul.f32 %v4533, %v4117
    %v4566 = vmul.f32 %v4534, %v4118
    %v4567 = vmul.f32 %v4535, %v4119
    %v4568 = vmul.f32 %v4536, %v4120
    %v4569 = vmul.f32 %v4537, %v4121
    %v4570 = vmul.f32 %v4538, %v4122
    %v4571 = vmul.f32 %v4539, %v4123
    %v4572 = vmul.f32 %v4540, %v4124
    %v4573 = vmul.f32 %v4541, %v4125
    %v4574 = vmul.f32 %v4542, %v4126
    %v4575 = vmul.f32 %v4543, %v4127
    %v4576 = vmul.f32 %v4544, %v4128
    %v4577 = vmul.f32 %v4545, %v4129
    %v4578 = vmul.f32 %v4546, %v4130
    %v4579 = vmul.f32 %v4547, 1.442695
    %v4580 = vpow.pop %v4579
    %v4581 = vmul.f32 %v4548, 1.442695
    %v4582 = vpow.pop %v4581
    %v4583 = vmul.f32 %v4549, 1.442695
    %v4584 = vpow.pop %v4583
    %v4585 = vmul.f32 %v4550, 1.442695
    %v4586 = vpow.pop %v4585
    %v4587 = vmul.f32 %v4551, 1.442695
    %v4588 = vpow.pop %v4587
    %v4589 = vmul.f32 %v4552, 1.442695
    %v4590 = vpow.pop %v4589
    %v4591 = vmul.f32 %v4553, 1.442695
    %v4592 = vpow.pop %v4591
    %v4593 = vmul.f32 %v4554, 1.442695
    %v4594 = vpow.pop %v4593
    %v4595 = vmul.f32 %v4555, 1.442695
    %v4596 = vpow.pop %v4595
    %v4597 = vmul.f32 %v4556, 1.442695
    %v4598 = vpow.pop %v4597
    %v4599 = vmul.f32 %v4557, 1.442695
    %v4600 = vpow.pop %v4599
    %v4601 = vmul.f32 %v4558, 1.442695
    %v4602 = vpow.pop %v4601
    %v4603 = vmul.f32 %v4559, 1.442695
    %v4604 = vpow.pop %v4603
    %v4605 = vmul.f32 %v4560, 1.442695
    %v4606 = vpow.pop %v4605
    %v4607 = vmul.f32 %v4561, 1.442695
    %v4608 = vpow.pop %v4607
    %v4609 = vmul.f32 %v4562, 1.442695
    %v4610 = vpow.pop %v4609
    %v4611 = vmul.f32 %v4563, 1.442695
    %v4612 = vpow.pop %v4611
    %v4613 = vmul.f32 %v4564, 1.442695
    %v4614 = vpow.pop %v4613
    %v4615 = vmul.f32 %v4565, 1.442695
    %v4616 = vpow.pop %v4615
    %v4617 = vmul.f32 %v4566, 1.442695
    %v4618 = vpow.pop %v4617
    %v4619 = vmul.f32 %v4567, 1.442695
    %v4620 = vpow.pop %v4619
    %v4621 = vmul.f32 %v4568, 1.442695
    %v4622 = vpow.pop %v4621
    %v4623 = vmul.f32 %v4569, 1.442695
    %v4624 = vpow.pop %v4623
    %v4625 = vmul.f32 %v4570, 1.442695
    %v4626 = vpow.pop %v4625
    %v4627 = vmul.f32 %v4571, 1.442695
    %v4628 = vpow.pop %v4627
    %v4629 = vmul.f32 %v4572, 1.442695
    %v4630 = vpow.pop %v4629
    %v4631 = vmul.f32 %v4573, 1.442695
    %v4632 = vpow.pop %v4631
    %v4633 = vmul.f32 %v4574, 1.442695
    %v4634 = vpow.pop %v4633
    %v4635 = vmul.f32 %v4575, 1.442695
    %v4636 = vpow.pop %v4635
    %v4637 = vmul.f32 %v4576, 1.442695
    %v4638 = vpow.pop %v4637
    %v4639 = vmul.f32 %v4577, 1.442695
    %v4640 = vpow.pop %v4639
    %v4641 = vmul.f32 %v4578, 1.442695
    %v4642 = vpow.pop %v4641
    %v4643 = vmul.f32 %v4483, %v4580
    %v4644 = vmul.f32 %v4484, %v4582
    %v4645 = vmul.f32 %v4485, %v4584
    %v4646 = vmul.f32 %v4486, %v4586
    %v4647 = vmul.f32 %v4487, %v4588
    %v4648 = vmul.f32 %v4488, %v4590
    %v4649 = vmul.f32 %v4489, %v4592
    %v4650 = vmul.f32 %v4490, %v4594
    %v4651 = vmul.f32 %v4491, %v4596
    %v4652 = vmul.f32 %v4492, %v4598
    %v4653 = vmul.f32 %v4493, %v4600
    %v4654 = vmul.f32 %v4494, %v4602
    %v4655 = vmul.f32 %v4495, %v4604
    %v4656 = vmul.f32 %v4496, %v4606
    %v4657 = vmul.f32 %v4497, %v4608
    %v4658 = vmul.f32 %v4498, %v4610
    %v4659 = vmul.f32 %v4499, %v4612
    %v4660 = vmul.f32 %v4500, %v4614
    %v4661 = vmul.f32 %v4501, %v4616
    %v4662 = vmul.f32 %v4502, %v4618
    %v4663 = vmul.f32 %v4503, %v4620
    %v4664 = vmul.f32 %v4504, %v4622
    %v4665 = vmul.f32 %v4505, %v4624
    %v4666 = vmul.f32 %v4506, %v4626
    %v4667 = vmul.f32 %v4507, %v4628
    %v4668 = vmul.f32 %v4508, %v4630
    %v4669 = vmul.f32 %v4509, %v4632
    %v4670 = vmul.f32 %v4510, %v4634
    %v4671 = vmul.f32 %v4511, %v4636
    %v4672 = vmul.f32 %v4512, %v4638
    %v4673 = vmul.f32 %v4513, %v4640
    %v4674 = vmul.f32 %v4514, %v4642
    %v4675 = vsub.f32 1.0, %v4643
    %v4676 = vsub.f32 1.0, %v4644
    %v4677 = vsub.f32 1.0, %v4645
    %v4678 = vsub.f32 1.0, %v4646
    %v4679 = vsub.f32 1.0, %v4647
    %v4680 = vsub.f32 1.0, %v4648
    %v4681 = vsub.f32 1.0, %v4649
    %v4682 = vsub.f32 1.0, %v4650
    %v4683 = vsub.f32 1.0, %v4651
    %v4684 = vsub.f32 1.0, %v4652
    %v4685 = vsub.f32 1.0, %v4653
    %v4686 = vsub.f32 1.0, %v4654
    %v4687 = vsub.f32 1.0, %v4655
    %v4688 = vsub.f32 1.0, %v4656
    %v4689 = vsub.f32 1.0, %v4657
    %v4690 = vsub.f32 1.0, %v4658
    %v4691 = vsub.f32 1.0, %v4659
    %v4692 = vsub.f32 1.0, %v4660
    %v4693 = vsub.f32 1.0, %v4661
    %v4694 = vsub.f32 1.0, %v4662
    %v4695 = vsub.f32 1.0, %v4663
    %v4696 = vsub.f32 1.0, %v4664
    %v4697 = vsub.f32 1.0, %v4665
    %v4698 = vsub.f32 1.0, %v4666
    %v4699 = vsub.f32 1.0, %v4667
    %v4700 = vsub.f32 1.0, %v4668
    %v4701 = vsub.f32 1.0, %v4669
    %v4702 = vsub.f32 1.0, %v4670
    %v4703 = vsub.f32 1.0, %v4671
    %v4704 = vsub.f32 1.0, %v4672
    %v4705 = vsub.f32 1.0, %v4673
    %v4706 = vsub.f32 1.0, %v4674
    %v4707 = vmul.f32 %v4067, %v4675
    %v4708 = vmul.f32 %v4068, %v4676
    %v4709 = vmul.f32 %v4069, %v4677
    %v4710 = vmul.f32 %v4070, %v4678
    %v4711 = vmul.f32 %v4071, %v4679
    %v4712 = vmul.f32 %v4072, %v4680
    %v4713 = vmul.f32 %v4073, %v4681
    %v4714 = vmul.f32 %v4074, %v4682
    %v4715 = vmul.f32 %v4075, %v4683
    %v4716 = vmul.f32 %v4076, %v4684
    %v4717 = vmul.f32 %v4077, %v4685
    %v4718 = vmul.f32 %v4078, %v4686
    %v4719 = vmul.f32 %v4079, %v4687
    %v4720 = vmul.f32 %v4080, %v4688
    %v4721 = vmul.f32 %v4081, %v4689
    %v4722 = vmul.f32 %v4082, %v4690
    %v4723 = vmul.f32 %v4083, %v4691
    %v4724 = vmul.f32 %v4084, %v4692
    %v4725 = vmul.f32 %v4085, %v4693
    %v4726 = vmul.f32 %v4086, %v4694
    %v4727 = vmul.f32 %v4087, %v4695
    %v4728 = vmul.f32 %v4088, %v4696
    %v4729 = vmul.f32 %v4089, %v4697
    %v4730 = vmul.f32 %v4090, %v4698
    %v4731 = vmul.f32 %v4091, %v4699
    %v4732 = vmul.f32 %v4092, %v4700
    %v4733 = vmul.f32 %v4093, %v4701
    %v4734 = vmul.f32 %v4094, %v4702
    %v4735 = vmul.f32 %v4095, %v4703
    %v4736 = vmul.f32 %v4096, %v4704
    %v4737 = vmul.f32 %v4097, %v4705
    %v4738 = vmul.f32 %v4098, %v4706
    %v4739 = vadd.f32 %v4707, 1.0
    %v4740 = vadd.f32 %v4708, 1.0
    %v4741 = vadd.f32 %v4709, 1.0
    %v4742 = vadd.f32 %v4710, 1.0
    %v4743 = vadd.f32 %v4711, 1.0
    %v4744 = vadd.f32 %v4712, 1.0
    %v4745 = vadd.f32 %v4713, 1.0
    %v4746 = vadd.f32 %v4714, 1.0
    %v4747 = vadd.f32 %v4715, 1.0
    %v4748 = vadd.f32 %v4716, 1.0
    %v4749 = vadd.f32 %v4717, 1.0
    %v4750 = vadd.f32 %v4718, 1.0
    %v4751 = vadd.f32 %v4719, 1.0
    %v4752 = vadd.f32 %v4720, 1.0
    %v4753 = vadd.f32 %v4721, 1.0
    %v4754 = vadd.f32 %v4722, 1.0
    %v4755 = vadd.f32 %v4723, 1.0
    %v4756 = vadd.f32 %v4724, 1.0
    %v4757 = vadd.f32 %v4725, 1.0
    %v4758 = vadd.f32 %v4726, 1.0
    %v4759 = vadd.f32 %v4727, 1.0
    %v4760 = vadd.f32 %v4728, 1.0
    %v4761 = vadd.f32 %v4729, 1.0
    %v4762 = vadd.f32 %v4730, 1.0
    %v4763 = vadd.f32 %v4731, 1.0
    %v4764 = vadd.f32 %v4732, 1.0
    %v4765 = vadd.f32 %v4733, 1.0
    %v4766 = vadd.f32 %v4734, 1.0
    %v4767 = vadd.f32 %v4735, 1.0
    %v4768 = vadd.f32 %v4736, 1.0
    %v4769 = vadd.f32 %v4737, 1.0
    %v4770 = vadd.f32 %v4738, 1.0
    %v4771 = vmul.f32 %v3971, %v4739
    %v4772 = vmul.f32 %v3972, %v4740
    %v4773 = vmul.f32 %v3973, %v4741
    %v4774 = vmul.f32 %v3974, %v4742
    %v4775 = vmul.f32 %v3975, %v4743
    %v4776 = vmul.f32 %v3976, %v4744
    %v4777 = vmul.f32 %v3977, %v4745
    %v4778 = vmul.f32 %v3978, %v4746
    %v4779 = vmul.f32 %v3979, %v4747
    %v4780 = vmul.f32 %v3980, %v4748
    %v4781 = vmul.f32 %v3981, %v4749
    %v4782 = vmul.f32 %v3982, %v4750
    %v4783 = vmul.f32 %v3983, %v4751
    %v4784 = vmul.f32 %v3984, %v4752
    %v4785 = vmul.f32 %v3985, %v4753
    %v4786 = vmul.f32 %v3986, %v4754
    %v4787 = vmul.f32 %v3987, %v4755
    %v4788 = vmul.f32 %v3988, %v4756
    %v4789 = vmul.f32 %v3989, %v4757
    %v4790 = vmul.f32 %v3990, %v4758
    %v4791 = vmul.f32 %v3991, %v4759
    %v4792 = vmul.f32 %v3992, %v4760
    %v4793 = vmul.f32 %v3993, %v4761
    %v4794 = vmul.f32 %v3994, %v4762
    %v4795 = vmul.f32 %v3995, %v4763
    %v4796 = vmul.f32 %v3996, %v4764
    %v4797 = vmul.f32 %v3997, %v4765
    %v4798 = vmul.f32 %v3998, %v4766
    %v4799 = vmul.f32 %v3999, %v4767
    %v4800 = vmul.f32 %v4000, %v4768
    %v4801 = vmul.f32 %v4001, %v4769
    %v4802 = vmul.f32 %v4002, %v4770
    %v4803 = vld [vmem:[%s8] sm:$0x3]
    %v4804 = vpack.c.bf16 %v4773, %v4771
    %v4805 = vpack.c.bf16 %v4774, %v4772
    %v4806 = vpack.c.bf16 %v4777, %v4775
    %v4807 = vpack.c.bf16 %v4778, %v4776
    %v4808 = vpack.c.bf16 %v4781, %v4779
    %v4809 = vpack.c.bf16 %v4782, %v4780
    %v4810 = vpack.c.bf16 %v4785, %v4783
    %v4811 = vpack.c.bf16 %v4786, %v4784
    %v4812 = vpack.c.bf16 %v4789, %v4787
    %v4813 = vpack.c.bf16 %v4790, %v4788
    %v4814 = vpack.c.bf16 %v4793, %v4791
    %v4815 = vpack.c.bf16 %v4794, %v4792
    %v4816 = vpack.c.bf16 %v4797, %v4795
    %v4817 = vpack.c.bf16 %v4798, %v4796
    %v4818 = vpack.c.bf16 %v4801, %v4799
    %v4819 = vpack.c.bf16 %v4802, %v4800
    %v4820 = vld [vmem:[%s9] sm:$0x7]
    %4822 = vset.pattern.permute.xlu0 0
    %4823 = vperm.xlu0 %4822, %v4820
    %v4824 = vpop.permute.xlu0 %4823
    %4826 = vmatprep.subr.bf16.mxu0 %v4805
    %4827 = vmatpush1.bf16.msra.mxu0 %v4804
    %4828 = vmatprep.subr.bf16.mxu0 %v4807
    %4829 = vmatpush1.bf16.msra.mxu0 %v4806
    %4830 = vmatprep.subr.bf16.mxu0 %v4809
    %4831 = vmatpush1.bf16.msra.mxu0 %v4808
    %4832 = vmatprep.subr.bf16.mxu0 %v4811
    %4833 = vmatpush1.bf16.msra.mxu0 %v4810
    %4834 = vmatprep.subr.bf16.mxu0 %v4813
    %4835 = vmatpush1.bf16.msra.mxu0 %v4812
    %4836 = vmatprep.subr.bf16.mxu0 %v4815
    %4837 = vmatpush1.bf16.msra.mxu0 %v4814
    %4838 = vmatprep.subr.bf16.mxu0 %v4817
    %4839 = vmatpush1.bf16.msra.mxu0 %v4816
    %4840 = vmatprep.subr.bf16.mxu0 %v4819
    %4841 = vmatpush1.bf16.msra.mxu0 %v4818
    %4842 = vmatprep.subr.bf16.mxu0 0
    %4843 = vmatpush1.bf16.msra.mxu0 0
    %4844 = vmatprep.subr.bf16.mxu0 0
    %4845 = vmatpush1.bf16.msra.mxu0 0
    %4846 = vmatprep.subr.bf16.mxu0 0
    %4847 = vmatpush1.bf16.msra.mxu0 0
    %4848 = vmatprep.subr.bf16.mxu0 0
    %4849 = vmatpush1.bf16.msra.mxu0 0
    %4850 = vmatprep.subr.bf16.mxu0 0
    %4851 = vmatpush1.bf16.msra.mxu0 0
    %4852 = vmatprep.subr.bf16.mxu0 0
    %4853 = vmatpush1.bf16.msra.mxu0 0
    %4854 = vmatprep.subr.bf16.mxu0 0
    %4855 = vmatpush1.bf16.msra.mxu0 0
    %4856 = vmatprep.subr.bf16.mxu0 0
    %4857 = vmatpush1.bf16.msra.mxu0 0
    %4858 = vmatprep.mubr.bf16.mxu0 0
    %4859 = vmatmul.mubr.bf16.gmra.mrb[0].mxu0 %v4803
    %v4860 = vpop.f32.mrb[0].mxu0
    %v4861 = vadd.f32 %v4824, %v4860
    %v4862 = vpop.f32.mrb[0].mxu0
    %v4863 = vadd.f32 %v4824, %v4862
    %v4864 = vpop.f32.mrb[0].mxu0
    %v4865 = vpop.f32.mrb[0].mxu0
    %4866 = vdwg.mxu0
    %v4869 = vcombine.low %v4861, %v4863
    %4871 = vst [vmem:[%s10] sm:$0x77] %v4869
    %v4872 = vld [vmem:[#allocation2 + $0x40] sm:$0xff]
    %v4873 = vld [vmem:[#allocation2 + $0x48] sm:$0xff]
    %v4874 = vld [vmem:[#allocation2 + $0x50] sm:$0xff]
    %v4875 = vld [vmem:[#allocation2 + $0x58] sm:$0xff]
    %v4876 = vld [vmem:[#allocation2 + $0x60] sm:$0xff]
    %v4877 = vld [vmem:[#allocation2 + $0x68] sm:$0xff]
    %v4878 = vld [vmem:[#allocation2 + $0x70] sm:$0xff]
    %v4879 = vld [vmem:[#allocation2 + $0x78] sm:$0xff]
    %v4880 = vpack.c.bf16 %v4874, %v4872
    %v4881 = vpack.c.bf16 %v4875, %v4873
    %v4882 = vpack.c.bf16 %v4878, %v4876
    %v4883 = vpack.c.bf16 %v4879, %v4877
    %v4884 = vld [vmem:[%s6] sm:$0xf]
    %v4885 = vld [vmem:[%s6 + $0x4] sm:$0xf]
    %v4886 = vld [vmem:[%s6 + $0x8] sm:$0xf]
    %v4887 = vld [vmem:[%s6 + $0xc] sm:$0xf]
    %v4888 = vld [vmem:[%s6 + $0x10] sm:$0xf]
    %v4889 = vld [vmem:[%s6 + $0x14] sm:$0xf]
    %v4890 = vld [vmem:[%s6 + $0x18] sm:$0xf]
    %v4891 = vld [vmem:[%s6 + $0x1c] sm:$0xf]
    %v4892 = vld [vmem:[%s6 + $0x20] sm:$0xf]
    %v4893 = vld [vmem:[%s6 + $0x24] sm:$0xf]
    %v4894 = vld [vmem:[%s6 + $0x28] sm:$0xf]
    %v4895 = vld [vmem:[%s6 + $0x2c] sm:$0xf]
    %v4896 = vld [vmem:[%s6 + $0x30] sm:$0xf]
    %v4897 = vld [vmem:[%s6 + $0x34] sm:$0xf]
    %v4898 = vld [vmem:[%s6 + $0x38] sm:$0xf]
    %v4899 = vld [vmem:[%s6 + $0x3c] sm:$0xf]
    %v4900 = vld [vmem:[%s7] sm:$0xff]
    %v4901 = vld [vmem:[%s7 + $0x8] sm:$0xff]
    %v4902 = vld [vmem:[%s7 + $0x10] sm:$0xff]
    %v4903 = vld [vmem:[%s7 + $0x18] sm:$0xff]
    %v4904 = vld [vmem:[%s7 + $0x20] sm:$0xff]
    %v4905 = vld [vmem:[%s7 + $0x28] sm:$0xff]
    %v4906 = vld [vmem:[%s7 + $0x30] sm:$0xff]
    %v4907 = vld [vmem:[%s7 + $0x38] sm:$0xff]
    %v4908 = vld [vmem:[%s7 + $0x40] sm:$0xff]
    %v4909 = vld [vmem:[%s7 + $0x48] sm:$0xff]
    %v4910 = vld [vmem:[%s7 + $0x50] sm:$0xff]
    %v4911 = vld [vmem:[%s7 + $0x58] sm:$0xff]
    %v4912 = vld [vmem:[%s7 + $0x60] sm:$0xff]
    %v4913 = vld [vmem:[%s7 + $0x68] sm:$0xff]
    %v4914 = vld [vmem:[%s7 + $0x70] sm:$0xff]
    %v4915 = vld [vmem:[%s7 + $0x78] sm:$0xff]
    %4917 = vset.pattern.permute.xlu0 0
    %4918 = vperm.xlu0 %4917, %v4900
    %v4919 = vpop.permute.xlu0 %4918
    %4922 = vset.pattern.permute.xlu0 0
    %4923 = vperm.xlu0 %4922, %v4901
    %v4924 = vpop.permute.xlu0 %4923
    %4927 = vset.pattern.permute.xlu0 0
    %4928 = vperm.xlu0 %4927, %v4902
    %v4929 = vpop.permute.xlu0 %4928
    %4932 = vset.pattern.permute.xlu0 0
    %4933 = vperm.xlu0 %4932, %v4903
    %v4934 = vpop.permute.xlu0 %4933
    %4937 = vset.pattern.permute.xlu0 0
    %4938 = vperm.xlu0 %4937, %v4904
    %v4939 = vpop.permute.xlu0 %4938
    %4942 = vset.pattern.permute.xlu0 0
    %4943 = vperm.xlu0 %4942, %v4905
    %v4944 = vpop.permute.xlu0 %4943
    %4947 = vset.pattern.permute.xlu0 0
    %4948 = vperm.xlu0 %4947, %v4906
    %v4949 = vpop.permute.xlu0 %4948
    %4952 = vset.pattern.permute.xlu0 0
    %4953 = vperm.xlu0 %4952, %v4907
    %v4954 = vpop.permute.xlu0 %4953
    %4957 = vset.pattern.permute.xlu0 0
    %4958 = vperm.xlu0 %4957, %v4908
    %v4959 = vpop.permute.xlu0 %4958
    %4962 = vset.pattern.permute.xlu0 0
    %4963 = vperm.xlu0 %4962, %v4909
    %v4964 = vpop.permute.xlu0 %4963
    %4967 = vset.pattern.permute.xlu0 0
    %4968 = vperm.xlu0 %4967, %v4910
    %v4969 = vpop.permute.xlu0 %4968
    %4972 = vset.pattern.permute.xlu0 0
    %4973 = vperm.xlu0 %4972, %v4911
    %v4974 = vpop.permute.xlu0 %4973
    %4977 = vset.pattern.permute.xlu0 0
    %4978 = vperm.xlu0 %4977, %v4912
    %v4979 = vpop.permute.xlu0 %4978
    %4982 = vset.pattern.permute.xlu0 0
    %4983 = vperm.xlu0 %4982, %v4913
    %v4984 = vpop.permute.xlu0 %4983
    %4987 = vset.pattern.permute.xlu0 0
    %4988 = vperm.xlu0 %4987, %v4914
    %v4989 = vpop.permute.xlu0 %4988
    %4992 = vset.pattern.permute.xlu0 0
    %4993 = vperm.xlu0 %4992, %v4915
    %v4994 = vpop.permute.xlu0 %4993
    %v5012 = vunpack.c.l.b16 %v4884
    %v5013 = vunpack.c.l.b16 %v4885
    %v5014 = vunpack.c.l.b16 %v4886
    %v5015 = vunpack.c.l.b16 %v4887
    %v5016 = vunpack.c.l.b16 %v4888
    %v5017 = vunpack.c.l.b16 %v4889
    %v5018 = vunpack.c.l.b16 %v4890
    %v5019 = vunpack.c.l.b16 %v4891
    %v5020 = vunpack.c.l.b16 %v4892
    %v5021 = vunpack.c.l.b16 %v4893
    %v5022 = vunpack.c.l.b16 %v4894
    %v5023 = vunpack.c.l.b16 %v4895
    %v5024 = vunpack.c.l.b16 %v4896
    %v5025 = vunpack.c.l.b16 %v4897
    %v5026 = vunpack.c.l.b16 %v4898
    %v5027 = vunpack.c.l.b16 %v4899
    %v5028 = vpack.c.b16 %v5013, %v5012
    %v5029 = vpack.c.b16 %v5015, %v5014
    %v5030 = vpack.c.b16 %v5017, %v5016
    %v5031 = vpack.c.b16 %v5019, %v5018
    %v5032 = vpack.c.b16 %v5021, %v5020
    %v5033 = vpack.c.b16 %v5023, %v5022
    %v5034 = vpack.c.b16 %v5025, %v5024
    %v5035 = vpack.c.b16 %v5027, %v5026
    %v5037 = vsel %vm3833, %v5028, 0
    %v5040 = vsel %vm3833, %v5029, 0
    %v5043 = vsel %vm3833, %v5030, 0
    %v5046 = vsel %vm3833, %v5031, 0
    %v5049 = vsel %vm3833, %v5032, 0
    %v5052 = vsel %vm3833, %v5033, 0
    %v5055 = vsel %vm3833, %v5034, 0
    %v5058 = vsel %vm3833, %v5035, 0
    %5060 = vmatprep.subr.bf16.mxu0 %v4881
    %5061 = vmatpush1.bf16.msra.mxu0 %v4880
    %5062 = vmatprep.subr.bf16.mxu0 %v4883
    %5063 = vmatpush1.bf16.msra.mxu0 %v4882
    %5064 = vmatprep.subr.bf16.mxu0 0
    %5065 = vmatpush1.bf16.msra.mxu0 0
    %5066 = vmatprep.subr.bf16.mxu0 0
    %5067 = vmatpush1.bf16.msra.mxu0 0
    %5068 = vmatprep.subr.bf16.mxu0 0
    %5069 = vmatpush1.bf16.msra.mxu0 0
    %5070 = vmatprep.subr.bf16.mxu0 0
    %5071 = vmatpush1.bf16.msra.mxu0 0
    %5072 = vmatprep.subr.bf16.mxu0 0
    %5073 = vmatpush1.bf16.msra.mxu0 0
    %5074 = vmatprep.subr.bf16.mxu0 0
    %5075 = vmatpush1.bf16.msra.mxu0 0
    %5076 = vmatprep.subr.bf16.mxu0 0
    %5077 = vmatpush1.bf16.msra.mxu0 0
    %5078 = vmatprep.subr.bf16.mxu0 0
    %5079 = vmatpush1.bf16.msra.mxu0 0
    %5080 = vmatprep.subr.bf16.mxu0 0
    %5081 = vmatpush1.bf16.msra.mxu0 0
    %5082 = vmatprep.subr.bf16.mxu0 0
    %5083 = vmatpush1.bf16.msra.mxu0 0
    %5084 = vmatprep.subr.bf16.mxu0 0
    %5085 = vmatpush1.bf16.msra.mxu0 0
    %5086 = vmatprep.subr.bf16.mxu0 0
    %5087 = vmatpush1.bf16.msra.mxu0 0
    %5088 = vmatprep.subr.bf16.mxu0 0
    %5089 = vmatpush1.bf16.msra.mxu0 0
    %5090 = vmatprep.subr.bf16.mxu0 0
    %5091 = vmatpush1.bf16.msra.mxu0 0
    %5092 = vmatprep.mubr.bf16.mxu0 0
    %5093 = vmatmul.mubr.bf16.gmra.mrb[0].mxu0 %v5037
    %v5094 = vpop.f32.mrb[0].mxu0
    %v5095 = vadd.f32 %v4919, %v5094
    %v5096 = vpop.f32.mrb[0].mxu0
    %v5097 = vadd.f32 %v4919, %v5096
    %v5098 = vpop.f32.mrb[0].mxu0
    %v5099 = vadd.f32 %v4924, %v5098
    %v5100 = vpop.f32.mrb[0].mxu0
    %v5101 = vadd.f32 %v4924, %v5100
    %5102 = vmatprep.mubr.bf16.mxu0 0
    %5103 = vmatmul.mubr.bf16.gmra.mrb[0].mxu0 %v5040
    %v5104 = vpop.f32.mrb[0].mxu0
    %v5105 = vadd.f32 %v4929, %v5104
    %v5106 = vpop.f32.mrb[0].mxu0
    %v5107 = vadd.f32 %v4929, %v5106
    %v5108 = vpop.f32.mrb[0].mxu0
    %v5109 = vadd.f32 %v4934, %v5108
    %v5110 = vpop.f32.mrb[0].mxu0
    %v5111 = vadd.f32 %v4934, %v5110
    %5112 = vmatprep.mubr.bf16.mxu0 0
    %5113 = vmatmul.mubr.bf16.gmra.mrb[0].mxu0 %v5043
    %v5114 = vpop.f32.mrb[0].mxu0
    %v5115 = vadd.f32 %v4939, %v5114
    %v5116 = vpop.f32.mrb[0].mxu0
    %v5117 = vadd.f32 %v4939, %v5116
    %v5118 = vpop.f32.mrb[0].mxu0
    %v5119 = vadd.f32 %v4944, %v5118
    %v5120 = vpop.f32.mrb[0].mxu0
    %v5121 = vadd.f32 %v4944, %v5120
    %5122 = vmatprep.mubr.bf16.mxu0 0
    %5123 = vmatmul.mubr.bf16.gmra.mrb[0].mxu0 %v5046
    %v5124 = vpop.f32.mrb[0].mxu0
    %v5125 = vadd.f32 %v4949, %v5124
    %v5126 = vpop.f32.mrb[0].mxu0
    %v5127 = vadd.f32 %v4949, %v5126
    %v5128 = vpop.f32.mrb[0].mxu0
    %v5129 = vadd.f32 %v4954, %v5128
    %v5130 = vpop.f32.mrb[0].mxu0
    %v5131 = vadd.f32 %v4954, %v5130
    %5132 = vmatprep.mubr.bf16.mxu0 0
    %5133 = vmatmul.mubr.bf16.gmra.mrb[0].mxu0 %v5049
    %v5134 = vpop.f32.mrb[0].mxu0
    %v5135 = vadd.f32 %v4959, %v5134
    %v5136 = vpop.f32.mrb[0].mxu0
    %v5137 = vadd.f32 %v4959, %v5136
    %v5138 = vpop.f32.mrb[0].mxu0
    %v5139 = vadd.f32 %v4964, %v5138
    %v5140 = vpop.f32.mrb[0].mxu0
    %v5141 = vadd.f32 %v4964, %v5140
    %5142 = vmatprep.mubr.bf16.mxu0 0
    %5143 = vmatmul.mubr.bf16.gmra.mrb[0].mxu0 %v5052
    %v5144 = vpop.f32.mrb[0].mxu0
    %v5145 = vadd.f32 %v4969, %v5144
    %v5146 = vpop.f32.mrb[0].mxu0
    %v5147 = vadd.f32 %v4969, %v5146
    %v5148 = vpop.f32.mrb[0].mxu0
    %v5149 = vadd.f32 %v4974, %v5148
    %v5150 = vpop.f32.mrb[0].mxu0
    %v5151 = vadd.f32 %v4974, %v5150
    %5152 = vmatprep.mubr.bf16.mxu0 0
    %5153 = vmatmul.mubr.bf16.gmra.mrb[0].mxu0 %v5055
    %v5154 = vpop.f32.mrb[0].mxu0
    %v5155 = vadd.f32 %v4979, %v5154
    %v5156 = vpop.f32.mrb[0].mxu0
    %v5157 = vadd.f32 %v4979, %v5156
    %v5158 = vpop.f32.mrb[0].mxu0
    %v5159 = vadd.f32 %v4984, %v5158
    %v5160 = vpop.f32.mrb[0].mxu0
    %v5161 = vadd.f32 %v4984, %v5160
    %5162 = vmatprep.mubr.bf16.mxu0 0
    %5163 = vmatmul.mubr.bf16.gmra.mrb[0].mxu0 %v5058
    %v5164 = vpop.f32.mrb[0].mxu0
    %v5165 = vadd.f32 %v4989, %v5164
    %v5166 = vpop.f32.mrb[0].mxu0
    %v5167 = vadd.f32 %v4989, %v5166
    %v5168 = vpop.f32.mrb[0].mxu0
    %v5169 = vadd.f32 %v4994, %v5168
    %v5170 = vpop.f32.mrb[0].mxu0
    %v5171 = vadd.f32 %v4994, %v5170
    %5172 = vdwg.mxu0
    %v5173 = vmul.f32 %v5095, 0.5
    %v5174 = vmul.f32 %v5097, 0.5
    %v5175 = vmul.f32 %v5099, 0.5
    %v5176 = vmul.f32 %v5101, 0.5
    %v5177 = vmul.f32 %v5105, 0.5
    %v5178 = vmul.f32 %v5107, 0.5
    %v5179 = vmul.f32 %v5109, 0.5
    %v5180 = vmul.f32 %v5111, 0.5
    %v5181 = vmul.f32 %v5115, 0.5
    %v5182 = vmul.f32 %v5117, 0.5
    %v5183 = vmul.f32 %v5119, 0.5
    %v5184 = vmul.f32 %v5121, 0.5
    %v5185 = vmul.f32 %v5125, 0.5
    %v5186 = vmul.f32 %v5127, 0.5
    %v5187 = vmul.f32 %v5129, 0.5
    %v5188 = vmul.f32 %v5131, 0.5
    %v5189 = vmul.f32 %v5135, 0.5
    %v5190 = vmul.f32 %v5137, 0.5
    %v5191 = vmul.f32 %v5139, 0.5
    %v5192 = vmul.f32 %v5141, 0.5
    %v5193 = vmul.f32 %v5145, 0.5
    %v5194 = vmul.f32 %v5147, 0.5
    %v5195 = vmul.f32 %v5149, 0.5
    %v5196 = vmul.f32 %v5151, 0.5
    %v5197 = vmul.f32 %v5155, 0.5
    %v5198 = vmul.f32 %v5157, 0.5
    %v5199 = vmul.f32 %v5159, 0.5
    %v5200 = vmul.f32 %v5161, 0.5
    %v5201 = vmul.f32 %v5165, 0.5
    %v5202 = vmul.f32 %v5167, 0.5
    %v5203 = vmul.f32 %v5169, 0.5
    %v5204 = vmul.f32 %v5171, 0.5
    %v5205 = vmul.f32 %v5095, 0.70710677
    %v5206 = vmul.f32 %v5097, 0.70710677
    %v5207 = vmul.f32 %v5099, 0.70710677
    %v5208 = vmul.f32 %v5101, 0.70710677
    %v5209 = vmul.f32 %v5105, 0.70710677
    %v5210 = vmul.f32 %v5107, 0.70710677
    %v5211 = vmul.f32 %v5109, 0.70710677
    %v5212 = vmul.f32 %v5111, 0.70710677
    %v5213 = vmul.f32 %v5115, 0.70710677
    %v5214 = vmul.f32 %v5117, 0.70710677
    %v5215 = vmul.f32 %v5119, 0.70710677
    %v5216 = vmul.f32 %v5121, 0.70710677
    %v5217 = vmul.f32 %v5125, 0.70710677
    %v5218 = vmul.f32 %v5127, 0.70710677
    %v5219 = vmul.f32 %v5129, 0.70710677
    %v5220 = vmul.f32 %v5131, 0.70710677
    %v5221 = vmul.f32 %v5135, 0.70710677
    %v5222 = vmul.f32 %v5137, 0.70710677
    %v5223 = vmul.f32 %v5139, 0.70710677
    %v5224 = vmul.f32 %v5141, 0.70710677
    %v5225 = vmul.f32 %v5145, 0.70710677
    %v5226 = vmul.f32 %v5147, 0.70710677
    %v5227 = vmul.f32 %v5149, 0.70710677
    %v5228 = vmul.f32 %v5151, 0.70710677
    %v5229 = vmul.f32 %v5155, 0.70710677
    %v5230 = vmul.f32 %v5157, 0.70710677
    %v5231 = vmul.f32 %v5159, 0.70710677
    %v5232 = vmul.f32 %v5161, 0.70710677
    %v5233 = vmul.f32 %v5165, 0.70710677
    %v5234 = vmul.f32 %v5167, 0.70710677
    %v5235 = vmul.f32 %v5169, 0.70710677
    %v5236 = vmul.f32 %v5171, 0.70710677
    %vm5237 = vcmp.ge.f32.partialorder %v5205, 0.0
    %vm5238 = vcmp.ge.f32.partialorder %v5206, 0.0
    %vm5239 = vcmp.ge.f32.partialorder %v5207, 0.0
    %vm5240 = vcmp.ge.f32.partialorder %v5208, 0.0
    %vm5241 = vcmp.ge.f32.partialorder %v5209, 0.0
    %vm5242 = vcmp.ge.f32.partialorder %v5210, 0.0
    %vm5243 = vcmp.ge.f32.partialorder %v5211, 0.0
    %vm5244 = vcmp.ge.f32.partialorder %v5212, 0.0
    %vm5245 = vcmp.ge.f32.partialorder %v5213, 0.0
    %vm5246 = vcmp.ge.f32.partialorder %v5214, 0.0
    %vm5247 = vcmp.ge.f32.partialorder %v5215, 0.0
    %vm5248 = vcmp.ge.f32.partialorder %v5216, 0.0
    %vm5249 = vcmp.ge.f32.partialorder %v5217, 0.0
    %vm5250 = vcmp.ge.f32.partialorder %v5218, 0.0
    %vm5251 = vcmp.ge.f32.partialorder %v5219, 0.0
    %vm5252 = vcmp.ge.f32.partialorder %v5220, 0.0
    %vm5253 = vcmp.ge.f32.partialorder %v5221, 0.0
    %vm5254 = vcmp.ge.f32.partialorder %v5222, 0.0
    %vm5255 = vcmp.ge.f32.partialorder %v5223, 0.0
    %vm5256 = vcmp.ge.f32.partialorder %v5224, 0.0
    %vm5257 = vcmp.ge.f32.partialorder %v5225, 0.0
    %vm5258 = vcmp.ge.f32.partialorder %v5226, 0.0
    %vm5259 = vcmp.ge.f32.partialorder %v5227, 0.0
    %vm5260 = vcmp.ge.f32.partialorder %v5228, 0.0
    %vm5261 = vcmp.ge.f32.partialorder %v5229, 0.0
    %vm5262 = vcmp.ge.f32.partialorder %v5230, 0.0
    %vm5263 = vcmp.ge.f32.partialorder %v5231, 0.0
    %vm5264 = vcmp.ge.f32.partialorder %v5232, 0.0
    %vm5265 = vcmp.ge.f32.partialorder %v5233, 0.0
    %vm5266 = vcmp.ge.f32.partialorder %v5234, 0.0
    %vm5267 = vcmp.ge.f32.partialorder %v5235, 0.0
    %vm5268 = vcmp.ge.f32.partialorder %v5236, 0.0
    %v5269 = vsel %vm5237, 1.0, -1.0
    %v5270 = vsel %vm5238, 1.0, -1.0
    %v5271 = vsel %vm5239, 1.0, -1.0
    %v5272 = vsel %vm5240, 1.0, -1.0
    %v5273 = vsel %vm5241, 1.0, -1.0
    %v5274 = vsel %vm5242, 1.0, -1.0
    %v5275 = vsel %vm5243, 1.0, -1.0
    %v5276 = vsel %vm5244, 1.0, -1.0
    %v5277 = vsel %vm5245, 1.0, -1.0
    %v5278 = vsel %vm5246, 1.0, -1.0
    %v5279 = vsel %vm5247, 1.0, -1.0
    %v5280 = vsel %vm5248, 1.0, -1.0
    %v5281 = vsel %vm5249, 1.0, -1.0
    %v5282 = vsel %vm5250, 1.0, -1.0
    %v5283 = vsel %vm5251, 1.0, -1.0
    %v5284 = vsel %vm5252, 1.0, -1.0
    %v5285 = vsel %vm5253, 1.0, -1.0
    %v5286 = vsel %vm5254, 1.0, -1.0
    %v5287 = vsel %vm5255, 1.0, -1.0
    %v5288 = vsel %vm5256, 1.0, -1.0
    %v5289 = vsel %vm5257, 1.0, -1.0
    %v5290 = vsel %vm5258, 1.0, -1.0
    %v5291 = vsel %vm5259, 1.0, -1.0
    %v5292 = vsel %vm5260, 1.0, -1.0
    %v5293 = vsel %vm5261, 1.0, -1.0
    %v5294 = vsel %vm5262, 1.0, -1.0
    %v5295 = vsel %vm5263, 1.0, -1.0
    %v5296 = vsel %vm5264, 1.0, -1.0
    %v5297 = vsel %vm5265, 1.0, -1.0
    %v5298 = vsel %vm5266, 1.0, -1.0
    %v5299 = vsel %vm5267, 1.0, -1.0
    %v5300 = vsel %vm5268, 1.0, -1.0
    %v5301 = vand.u32 2147483647, %v5205
    %v5302 = vand.u32 2147483647, %v5206
    %v5303 = vand.u32 2147483647, %v5207
    %v5304 = vand.u32 2147483647, %v5208
    %v5305 = vand.u32 2147483647, %v5209
    %v5306 = vand.u32 2147483647, %v5210
    %v5307 = vand.u32 2147483647, %v5211
    %v5308 = vand.u32 2147483647, %v5212
    %v5309 = vand.u32 2147483647, %v5213
    %v5310 = vand.u32 2147483647, %v5214
    %v5311 = vand.u32 2147483647, %v5215
    %v5312 = vand.u32 2147483647, %v5216
    %v5313 = vand.u32 2147483647, %v5217
    %v5314 = vand.u32 2147483647, %v5218
    %v5315 = vand.u32 2147483647, %v5219
    %v5316 = vand.u32 2147483647, %v5220
    %v5317 = vand.u32 2147483647, %v5221
    %v5318 = vand.u32 2147483647, %v5222
    %v5319 = vand.u32 2147483647, %v5223
    %v5320 = vand.u32 2147483647, %v5224
    %v5321 = vand.u32 2147483647, %v5225
    %v5322 = vand.u32 2147483647, %v5226
    %v5323 = vand.u32 2147483647, %v5227
    %v5324 = vand.u32 2147483647, %v5228
    %v5325 = vand.u32 2147483647, %v5229
    %v5326 = vand.u32 2147483647, %v5230
    %v5327 = vand.u32 2147483647, %v5231
    %v5328 = vand.u32 2147483647, %v5232
    %v5329 = vand.u32 2147483647, %v5233
    %v5330 = vand.u32 2147483647, %v5234
    %v5331 = vand.u32 2147483647, %v5235
    %v5332 = vand.u32 2147483647, %v5236
    %v5333 = vmul.f32 %v5301, 0.3275911
    %v5334 = vmul.f32 %v5302, 0.3275911
    %v5335 = vmul.f32 %v5303, 0.3275911
    %v5336 = vmul.f32 %v5304, 0.3275911
    %v5337 = vmul.f32 %v5305, 0.3275911
    %v5338 = vmul.f32 %v5306, 0.3275911
    %v5339 = vmul.f32 %v5307, 0.3275911
    %v5340 = vmul.f32 %v5308, 0.3275911
    %v5341 = vmul.f32 %v5309, 0.3275911
    %v5342 = vmul.f32 %v5310, 0.3275911
    %v5343 = vmul.f32 %v5311, 0.3275911
    %v5344 = vmul.f32 %v5312, 0.3275911
    %v5345 = vmul.f32 %v5313, 0.3275911
    %v5346 = vmul.f32 %v5314, 0.3275911
    %v5347 = vmul.f32 %v5315, 0.3275911
    %v5348 = vmul.f32 %v5316, 0.3275911
    %v5349 = vmul.f32 %v5317, 0.3275911
    %v5350 = vmul.f32 %v5318, 0.3275911
    %v5351 = vmul.f32 %v5319, 0.3275911
    %v5352 = vmul.f32 %v5320, 0.3275911
    %v5353 = vmul.f32 %v5321, 0.3275911
    %v5354 = vmul.f32 %v5322, 0.3275911
    %v5355 = vmul.f32 %v5323, 0.3275911
    %v5356 = vmul.f32 %v5324, 0.3275911
    %v5357 = vmul.f32 %v5325, 0.3275911
    %v5358 = vmul.f32 %v5326, 0.3275911
    %v5359 = vmul.f32 %v5327, 0.3275911
    %v5360 = vmul.f32 %v5328, 0.3275911
    %v5361 = vmul.f32 %v5329, 0.3275911
    %v5362 = vmul.f32 %v5330, 0.3275911
    %v5363 = vmul.f32 %v5331, 0.3275911
    %v5364 = vmul.f32 %v5332, 0.3275911
    %v5365 = vadd.f32 %v5333, 1.0
    %v5366 = vadd.f32 %v5334, 1.0
    %v5367 = vadd.f32 %v5335, 1.0
    %v5368 = vadd.f32 %v5336, 1.0
    %v5369 = vadd.f32 %v5337, 1.0
    %v5370 = vadd.f32 %v5338, 1.0
    %v5371 = vadd.f32 %v5339, 1.0
    %v5372 = vadd.f32 %v5340, 1.0
    %v5373 = vadd.f32 %v5341, 1.0
    %v5374 = vadd.f32 %v5342, 1.0
    %v5375 = vadd.f32 %v5343, 1.0
    %v5376 = vadd.f32 %v5344, 1.0
    %v5377 = vadd.f32 %v5345, 1.0
    %v5378 = vadd.f32 %v5346, 1.0
    %v5379 = vadd.f32 %v5347, 1.0
    %v5380 = vadd.f32 %v5348, 1.0
    %v5381 = vadd.f32 %v5349, 1.0
    %v5382 = vadd.f32 %v5350, 1.0
    %v5383 = vadd.f32 %v5351, 1.0
    %v5384 = vadd.f32 %v5352, 1.0
    %v5385 = vadd.f32 %v5353, 1.0
    %v5386 = vadd.f32 %v5354, 1.0
    %v5387 = vadd.f32 %v5355, 1.0
    %v5388 = vadd.f32 %v5356, 1.0
    %v5389 = vadd.f32 %v5357, 1.0
    %v5390 = vadd.f32 %v5358, 1.0
    %v5391 = vadd.f32 %v5359, 1.0
    %v5392 = vadd.f32 %v5360, 1.0
    %v5393 = vadd.f32 %v5361, 1.0
    %v5394 = vadd.f32 %v5362, 1.0
    %v5395 = vadd.f32 %v5363, 1.0
    %v5396 = vadd.f32 %v5364, 1.0
    %v5397 = vrcp.pop %v5365
    %v5398 = vrcp.pop %v5366
    %v5399 = vrcp.pop %v5367
    %v5400 = vrcp.pop %v5368
    %v5401 = vrcp.pop %v5369
    %v5402 = vrcp.pop %v5370
    %v5403 = vrcp.pop %v5371
    %v5404 = vrcp.pop %v5372
    %v5405 = vrcp.pop %v5373
    %v5406 = vrcp.pop %v5374
    %v5407 = vrcp.pop %v5375
    %v5408 = vrcp.pop %v5376
    %v5409 = vrcp.pop %v5377
    %v5410 = vrcp.pop %v5378
    %v5411 = vrcp.pop %v5379
    %v5412 = vrcp.pop %v5380
    %v5413 = vrcp.pop %v5381
    %v5414 = vrcp.pop %v5382
    %v5415 = vrcp.pop %v5383
    %v5416 = vrcp.pop %v5384
    %v5417 = vrcp.pop %v5385
    %v5418 = vrcp.pop %v5386
    %v5419 = vrcp.pop %v5387
    %v5420 = vrcp.pop %v5388
    %v5421 = vrcp.pop %v5389
    %v5422 = vrcp.pop %v5390
    %v5423 = vrcp.pop %v5391
    %v5424 = vrcp.pop %v5392
    %v5425 = vrcp.pop %v5393
    %v5426 = vrcp.pop %v5394
    %v5427 = vrcp.pop %v5395
    %v5428 = vrcp.pop %v5396
    %v5429 = vmul.f32 %v5397, 1.0614054
    %v5430 = vmul.f32 %v5398, 1.0614054
    %v5431 = vmul.f32 %v5399, 1.0614054
    %v5432 = vmul.f32 %v5400, 1.0614054
    %v5433 = vmul.f32 %v5401, 1.0614054
    %v5434 = vmul.f32 %v5402, 1.0614054
    %v5435 = vmul.f32 %v5403, 1.0614054
    %v5436 = vmul.f32 %v5404, 1.0614054
    %v5437 = vmul.f32 %v5405, 1.0614054
    %v5438 = vmul.f32 %v5406, 1.0614054
    %v5439 = vmul.f32 %v5407, 1.0614054
    %v5440 = vmul.f32 %v5408, 1.0614054
    %v5441 = vmul.f32 %v5409, 1.0614054
    %v5442 = vmul.f32 %v5410, 1.0614054
    %v5443 = vmul.f32 %v5411, 1.0614054
    %v5444 = vmul.f32 %v5412, 1.0614054
    %v5445 = vmul.f32 %v5413, 1.0614054
    %v5446 = vmul.f32 %v5414, 1.0614054
    %v5447 = vmul.f32 %v5415, 1.0614054
    %v5448 = vmul.f32 %v5416, 1.0614054
    %v5449 = vmul.f32 %v5417, 1.0614054
    %v5450 = vmul.f32 %v5418, 1.0614054
    %v5451 = vmul.f32 %v5419, 1.0614054
    %v5452 = vmul.f32 %v5420, 1.0614054
    %v5453 = vmul.f32 %v5421, 1.0614054
    %v5454 = vmul.f32 %v5422, 1.0614054
    %v5455 = vmul.f32 %v5423, 1.0614054
    %v5456 = vmul.f32 %v5424, 1.0614054
    %v5457 = vmul.f32 %v5425, 1.0614054
    %v5458 = vmul.f32 %v5426, 1.0614054
    %v5459 = vmul.f32 %v5427, 1.0614054
    %v5460 = vmul.f32 %v5428, 1.0614054
    %v5461 = vadd.f32 %v5429, -1.4531521
    %v5462 = vadd.f32 %v5430, -1.4531521
    %v5463 = vadd.f32 %v5431, -1.4531521
    %v5464 = vadd.f32 %v5432, -1.4531521
    %v5465 = vadd.f32 %v5433, -1.4531521
    %v5466 = vadd.f32 %v5434, -1.4531521
    %v5467 = vadd.f32 %v5435, -1.4531521
    %v5468 = vadd.f32 %v5436, -1.4531521
    %v5469 = vadd.f32 %v5437, -1.4531521
    %v5470 = vadd.f32 %v5438, -1.4531521
    %v5471 = vadd.f32 %v5439, -1.4531521
    %v5472 = vadd.f32 %v5440, -1.4531521
    %v5473 = vadd.f32 %v5441, -1.4531521
    %v5474 = vadd.f32 %v5442, -1.4531521
    %v5475 = vadd.f32 %v5443, -1.4531521
    %v5476 = vadd.f32 %v5444, -1.4531521
    %v5477 = vadd.f32 %v5445, -1.4531521
    %v5478 = vadd.f32 %v5446, -1.4531521
    %v5479 = vadd.f32 %v5447, -1.4531521
    %v5480 = vadd.f32 %v5448, -1.4531521
    %v5481 = vadd.f32 %v5449, -1.4531521
    %v5482 = vadd.f32 %v5450, -1.4531521
    %v5483 = vadd.f32 %v5451, -1.4531521
    %v5484 = vadd.f32 %v5452, -1.4531521
    %v5485 = vadd.f32 %v5453, -1.4531521
    %v5486 = vadd.f32 %v5454, -1.4531521
    %v5487 = vadd.f32 %v5455, -1.4531521
    %v5488 = vadd.f32 %v5456, -1.4531521
    %v5489 = vadd.f32 %v5457, -1.4531521
    %v5490 = vadd.f32 %v5458, -1.4531521
    %v5491 = vadd.f32 %v5459, -1.4531521
    %v5492 = vadd.f32 %v5460, -1.4531521
    %v5493 = vmul.f32 %v5461, %v5397
    %v5494 = vmul.f32 %v5462, %v5398
    %v5495 = vmul.f32 %v5463, %v5399
    %v5496 = vmul.f32 %v5464, %v5400
    %v5497 = vmul.f32 %v5465, %v5401
    %v5498 = vmul.f32 %v5466, %v5402
    %v5499 = vmul.f32 %v5467, %v5403
    %v5500 = vmul.f32 %v5468, %v5404
    %v5501 = vmul.f32 %v5469, %v5405
    %v5502 = vmul.f32 %v5470, %v5406
    %v5503 = vmul.f32 %v5471, %v5407
    %v5504 = vmul.f32 %v5472, %v5408
    %v5505 = vmul.f32 %v5473, %v5409
    %v5506 = vmul.f32 %v5474, %v5410
    %v5507 = vmul.f32 %v5475, %v5411
    %v5508 = vmul.f32 %v5476, %v5412
    %v5509 = vmul.f32 %v5477, %v5413
    %v5510 = vmul.f32 %v5478, %v5414
    %v5511 = vmul.f32 %v5479, %v5415
    %v5512 = vmul.f32 %v5480, %v5416
    %v5513 = vmul.f32 %v5481, %v5417
    %v5514 = vmul.f32 %v5482, %v5418
    %v5515 = vmul.f32 %v5483, %v5419
    %v5516 = vmul.f32 %v5484, %v5420
    %v5517 = vmul.f32 %v5485, %v5421
    %v5518 = vmul.f32 %v5486, %v5422
    %v5519 = vmul.f32 %v5487, %v5423
    %v5520 = vmul.f32 %v5488, %v5424
    %v5521 = vmul.f32 %v5489, %v5425
    %v5522 = vmul.f32 %v5490, %v5426
    %v5523 = vmul.f32 %v5491, %v5427
    %v5524 = vmul.f32 %v5492, %v5428
    %v5525 = vadd.f32 %v5493, 1.4214138
    %v5526 = vadd.f32 %v5494, 1.4214138
    %v5527 = vadd.f32 %v5495, 1.4214138
    %v5528 = vadd.f32 %v5496, 1.4214138
    %v5529 = vadd.f32 %v5497, 1.4214138
    %v5530 = vadd.f32 %v5498, 1.4214138
    %v5531 = vadd.f32 %v5499, 1.4214138
    %v5532 = vadd.f32 %v5500, 1.4214138
    %v5533 = vadd.f32 %v5501, 1.4214138
    %v5534 = vadd.f32 %v5502, 1.4214138
    %v5535 = vadd.f32 %v5503, 1.4214138
    %v5536 = vadd.f32 %v5504, 1.4214138
    %v5537 = vadd.f32 %v5505, 1.4214138
    %v5538 = vadd.f32 %v5506, 1.4214138
    %v5539 = vadd.f32 %v5507, 1.4214138
    %v5540 = vadd.f32 %v5508, 1.4214138
    %v5541 = vadd.f32 %v5509, 1.4214138
    %v5542 = vadd.f32 %v5510, 1.4214138
    %v5543 = vadd.f32 %v5511, 1.4214138
    %v5544 = vadd.f32 %v5512, 1.4214138
    %v5545 = vadd.f32 %v5513, 1.4214138
    %v5546 = vadd.f32 %v5514, 1.4214138
    %v5547 = vadd.f32 %v5515, 1.4214138
    %v5548 = vadd.f32 %v5516, 1.4214138
    %v5549 = vadd.f32 %v5517, 1.4214138
    %v5550 = vadd.f32 %v5518, 1.4214138
    %v5551 = vadd.f32 %v5519, 1.4214138
    %v5552 = vadd.f32 %v5520, 1.4214138
    %v5553 = vadd.f32 %v5521, 1.4214138
    %v5554 = vadd.f32 %v5522, 1.4214138
    %v5555 = vadd.f32 %v5523, 1.4214138
    %v5556 = vadd.f32 %v5524, 1.4214138
    %v5557 = vmul.f32 %v5525, %v5397
    %v5558 = vmul.f32 %v5526, %v5398
    %v5559 = vmul.f32 %v5527, %v5399
    %v5560 = vmul.f32 %v5528, %v5400
    %v5561 = vmul.f32 %v5529, %v5401
    %v5562 = vmul.f32 %v5530, %v5402
    %v5563 = vmul.f32 %v5531, %v5403
    %v5564 = vmul.f32 %v5532, %v5404
    %v5565 = vmul.f32 %v5533, %v5405
    %v5566 = vmul.f32 %v5534, %v5406
    %v5567 = vmul.f32 %v5535, %v5407
    %v5568 = vmul.f32 %v5536, %v5408
    %v5569 = vmul.f32 %v5537, %v5409
    %v5570 = vmul.f32 %v5538, %v5410
    %v5571 = vmul.f32 %v5539, %v5411
    %v5572 = vmul.f32 %v5540, %v5412
    %v5573 = vmul.f32 %v5541, %v5413
    %v5574 = vmul.f32 %v5542, %v5414
    %v5575 = vmul.f32 %v5543, %v5415
    %v5576 = vmul.f32 %v5544, %v5416
    %v5577 = vmul.f32 %v5545, %v5417
    %v5578 = vmul.f32 %v5546, %v5418
    %v5579 = vmul.f32 %v5547, %v5419
    %v5580 = vmul.f32 %v5548, %v5420
    %v5581 = vmul.f32 %v5549, %v5421
    %v5582 = vmul.f32 %v5550, %v5422
    %v5583 = vmul.f32 %v5551, %v5423
    %v5584 = vmul.f32 %v5552, %v5424
    %v5585 = vmul.f32 %v5553, %v5425
    %v5586 = vmul.f32 %v5554, %v5426
    %v5587 = vmul.f32 %v5555, %v5427
    %v5588 = vmul.f32 %v5556, %v5428
    %v5589 = vadd.f32 %v5557, -0.28449672
    %v5590 = vadd.f32 %v5558, -0.28449672
    %v5591 = vadd.f32 %v5559, -0.28449672
    %v5592 = vadd.f32 %v5560, -0.28449672
    %v5593 = vadd.f32 %v5561, -0.28449672
    %v5594 = vadd.f32 %v5562, -0.28449672
    %v5595 = vadd.f32 %v5563, -0.28449672
    %v5596 = vadd.f32 %v5564, -0.28449672
    %v5597 = vadd.f32 %v5565, -0.28449672
    %v5598 = vadd.f32 %v5566, -0.28449672
    %v5599 = vadd.f32 %v5567, -0.28449672
    %v5600 = vadd.f32 %v5568, -0.28449672
    %v5601 = vadd.f32 %v5569, -0.28449672
    %v5602 = vadd.f32 %v5570, -0.28449672
    %v5603 = vadd.f32 %v5571, -0.28449672
    %v5604 = vadd.f32 %v5572, -0.28449672
    %v5605 = vadd.f32 %v5573, -0.28449672
    %v5606 = vadd.f32 %v5574, -0.28449672
    %v5607 = vadd.f32 %v5575, -0.28449672
    %v5608 = vadd.f32 %v5576, -0.28449672
    %v5609 = vadd.f32 %v5577, -0.28449672
    %v5610 = vadd.f32 %v5578, -0.28449672
    %v5611 = vadd.f32 %v5579, -0.28449672
    %v5612 = vadd.f32 %v5580, -0.28449672
    %v5613 = vadd.f32 %v5581, -0.28449672
    %v5614 = vadd.f32 %v5582, -0.28449672
    %v5615 = vadd.f32 %v5583, -0.28449672
    %v5616 = vadd.f32 %v5584, -0.28449672
    %v5617 = vadd.f32 %v5585, -0.28449672
    %v5618 = vadd.f32 %v5586, -0.28449672
    %v5619 = vadd.f32 %v5587, -0.28449672
    %v5620 = vadd.f32 %v5588, -0.28449672
    %v5621 = vmul.f32 %v5589, %v5397
    %v5622 = vmul.f32 %v5590, %v5398
    %v5623 = vmul.f32 %v5591, %v5399
    %v5624 = vmul.f32 %v5592, %v5400
    %v5625 = vmul.f32 %v5593, %v5401
    %v5626 = vmul.f32 %v5594, %v5402
    %v5627 = vmul.f32 %v5595, %v5403
    %v5628 = vmul.f32 %v5596, %v5404
    %v5629 = vmul.f32 %v5597, %v5405
    %v5630 = vmul.f32 %v5598, %v5406
    %v5631 = vmul.f32 %v5599, %v5407
    %v5632 = vmul.f32 %v5600, %v5408
    %v5633 = vmul.f32 %v5601, %v5409
    %v5634 = vmul.f32 %v5602, %v5410
    %v5635 = vmul.f32 %v5603, %v5411
    %v5636 = vmul.f32 %v5604, %v5412
    %v5637 = vmul.f32 %v5605, %v5413
    %v5638 = vmul.f32 %v5606, %v5414
    %v5639 = vmul.f32 %v5607, %v5415
    %v5640 = vmul.f32 %v5608, %v5416
    %v5641 = vmul.f32 %v5609, %v5417
    %v5642 = vmul.f32 %v5610, %v5418
    %v5643 = vmul.f32 %v5611, %v5419
    %v5644 = vmul.f32 %v5612, %v5420
    %v5645 = vmul.f32 %v5613, %v5421
    %v5646 = vmul.f32 %v5614, %v5422
    %v5647 = vmul.f32 %v5615, %v5423
    %v5648 = vmul.f32 %v5616, %v5424
    %v5649 = vmul.f32 %v5617, %v5425
    %v5650 = vmul.f32 %v5618, %v5426
    %v5651 = vmul.f32 %v5619, %v5427
    %v5652 = vmul.f32 %v5620, %v5428
    %v5653 = vadd.f32 %v5621, 0.2548296
    %v5654 = vadd.f32 %v5622, 0.2548296
    %v5655 = vadd.f32 %v5623, 0.2548296
    %v5656 = vadd.f32 %v5624, 0.2548296
    %v5657 = vadd.f32 %v5625, 0.2548296
    %v5658 = vadd.f32 %v5626, 0.2548296
    %v5659 = vadd.f32 %v5627, 0.2548296
    %v5660 = vadd.f32 %v5628, 0.2548296
    %v5661 = vadd.f32 %v5629, 0.2548296
    %v5662 = vadd.f32 %v5630, 0.2548296
    %v5663 = vadd.f32 %v5631, 0.2548296
    %v5664 = vadd.f32 %v5632, 0.2548296
    %v5665 = vadd.f32 %v5633, 0.2548296
    %v5666 = vadd.f32 %v5634, 0.2548296
    %v5667 = vadd.f32 %v5635, 0.2548296
    %v5668 = vadd.f32 %v5636, 0.2548296
    %v5669 = vadd.f32 %v5637, 0.2548296
    %v5670 = vadd.f32 %v5638, 0.2548296
    %v5671 = vadd.f32 %v5639, 0.2548296
    %v5672 = vadd.f32 %v5640, 0.2548296
    %v5673 = vadd.f32 %v5641, 0.2548296
    %v5674 = vadd.f32 %v5642, 0.2548296
    %v5675 = vadd.f32 %v5643, 0.2548296
    %v5676 = vadd.f32 %v5644, 0.2548296
    %v5677 = vadd.f32 %v5645, 0.2548296
    %v5678 = vadd.f32 %v5646, 0.2548296
    %v5679 = vadd.f32 %v5647, 0.2548296
    %v5680 = vadd.f32 %v5648, 0.2548296
    %v5681 = vadd.f32 %v5649, 0.2548296
    %v5682 = vadd.f32 %v5650, 0.2548296
    %v5683 = vadd.f32 %v5651, 0.2548296
    %v5684 = vadd.f32 %v5652, 0.2548296
    %v5685 = vmul.f32 %v5653, %v5397
    %v5686 = vmul.f32 %v5654, %v5398
    %v5687 = vmul.f32 %v5655, %v5399
    %v5688 = vmul.f32 %v5656, %v5400
    %v5689 = vmul.f32 %v5657, %v5401
    %v5690 = vmul.f32 %v5658, %v5402
    %v5691 = vmul.f32 %v5659, %v5403
    %v5692 = vmul.f32 %v5660, %v5404
    %v5693 = vmul.f32 %v5661, %v5405
    %v5694 = vmul.f32 %v5662, %v5406
    %v5695 = vmul.f32 %v5663, %v5407
    %v5696 = vmul.f32 %v5664, %v5408
    %v5697 = vmul.f32 %v5665, %v5409
    %v5698 = vmul.f32 %v5666, %v5410
    %v5699 = vmul.f32 %v5667, %v5411
    %v5700 = vmul.f32 %v5668, %v5412
    %v5701 = vmul.f32 %v5669, %v5413
    %v5702 = vmul.f32 %v5670, %v5414
    %v5703 = vmul.f32 %v5671, %v5415
    %v5704 = vmul.f32 %v5672, %v5416
    %v5705 = vmul.f32 %v5673, %v5417
    %v5706 = vmul.f32 %v5674, %v5418
    %v5707 = vmul.f32 %v5675, %v5419
    %v5708 = vmul.f32 %v5676, %v5420
    %v5709 = vmul.f32 %v5677, %v5421
    %v5710 = vmul.f32 %v5678, %v5422
    %v5711 = vmul.f32 %v5679, %v5423
    %v5712 = vmul.f32 %v5680, %v5424
    %v5713 = vmul.f32 %v5681, %v5425
    %v5714 = vmul.f32 %v5682, %v5426
    %v5715 = vmul.f32 %v5683, %v5427
    %v5716 = vmul.f32 %v5684, %v5428
    %v5717 = vsub.f32 0.0, %v5301
    %v5718 = vsub.f32 0.0, %v5302
    %v5719 = vsub.f32 0.0, %v5303
    %v5720 = vsub.f32 0.0, %v5304
    %v5721 = vsub.f32 0.0, %v5305
    %v5722 = vsub.f32 0.0, %v5306
    %v5723 = vsub.f32 0.0, %v5307
    %v5724 = vsub.f32 0.0, %v5308
    %v5725 = vsub.f32 0.0, %v5309
    %v5726 = vsub.f32 0.0, %v5310
    %v5727 = vsub.f32 0.0, %v5311
    %v5728 = vsub.f32 0.0, %v5312
    %v5729 = vsub.f32 0.0, %v5313
    %v5730 = vsub.f32 0.0, %v5314
    %v5731 = vsub.f32 0.0, %v5315
    %v5732 = vsub.f32 0.0, %v5316
    %v5733 = vsub.f32 0.0, %v5317
    %v5734 = vsub.f32 0.0, %v5318
    %v5735 = vsub.f32 0.0, %v5319
    %v5736 = vsub.f32 0.0, %v5320
    %v5737 = vsub.f32 0.0, %v5321
    %v5738 = vsub.f32 0.0, %v5322
    %v5739 = vsub.f32 0.0, %v5323
    %v5740 = vsub.f32 0.0, %v5324
    %v5741 = vsub.f32 0.0, %v5325
    %v5742 = vsub.f32 0.0, %v5326
    %v5743 = vsub.f32 0.0, %v5327
    %v5744 = vsub.f32 0.0, %v5328
    %v5745 = vsub.f32 0.0, %v5329
    %v5746 = vsub.f32 0.0, %v5330
    %v5747 = vsub.f32 0.0, %v5331
    %v5748 = vsub.f32 0.0, %v5332
    %v5749 = vmul.f32 %v5717, %v5301
    %v5750 = vmul.f32 %v5718, %v5302
    %v5751 = vmul.f32 %v5719, %v5303
    %v5752 = vmul.f32 %v5720, %v5304
    %v5753 = vmul.f32 %v5721, %v5305
    %v5754 = vmul.f32 %v5722, %v5306
    %v5755 = vmul.f32 %v5723, %v5307
    %v5756 = vmul.f32 %v5724, %v5308
    %v5757 = vmul.f32 %v5725, %v5309
    %v5758 = vmul.f32 %v5726, %v5310
    %v5759 = vmul.f32 %v5727, %v5311
    %v5760 = vmul.f32 %v5728, %v5312
    %v5761 = vmul.f32 %v5729, %v5313
    %v5762 = vmul.f32 %v5730, %v5314
    %v5763 = vmul.f32 %v5731, %v5315
    %v5764 = vmul.f32 %v5732, %v5316
    %v5765 = vmul.f32 %v5733, %v5317
    %v5766 = vmul.f32 %v5734, %v5318
    %v5767 = vmul.f32 %v5735, %v5319
    %v5768 = vmul.f32 %v5736, %v5320
    %v5769 = vmul.f32 %v5737, %v5321
    %v5770 = vmul.f32 %v5738, %v5322
    %v5771 = vmul.f32 %v5739, %v5323
    %v5772 = vmul.f32 %v5740, %v5324
    %v5773 = vmul.f32 %v5741, %v5325
    %v5774 = vmul.f32 %v5742, %v5326
    %v5775 = vmul.f32 %v5743, %v5327
    %v5776 = vmul.f32 %v5744, %v5328
    %v5777 = vmul.f32 %v5745, %v5329
    %v5778 = vmul.f32 %v5746, %v5330
    %v5779 = vmul.f32 %v5747, %v5331
    %v5780 = vmul.f32 %v5748, %v5332
    %v5781 = vmul.f32 %v5749, 1.442695
    %v5782 = vpow.pop %v5781
    %v5783 = vmul.f32 %v5750, 1.442695
    %v5784 = vpow.pop %v5783
    %v5785 = vmul.f32 %v5751, 1.442695
    %v5786 = vpow.pop %v5785
    %v5787 = vmul.f32 %v5752, 1.442695
    %v5788 = vpow.pop %v5787
    %v5789 = vmul.f32 %v5753, 1.442695
    %v5790 = vpow.pop %v5789
    %v5791 = vmul.f32 %v5754, 1.442695
    %v5792 = vpow.pop %v5791
    %v5793 = vmul.f32 %v5755, 1.442695
    %v5794 = vpow.pop %v5793
    %v5795 = vmul.f32 %v5756, 1.442695
    %v5796 = vpow.pop %v5795
    %v5797 = vmul.f32 %v5757, 1.442695
    %v5798 = vpow.pop %v5797
    %v5799 = vmul.f32 %v5758, 1.442695
    %v5800 = vpow.pop %v5799
    %v5801 = vmul.f32 %v5759, 1.442695
    %v5802 = vpow.pop %v5801
    %v5803 = vmul.f32 %v5760, 1.442695
    %v5804 = vpow.pop %v5803
    %v5805 = vmul.f32 %v5761, 1.442695
    %v5806 = vpow.pop %v5805
    %v5807 = vmul.f32 %v5762, 1.442695
    %v5808 = vpow.pop %v5807
    %v5809 = vmul.f32 %v5763, 1.442695
    %v5810 = vpow.pop %v5809
    %v5811 = vmul.f32 %v5764, 1.442695
    %v5812 = vpow.pop %v5811
    %v5813 = vmul.f32 %v5765, 1.442695
    %v5814 = vpow.pop %v5813
    %v5815 = vmul.f32 %v5766, 1.442695
    %v5816 = vpow.pop %v5815
    %v5817 = vmul.f32 %v5767, 1.442695
    %v5818 = vpow.pop %v5817
    %v5819 = vmul.f32 %v5768, 1.442695
    %v5820 = vpow.pop %v5819
    %v5821 = vmul.f32 %v5769, 1.442695
    %v5822 = vpow.pop %v5821
    %v5823 = vmul.f32 %v5770, 1.442695
    %v5824 = vpow.pop %v5823
    %v5825 = vmul.f32 %v5771, 1.442695
    %v5826 = vpow.pop %v5825
    %v5827 = vmul.f32 %v5772, 1.442695
    %v5828 = vpow.pop %v5827
    %v5829 = vmul.f32 %v5773, 1.442695
    %v5830 = vpow.pop %v5829
    %v5831 = vmul.f32 %v5774, 1.442695
    %v5832 = vpow.pop %v5831
    %v5833 = vmul.f32 %v5775, 1.442695
    %v5834 = vpow.pop %v5833
    %v5835 = vmul.f32 %v5776, 1.442695
    %v5836 = vpow.pop %v5835
    %v5837 = vmul.f32 %v5777, 1.442695
    %v5838 = vpow.pop %v5837
    %v5839 = vmul.f32 %v5778, 1.442695
    %v5840 = vpow.pop %v5839
    %v5841 = vmul.f32 %v5779, 1.442695
    %v5842 = vpow.pop %v5841
    %v5843 = vmul.f32 %v5780, 1.442695
    %v5844 = vpow.pop %v5843
    %v5845 = vmul.f32 %v5685, %v5782
    %v5846 = vmul.f32 %v5686, %v5784
    %v5847 = vmul.f32 %v5687, %v5786
    %v5848 = vmul.f32 %v5688, %v5788
    %v5849 = vmul.f32 %v5689, %v5790
    %v5850 = vmul.f32 %v5690, %v5792
    %v5851 = vmul.f32 %v5691, %v5794
    %v5852 = vmul.f32 %v5692, %v5796
    %v5853 = vmul.f32 %v5693, %v5798
    %v5854 = vmul.f32 %v5694, %v5800
    %v5855 = vmul.f32 %v5695, %v5802
    %v5856 = vmul.f32 %v5696, %v5804
    %v5857 = vmul.f32 %v5697, %v5806
    %v5858 = vmul.f32 %v5698, %v5808
    %v5859 = vmul.f32 %v5699, %v5810
    %v5860 = vmul.f32 %v5700, %v5812
    %v5861 = vmul.f32 %v5701, %v5814
    %v5862 = vmul.f32 %v5702, %v5816
    %v5863 = vmul.f32 %v5703, %v5818
    %v5864 = vmul.f32 %v5704, %v5820
    %v5865 = vmul.f32 %v5705, %v5822
    %v5866 = vmul.f32 %v5706, %v5824
    %v5867 = vmul.f32 %v5707, %v5826
    %v5868 = vmul.f32 %v5708, %v5828
    %v5869 = vmul.f32 %v5709, %v5830
    %v5870 = vmul.f32 %v5710, %v5832
    %v5871 = vmul.f32 %v5711, %v5834
    %v5872 = vmul.f32 %v5712, %v5836
    %v5873 = vmul.f32 %v5713, %v5838
    %v5874 = vmul.f32 %v5714, %v5840
    %v5875 = vmul.f32 %v5715, %v5842
    %v5876 = vmul.f32 %v5716, %v5844
    %v5877 = vsub.f32 1.0, %v5845
    %v5878 = vsub.f32 1.0, %v5846
    %v5879 = vsub.f32 1.0, %v5847
    %v5880 = vsub.f32 1.0, %v5848
    %v5881 = vsub.f32 1.0, %v5849
    %v5882 = vsub.f32 1.0, %v5850
    %v5883 = vsub.f32 1.0, %v5851
    %v5884 = vsub.f32 1.0, %v5852
    %v5885 = vsub.f32 1.0, %v5853
    %v5886 = vsub.f32 1.0, %v5854
    %v5887 = vsub.f32 1.0, %v5855
    %v5888 = vsub.f32 1.0, %v5856
    %v5889 = vsub.f32 1.0, %v5857
    %v5890 = vsub.f32 1.0, %v5858
    %v5891 = vsub.f32 1.0, %v5859
    %v5892 = vsub.f32 1.0, %v5860
    %v5893 = vsub.f32 1.0, %v5861
    %v5894 = vsub.f32 1.0, %v5862
    %v5895 = vsub.f32 1.0, %v5863
    %v5896 = vsub.f32 1.0, %v5864
    %v5897 = vsub.f32 1.0, %v5865
    %v5898 = vsub.f32 1.0, %v5866
    %v5899 = vsub.f32 1.0, %v5867
    %v5900 = vsub.f32 1.0, %v5868
    %v5901 = vsub.f32 1.0, %v5869
    %v5902 = vsub.f32 1.0, %v5870
    %v5903 = vsub.f32 1.0, %v5871
    %v5904 = vsub.f32 1.0, %v5872
    %v5905 = vsub.f32 1.0, %v5873
    %v5906 = vsub.f32 1.0, %v5874
    %v5907 = vsub.f32 1.0, %v5875
    %v5908 = vsub.f32 1.0, %v5876
    %v5909 = vmul.f32 %v5269, %v5877
    %v5910 = vmul.f32 %v5270, %v5878
    %v5911 = vmul.f32 %v5271, %v5879
    %v5912 = vmul.f32 %v5272, %v5880
    %v5913 = vmul.f32 %v5273, %v5881
    %v5914 = vmul.f32 %v5274, %v5882
    %v5915 = vmul.f32 %v5275, %v5883
    %v5916 = vmul.f32 %v5276, %v5884
    %v5917 = vmul.f32 %v5277, %v5885
    %v5918 = vmul.f32 %v5278, %v5886
    %v5919 = vmul.f32 %v5279, %v5887
    %v5920 = vmul.f32 %v5280, %v5888
    %v5921 = vmul.f32 %v5281, %v5889
    %v5922 = vmul.f32 %v5282, %v5890
    %v5923 = vmul.f32 %v5283, %v5891
    %v5924 = vmul.f32 %v5284, %v5892
    %v5925 = vmul.f32 %v5285, %v5893
    %v5926 = vmul.f32 %v5286, %v5894
    %v5927 = vmul.f32 %v5287, %v5895
    %v5928 = vmul.f32 %v5288, %v5896
    %v5929 = vmul.f32 %v5289, %v5897
    %v5930 = vmul.f32 %v5290, %v5898
    %v5931 = vmul.f32 %v5291, %v5899
    %v5932 = vmul.f32 %v5292, %v5900
    %v5933 = vmul.f32 %v5293, %v5901
    %v5934 = vmul.f32 %v5294, %v5902
    %v5935 = vmul.f32 %v5295, %v5903
    %v5936 = vmul.f32 %v5296, %v5904
    %v5937 = vmul.f32 %v5297, %v5905
    %v5938 = vmul.f32 %v5298, %v5906
    %v5939 = vmul.f32 %v5299, %v5907
    %v5940 = vmul.f32 %v5300, %v5908
    %v5941 = vadd.f32 %v5909, 1.0
    %v5942 = vadd.f32 %v5910, 1.0
    %v5943 = vadd.f32 %v5911, 1.0
    %v5944 = vadd.f32 %v5912, 1.0
    %v5945 = vadd.f32 %v5913, 1.0
    %v5946 = vadd.f32 %v5914, 1.0
    %v5947 = vadd.f32 %v5915, 1.0
    %v5948 = vadd.f32 %v5916, 1.0
    %v5949 = vadd.f32 %v5917, 1.0
    %v5950 = vadd.f32 %v5918, 1.0
    %v5951 = vadd.f32 %v5919, 1.0
    %v5952 = vadd.f32 %v5920, 1.0
    %v5953 = vadd.f32 %v5921, 1.0
    %v5954 = vadd.f32 %v5922, 1.0
    %v5955 = vadd.f32 %v5923, 1.0
    %v5956 = vadd.f32 %v5924, 1.0
    %v5957 = vadd.f32 %v5925, 1.0
    %v5958 = vadd.f32 %v5926, 1.0
    %v5959 = vadd.f32 %v5927, 1.0
    %v5960 = vadd.f32 %v5928, 1.0
    %v5961 = vadd.f32 %v5929, 1.0
    %v5962 = vadd.f32 %v5930, 1.0
    %v5963 = vadd.f32 %v5931, 1.0
    %v5964 = vadd.f32 %v5932, 1.0
    %v5965 = vadd.f32 %v5933, 1.0
    %v5966 = vadd.f32 %v5934, 1.0
    %v5967 = vadd.f32 %v5935, 1.0
    %v5968 = vadd.f32 %v5936, 1.0
    %v5969 = vadd.f32 %v5937, 1.0
    %v5970 = vadd.f32 %v5938, 1.0
    %v5971 = vadd.f32 %v5939, 1.0
    %v5972 = vadd.f32 %v5940, 1.0
    %v5973 = vmul.f32 %v5173, %v5941
    %v5974 = vmul.f32 %v5174, %v5942
    %v5975 = vmul.f32 %v5175, %v5943
    %v5976 = vmul.f32 %v5176, %v5944
    %v5977 = vmul.f32 %v5177, %v5945
    %v5978 = vmul.f32 %v5178, %v5946
    %v5979 = vmul.f32 %v5179, %v5947
    %v5980 = vmul.f32 %v5180, %v5948
    %v5981 = vmul.f32 %v5181, %v5949
    %v5982 = vmul.f32 %v5182, %v5950
    %v5983 = vmul.f32 %v5183, %v5951
    %v5984 = vmul.f32 %v5184, %v5952
    %v5985 = vmul.f32 %v5185, %v5953
    %v5986 = vmul.f32 %v5186, %v5954
    %v5987 = vmul.f32 %v5187, %v5955
    %v5988 = vmul.f32 %v5188, %v5956
    %v5989 = vmul.f32 %v5189, %v5957
    %v5990 = vmul.f32 %v5190, %v5958
    %v5991 = vmul.f32 %v5191, %v5959
    %v5992 = vmul.f32 %v5192, %v5960
    %v5993 = vmul.f32 %v5193, %v5961
    %v5994 = vmul.f32 %v5194, %v5962
    %v5995 = vmul.f32 %v5195, %v5963
    %v5996 = vmul.f32 %v5196, %v5964
    %v5997 = vmul.f32 %v5197, %v5965
    %v5998 = vmul.f32 %v5198, %v5966
    %v5999 = vmul.f32 %v5199, %v5967
    %v6000 = vmul.f32 %v5200, %v5968
    %v6001 = vmul.f32 %v5201, %v5969
    %v6002 = vmul.f32 %v5202, %v5970
    %v6003 = vmul.f32 %v5203, %v5971
    %v6004 = vmul.f32 %v5204, %v5972
    %v6005 = vld [vmem:[%s8] sm:$0x3]
    %v6006 = vpack.c.bf16 %v5975, %v5973
    %v6007 = vpack.c.bf16 %v5976, %v5974
    %v6008 = vpack.c.bf16 %v5979, %v5977
    %v6009 = vpack.c.bf16 %v5980, %v5978
    %v6010 = vpack.c.bf16 %v5983, %v5981
    %v6011 = vpack.c.bf16 %v5984, %v5982
    %v6012 = vpack.c.bf16 %v5987, %v5985
    %v6013 = vpack.c.bf16 %v5988, %v5986
    %v6014 = vpack.c.bf16 %v5991, %v5989
    %v6015 = vpack.c.bf16 %v5992, %v5990
    %v6016 = vpack.c.bf16 %v5995, %v5993
    %v6017 = vpack.c.bf16 %v5996, %v5994
    %v6018 = vpack.c.bf16 %v5999, %v5997
    %v6019 = vpack.c.bf16 %v6000, %v5998
    %v6020 = vpack.c.bf16 %v6003, %v6001
    %v6021 = vpack.c.bf16 %v6004, %v6002
    %v6022 = vld [vmem:[%s9] sm:$0x7]
    %6024 = vset.pattern.permute.xlu0 0
    %6025 = vperm.xlu0 %6024, %v6022
    %v6026 = vpop.permute.xlu0 %6025
    %6028 = vmatprep.subr.bf16.mxu0 %v6007
    %6029 = vmatpush1.bf16.msra.mxu0 %v6006
    %6030 = vmatprep.subr.bf16.mxu0 %v6009
    %6031 = vmatpush1.bf16.msra.mxu0 %v6008
    %6032 = vmatprep.subr.bf16.mxu0 %v6011
    %6033 = vmatpush1.bf16.msra.mxu0 %v6010
    %6034 = vmatprep.subr.bf16.mxu0 %v6013
    %6035 = vmatpush1.bf16.msra.mxu0 %v6012
    %6036 = vmatprep.subr.bf16.mxu0 %v6015
    %6037 = vmatpush1.bf16.msra.mxu0 %v6014
    %6038 = vmatprep.subr.bf16.mxu0 %v6017
    %6039 = vmatpush1.bf16.msra.mxu0 %v6016
    %6040 = vmatprep.subr.bf16.mxu0 %v6019
    %6041 = vmatpush1.bf16.msra.mxu0 %v6018
    %6042 = vmatprep.subr.bf16.mxu0 %v6021
    %6043 = vmatpush1.bf16.msra.mxu0 %v6020
    %6044 = vmatprep.subr.bf16.mxu0 0
    %6045 = vmatpush1.bf16.msra.mxu0 0
    %6046 = vmatprep.subr.bf16.mxu0 0
    %6047 = vmatpush1.bf16.msra.mxu0 0
    %6048 = vmatprep.subr.bf16.mxu0 0
    %6049 = vmatpush1.bf16.msra.mxu0 0
    %6050 = vmatprep.subr.bf16.mxu0 0
    %6051 = vmatpush1.bf16.msra.mxu0 0
    %6052 = vmatprep.subr.bf16.mxu0 0
    %6053 = vmatpush1.bf16.msra.mxu0 0
    %6054 = vmatprep.subr.bf16.mxu0 0
    %6055 = vmatpush1.bf16.msra.mxu0 0
    %6056 = vmatprep.subr.bf16.mxu0 0
    %6057 = vmatpush1.bf16.msra.mxu0 0
    %6058 = vmatprep.subr.bf16.mxu0 0
    %6059 = vmatpush1.bf16.msra.mxu0 0
    %6060 = vmatprep.mubr.bf16.mxu0 0
    %6061 = vmatmul.mubr.bf16.gmra.mrb[0].mxu0 %v6005
    %v6062 = vpop.f32.mrb[0].mxu0
    %v6063 = vadd.f32 %v6026, %v6062
    %v6064 = vpop.f32.mrb[0].mxu0
    %v6065 = vadd.f32 %v6026, %v6064
    %v6066 = vpop.f32.mrb[0].mxu0
    %v6067 = vpop.f32.mrb[0].mxu0
    %6068 = vdwg.mxu0
    %v6071 = vcombine.low %v6063, %v6065
    %s6073 = scalar_lea.vmem %s10, 8
    %6074 = vst [vmem:[%s6073] sm:$0x77] %v6071
    // Predicated region
    $region54: #{tpu_custom_call.1} parent=1 // pred_check
      _
    $region55: #{tpu_custom_call.1} parent=1 // pred_check_branch
      %6076 = sbr.rel (0) target = $region57
    $region56: #{tpu_custom_call.1} parent=1 // pred_region
      _
    $region57: #{tpu_custom_call.1} parent=1 // pred_fallthru
      _
    // Predicated region
    $region58: #{tpu_custom_call.1} parent=1 // pred_check
      _
    $region59: #{tpu_custom_call.1} parent=1 // pred_check_branch
      %6078 = sbr.rel (0) target = $region61
    $region60: #{tpu_custom_call.1} parent=1 // pred_region
      _
    $region61: #{tpu_custom_call.1} parent=1 // pred_fallthru
      _
    %6079 = vsyncpa [#allocation4], 1
    %6080 = vsyncpa [#allocation6], 1

</llo_original>
